<compile_context>
chip_gen: v7x
topology: tpu7x:2x2x1
jax: 0.10.0
libtpu: 0.0.40
codegen_flags: <defaults>
</compile_context>

<pallas_src>
import functools

import jax
import jax.numpy as jnp
import numpy as np
from jax.experimental import pallas as pl
from jax.experimental.pallas import tpu as pltpu

INPUT_SIZE = 512
HIDDEN = 256
NUM_CLASSES = 7
BN_EPS = 1e-5


def _choose_time_block(T, max_tb=32):
    """Pick (time_block, padded_T).  Short sequences run as one grid step with
    no padding; long ones prefer an exact divisor, otherwise pad up to a
    multiple of 16 (avoids the tb=1 per-step-overhead cliff)."""
    if T <= max_tb:
        return T, T
    for cand in (32, 16, 8):
        if T % cand == 0:
            return cand, T
    return 16, ((T + 15) // 16) * 16


def _lstm_cell(gates, c_prev, H):
    i_g = jax.nn.sigmoid(gates[:, 0 * H:1 * H])
    f_g = jax.nn.sigmoid(gates[:, 1 * H:2 * H])
    g_g = jnp.tanh(gates[:, 2 * H:3 * H])
    o_g = jax.nn.sigmoid(gates[:, 3 * H:4 * H])
    c_new = f_g * c_prev + i_g * g_g
    h_new = o_g * jnp.tanh(c_new)
    return h_new, c_new


# ----------------------------------------------------------------------------
# Pallas kernel 1: LSTM layer 0.
# Grid = (direction, time_block).  The direction axis is "parallel" (on v7x
# megacore one direction per TensorCore); the time axis carries the recurrence
# in VMEM scratch.  The backward direction is fed time-reversed gate inputs by
# the wrapper, so both directions are plain forward recurrences here.
# Per step only the small (B,H)x(H,4H) bf16 recurrent matmul + f32 gate math.
# ----------------------------------------------------------------------------
def _lstm_dir_kernel(g_ref, whh_ref, h_out_ref, h_sc, c_sc):
    t = pl.program_id(1)

    @pl.when(t == 0)
    def _():
        h_sc[...] = jnp.zeros_like(h_sc)
        c_sc[...] = jnp.zeros_like(c_sc)

    TB = g_ref.shape[1]
    H = h_sc.shape[-1]
    whh = whh_ref[0]                     # (H, 4H) bf16, hoisted out of the loop

    def step(j, carry):
        h, c = carry
        gates = g_ref[0, j].astype(jnp.float32) + jnp.dot(
            h.astype(jnp.bfloat16), whh, preferred_element_type=jnp.float32)
        h, c = _lstm_cell(gates, c, H)
        h_out_ref[0, j] = h.astype(h_out_ref.dtype)
        return h, c

    h, c = jax.lax.fori_loop(0, TB, step, (h_sc[...], c_sc[...]), unroll=True)
    h_sc[...] = h
    c_sc[...] = c


def bilstm_layer0(g_all, whh_all, *, tb):
    """g_all: (2, Tp, B, 4H) bf16 gate inputs (dir 0 = forward, dir 1 =
    time-reversed backward).  whh_all: (2, H, 4H) bf16 (transposed W_hh).
    Returns (2, Tp, B, H) bf16 hidden states (dir 1 still time-reversed)."""
    _, Tp, B, G = g_all.shape
    H = whh_all.shape[1]
    nt = Tp // tb

    # NOTE: the grid-invariant weight block could use pipeline_mode=
    # pl.Buffered(1) to drop one redundant DMA buffer; total VMEM here (~1 MiB)
    # is far below the limit on every generation, so default buffering is kept.
    return pl.pallas_call(
        _lstm_dir_kernel,
        out_shape=jax.ShapeDtypeStruct((2, Tp, B, H), jnp.bfloat16),
        grid_spec=pltpu.PrefetchScalarGridSpec(
            num_scalar_prefetch=0,
            grid=(2, nt),
            in_specs=[
                pl.BlockSpec((1, tb, B, G), lambda d, t: (d, t, 0, 0)),
                pl.BlockSpec((1, H, G), lambda d, t: (d, 0, 0)),
            ],
            out_specs=pl.BlockSpec((1, tb, B, H), lambda d, t: (d, t, 0, 0)),
            scratch_shapes=[pltpu.VMEM((B, H), jnp.float32),
                            pltpu.VMEM((B, H), jnp.float32)],
        ),
        compiler_params=pltpu.CompilerParams(
            dimension_semantics=("parallel", "arbitrary")),
    )(g_all, whh_all)


# ----------------------------------------------------------------------------
# Pallas kernel 2: layer-1 forward recurrence (final hidden only) + single-step
# layer-1 backward cell + fused BN(eval)/Linear/softmax head.
# ----------------------------------------------------------------------------
def _layer1_head_kernel(g1f_ref, whh_ref, g1b_ref, wf_ref, wb_ref, beff_ref,
                        out_ref, h_sc, c_sc, *, t_real):
    i = pl.program_id(0)
    nt = pl.num_programs(0)

    @pl.when(i == 0)
    def _():
        h_sc[...] = jnp.zeros_like(h_sc)
        c_sc[...] = jnp.zeros_like(c_sc)

    TB = g1f_ref.shape[0]
    H = h_sc.shape[-1]
    whh = whh_ref[...]                   # (H, 4H) bf16, hoisted out of the loop

    def step(j, carry):
        h, c = carry
        gates = g1f_ref[j].astype(jnp.float32) + jnp.dot(
            h.astype(jnp.bfloat16), whh, preferred_element_type=jnp.float32)
        h_new, c_new = _lstm_cell(gates, c, H)
        if t_real is None:               # no time padding -> no masking needed
            return h_new, c_new
        valid = (i * TB + j) < t_real    # freeze the carry on padded steps
        return jnp.where(valid, h_new, h), jnp.where(valid, c_new, c)

    h, c = jax.lax.fori_loop(0, TB, step, (h_sc[...], c_sc[...]), unroll=True)
    h_sc[...] = h
    c_sc[...] = c

    @pl.when(i == nt - 1)
    def _():
        # Single-step backward LSTM from the zero state: for out[-1] the
        # backward direction has only processed x[T-1] (h_prev = c_prev = 0),
        # so the full backward recurrence is unnecessary.
        gb = g1b_ref[...]
        i_b = jax.nn.sigmoid(gb[:, 0 * H:1 * H])
        g_b = jnp.tanh(gb[:, 2 * H:3 * H])
        o_b = jax.nn.sigmoid(gb[:, 3 * H:4 * H])
        hb = o_b * jnp.tanh(i_b * g_b)

        # BN (eval) is already folded into the linear weights/bias; the 512-wide
        # concat is avoided by splitting the weight into fwd/bwd halves.
        logits = (jnp.dot(h, wf_ref[...], preferred_element_type=jnp.float32)
                  + jnp.dot(hb, wb_ref[...], preferred_element_type=jnp.float32)
                  + beff_ref[...]) * 0.1
        m = jnp.max(logits, axis=-1, keepdims=True)
        e = jnp.exp(logits - m)
        out_ref[...] = e / jnp.sum(e, axis=-1, keepdims=True)


def lstm_layer1_head(g1f, whh_t, g1b_last, w_eff_f, w_eff_b, b_eff, *, tb,
                     t_real):
    Tp, B, G = g1f.shape
    H = whh_t.shape[0]
    nt = Tp // tb
    nc = w_eff_f.shape[1]

    kernel = functools.partial(_layer1_head_kernel, t_real=t_real)
    return pl.pallas_call(
        kernel,
        out_shape=jax.ShapeDtypeStruct((B, nc), jnp.float32),
        grid_spec=pltpu.PrefetchScalarGridSpec(
            num_scalar_prefetch=0,
            grid=(nt,),
            in_specs=[
                pl.BlockSpec((tb, B, G), lambda i: (i, 0, 0)),
                pl.BlockSpec((H, G), lambda i: (0, 0)),
                pl.BlockSpec((B, G), lambda i: (0, 0)),
                pl.BlockSpec((H, nc), lambda i: (0, 0)),
                pl.BlockSpec((H, nc), lambda i: (0, 0)),
                pl.BlockSpec((1, nc), lambda i: (0, 0)),
            ],
            out_specs=pl.BlockSpec((B, nc), lambda i: (0, 0)),
            scratch_shapes=[pltpu.VMEM((B, H), jnp.float32),
                            pltpu.VMEM((B, H), jnp.float32)],
        ),
        compiler_params=pltpu.CompilerParams(
            dimension_semantics=("arbitrary",)),
    )(g1f, whh_t, g1b_last, w_eff_f, w_eff_b, b_eff)


# ----------------------------------------------------------------------------
# Full forward pass
# ----------------------------------------------------------------------------
@jax.jit
def rate_predictor_forward(x, params):
    x = x.astype(jnp.float32)                       # (B, 512, T)  (PyTorch NCL)
    B = x.shape[0]
    T = x.shape[2]
    tb, Tp = _choose_time_block(T)

    # ---- Layer-0 input projections (both directions), fused with the
    #      NCL -> (T, B, ...) relayout: one large matmul each over T*B rows ----
    w0f, wh0f, bi0f, bh0f = params["l0_fwd"]
    w0b, wh0b, bi0b, bh0b = params["l0_bwd"]
    g0f = jnp.einsum('bct,gc->tbg', x, w0f) + (bi0f + bh0f)       # (T, B, 4H)
    g0b = jnp.einsum('bct,gc->tbg', x, w0b) + (bi0b + bh0b)       # (T, B, 4H)

    # Stack [forward, time-reversed backward] on a leading direction axis so a
    # single plain-forward kernel serves both directions; store bf16 in HBM.
    g_all = jnp.stack([g0f, g0b[::-1]], axis=0).astype(jnp.bfloat16)
    if Tp != T:
        g_all = jnp.pad(g_all, ((0, 0), (0, Tp - T), (0, 0), (0, 0)))
    whh_all = jnp.stack([wh0f.T, wh0b.T], axis=0).astype(jnp.bfloat16)

    # ---- LSTM layer 0 (Pallas, direction-parallel grid) ----
    h0 = bilstm_layer0(g_all, whh_all, tb=tb)                     # (2, Tp, B, H)
    hf0 = h0[0, :T]                        # (T, B, H) bf16, forward direction
    hb0 = h0[1, :T][::-1]                  # (T, B, H) bf16, original time order

    # (dropout between layers is identity in eval mode)

    # ---- Layer-1 input projections (no (T, B, 512) concat materialized) ----
    w1f, wh1f, bi1f, bh1f = params["l1_fwd"]
    w1b, wh1b, bi1b, bh1b = params["l1_bwd"]
    g1f = (jnp.einsum('tbh,gh->tbg', hf0, w1f[:, :HIDDEN].astype(jnp.bfloat16),
                      preferred_element_type=jnp.float32)
           + jnp.einsum('tbh,gh->tbg', hb0, w1f[:, HIDDEN:].astype(jnp.bfloat16),
                        preferred_element_type=jnp.float32)
           + (bi1f + bh1f)).astype(jnp.bfloat16)                  # (T, B, 4H)
    if Tp != T:
        g1f = jnp.pad(g1f, ((0, Tp - T), (0, 0), (0, 0)))

    # Backward layer-1 gate input, only for the last timestep (single step).
    g1b_last = (hf0[-1].astype(jnp.float32) @ w1b[:, :HIDDEN].T
                + hb0[-1].astype(jnp.float32) @ w1b[:, HIDDEN:].T
                + (bi1b + bh1b))                                  # (B, 4H) f32

    # ---- Fold BatchNorm1d (eval) into the Linear layer ----
    inv_std = jax.lax.rsqrt(params["bn_var"] + BN_EPS)
    scale = params["bn_gamma"] * inv_std                          # (512,)
    shift = params["bn_beta"] - params["bn_mean"] * scale         # (512,)
    w_eff = scale[:, None] * params["lin_w"].T                    # (512, 7)
    b_eff = shift @ params["lin_w"].T + params["lin_b"]           # (7,)

    # ---- Layer-1 forward recurrence + single-step backward + head (Pallas) ----
    return lstm_layer1_head(g1f, wh1f.astype(jnp.bfloat16).T, g1b_last,
                            w_eff[:HIDDEN], w_eff[HIDDEN:],
                            b_eff.reshape(1, -1), tb=tb,
                            t_real=None if Tp == T else T)


# ----------------------------------------------------------------------------
# Deterministic parameter init (matches PyTorch shapes; values are synthetic)
# ----------------------------------------------------------------------------
def init_params(key):
    k = 1.0 / np.sqrt(HIDDEN)

    def lstm_dir_params(key, d_in):
        ks = jax.random.split(key, 4)
        w_ih = jax.random.uniform(ks[0], (4 * HIDDEN, d_in), jnp.float32, -k, k)
        w_hh = jax.random.uniform(ks[1], (4 * HIDDEN, HIDDEN), jnp.float32, -k, k)
        b_ih = jax.random.uniform(ks[2], (4 * HIDDEN,), jnp.float32, -k, k)
        b_hh = jax.random.uniform(ks[3], (4 * HIDDEN,), jnp.float32, -k, k)
        return (w_ih, w_hh, b_ih, b_hh)

    keys = jax.random.split(key, 8)
    return {
        "l0_fwd": lstm_dir_params(keys[0], INPUT_SIZE),
        "l0_bwd": lstm_dir_params(keys[1], INPUT_SIZE),
        "l1_fwd": lstm_dir_params(keys[2], 2 * HIDDEN),
        "l1_bwd": lstm_dir_params(keys[3], 2 * HIDDEN),
        "bn_gamma": 1.0 + 0.1 * jax.random.normal(keys[4], (2 * HIDDEN,), jnp.float32),
        "bn_beta": 0.1 * jax.random.normal(keys[5], (2 * HIDDEN,), jnp.float32),
        "bn_mean": 0.05 * jax.random.normal(keys[6], (2 * HIDDEN,), jnp.float32),
        "bn_var": jnp.ones((2 * HIDDEN,), jnp.float32),
        "lin_w": jax.random.uniform(keys[7], (NUM_CLASSES, 2 * HIDDEN),
                                    jnp.float32, -1.0 / np.sqrt(2 * HIDDEN),
                                    1.0 / np.sqrt(2 * HIDDEN)),
        "lin_b": jnp.zeros((NUM_CLASSES,), jnp.float32),
    }


# ----------------------------------------------------------------------------
# Pure-JAX reference (sanity check of the Pallas kernels)
# ----------------------------------------------------------------------------
def _lstm_dir_ref(x, w_ih, w_hh, b_ih, b_hh, reverse):
    T, B, _ = x.shape
    H = w_hh.shape[1]

    def step(carry, x_t):
        h, c = carry
        gates = x_t @ w_ih.T + h @ w_hh.T + b_ih + b_hh
        i = jax.nn.sigmoid(gates[:, 0 * H:1 * H])
        f = jax.nn.sigmoid(gates[:, 1 * H:2 * H])
        g = jnp.tanh(gates[:, 2 * H:3 * H])
        o = jax.nn.sigmoid(gates[:, 3 * H:4 * H])
        c = f * c + i * g
        h = o * jnp.tanh(c)
        return (h, c), h

    xs = x[::-1] if reverse else x
    init = (jnp.zeros((B, H), jnp.float32), jnp.zeros((B, H), jnp.float32))
    _, hs = jax.lax.scan(step, init, xs)
    return hs[::-1] if reverse else hs


def rate_predictor_ref(x, p):
    x_tbd = jnp.transpose(x, (2, 0, 1)).astype(jnp.float32)
    h0 = jnp.concatenate([_lstm_dir_ref(x_tbd, *p["l0_fwd"], False),
                          _lstm_dir_ref(x_tbd, *p["l0_bwd"], True)], axis=-1)
    last = jnp.concatenate([_lstm_dir_ref(h0, *p["l1_fwd"], False)[-1],
                            _lstm_dir_ref(h0, *p["l1_bwd"], True)[-1]], axis=-1)
    y = ((last - p["bn_mean"]) * jax.lax.rsqrt(p["bn_var"] + BN_EPS)
         * p["bn_gamma"] + p["bn_beta"])
    logits = (y @ p["lin_w"].T + p["lin_b"]) / 10.0
    return jax.nn.softmax(logits, axis=-1)


if __name__ == "__main__":
    key = jax.random.PRNGKey(0)
    k_params, k_x = jax.random.split(key)

    B, T = 2, 8
    x = jax.random.normal(k_x, (B, INPUT_SIZE, T), jnp.float32)   # (N, C=512, L)
    params = init_params(k_params)

    out = rate_predictor_forward(x, params)
    out = jax.block_until_ready(out)

    assert out.shape == (B, NUM_CLASSES)
    ref = jax.block_until_ready(rate_predictor_ref(x, params))
    np.testing.assert_allclose(np.asarray(jnp.sum(out, axis=-1)),
                               np.ones((B,)), rtol=1e-5, atol=1e-5)
    # bf16 MXU operands / bf16 activation storage introduce small drift vs the
    # f32 reference; well inside this tolerance after the /10 + softmax head.
    np.testing.assert_allclose(np.asarray(out), np.asarray(ref),
                               rtol=5e-3, atol=5e-3)

    print("KERNEL_OK")
</pallas_src>

<mosaic_0001>
module attributes {stable_mosaic.version = 11 : i64} {
  func.func @_lstm_dir_kernel(%arg0: i32, %arg1: i32, %arg2: memref<1x8x2x1024xbf16, #tpu.memory_space<vmem>>, %arg3: memref<1x256x1024xbf16, #tpu.memory_space<vmem>>, %arg4: memref<1x8x2x256xbf16, #tpu.memory_space<vmem>>, %arg5: memref<2x256xf32, #tpu.memory_space<vmem>>, %arg6: memref<2x256xf32, #tpu.memory_space<vmem>>) attributes {dimension_semantics = [#tpu.dimension_semantics<parallel>, #tpu.dimension_semantics<arbitrary>], iteration_bounds = array<i64: 2, 1>, scalar_prefetch = 0 : i64, scratch_operands = 2 : i64, tpu.core_type = #tpu.core_type<tc>, window_params = [{transform_indices = @transform_0, window_bounds = array<i64: 1, 8, 2, 1024>}, {transform_indices = @transform_1, window_bounds = array<i64: 1, 256, 1024>}, {transform_indices = @transform_2, window_bounds = array<i64: 1, 8, 2, 256>}]} {
    %c0_i32 = arith.constant 0 : i32
    %0 = arith.cmpi eq, %arg1, %c0_i32 : i32
    %1 = arith.extui %0 : i1 to i32
    %c0_i32_0 = arith.constant 0 : i32
    %2 = arith.cmpi ne, %1, %c0_i32_0 : i32
    scf.if %2 {
      %cst_91 = arith.constant 0.000000e+00 : f32
      %305 = vector.broadcast %cst_91 : f32 to vector<2x256xf32>
      %c0_92 = arith.constant 0 : index
      %c0_93 = arith.constant 0 : index
      %306 = vector.load %arg5[%c0_92, %c0_93] : memref<2x256xf32, #tpu.memory_space<vmem>>, vector<2x256xf32>
      tpu.vector_store %arg5[%c0_92, %c0_93], %305 {strides = array<i32>} : memref<2x256xf32, #tpu.memory_space<vmem>>, vector<2x256xf32>,
      %cst_94 = arith.constant 0.000000e+00 : f32
      %307 = vector.broadcast %cst_94 : f32 to vector<2x256xf32>
      %c0_95 = arith.constant 0 : index
      %c0_96 = arith.constant 0 : index
      %308 = vector.load %arg6[%c0_95, %c0_96] : memref<2x256xf32, #tpu.memory_space<vmem>>, vector<2x256xf32>
      tpu.vector_store %arg6[%c0_95, %c0_96], %307 {strides = array<i32>} : memref<2x256xf32, #tpu.memory_space<vmem>>, vector<2x256xf32>,
    } else {
    }
    %c0 = arith.constant 0 : index
    %c0_1 = arith.constant 0 : index
    %c0_2 = arith.constant 0 : index
    %3 = vector.load %arg3[%c0, %c0_1, %c0_2] : memref<1x256x1024xbf16, #tpu.memory_space<vmem>>, vector<1x256x1024xbf16>
    %4 = vector.shape_cast %3 : vector<1x256x1024xbf16> to vector<256x1024xbf16>
    %c0_3 = arith.constant 0 : index
    %c0_4 = arith.constant 0 : index
    %5 = vector.load %arg5[%c0_3, %c0_4] : memref<2x256xf32, #tpu.memory_space<vmem>>, vector<2x256xf32>
    %c0_5 = arith.constant 0 : index
    %c0_6 = arith.constant 0 : index
    %6 = vector.load %arg6[%c0_5, %c0_6] : memref<2x256xf32, #tpu.memory_space<vmem>>, vector<2x256xf32>
    %c0_i32_7 = arith.constant 0 : i32
    %c0_8 = arith.constant 0 : index
    %7 = arith.index_cast %c0_i32_7 : i32 to index
    %c0_9 = arith.constant 0 : index
    %c0_10 = arith.constant 0 : index
    %8 = vector.load %arg2[%c0_8, %7, %c0_9, %c0_10] : memref<1x8x2x1024xbf16, #tpu.memory_space<vmem>>, vector<1x1x2x1024xbf16>
    %9 = vector.shape_cast %8 : vector<1x1x2x1024xbf16> to vector<2x1024xbf16>
    %10 = arith.extf %9 : vector<2x1024xbf16> to vector<2x1024xf32>
    %11 = arith.truncf %5 : vector<2x256xf32> to vector<2x256xbf16>
    %cst = arith.constant dense<0.000000e+00> : vector<2x1024xf32>
    %12 = tpu.matmul %11, %4, %cst {dimension_numbers = #tpu.dot_dimension_numbers<[1], [0], [0], [1], [0, 0, 1, 1], [], []>} : vector<2x256xbf16>, vector<256x1024xbf16>, vector<2x1024xf32> -> vector<2x1024xf32>
    %13 = arith.addf %10, %12 : vector<2x1024xf32>
    %14 = vector.extract_strided_slice %13 {offsets = [0, 0], sizes = [2, 256], strides = [1, 1]} : vector<2x1024xf32> to vector<2x256xf32>
    %15 = arith.negf %14 : vector<2x256xf32>
    %16 = math.exp %15 : vector<2x256xf32>
    %cst_11 = arith.constant 1.000000e+00 : f32
    %17 = vector.broadcast %cst_11 : f32 to vector<2x256xf32>
    %18 = arith.addf %17, %16 : vector<2x256xf32>
    %19 = arith.divf %17, %18 : vector<2x256xf32>
    %20 = vector.extract_strided_slice %13 {offsets = [0, 256], sizes = [2, 256], strides = [1, 1]} : vector<2x1024xf32> to vector<2x256xf32>
    %21 = arith.negf %20 : vector<2x256xf32>
    %22 = math.exp %21 : vector<2x256xf32>
    %cst_12 = arith.constant 1.000000e+00 : f32
    %23 = vector.broadcast %cst_12 : f32 to vector<2x256xf32>
    %24 = arith.addf %23, %22 : vector<2x256xf32>
    %25 = arith.divf %23, %24 : vector<2x256xf32>
    %26 = vector.extract_strided_slice %13 {offsets = [0, 512], sizes = [2, 256], strides = [1, 1]} : vector<2x1024xf32> to vector<2x256xf32>
    %27 = math.tanh %26 : vector<2x256xf32>
    %28 = vector.extract_strided_slice %13 {offsets = [0, 768], sizes = [2, 256], strides = [1, 1]} : vector<2x1024xf32> to vector<2x256xf32>
    %29 = arith.negf %28 : vector<2x256xf32>
    %30 = math.exp %29 : vector<2x256xf32>
    %cst_13 = arith.constant 1.000000e+00 : f32
    %31 = vector.broadcast %cst_13 : f32 to vector<2x256xf32>
    %32 = arith.addf %31, %30 : vector<2x256xf32>
    %33 = arith.divf %31, %32 : vector<2x256xf32>
    %34 = arith.mulf %25, %6 : vector<2x256xf32>
    %35 = arith.mulf %19, %27 : vector<2x256xf32>
    %36 = arith.addf %34, %35 : vector<2x256xf32>
    %37 = math.tanh %36 : vector<2x256xf32>
    %38 = arith.mulf %33, %37 : vector<2x256xf32>
    %39 = arith.truncf %38 : vector<2x256xf32> to vector<2x256xbf16>
    %c0_14 = arith.constant 0 : index
    %40 = arith.index_cast %c0_i32_7 : i32 to index
    %c0_15 = arith.constant 0 : index
    %c0_16 = arith.constant 0 : index
    %41 = vector.load %arg4[%c0_14, %40, %c0_15, %c0_16] : memref<1x8x2x256xbf16, #tpu.memory_space<vmem>>, vector<1x1x2x256xbf16>
    %42 = vector.shape_cast %41 : vector<1x1x2x256xbf16> to vector<2x256xbf16>
    %43 = vector.shape_cast %39 : vector<2x256xbf16> to vector<1x1x2x256xbf16>
    tpu.vector_store %arg4[%c0_14, %40, %c0_15, %c0_16], %43 {strides = array<i32>} : memref<1x8x2x256xbf16, #tpu.memory_space<vmem>>, vector<1x1x2x256xbf16>,
    %c1_i32 = arith.constant 1 : i32
    %c0_17 = arith.constant 0 : index
    %44 = arith.index_cast %c1_i32 : i32 to index
    %c0_18 = arith.constant 0 : index
    %c0_19 = arith.constant 0 : index
    %45 = vector.load %arg2[%c0_17, %44, %c0_18, %c0_19] : memref<1x8x2x1024xbf16, #tpu.memory_space<vmem>>, vector<1x1x2x1024xbf16>
    %46 = vector.shape_cast %45 : vector<1x1x2x1024xbf16> to vector<2x1024xbf16>
    %47 = arith.extf %46 : vector<2x1024xbf16> to vector<2x1024xf32>
    %48 = arith.truncf %38 : vector<2x256xf32> to vector<2x256xbf16>
    %cst_20 = arith.constant dense<0.000000e+00> : vector<2x1024xf32>
    %49 = tpu.matmul %48, %4, %cst_20 {dimension_numbers = #tpu.dot_dimension_numbers<[1], [0], [0], [1], [0, 0, 1, 1], [], []>} : vector<2x256xbf16>, vector<256x1024xbf16>, vector<2x1024xf32> -> vector<2x1024xf32>
    %50 = arith.addf %47, %49 : vector<2x1024xf32>
    %51 = vector.extract_strided_slice %50 {offsets = [0, 0], sizes = [2, 256], strides = [1, 1]} : vector<2x1024xf32> to vector<2x256xf32>
    %52 = arith.negf %51 : vector<2x256xf32>
    %53 = math.exp %52 : vector<2x256xf32>
    %cst_21 = arith.constant 1.000000e+00 : f32
    %54 = vector.broadcast %cst_21 : f32 to vector<2x256xf32>
    %55 = arith.addf %54, %53 : vector<2x256xf32>
    %56 = arith.divf %54, %55 : vector<2x256xf32>
    %57 = vector.extract_strided_slice %50 {offsets = [0, 256], sizes = [2, 256], strides = [1, 1]} : vector<2x1024xf32> to vector<2x256xf32>
    %58 = arith.negf %57 : vector<2x256xf32>
    %59 = math.exp %58 : vector<2x256xf32>
    %cst_22 = arith.constant 1.000000e+00 : f32
    %60 = vector.broadcast %cst_22 : f32 to vector<2x256xf32>
    %61 = arith.addf %60, %59 : vector<2x256xf32>
    %62 = arith.divf %60, %61 : vector<2x256xf32>
    %63 = vector.extract_strided_slice %50 {offsets = [0, 512], sizes = [2, 256], strides = [1, 1]} : vector<2x1024xf32> to vector<2x256xf32>
    %64 = math.tanh %63 : vector<2x256xf32>
    %65 = vector.extract_strided_slice %50 {offsets = [0, 768], sizes = [2, 256], strides = [1, 1]} : vector<2x1024xf32> to vector<2x256xf32>
    %66 = arith.negf %65 : vector<2x256xf32>
    %67 = math.exp %66 : vector<2x256xf32>
    %cst_23 = arith.constant 1.000000e+00 : f32
    %68 = vector.broadcast %cst_23 : f32 to vector<2x256xf32>
    %69 = arith.addf %68, %67 : vector<2x256xf32>
    %70 = arith.divf %68, %69 : vector<2x256xf32>
    %71 = arith.mulf %62, %36 : vector<2x256xf32>
    %72 = arith.mulf %56, %64 : vector<2x256xf32>
    %73 = arith.addf %71, %72 : vector<2x256xf32>
    %74 = math.tanh %73 : vector<2x256xf32>
    %75 = arith.mulf %70, %74 : vector<2x256xf32>
    %76 = arith.truncf %75 : vector<2x256xf32> to vector<2x256xbf16>
    %c0_24 = arith.constant 0 : index
    %77 = arith.index_cast %c1_i32 : i32 to index
    %c0_25 = arith.constant 0 : index
    %c0_26 = arith.constant 0 : index
    %78 = vector.load %arg4[%c0_24, %77, %c0_25, %c0_26] : memref<1x8x2x256xbf16, #tpu.memory_space<vmem>>, vector<1x1x2x256xbf16>
    %79 = vector.shape_cast %78 : vector<1x1x2x256xbf16> to vector<2x256xbf16>
    %80 = vector.shape_cast %76 : vector<2x256xbf16> to vector<1x1x2x256xbf16>
    tpu.vector_store %arg4[%c0_24, %77, %c0_25, %c0_26], %80 {strides = array<i32>} : memref<1x8x2x256xbf16, #tpu.memory_space<vmem>>, vector<1x1x2x256xbf16>,
    %c2_i32 = arith.constant 2 : i32
    %c0_27 = arith.constant 0 : index
    %81 = arith.index_cast %c2_i32 : i32 to index
    %c0_28 = arith.constant 0 : index
    %c0_29 = arith.constant 0 : index
    %82 = vector.load %arg2[%c0_27, %81, %c0_28, %c0_29] : memref<1x8x2x1024xbf16, #tpu.memory_space<vmem>>, vector<1x1x2x1024xbf16>
    %83 = vector.shape_cast %82 : vector<1x1x2x1024xbf16> to vector<2x1024xbf16>
    %84 = arith.extf %83 : vector<2x1024xbf16> to vector<2x1024xf32>
    %85 = arith.truncf %75 : vector<2x256xf32> to vector<2x256xbf16>
    %cst_30 = arith.constant dense<0.000000e+00> : vector<2x1024xf32>
    %86 = tpu.matmul %85, %4, %cst_30 {dimension_numbers = #tpu.dot_dimension_numbers<[1], [0], [0], [1], [0, 0, 1, 1], [], []>} : vector<2x256xbf16>, vector<256x1024xbf16>, vector<2x1024xf32> -> vector<2x1024xf32>
    %87 = arith.addf %84, %86 : vector<2x1024xf32>
    %88 = vector.extract_strided_slice %87 {offsets = [0, 0], sizes = [2, 256], strides = [1, 1]} : vector<2x1024xf32> to vector<2x256xf32>
    %89 = arith.negf %88 : vector<2x256xf32>
    %90 = math.exp %89 : vector<2x256xf32>
    %cst_31 = arith.constant 1.000000e+00 : f32
    %91 = vector.broadcast %cst_31 : f32 to vector<2x256xf32>
    %92 = arith.addf %91, %90 : vector<2x256xf32>
    %93 = arith.divf %91, %92 : vector<2x256xf32>
    %94 = vector.extract_strided_slice %87 {offsets = [0, 256], sizes = [2, 256], strides = [1, 1]} : vector<2x1024xf32> to vector<2x256xf32>
    %95 = arith.negf %94 : vector<2x256xf32>
    %96 = math.exp %95 : vector<2x256xf32>
    %cst_32 = arith.constant 1.000000e+00 : f32
    %97 = vector.broadcast %cst_32 : f32 to vector<2x256xf32>
    %98 = arith.addf %97, %96 : vector<2x256xf32>
    %99 = arith.divf %97, %98 : vector<2x256xf32>
    %100 = vector.extract_strided_slice %87 {offsets = [0, 512], sizes = [2, 256], strides = [1, 1]} : vector<2x1024xf32> to vector<2x256xf32>
    %101 = math.tanh %100 : vector<2x256xf32>
    %102 = vector.extract_strided_slice %87 {offsets = [0, 768], sizes = [2, 256], strides = [1, 1]} : vector<2x1024xf32> to vector<2x256xf32>
    %103 = arith.negf %102 : vector<2x256xf32>
    %104 = math.exp %103 : vector<2x256xf32>
    %cst_33 = arith.constant 1.000000e+00 : f32
    %105 = vector.broadcast %cst_33 : f32 to vector<2x256xf32>
    %106 = arith.addf %105, %104 : vector<2x256xf32>
    %107 = arith.divf %105, %106 : vector<2x256xf32>
    %108 = arith.mulf %99, %73 : vector<2x256xf32>
    %109 = arith.mulf %93, %101 : vector<2x256xf32>
    %110 = arith.addf %108, %109 : vector<2x256xf32>
    %111 = math.tanh %110 : vector<2x256xf32>
    %112 = arith.mulf %107, %111 : vector<2x256xf32>
    %113 = arith.truncf %112 : vector<2x256xf32> to vector<2x256xbf16>
    %c0_34 = arith.constant 0 : index
    %114 = arith.index_cast %c2_i32 : i32 to index
    %c0_35 = arith.constant 0 : index
    %c0_36 = arith.constant 0 : index
    %115 = vector.load %arg4[%c0_34, %114, %c0_35, %c0_36] : memref<1x8x2x256xbf16, #tpu.memory_space<vmem>>, vector<1x1x2x256xbf16>
    %116 = vector.shape_cast %115 : vector<1x1x2x256xbf16> to vector<2x256xbf16>
    %117 = vector.shape_cast %113 : vector<2x256xbf16> to vector<1x1x2x256xbf16>
    tpu.vector_store %arg4[%c0_34, %114, %c0_35, %c0_36], %117 {strides = array<i32>} : memref<1x8x2x256xbf16, #tpu.memory_space<vmem>>, vector<1x1x2x256xbf16>,
    %c3_i32 = arith.constant 3 : i32
    %c0_37 = arith.constant 0 : index
    %118 = arith.index_cast %c3_i32 : i32 to index
    %c0_38 = arith.constant 0 : index
    %c0_39 = arith.constant 0 : index
    %119 = vector.load %arg2[%c0_37, %118, %c0_38, %c0_39] : memref<1x8x2x1024xbf16, #tpu.memory_space<vmem>>, vector<1x1x2x1024xbf16>
    %120 = vector.shape_cast %119 : vector<1x1x2x1024xbf16> to vector<2x1024xbf16>
    %121 = arith.extf %120 : vector<2x1024xbf16> to vector<2x1024xf32>
    %122 = arith.truncf %112 : vector<2x256xf32> to vector<2x256xbf16>
    %cst_40 = arith.constant dense<0.000000e+00> : vector<2x1024xf32>
    %123 = tpu.matmul %122, %4, %cst_40 {dimension_numbers = #tpu.dot_dimension_numbers<[1], [0], [0], [1], [0, 0, 1, 1], [], []>} : vector<2x256xbf16>, vector<256x1024xbf16>, vector<2x1024xf32> -> vector<2x1024xf32>
    %124 = arith.addf %121, %123 : vector<2x1024xf32>
    %125 = vector.extract_strided_slice %124 {offsets = [0, 0], sizes = [2, 256], strides = [1, 1]} : vector<2x1024xf32> to vector<2x256xf32>
    %126 = arith.negf %125 : vector<2x256xf32>
    %127 = math.exp %126 : vector<2x256xf32>
    %cst_41 = arith.constant 1.000000e+00 : f32
    %128 = vector.broadcast %cst_41 : f32 to vector<2x256xf32>
    %129 = arith.addf %128, %127 : vector<2x256xf32>
    %130 = arith.divf %128, %129 : vector<2x256xf32>
    %131 = vector.extract_strided_slice %124 {offsets = [0, 256], sizes = [2, 256], strides = [1, 1]} : vector<2x1024xf32> to vector<2x256xf32>
    %132 = arith.negf %131 : vector<2x256xf32>
    %133 = math.exp %132 : vector<2x256xf32>
    %cst_42 = arith.constant 1.000000e+00 : f32
    %134 = vector.broadcast %cst_42 : f32 to vector<2x256xf32>
    %135 = arith.addf %134, %133 : vector<2x256xf32>
    %136 = arith.divf %134, %135 : vector<2x256xf32>
    %137 = vector.extract_strided_slice %124 {offsets = [0, 512], sizes = [2, 256], strides = [1, 1]} : vector<2x1024xf32> to vector<2x256xf32>
    %138 = math.tanh %137 : vector<2x256xf32>
    %139 = vector.extract_strided_slice %124 {offsets = [0, 768], sizes = [2, 256], strides = [1, 1]} : vector<2x1024xf32> to vector<2x256xf32>
    %140 = arith.negf %139 : vector<2x256xf32>
    %141 = math.exp %140 : vector<2x256xf32>
    %cst_43 = arith.constant 1.000000e+00 : f32
    %142 = vector.broadcast %cst_43 : f32 to vector<2x256xf32>
    %143 = arith.addf %142, %141 : vector<2x256xf32>
    %144 = arith.divf %142, %143 : vector<2x256xf32>
    %145 = arith.mulf %136, %110 : vector<2x256xf32>
    %146 = arith.mulf %130, %138 : vector<2x256xf32>
    %147 = arith.addf %145, %146 : vector<2x256xf32>
    %148 = math.tanh %147 : vector<2x256xf32>
    %149 = arith.mulf %144, %148 : vector<2x256xf32>
    %150 = arith.truncf %149 : vector<2x256xf32> to vector<2x256xbf16>
    %c0_44 = arith.constant 0 : index
    %151 = arith.index_cast %c3_i32 : i32 to index
    %c0_45 = arith.constant 0 : index
    %c0_46 = arith.constant 0 : index
    %152 = vector.load %arg4[%c0_44, %151, %c0_45, %c0_46] : memref<1x8x2x256xbf16, #tpu.memory_space<vmem>>, vector<1x1x2x256xbf16>
    %153 = vector.shape_cast %152 : vector<1x1x2x256xbf16> to vector<2x256xbf16>
    %154 = vector.shape_cast %150 : vector<2x256xbf16> to vector<1x1x2x256xbf16>
    tpu.vector_store %arg4[%c0_44, %151, %c0_45, %c0_46], %154 {strides = array<i32>} : memref<1x8x2x256xbf16, #tpu.memory_space<vmem>>, vector<1x1x2x256xbf16>,
    %c4_i32 = arith.constant 4 : i32
    %c0_47 = arith.constant 0 : index
    %155 = arith.index_cast %c4_i32 : i32 to index
    %c0_48 = arith.constant 0 : index
    %c0_49 = arith.constant 0 : index
    %156 = vector.load %arg2[%c0_47, %155, %c0_48, %c0_49] : memref<1x8x2x1024xbf16, #tpu.memory_space<vmem>>, vector<1x1x2x1024xbf16>
    %157 = vector.shape_cast %156 : vector<1x1x2x1024xbf16> to vector<2x1024xbf16>
    %158 = arith.extf %157 : vector<2x1024xbf16> to vector<2x1024xf32>
    %159 = arith.truncf %149 : vector<2x256xf32> to vector<2x256xbf16>
    %cst_50 = arith.constant dense<0.000000e+00> : vector<2x1024xf32>
    %160 = tpu.matmul %159, %4, %cst_50 {dimension_numbers = #tpu.dot_dimension_numbers<[1], [0], [0], [1], [0, 0, 1, 1], [], []>} : vector<2x256xbf16>, vector<256x1024xbf16>, vector<2x1024xf32> -> vector<2x1024xf32>
    %161 = arith.addf %158, %160 : vector<2x1024xf32>
    %162 = vector.extract_strided_slice %161 {offsets = [0, 0], sizes = [2, 256], strides = [1, 1]} : vector<2x1024xf32> to vector<2x256xf32>
    %163 = arith.negf %162 : vector<2x256xf32>
    %164 = math.exp %163 : vector<2x256xf32>
    %cst_51 = arith.constant 1.000000e+00 : f32
    %165 = vector.broadcast %cst_51 : f32 to vector<2x256xf32>
    %166 = arith.addf %165, %164 : vector<2x256xf32>
    %167 = arith.divf %165, %166 : vector<2x256xf32>
    %168 = vector.extract_strided_slice %161 {offsets = [0, 256], sizes = [2, 256], strides = [1, 1]} : vector<2x1024xf32> to vector<2x256xf32>
    %169 = arith.negf %168 : vector<2x256xf32>
    %170 = math.exp %169 : vector<2x256xf32>
    %cst_52 = arith.constant 1.000000e+00 : f32
    %171 = vector.broadcast %cst_52 : f32 to vector<2x256xf32>
    %172 = arith.addf %171, %170 : vector<2x256xf32>
    %173 = arith.divf %171, %172 : vector<2x256xf32>
    %174 = vector.extract_strided_slice %161 {offsets = [0, 512], sizes = [2, 256], strides = [1, 1]} : vector<2x1024xf32> to vector<2x256xf32>
    %175 = math.tanh %174 : vector<2x256xf32>
    %176 = vector.extract_strided_slice %161 {offsets = [0, 768], sizes = [2, 256], strides = [1, 1]} : vector<2x1024xf32> to vector<2x256xf32>
    %177 = arith.negf %176 : vector<2x256xf32>
    %178 = math.exp %177 : vector<2x256xf32>
    %cst_53 = arith.constant 1.000000e+00 : f32
    %179 = vector.broadcast %cst_53 : f32 to vector<2x256xf32>
    %180 = arith.addf %179, %178 : vector<2x256xf32>
    %181 = arith.divf %179, %180 : vector<2x256xf32>
    %182 = arith.mulf %173, %147 : vector<2x256xf32>
    %183 = arith.mulf %167, %175 : vector<2x256xf32>
    %184 = arith.addf %182, %183 : vector<2x256xf32>
    %185 = math.tanh %184 : vector<2x256xf32>
    %186 = arith.mulf %181, %185 : vector<2x256xf32>
    %187 = arith.truncf %186 : vector<2x256xf32> to vector<2x256xbf16>
    %c0_54 = arith.constant 0 : index
    %188 = arith.index_cast %c4_i32 : i32 to index
    %c0_55 = arith.constant 0 : index
    %c0_56 = arith.constant 0 : index
    %189 = vector.load %arg4[%c0_54, %188, %c0_55, %c0_56] : memref<1x8x2x256xbf16, #tpu.memory_space<vmem>>, vector<1x1x2x256xbf16>
    %190 = vector.shape_cast %189 : vector<1x1x2x256xbf16> to vector<2x256xbf16>
    %191 = vector.shape_cast %187 : vector<2x256xbf16> to vector<1x1x2x256xbf16>
    tpu.vector_store %arg4[%c0_54, %188, %c0_55, %c0_56], %191 {strides = array<i32>} : memref<1x8x2x256xbf16, #tpu.memory_space<vmem>>, vector<1x1x2x256xbf16>,
    %c5_i32 = arith.constant 5 : i32
    %c0_57 = arith.constant 0 : index
    %192 = arith.index_cast %c5_i32 : i32 to index
    %c0_58 = arith.constant 0 : index
    %c0_59 = arith.constant 0 : index
    %193 = vector.load %arg2[%c0_57, %192, %c0_58, %c0_59] : memref<1x8x2x1024xbf16, #tpu.memory_space<vmem>>, vector<1x1x2x1024xbf16>
    %194 = vector.shape_cast %193 : vector<1x1x2x1024xbf16> to vector<2x1024xbf16>
    %195 = arith.extf %194 : vector<2x1024xbf16> to vector<2x1024xf32>
    %196 = arith.truncf %186 : vector<2x256xf32> to vector<2x256xbf16>
    %cst_60 = arith.constant dense<0.000000e+00> : vector<2x1024xf32>
    %197 = tpu.matmul %196, %4, %cst_60 {dimension_numbers = #tpu.dot_dimension_numbers<[1], [0], [0], [1], [0, 0, 1, 1], [], []>} : vector<2x256xbf16>, vector<256x1024xbf16>, vector<2x1024xf32> -> vector<2x1024xf32>
    %198 = arith.addf %195, %197 : vector<2x1024xf32>
    %199 = vector.extract_strided_slice %198 {offsets = [0, 0], sizes = [2, 256], strides = [1, 1]} : vector<2x1024xf32> to vector<2x256xf32>
    %200 = arith.negf %199 : vector<2x256xf32>
    %201 = math.exp %200 : vector<2x256xf32>
    %cst_61 = arith.constant 1.000000e+00 : f32
    %202 = vector.broadcast %cst_61 : f32 to vector<2x256xf32>
    %203 = arith.addf %202, %201 : vector<2x256xf32>
    %204 = arith.divf %202, %203 : vector<2x256xf32>
    %205 = vector.extract_strided_slice %198 {offsets = [0, 256], sizes = [2, 256], strides = [1, 1]} : vector<2x1024xf32> to vector<2x256xf32>
    %206 = arith.negf %205 : vector<2x256xf32>
    %207 = math.exp %206 : vector<2x256xf32>
    %cst_62 = arith.constant 1.000000e+00 : f32
    %208 = vector.broadcast %cst_62 : f32 to vector<2x256xf32>
    %209 = arith.addf %208, %207 : vector<2x256xf32>
    %210 = arith.divf %208, %209 : vector<2x256xf32>
    %211 = vector.extract_strided_slice %198 {offsets = [0, 512], sizes = [2, 256], strides = [1, 1]} : vector<2x1024xf32> to vector<2x256xf32>
    %212 = math.tanh %211 : vector<2x256xf32>
    %213 = vector.extract_strided_slice %198 {offsets = [0, 768], sizes = [2, 256], strides = [1, 1]} : vector<2x1024xf32> to vector<2x256xf32>
    %214 = arith.negf %213 : vector<2x256xf32>
    %215 = math.exp %214 : vector<2x256xf32>
    %cst_63 = arith.constant 1.000000e+00 : f32
    %216 = vector.broadcast %cst_63 : f32 to vector<2x256xf32>
    %217 = arith.addf %216, %215 : vector<2x256xf32>
    %218 = arith.divf %216, %217 : vector<2x256xf32>
    %219 = arith.mulf %210, %184 : vector<2x256xf32>
    %220 = arith.mulf %204, %212 : vector<2x256xf32>
    %221 = arith.addf %219, %220 : vector<2x256xf32>
    %222 = math.tanh %221 : vector<2x256xf32>
    %223 = arith.mulf %218, %222 : vector<2x256xf32>
    %224 = arith.truncf %223 : vector<2x256xf32> to vector<2x256xbf16>
    %c0_64 = arith.constant 0 : index
    %225 = arith.index_cast %c5_i32 : i32 to index
    %c0_65 = arith.constant 0 : index
    %c0_66 = arith.constant 0 : index
    %226 = vector.load %arg4[%c0_64, %225, %c0_65, %c0_66] : memref<1x8x2x256xbf16, #tpu.memory_space<vmem>>, vector<1x1x2x256xbf16>
    %227 = vector.shape_cast %226 : vector<1x1x2x256xbf16> to vector<2x256xbf16>
    %228 = vector.shape_cast %224 : vector<2x256xbf16> to vector<1x1x2x256xbf16>
    tpu.vector_store %arg4[%c0_64, %225, %c0_65, %c0_66], %228 {strides = array<i32>} : memref<1x8x2x256xbf16, #tpu.memory_space<vmem>>, vector<1x1x2x256xbf16>,
    %c6_i32 = arith.constant 6 : i32
    %c0_67 = arith.constant 0 : index
    %229 = arith.index_cast %c6_i32 : i32 to index
    %c0_68 = arith.constant 0 : index
    %c0_69 = arith.constant 0 : index
    %230 = vector.load %arg2[%c0_67, %229, %c0_68, %c0_69] : memref<1x8x2x1024xbf16, #tpu.memory_space<vmem>>, vector<1x1x2x1024xbf16>
    %231 = vector.shape_cast %230 : vector<1x1x2x1024xbf16> to vector<2x1024xbf16>
    %232 = arith.extf %231 : vector<2x1024xbf16> to vector<2x1024xf32>
    %233 = arith.truncf %223 : vector<2x256xf32> to vector<2x256xbf16>
    %cst_70 = arith.constant dense<0.000000e+00> : vector<2x1024xf32>
    %234 = tpu.matmul %233, %4, %cst_70 {dimension_numbers = #tpu.dot_dimension_numbers<[1], [0], [0], [1], [0, 0, 1, 1], [], []>} : vector<2x256xbf16>, vector<256x1024xbf16>, vector<2x1024xf32> -> vector<2x1024xf32>
    %235 = arith.addf %232, %234 : vector<2x1024xf32>
    %236 = vector.extract_strided_slice %235 {offsets = [0, 0], sizes = [2, 256], strides = [1, 1]} : vector<2x1024xf32> to vector<2x256xf32>
    %237 = arith.negf %236 : vector<2x256xf32>
    %238 = math.exp %237 : vector<2x256xf32>
    %cst_71 = arith.constant 1.000000e+00 : f32
    %239 = vector.broadcast %cst_71 : f32 to vector<2x256xf32>
    %240 = arith.addf %239, %238 : vector<2x256xf32>
    %241 = arith.divf %239, %240 : vector<2x256xf32>
    %242 = vector.extract_strided_slice %235 {offsets = [0, 256], sizes = [2, 256], strides = [1, 1]} : vector<2x1024xf32> to vector<2x256xf32>
    %243 = arith.negf %242 : vector<2x256xf32>
    %244 = math.exp %243 : vector<2x256xf32>
    %cst_72 = arith.constant 1.000000e+00 : f32
    %245 = vector.broadcast %cst_72 : f32 to vector<2x256xf32>
    %246 = arith.addf %245, %244 : vector<2x256xf32>
    %247 = arith.divf %245, %246 : vector<2x256xf32>
    %248 = vector.extract_strided_slice %235 {offsets = [0, 512], sizes = [2, 256], strides = [1, 1]} : vector<2x1024xf32> to vector<2x256xf32>
    %249 = math.tanh %248 : vector<2x256xf32>
    %250 = vector.extract_strided_slice %235 {offsets = [0, 768], sizes = [2, 256], strides = [1, 1]} : vector<2x1024xf32> to vector<2x256xf32>
    %251 = arith.negf %250 : vector<2x256xf32>
    %252 = math.exp %251 : vector<2x256xf32>
    %cst_73 = arith.constant 1.000000e+00 : f32
    %253 = vector.broadcast %cst_73 : f32 to vector<2x256xf32>
    %254 = arith.addf %253, %252 : vector<2x256xf32>
    %255 = arith.divf %253, %254 : vector<2x256xf32>
    %256 = arith.mulf %247, %221 : vector<2x256xf32>
    %257 = arith.mulf %241, %249 : vector<2x256xf32>
    %258 = arith.addf %256, %257 : vector<2x256xf32>
    %259 = math.tanh %258 : vector<2x256xf32>
    %260 = arith.mulf %255, %259 : vector<2x256xf32>
    %261 = arith.truncf %260 : vector<2x256xf32> to vector<2x256xbf16>
    %c0_74 = arith.constant 0 : index
    %262 = arith.index_cast %c6_i32 : i32 to index
    %c0_75 = arith.constant 0 : index
    %c0_76 = arith.constant 0 : index
    %263 = vector.load %arg4[%c0_74, %262, %c0_75, %c0_76] : memref<1x8x2x256xbf16, #tpu.memory_space<vmem>>, vector<1x1x2x256xbf16>
    %264 = vector.shape_cast %263 : vector<1x1x2x256xbf16> to vector<2x256xbf16>
    %265 = vector.shape_cast %261 : vector<2x256xbf16> to vector<1x1x2x256xbf16>
    tpu.vector_store %arg4[%c0_74, %262, %c0_75, %c0_76], %265 {strides = array<i32>} : memref<1x8x2x256xbf16, #tpu.memory_space<vmem>>, vector<1x1x2x256xbf16>,
    %c7_i32 = arith.constant 7 : i32
    %c0_77 = arith.constant 0 : index
    %266 = arith.index_cast %c7_i32 : i32 to index
    %c0_78 = arith.constant 0 : index
    %c0_79 = arith.constant 0 : index
    %267 = vector.load %arg2[%c0_77, %266, %c0_78, %c0_79] : memref<1x8x2x1024xbf16, #tpu.memory_space<vmem>>, vector<1x1x2x1024xbf16>
    %268 = vector.shape_cast %267 : vector<1x1x2x1024xbf16> to vector<2x1024xbf16>
    %269 = arith.extf %268 : vector<2x1024xbf16> to vector<2x1024xf32>
    %270 = arith.truncf %260 : vector<2x256xf32> to vector<2x256xbf16>
    %cst_80 = arith.constant dense<0.000000e+00> : vector<2x1024xf32>
    %271 = tpu.matmul %270, %4, %cst_80 {dimension_numbers = #tpu.dot_dimension_numbers<[1], [0], [0], [1], [0, 0, 1, 1], [], []>} : vector<2x256xbf16>, vector<256x1024xbf16>, vector<2x1024xf32> -> vector<2x1024xf32>
    %272 = arith.addf %269, %271 : vector<2x1024xf32>
    %273 = vector.extract_strided_slice %272 {offsets = [0, 0], sizes = [2, 256], strides = [1, 1]} : vector<2x1024xf32> to vector<2x256xf32>
    %274 = arith.negf %273 : vector<2x256xf32>
    %275 = math.exp %274 : vector<2x256xf32>
    %cst_81 = arith.constant 1.000000e+00 : f32
    %276 = vector.broadcast %cst_81 : f32 to vector<2x256xf32>
    %277 = arith.addf %276, %275 : vector<2x256xf32>
    %278 = arith.divf %276, %277 : vector<2x256xf32>
    %279 = vector.extract_strided_slice %272 {offsets = [0, 256], sizes = [2, 256], strides = [1, 1]} : vector<2x1024xf32> to vector<2x256xf32>
    %280 = arith.negf %279 : vector<2x256xf32>
    %281 = math.exp %280 : vector<2x256xf32>
    %cst_82 = arith.constant 1.000000e+00 : f32
    %282 = vector.broadcast %cst_82 : f32 to vector<2x256xf32>
    %283 = arith.addf %282, %281 : vector<2x256xf32>
    %284 = arith.divf %282, %283 : vector<2x256xf32>
    %285 = vector.extract_strided_slice %272 {offsets = [0, 512], sizes = [2, 256], strides = [1, 1]} : vector<2x1024xf32> to vector<2x256xf32>
    %286 = math.tanh %285 : vector<2x256xf32>
    %287 = vector.extract_strided_slice %272 {offsets = [0, 768], sizes = [2, 256], strides = [1, 1]} : vector<2x1024xf32> to vector<2x256xf32>
    %288 = arith.negf %287 : vector<2x256xf32>
    %289 = math.exp %288 : vector<2x256xf32>
    %cst_83 = arith.constant 1.000000e+00 : f32
    %290 = vector.broadcast %cst_83 : f32 to vector<2x256xf32>
    %291 = arith.addf %290, %289 : vector<2x256xf32>
    %292 = arith.divf %290, %291 : vector<2x256xf32>
    %293 = arith.mulf %284, %258 : vector<2x256xf32>
    %294 = arith.mulf %278, %286 : vector<2x256xf32>
    %295 = arith.addf %293, %294 : vector<2x256xf32>
    %296 = math.tanh %295 : vector<2x256xf32>
    %297 = arith.mulf %292, %296 : vector<2x256xf32>
    %298 = arith.truncf %297 : vector<2x256xf32> to vector<2x256xbf16>
    %c0_84 = arith.constant 0 : index
    %299 = arith.index_cast %c7_i32 : i32 to index
    %c0_85 = arith.constant 0 : index
    %c0_86 = arith.constant 0 : index
    %300 = vector.load %arg4[%c0_84, %299, %c0_85, %c0_86] : memref<1x8x2x256xbf16, #tpu.memory_space<vmem>>, vector<1x1x2x256xbf16>
    %301 = vector.shape_cast %300 : vector<1x1x2x256xbf16> to vector<2x256xbf16>
    %302 = vector.shape_cast %298 : vector<2x256xbf16> to vector<1x1x2x256xbf16>
    tpu.vector_store %arg4[%c0_84, %299, %c0_85, %c0_86], %302 {strides = array<i32>} : memref<1x8x2x256xbf16, #tpu.memory_space<vmem>>, vector<1x1x2x256xbf16>,
    %c8_i32 = arith.constant 8 : i32
    %c0_87 = arith.constant 0 : index
    %c0_88 = arith.constant 0 : index
    %303 = vector.load %arg5[%c0_87, %c0_88] : memref<2x256xf32, #tpu.memory_space<vmem>>, vector<2x256xf32>
    tpu.vector_store %arg5[%c0_87, %c0_88], %297 {strides = array<i32>} : memref<2x256xf32, #tpu.memory_space<vmem>>, vector<2x256xf32>,
    %c0_89 = arith.constant 0 : index
    %c0_90 = arith.constant 0 : index
    %304 = vector.load %arg6[%c0_89, %c0_90] : memref<2x256xf32, #tpu.memory_space<vmem>>, vector<2x256xf32>
    tpu.vector_store %arg6[%c0_89, %c0_90], %295 {strides = array<i32>} : memref<2x256xf32, #tpu.memory_space<vmem>>, vector<2x256xf32>,
    return
  }
  func.func @transform_0(%arg0: i32, %arg1: i32) -> (i32, i32, i32, i32) {
    %c0_i32 = arith.constant 0 : i32
    %c0_i32_0 = arith.constant 0 : i32
    %c0_i32_1 = arith.constant 0 : i32
    return %arg0, %arg1, %c0_i32, %c0_i32_0 : i32, i32, i32, i32
  }
  func.func @transform_1(%arg0: i32, %arg1: i32) -> (i32, i32, i32) {
    %c0_i32 = arith.constant 0 : i32
    %c0_i32_0 = arith.constant 0 : i32
    %c0_i32_1 = arith.constant 0 : i32
    return %arg0, %c0_i32, %c0_i32_0 : i32, i32, i32
  }
  func.func @transform_2(%arg0: i32, %arg1: i32) -> (i32, i32, i32, i32) {
    %c0_i32 = arith.constant 0 : i32
    %c0_i32_0 = arith.constant 0 : i32
    %c0_i32_1 = arith.constant 0 : i32
    return %arg0, %arg1, %c0_i32, %c0_i32_0 : i32, i32, i32, i32
  }
}

module attributes {stable_mosaic.version = 11 : i64} {
  func.func @_layer1_head_kernel(%arg0: i32, %arg1: memref<8x2x1024xbf16, #tpu.memory_space<vmem>>, %arg2: memref<256x1024xbf16, #tpu.memory_space<vmem>>, %arg3: memref<2x1024xf32, #tpu.memory_space<vmem>>, %arg4: memref<256x7xf32, #tpu.memory_space<vmem>>, %arg5: memref<256x7xf32, #tpu.memory_space<vmem>>, %arg6: memref<1x7xf32, #tpu.memory_space<vmem>>, %arg7: memref<2x7xf32, #tpu.memory_space<vmem>>, %arg8: memref<2x256xf32, #tpu.memory_space<vmem>>, %arg9: memref<2x256xf32, #tpu.memory_space<vmem>>) attributes {dimension_semantics = [#tpu.dimension_semantics<arbitrary>], iteration_bounds = array<i64: 1>, scalar_prefetch = 0 : i64, scratch_operands = 2 : i64, tpu.core_type = #tpu.core_type<tc>, window_params = [{transform_indices = @transform_0, window_bounds = array<i64: 8, 2, 1024>}, {pipeline_mode = #tpu.pipeline_mode<synchronous>, transform_indices = @transform_1, window_bounds = array<i64: 256, 1024>}, {pipeline_mode = #tpu.pipeline_mode<synchronous>, transform_indices = @transform_2, window_bounds = array<i64: 2, 1024>}, {pipeline_mode = #tpu.pipeline_mode<synchronous>, transform_indices = @transform_3, window_bounds = array<i64: 256, 7>}, {pipeline_mode = #tpu.pipeline_mode<synchronous>, transform_indices = @transform_4, window_bounds = array<i64: 256, 7>}, {pipeline_mode = #tpu.pipeline_mode<synchronous>, transform_indices = @transform_5, window_bounds = array<i64: 1, 7>}, {pipeline_mode = #tpu.pipeline_mode<synchronous>, transform_indices = @transform_6, window_bounds = array<i64: 2, 7>}]} {
    %c0_i32 = arith.constant 0 : i32
    %0 = arith.cmpi eq, %arg0, %c0_i32 : i32
    %1 = arith.extui %0 : i1 to i32
    %c0_i32_0 = arith.constant 0 : i32
    %2 = arith.cmpi ne, %1, %c0_i32_0 : i32
    scf.if %2 {
      %cst_60 = arith.constant 0.000000e+00 : f32
      %267 = vector.broadcast %cst_60 : f32 to vector<2x256xf32>
      %c0_61 = arith.constant 0 : index
      %c0_62 = arith.constant 0 : index
      %268 = vector.load %arg8[%c0_61, %c0_62] : memref<2x256xf32, #tpu.memory_space<vmem>>, vector<2x256xf32>
      tpu.vector_store %arg8[%c0_61, %c0_62], %267 {strides = array<i32>} : memref<2x256xf32, #tpu.memory_space<vmem>>, vector<2x256xf32>,
      %cst_63 = arith.constant 0.000000e+00 : f32
      %269 = vector.broadcast %cst_63 : f32 to vector<2x256xf32>
      %c0_64 = arith.constant 0 : index
      %c0_65 = arith.constant 0 : index
      %270 = vector.load %arg9[%c0_64, %c0_65] : memref<2x256xf32, #tpu.memory_space<vmem>>, vector<2x256xf32>
      tpu.vector_store %arg9[%c0_64, %c0_65], %269 {strides = array<i32>} : memref<2x256xf32, #tpu.memory_space<vmem>>, vector<2x256xf32>,
    } else {
    }
    %c0 = arith.constant 0 : index
    %c0_1 = arith.constant 0 : index
    %3 = vector.load %arg2[%c0, %c0_1] : memref<256x1024xbf16, #tpu.memory_space<vmem>>, vector<256x1024xbf16>
    %c0_2 = arith.constant 0 : index
    %c0_3 = arith.constant 0 : index
    %4 = vector.load %arg8[%c0_2, %c0_3] : memref<2x256xf32, #tpu.memory_space<vmem>>, vector<2x256xf32>
    %c0_4 = arith.constant 0 : index
    %c0_5 = arith.constant 0 : index
    %5 = vector.load %arg9[%c0_4, %c0_5] : memref<2x256xf32, #tpu.memory_space<vmem>>, vector<2x256xf32>
    %c0_i32_6 = arith.constant 0 : i32
    %6 = arith.index_cast %c0_i32_6 : i32 to index
    %c0_7 = arith.constant 0 : index
    %c0_8 = arith.constant 0 : index
    %7 = vector.load %arg1[%6, %c0_7, %c0_8] : memref<8x2x1024xbf16, #tpu.memory_space<vmem>>, vector<1x2x1024xbf16>
    %8 = vector.shape_cast %7 : vector<1x2x1024xbf16> to vector<2x1024xbf16>
    %9 = arith.extf %8 : vector<2x1024xbf16> to vector<2x1024xf32>
    %10 = arith.truncf %4 : vector<2x256xf32> to vector<2x256xbf16>
    %cst = arith.constant dense<0.000000e+00> : vector<2x1024xf32>
    %11 = tpu.matmul %10, %3, %cst {dimension_numbers = #tpu.dot_dimension_numbers<[1], [0], [0], [1], [0, 0, 1, 1], [], []>} : vector<2x256xbf16>, vector<256x1024xbf16>, vector<2x1024xf32> -> vector<2x1024xf32>
    %12 = arith.addf %9, %11 : vector<2x1024xf32>
    %13 = vector.extract_strided_slice %12 {offsets = [0, 0], sizes = [2, 256], strides = [1, 1]} : vector<2x1024xf32> to vector<2x256xf32>
    %14 = arith.negf %13 : vector<2x256xf32>
    %15 = math.exp %14 : vector<2x256xf32>
    %cst_9 = arith.constant 1.000000e+00 : f32
    %16 = vector.broadcast %cst_9 : f32 to vector<2x256xf32>
    %17 = arith.addf %16, %15 : vector<2x256xf32>
    %18 = arith.divf %16, %17 : vector<2x256xf32>
    %19 = vector.extract_strided_slice %12 {offsets = [0, 256], sizes = [2, 256], strides = [1, 1]} : vector<2x1024xf32> to vector<2x256xf32>
    %20 = arith.negf %19 : vector<2x256xf32>
    %21 = math.exp %20 : vector<2x256xf32>
    %cst_10 = arith.constant 1.000000e+00 : f32
    %22 = vector.broadcast %cst_10 : f32 to vector<2x256xf32>
    %23 = arith.addf %22, %21 : vector<2x256xf32>
    %24 = arith.divf %22, %23 : vector<2x256xf32>
    %25 = vector.extract_strided_slice %12 {offsets = [0, 512], sizes = [2, 256], strides = [1, 1]} : vector<2x1024xf32> to vector<2x256xf32>
    %26 = math.tanh %25 : vector<2x256xf32>
    %27 = vector.extract_strided_slice %12 {offsets = [0, 768], sizes = [2, 256], strides = [1, 1]} : vector<2x1024xf32> to vector<2x256xf32>
    %28 = arith.negf %27 : vector<2x256xf32>
    %29 = math.exp %28 : vector<2x256xf32>
    %cst_11 = arith.constant 1.000000e+00 : f32
    %30 = vector.broadcast %cst_11 : f32 to vector<2x256xf32>
    %31 = arith.addf %30, %29 : vector<2x256xf32>
    %32 = arith.divf %30, %31 : vector<2x256xf32>
    %33 = arith.mulf %24, %5 : vector<2x256xf32>
    %34 = arith.mulf %18, %26 : vector<2x256xf32>
    %35 = arith.addf %33, %34 : vector<2x256xf32>
    %36 = math.tanh %35 : vector<2x256xf32>
    %37 = arith.mulf %32, %36 : vector<2x256xf32>
    %c1_i32 = arith.constant 1 : i32
    %38 = arith.index_cast %c1_i32 : i32 to index
    %c0_12 = arith.constant 0 : index
    %c0_13 = arith.constant 0 : index
    %39 = vector.load %arg1[%38, %c0_12, %c0_13] : memref<8x2x1024xbf16, #tpu.memory_space<vmem>>, vector<1x2x1024xbf16>
    %40 = vector.shape_cast %39 : vector<1x2x1024xbf16> to vector<2x1024xbf16>
    %41 = arith.extf %40 : vector<2x1024xbf16> to vector<2x1024xf32>
    %42 = arith.truncf %37 : vector<2x256xf32> to vector<2x256xbf16>
    %cst_14 = arith.constant dense<0.000000e+00> : vector<2x1024xf32>
    %43 = tpu.matmul %42, %3, %cst_14 {dimension_numbers = #tpu.dot_dimension_numbers<[1], [0], [0], [1], [0, 0, 1, 1], [], []>} : vector<2x256xbf16>, vector<256x1024xbf16>, vector<2x1024xf32> -> vector<2x1024xf32>
    %44 = arith.addf %41, %43 : vector<2x1024xf32>
    %45 = vector.extract_strided_slice %44 {offsets = [0, 0], sizes = [2, 256], strides = [1, 1]} : vector<2x1024xf32> to vector<2x256xf32>
    %46 = arith.negf %45 : vector<2x256xf32>
    %47 = math.exp %46 : vector<2x256xf32>
    %cst_15 = arith.constant 1.000000e+00 : f32
    %48 = vector.broadcast %cst_15 : f32 to vector<2x256xf32>
    %49 = arith.addf %48, %47 : vector<2x256xf32>
    %50 = arith.divf %48, %49 : vector<2x256xf32>
    %51 = vector.extract_strided_slice %44 {offsets = [0, 256], sizes = [2, 256], strides = [1, 1]} : vector<2x1024xf32> to vector<2x256xf32>
    %52 = arith.negf %51 : vector<2x256xf32>
    %53 = math.exp %52 : vector<2x256xf32>
    %cst_16 = arith.constant 1.000000e+00 : f32
    %54 = vector.broadcast %cst_16 : f32 to vector<2x256xf32>
    %55 = arith.addf %54, %53 : vector<2x256xf32>
    %56 = arith.divf %54, %55 : vector<2x256xf32>
    %57 = vector.extract_strided_slice %44 {offsets = [0, 512], sizes = [2, 256], strides = [1, 1]} : vector<2x1024xf32> to vector<2x256xf32>
    %58 = math.tanh %57 : vector<2x256xf32>
    %59 = vector.extract_strided_slice %44 {offsets = [0, 768], sizes = [2, 256], strides = [1, 1]} : vector<2x1024xf32> to vector<2x256xf32>
    %60 = arith.negf %59 : vector<2x256xf32>
    %61 = math.exp %60 : vector<2x256xf32>
    %cst_17 = arith.constant 1.000000e+00 : f32
    %62 = vector.broadcast %cst_17 : f32 to vector<2x256xf32>
    %63 = arith.addf %62, %61 : vector<2x256xf32>
    %64 = arith.divf %62, %63 : vector<2x256xf32>
    %65 = arith.mulf %56, %35 : vector<2x256xf32>
    %66 = arith.mulf %50, %58 : vector<2x256xf32>
    %67 = arith.addf %65, %66 : vector<2x256xf32>
    %68 = math.tanh %67 : vector<2x256xf32>
    %69 = arith.mulf %64, %68 : vector<2x256xf32>
    %c2_i32 = arith.constant 2 : i32
    %70 = arith.index_cast %c2_i32 : i32 to index
    %c0_18 = arith.constant 0 : index
    %c0_19 = arith.constant 0 : index
    %71 = vector.load %arg1[%70, %c0_18, %c0_19] : memref<8x2x1024xbf16, #tpu.memory_space<vmem>>, vector<1x2x1024xbf16>
    %72 = vector.shape_cast %71 : vector<1x2x1024xbf16> to vector<2x1024xbf16>
    %73 = arith.extf %72 : vector<2x1024xbf16> to vector<2x1024xf32>
    %74 = arith.truncf %69 : vector<2x256xf32> to vector<2x256xbf16>
    %cst_20 = arith.constant dense<0.000000e+00> : vector<2x1024xf32>
    %75 = tpu.matmul %74, %3, %cst_20 {dimension_numbers = #tpu.dot_dimension_numbers<[1], [0], [0], [1], [0, 0, 1, 1], [], []>} : vector<2x256xbf16>, vector<256x1024xbf16>, vector<2x1024xf32> -> vector<2x1024xf32>
    %76 = arith.addf %73, %75 : vector<2x1024xf32>
    %77 = vector.extract_strided_slice %76 {offsets = [0, 0], sizes = [2, 256], strides = [1, 1]} : vector<2x1024xf32> to vector<2x256xf32>
    %78 = arith.negf %77 : vector<2x256xf32>
    %79 = math.exp %78 : vector<2x256xf32>
    %cst_21 = arith.constant 1.000000e+00 : f32
    %80 = vector.broadcast %cst_21 : f32 to vector<2x256xf32>
    %81 = arith.addf %80, %79 : vector<2x256xf32>
    %82 = arith.divf %80, %81 : vector<2x256xf32>
    %83 = vector.extract_strided_slice %76 {offsets = [0, 256], sizes = [2, 256], strides = [1, 1]} : vector<2x1024xf32> to vector<2x256xf32>
    %84 = arith.negf %83 : vector<2x256xf32>
    %85 = math.exp %84 : vector<2x256xf32>
    %cst_22 = arith.constant 1.000000e+00 : f32
    %86 = vector.broadcast %cst_22 : f32 to vector<2x256xf32>
    %87 = arith.addf %86, %85 : vector<2x256xf32>
    %88 = arith.divf %86, %87 : vector<2x256xf32>
    %89 = vector.extract_strided_slice %76 {offsets = [0, 512], sizes = [2, 256], strides = [1, 1]} : vector<2x1024xf32> to vector<2x256xf32>
    %90 = math.tanh %89 : vector<2x256xf32>
    %91 = vector.extract_strided_slice %76 {offsets = [0, 768], sizes = [2, 256], strides = [1, 1]} : vector<2x1024xf32> to vector<2x256xf32>
    %92 = arith.negf %91 : vector<2x256xf32>
    %93 = math.exp %92 : vector<2x256xf32>
    %cst_23 = arith.constant 1.000000e+00 : f32
    %94 = vector.broadcast %cst_23 : f32 to vector<2x256xf32>
    %95 = arith.addf %94, %93 : vector<2x256xf32>
    %96 = arith.divf %94, %95 : vector<2x256xf32>
    %97 = arith.mulf %88, %67 : vector<2x256xf32>
    %98 = arith.mulf %82, %90 : vector<2x256xf32>
    %99 = arith.addf %97, %98 : vector<2x256xf32>
    %100 = math.tanh %99 : vector<2x256xf32>
    %101 = arith.mulf %96, %100 : vector<2x256xf32>
    %c3_i32 = arith.constant 3 : i32
    %102 = arith.index_cast %c3_i32 : i32 to index
    %c0_24 = arith.constant 0 : index
    %c0_25 = arith.constant 0 : index
    %103 = vector.load %arg1[%102, %c0_24, %c0_25] : memref<8x2x1024xbf16, #tpu.memory_space<vmem>>, vector<1x2x1024xbf16>
    %104 = vector.shape_cast %103 : vector<1x2x1024xbf16> to vector<2x1024xbf16>
    %105 = arith.extf %104 : vector<2x1024xbf16> to vector<2x1024xf32>
    %106 = arith.truncf %101 : vector<2x256xf32> to vector<2x256xbf16>
    %cst_26 = arith.constant dense<0.000000e+00> : vector<2x1024xf32>
    %107 = tpu.matmul %106, %3, %cst_26 {dimension_numbers = #tpu.dot_dimension_numbers<[1], [0], [0], [1], [0, 0, 1, 1], [], []>} : vector<2x256xbf16>, vector<256x1024xbf16>, vector<2x1024xf32> -> vector<2x1024xf32>
    %108 = arith.addf %105, %107 : vector<2x1024xf32>
    %109 = vector.extract_strided_slice %108 {offsets = [0, 0], sizes = [2, 256], strides = [1, 1]} : vector<2x1024xf32> to vector<2x256xf32>
    %110 = arith.negf %109 : vector<2x256xf32>
    %111 = math.exp %110 : vector<2x256xf32>
    %cst_27 = arith.constant 1.000000e+00 : f32
    %112 = vector.broadcast %cst_27 : f32 to vector<2x256xf32>
    %113 = arith.addf %112, %111 : vector<2x256xf32>
    %114 = arith.divf %112, %113 : vector<2x256xf32>
    %115 = vector.extract_strided_slice %108 {offsets = [0, 256], sizes = [2, 256], strides = [1, 1]} : vector<2x1024xf32> to vector<2x256xf32>
    %116 = arith.negf %115 : vector<2x256xf32>
    %117 = math.exp %116 : vector<2x256xf32>
    %cst_28 = arith.constant 1.000000e+00 : f32
    %118 = vector.broadcast %cst_28 : f32 to vector<2x256xf32>
    %119 = arith.addf %118, %117 : vector<2x256xf32>
    %120 = arith.divf %118, %119 : vector<2x256xf32>
    %121 = vector.extract_strided_slice %108 {offsets = [0, 512], sizes = [2, 256], strides = [1, 1]} : vector<2x1024xf32> to vector<2x256xf32>
    %122 = math.tanh %121 : vector<2x256xf32>
    %123 = vector.extract_strided_slice %108 {offsets = [0, 768], sizes = [2, 256], strides = [1, 1]} : vector<2x1024xf32> to vector<2x256xf32>
    %124 = arith.negf %123 : vector<2x256xf32>
    %125 = math.exp %124 : vector<2x256xf32>
    %cst_29 = arith.constant 1.000000e+00 : f32
    %126 = vector.broadcast %cst_29 : f32 to vector<2x256xf32>
    %127 = arith.addf %126, %125 : vector<2x256xf32>
    %128 = arith.divf %126, %127 : vector<2x256xf32>
    %129 = arith.mulf %120, %99 : vector<2x256xf32>
    %130 = arith.mulf %114, %122 : vector<2x256xf32>
    %131 = arith.addf %129, %130 : vector<2x256xf32>
    %132 = math.tanh %131 : vector<2x256xf32>
    %133 = arith.mulf %128, %132 : vector<2x256xf32>
    %c4_i32 = arith.constant 4 : i32
    %134 = arith.index_cast %c4_i32 : i32 to index
    %c0_30 = arith.constant 0 : index
    %c0_31 = arith.constant 0 : index
    %135 = vector.load %arg1[%134, %c0_30, %c0_31] : memref<8x2x1024xbf16, #tpu.memory_space<vmem>>, vector<1x2x1024xbf16>
    %136 = vector.shape_cast %135 : vector<1x2x1024xbf16> to vector<2x1024xbf16>
    %137 = arith.extf %136 : vector<2x1024xbf16> to vector<2x1024xf32>
    %138 = arith.truncf %133 : vector<2x256xf32> to vector<2x256xbf16>
    %cst_32 = arith.constant dense<0.000000e+00> : vector<2x1024xf32>
    %139 = tpu.matmul %138, %3, %cst_32 {dimension_numbers = #tpu.dot_dimension_numbers<[1], [0], [0], [1], [0, 0, 1, 1], [], []>} : vector<2x256xbf16>, vector<256x1024xbf16>, vector<2x1024xf32> -> vector<2x1024xf32>
    %140 = arith.addf %137, %139 : vector<2x1024xf32>
    %141 = vector.extract_strided_slice %140 {offsets = [0, 0], sizes = [2, 256], strides = [1, 1]} : vector<2x1024xf32> to vector<2x256xf32>
    %142 = arith.negf %141 : vector<2x256xf32>
    %143 = math.exp %142 : vector<2x256xf32>
    %cst_33 = arith.constant 1.000000e+00 : f32
    %144 = vector.broadcast %cst_33 : f32 to vector<2x256xf32>
    %145 = arith.addf %144, %143 : vector<2x256xf32>
    %146 = arith.divf %144, %145 : vector<2x256xf32>
    %147 = vector.extract_strided_slice %140 {offsets = [0, 256], sizes = [2, 256], strides = [1, 1]} : vector<2x1024xf32> to vector<2x256xf32>
    %148 = arith.negf %147 : vector<2x256xf32>
    %149 = math.exp %148 : vector<2x256xf32>
    %cst_34 = arith.constant 1.000000e+00 : f32
    %150 = vector.broadcast %cst_34 : f32 to vector<2x256xf32>
    %151 = arith.addf %150, %149 : vector<2x256xf32>
    %152 = arith.divf %150, %151 : vector<2x256xf32>
    %153 = vector.extract_strided_slice %140 {offsets = [0, 512], sizes = [2, 256], strides = [1, 1]} : vector<2x1024xf32> to vector<2x256xf32>
    %154 = math.tanh %153 : vector<2x256xf32>
    %155 = vector.extract_strided_slice %140 {offsets = [0, 768], sizes = [2, 256], strides = [1, 1]} : vector<2x1024xf32> to vector<2x256xf32>
    %156 = arith.negf %155 : vector<2x256xf32>
    %157 = math.exp %156 : vector<2x256xf32>
    %cst_35 = arith.constant 1.000000e+00 : f32
    %158 = vector.broadcast %cst_35 : f32 to vector<2x256xf32>
    %159 = arith.addf %158, %157 : vector<2x256xf32>
    %160 = arith.divf %158, %159 : vector<2x256xf32>
    %161 = arith.mulf %152, %131 : vector<2x256xf32>
    %162 = arith.mulf %146, %154 : vector<2x256xf32>
    %163 = arith.addf %161, %162 : vector<2x256xf32>
    %164 = math.tanh %163 : vector<2x256xf32>
    %165 = arith.mulf %160, %164 : vector<2x256xf32>
    %c5_i32 = arith.constant 5 : i32
    %166 = arith.index_cast %c5_i32 : i32 to index
    %c0_36 = arith.constant 0 : index
    %c0_37 = arith.constant 0 : index
    %167 = vector.load %arg1[%166, %c0_36, %c0_37] : memref<8x2x1024xbf16, #tpu.memory_space<vmem>>, vector<1x2x1024xbf16>
    %168 = vector.shape_cast %167 : vector<1x2x1024xbf16> to vector<2x1024xbf16>
    %169 = arith.extf %168 : vector<2x1024xbf16> to vector<2x1024xf32>
    %170 = arith.truncf %165 : vector<2x256xf32> to vector<2x256xbf16>
    %cst_38 = arith.constant dense<0.000000e+00> : vector<2x1024xf32>
    %171 = tpu.matmul %170, %3, %cst_38 {dimension_numbers = #tpu.dot_dimension_numbers<[1], [0], [0], [1], [0, 0, 1, 1], [], []>} : vector<2x256xbf16>, vector<256x1024xbf16>, vector<2x1024xf32> -> vector<2x1024xf32>
    %172 = arith.addf %169, %171 : vector<2x1024xf32>
    %173 = vector.extract_strided_slice %172 {offsets = [0, 0], sizes = [2, 256], strides = [1, 1]} : vector<2x1024xf32> to vector<2x256xf32>
    %174 = arith.negf %173 : vector<2x256xf32>
    %175 = math.exp %174 : vector<2x256xf32>
    %cst_39 = arith.constant 1.000000e+00 : f32
    %176 = vector.broadcast %cst_39 : f32 to vector<2x256xf32>
    %177 = arith.addf %176, %175 : vector<2x256xf32>
    %178 = arith.divf %176, %177 : vector<2x256xf32>
    %179 = vector.extract_strided_slice %172 {offsets = [0, 256], sizes = [2, 256], strides = [1, 1]} : vector<2x1024xf32> to vector<2x256xf32>
    %180 = arith.negf %179 : vector<2x256xf32>
    %181 = math.exp %180 : vector<2x256xf32>
    %cst_40 = arith.constant 1.000000e+00 : f32
    %182 = vector.broadcast %cst_40 : f32 to vector<2x256xf32>
    %183 = arith.addf %182, %181 : vector<2x256xf32>
    %184 = arith.divf %182, %183 : vector<2x256xf32>
    %185 = vector.extract_strided_slice %172 {offsets = [0, 512], sizes = [2, 256], strides = [1, 1]} : vector<2x1024xf32> to vector<2x256xf32>
    %186 = math.tanh %185 : vector<2x256xf32>
    %187 = vector.extract_strided_slice %172 {offsets = [0, 768], sizes = [2, 256], strides = [1, 1]} : vector<2x1024xf32> to vector<2x256xf32>
    %188 = arith.negf %187 : vector<2x256xf32>
    %189 = math.exp %188 : vector<2x256xf32>
    %cst_41 = arith.constant 1.000000e+00 : f32
    %190 = vector.broadcast %cst_41 : f32 to vector<2x256xf32>
    %191 = arith.addf %190, %189 : vector<2x256xf32>
    %192 = arith.divf %190, %191 : vector<2x256xf32>
    %193 = arith.mulf %184, %163 : vector<2x256xf32>
    %194 = arith.mulf %178, %186 : vector<2x256xf32>
    %195 = arith.addf %193, %194 : vector<2x256xf32>
    %196 = math.tanh %195 : vector<2x256xf32>
    %197 = arith.mulf %192, %196 : vector<2x256xf32>
    %c6_i32 = arith.constant 6 : i32
    %198 = arith.index_cast %c6_i32 : i32 to index
    %c0_42 = arith.constant 0 : index
    %c0_43 = arith.constant 0 : index
    %199 = vector.load %arg1[%198, %c0_42, %c0_43] : memref<8x2x1024xbf16, #tpu.memory_space<vmem>>, vector<1x2x1024xbf16>
    %200 = vector.shape_cast %199 : vector<1x2x1024xbf16> to vector<2x1024xbf16>
    %201 = arith.extf %200 : vector<2x1024xbf16> to vector<2x1024xf32>
    %202 = arith.truncf %197 : vector<2x256xf32> to vector<2x256xbf16>
    %cst_44 = arith.constant dense<0.000000e+00> : vector<2x1024xf32>
    %203 = tpu.matmul %202, %3, %cst_44 {dimension_numbers = #tpu.dot_dimension_numbers<[1], [0], [0], [1], [0, 0, 1, 1], [], []>} : vector<2x256xbf16>, vector<256x1024xbf16>, vector<2x1024xf32> -> vector<2x1024xf32>
    %204 = arith.addf %201, %203 : vector<2x1024xf32>
    %205 = vector.extract_strided_slice %204 {offsets = [0, 0], sizes = [2, 256], strides = [1, 1]} : vector<2x1024xf32> to vector<2x256xf32>
    %206 = arith.negf %205 : vector<2x256xf32>
    %207 = math.exp %206 : vector<2x256xf32>
    %cst_45 = arith.constant 1.000000e+00 : f32
    %208 = vector.broadcast %cst_45 : f32 to vector<2x256xf32>
    %209 = arith.addf %208, %207 : vector<2x256xf32>
    %210 = arith.divf %208, %209 : vector<2x256xf32>
    %211 = vector.extract_strided_slice %204 {offsets = [0, 256], sizes = [2, 256], strides = [1, 1]} : vector<2x1024xf32> to vector<2x256xf32>
    %212 = arith.negf %211 : vector<2x256xf32>
    %213 = math.exp %212 : vector<2x256xf32>
    %cst_46 = arith.constant 1.000000e+00 : f32
    %214 = vector.broadcast %cst_46 : f32 to vector<2x256xf32>
    %215 = arith.addf %214, %213 : vector<2x256xf32>
    %216 = arith.divf %214, %215 : vector<2x256xf32>
    %217 = vector.extract_strided_slice %204 {offsets = [0, 512], sizes = [2, 256], strides = [1, 1]} : vector<2x1024xf32> to vector<2x256xf32>
    %218 = math.tanh %217 : vector<2x256xf32>
    %219 = vector.extract_strided_slice %204 {offsets = [0, 768], sizes = [2, 256], strides = [1, 1]} : vector<2x1024xf32> to vector<2x256xf32>
    %220 = arith.negf %219 : vector<2x256xf32>
    %221 = math.exp %220 : vector<2x256xf32>
    %cst_47 = arith.constant 1.000000e+00 : f32
    %222 = vector.broadcast %cst_47 : f32 to vector<2x256xf32>
    %223 = arith.addf %222, %221 : vector<2x256xf32>
    %224 = arith.divf %222, %223 : vector<2x256xf32>
    %225 = arith.mulf %216, %195 : vector<2x256xf32>
    %226 = arith.mulf %210, %218 : vector<2x256xf32>
    %227 = arith.addf %225, %226 : vector<2x256xf32>
    %228 = math.tanh %227 : vector<2x256xf32>
    %229 = arith.mulf %224, %228 : vector<2x256xf32>
    %c7_i32 = arith.constant 7 : i32
    %230 = arith.index_cast %c7_i32 : i32 to index
    %c0_48 = arith.constant 0 : index
    %c0_49 = arith.constant 0 : index
    %231 = vector.load %arg1[%230, %c0_48, %c0_49] : memref<8x2x1024xbf16, #tpu.memory_space<vmem>>, vector<1x2x1024xbf16>
    %232 = vector.shape_cast %231 : vector<1x2x1024xbf16> to vector<2x1024xbf16>
    %233 = arith.extf %232 : vector<2x1024xbf16> to vector<2x1024xf32>
    %234 = arith.truncf %229 : vector<2x256xf32> to vector<2x256xbf16>
    %cst_50 = arith.constant dense<0.000000e+00> : vector<2x1024xf32>
    %235 = tpu.matmul %234, %3, %cst_50 {dimension_numbers = #tpu.dot_dimension_numbers<[1], [0], [0], [1], [0, 0, 1, 1], [], []>} : vector<2x256xbf16>, vector<256x1024xbf16>, vector<2x1024xf32> -> vector<2x1024xf32>
    %236 = arith.addf %233, %235 : vector<2x1024xf32>
    %237 = vector.extract_strided_slice %236 {offsets = [0, 0], sizes = [2, 256], strides = [1, 1]} : vector<2x1024xf32> to vector<2x256xf32>
    %238 = arith.negf %237 : vector<2x256xf32>
    %239 = math.exp %238 : vector<2x256xf32>
    %cst_51 = arith.constant 1.000000e+00 : f32
    %240 = vector.broadcast %cst_51 : f32 to vector<2x256xf32>
    %241 = arith.addf %240, %239 : vector<2x256xf32>
    %242 = arith.divf %240, %241 : vector<2x256xf32>
    %243 = vector.extract_strided_slice %236 {offsets = [0, 256], sizes = [2, 256], strides = [1, 1]} : vector<2x1024xf32> to vector<2x256xf32>
    %244 = arith.negf %243 : vector<2x256xf32>
    %245 = math.exp %244 : vector<2x256xf32>
    %cst_52 = arith.constant 1.000000e+00 : f32
    %246 = vector.broadcast %cst_52 : f32 to vector<2x256xf32>
    %247 = arith.addf %246, %245 : vector<2x256xf32>
    %248 = arith.divf %246, %247 : vector<2x256xf32>
    %249 = vector.extract_strided_slice %236 {offsets = [0, 512], sizes = [2, 256], strides = [1, 1]} : vector<2x1024xf32> to vector<2x256xf32>
    %250 = math.tanh %249 : vector<2x256xf32>
    %251 = vector.extract_strided_slice %236 {offsets = [0, 768], sizes = [2, 256], strides = [1, 1]} : vector<2x1024xf32> to vector<2x256xf32>
    %252 = arith.negf %251 : vector<2x256xf32>
    %253 = math.exp %252 : vector<2x256xf32>
    %cst_53 = arith.constant 1.000000e+00 : f32
    %254 = vector.broadcast %cst_53 : f32 to vector<2x256xf32>
    %255 = arith.addf %254, %253 : vector<2x256xf32>
    %256 = arith.divf %254, %255 : vector<2x256xf32>
    %257 = arith.mulf %248, %227 : vector<2x256xf32>
    %258 = arith.mulf %242, %250 : vector<2x256xf32>
    %259 = arith.addf %257, %258 : vector<2x256xf32>
    %260 = math.tanh %259 : vector<2x256xf32>
    %261 = arith.mulf %256, %260 : vector<2x256xf32>
    %c8_i32 = arith.constant 8 : i32
    %c0_54 = arith.constant 0 : index
    %c0_55 = arith.constant 0 : index
    %262 = vector.load %arg8[%c0_54, %c0_55] : memref<2x256xf32, #tpu.memory_space<vmem>>, vector<2x256xf32>
    tpu.vector_store %arg8[%c0_54, %c0_55], %261 {strides = array<i32>} : memref<2x256xf32, #tpu.memory_space<vmem>>, vector<2x256xf32>,
    %c0_56 = arith.constant 0 : index
    %c0_57 = arith.constant 0 : index
    %263 = vector.load %arg9[%c0_56, %c0_57] : memref<2x256xf32, #tpu.memory_space<vmem>>, vector<2x256xf32>
    tpu.vector_store %arg9[%c0_56, %c0_57], %259 {strides = array<i32>} : memref<2x256xf32, #tpu.memory_space<vmem>>, vector<2x256xf32>,
    %c0_i32_58 = arith.constant 0 : i32
    %264 = arith.cmpi eq, %arg0, %c0_i32_58 : i32
    %265 = arith.extui %264 : i1 to i32
    %c0_i32_59 = arith.constant 0 : i32
    %266 = arith.cmpi ne, %265, %c0_i32_59 : i32
    scf.if %266 {
      %c0_60 = arith.constant 0 : index
      %c0_61 = arith.constant 0 : index
      %267 = vector.load %arg3[%c0_60, %c0_61] : memref<2x1024xf32, #tpu.memory_space<vmem>>, vector<2x1024xf32>
      %268 = vector.extract_strided_slice %267 {offsets = [0, 0], sizes = [2, 256], strides = [1, 1]} : vector<2x1024xf32> to vector<2x256xf32>
      %269 = arith.negf %268 : vector<2x256xf32>
      %270 = math.exp %269 : vector<2x256xf32>
      %cst_62 = arith.constant 1.000000e+00 : f32
      %271 = vector.broadcast %cst_62 : f32 to vector<2x256xf32>
      %272 = arith.addf %271, %270 : vector<2x256xf32>
      %273 = arith.divf %271, %272 : vector<2x256xf32>
      %274 = vector.extract_strided_slice %267 {offsets = [0, 512], sizes = [2, 256], strides = [1, 1]} : vector<2x1024xf32> to vector<2x256xf32>
      %275 = math.tanh %274 : vector<2x256xf32>
      %276 = vector.extract_strided_slice %267 {offsets = [0, 768], sizes = [2, 256], strides = [1, 1]} : vector<2x1024xf32> to vector<2x256xf32>
      %277 = arith.negf %276 : vector<2x256xf32>
      %278 = math.exp %277 : vector<2x256xf32>
      %cst_63 = arith.constant 1.000000e+00 : f32
      %279 = vector.broadcast %cst_63 : f32 to vector<2x256xf32>
      %280 = arith.addf %279, %278 : vector<2x256xf32>
      %281 = arith.divf %279, %280 : vector<2x256xf32>
      %282 = arith.mulf %273, %275 : vector<2x256xf32>
      %283 = math.tanh %282 : vector<2x256xf32>
      %284 = arith.mulf %281, %283 : vector<2x256xf32>
      %c0_64 = arith.constant 0 : index
      %c0_65 = arith.constant 0 : index
      %285 = vector.load %arg4[%c0_64, %c0_65] : memref<256x7xf32, #tpu.memory_space<vmem>>, vector<256x7xf32>
      %cst_66 = arith.constant dense<0.000000e+00> : vector<2x7xf32>
      %286 = tpu.matmul %261, %285, %cst_66 {dimension_numbers = #tpu.dot_dimension_numbers<[1], [0], [0], [1], [0, 0, 1, 1], [], []>} : vector<2x256xf32>, vector<256x7xf32>, vector<2x7xf32> -> vector<2x7xf32>
      %c0_67 = arith.constant 0 : index
      %c0_68 = arith.constant 0 : index
      %287 = vector.load %arg5[%c0_67, %c0_68] : memref<256x7xf32, #tpu.memory_space<vmem>>, vector<256x7xf32>
      %cst_69 = arith.constant dense<0.000000e+00> : vector<2x7xf32>
      %288 = tpu.matmul %284, %287, %cst_69 {dimension_numbers = #tpu.dot_dimension_numbers<[1], [0], [0], [1], [0, 0, 1, 1], [], []>} : vector<2x256xf32>, vector<256x7xf32>, vector<2x7xf32> -> vector<2x7xf32>
      %289 = arith.addf %286, %288 : vector<2x7xf32>
      %c0_70 = arith.constant 0 : index
      %c0_71 = arith.constant 0 : index
      %290 = vector.load %arg6[%c0_70, %c0_71] : memref<1x7xf32, #tpu.memory_space<vmem>>, vector<1x7xf32>
      %291 = vector.broadcast %290 : vector<1x7xf32> to vector<2x7xf32>
      %292 = arith.addf %289, %291 : vector<2x7xf32>
      %cst_72 = arith.constant 1.000000e-01 : f32
      %293 = vector.broadcast %cst_72 : f32 to vector<2x7xf32>
      %294 = arith.mulf %292, %293 : vector<2x7xf32>
      %cst_73 = arith.constant dense<0xFF800000> : vector<2xf32>
      %295 = vector.multi_reduction <maximumf>, %294, %cst_73 [1] : vector<2x7xf32> to vector<2xf32>
      %296 = vector.shape_cast %295 : vector<2xf32> to vector<2x1xf32>
      %297 = vector.broadcast %296 : vector<2x1xf32> to vector<2x7xf32>
      %298 = arith.subf %294, %297 : vector<2x7xf32>
      %299 = math.exp %298 : vector<2x7xf32>
      %cst_74 = arith.constant dense<0.000000e+00> : vector<2xf32>
      %300 = vector.multi_reduction <add>, %299, %cst_74 [1] : vector<2x7xf32> to vector<2xf32>
      %301 = vector.shape_cast %300 : vector<2xf32> to vector<2x1xf32>
      %302 = vector.broadcast %301 : vector<2x1xf32> to vector<2x7xf32>
      %303 = arith.divf %299, %302 : vector<2x7xf32>
      %c0_75 = arith.constant 0 : index
      %c0_76 = arith.constant 0 : index
      %304 = vector.load %arg7[%c0_75, %c0_76] : memref<2x7xf32, #tpu.memory_space<vmem>>, vector<2x7xf32>
      tpu.vector_store %arg7[%c0_75, %c0_76], %303 {strides = array<i32>} : memref<2x7xf32, #tpu.memory_space<vmem>>, vector<2x7xf32>,
    } else {
    }
    return
  }
  func.func @transform_0(%arg0: i32) -> (i32, i32, i32) {
    %c0_i32 = arith.constant 0 : i32
    %c0_i32_0 = arith.constant 0 : i32
    %c0_i32_1 = arith.constant 0 : i32
    return %arg0, %c0_i32, %c0_i32_0 : i32, i32, i32
  }
  func.func @transform_1(%arg0: i32) -> (i32, i32) {
    %c0_i32 = arith.constant 0 : i32
    %c0_i32_0 = arith.constant 0 : i32
    %c0_i32_1 = arith.constant 0 : i32
    return %c0_i32, %c0_i32_0 : i32, i32
  }
  func.func @transform_2(%arg0: i32) -> (i32, i32) {
    %c0_i32 = arith.constant 0 : i32
    %c0_i32_0 = arith.constant 0 : i32
    %c0_i32_1 = arith.constant 0 : i32
    return %c0_i32, %c0_i32_0 : i32, i32
  }
  func.func @transform_3(%arg0: i32) -> (i32, i32) {
    %c0_i32 = arith.constant 0 : i32
    %c0_i32_0 = arith.constant 0 : i32
    %c0_i32_1 = arith.constant 0 : i32
    return %c0_i32, %c0_i32_0 : i32, i32
  }
  func.func @transform_4(%arg0: i32) -> (i32, i32) {
    %c0_i32 = arith.constant 0 : i32
    %c0_i32_0 = arith.constant 0 : i32
    %c0_i32_1 = arith.constant 0 : i32
    return %c0_i32, %c0_i32_0 : i32, i32
  }
  func.func @transform_5(%arg0: i32) -> (i32, i32) {
    %c0_i32 = arith.constant 0 : i32
    %c0_i32_0 = arith.constant 0 : i32
    %c0_i32_1 = arith.constant 0 : i32
    return %c0_i32, %c0_i32_0 : i32, i32
  }
  func.func @transform_6(%arg0: i32) -> (i32, i32) {
    %c0_i32 = arith.constant 0 : i32
    %c0_i32_0 = arith.constant 0 : i32
    %c0_i32_1 = arith.constant 0 : i32
    return %c0_i32, %c0_i32_0 : i32, i32
  }
}

</mosaic_0001>

<llo_original>
// kernel: rate_predictor_forward.2
$region0: #{rate_predictor_forward.2}
  #allocation0 [shape = 'u32[]', space=smem, size = 0x4, offset = 0x4, fixed_abs, tag = 'smem constant byte address 0x4 - core index']
  #allocation1 [shape = 'u32[144,128]{1,0:T(1,128)}', space=vmem, size = 0x12000, scoped, tag = 'internal scratch']
  #allocation2 [shape = 'f32[2,256]{1,0:T(2,128)}', space=vmem, size = 0x800, scoped, tag = 'scratch operand']
  #allocation3 [shape = 'f32[2,256]{1,0:T(2,128)}', space=vmem, size = 0x800, scoped, tag = 'scratch operand']
  %s0 = inlined_call_operand.vmem [shape: bf16[2,8,2,1024], index: 0, kind: input, shape index: {}]
  %s1 = inlined_call_operand.vmem [shape: bf16[2,256,1024], index: 1, kind: input, shape index: {}]
  %s2 = inlined_call_operand.vmem [shape: bf16[2,8,2,256], index: 2, kind: output, shape index: {}]
  %s3 = sld [smem:[#allocation0]]
  $region45: #{rate_predictor_forward.2} parent=0
    _
  %s5 = ssub.s32 1, %s3
  %s6 = scalar_select 0, %s5, %s3
  loop: start=0, step=1, limit=4
  $region2: #{rate_predictor_forward.2} parent=0 // loop_pre_header
    _
  $region3: #{rate_predictor_forward.2} parent=0 // loop_header
    %s8 = sphi 0, %s12
    %p9 = scmp.ge.s32.totalorder %s8, 4
    %s15 = sphi 0, %s27
    %s16 = sphi 0, %s23
    %s17 = sphi 0, %s15
    %s18 = sphi 0, %s16
    %s19 = sphi 0, %s17
    %s20 = sphi 0, %s18
    %s32 = sphi 0, %s34
    %s35 = sphi 0, %s32
    %s36 = sphi 0, %s35
    %s52 = sphi 0, %s36
    %s58 = sphi 0, %s60
    %s61 = sphi 0, %s58
    %s62 = sphi 0, %s61
    %s78 = sphi 0, %s62
    %s86 = sphi 0, %s88
    %s89 = sphi 0, %s86
    %s90 = sphi 0, %s89
    %s106 = sphi 0, %s90
  $region4: #{rate_predictor_forward.2} parent=0 // loop_header_branch
    %11 = sbr.rel (%p9) target = $region8
  $region5: #{rate_predictor_forward.2} parent=0 // loop_body
    %s13 = ssub.s32 %s8, 1
    %s14 = ssub.s32 %s8, 2
    %s21 = sadd.s32 1, %s16
    %p22 = scmp.ge.s32.totalorder %s21, 1
    %s23 = scalar_select %p22, 0, %s21
    %s24 = sadd.s32 1, %s15
    %s25 = scalar_select %p22, %s24, %s15
    %p26 = scmp.ge.s32.totalorder %s25, 2
    %s27 = scalar_select %p26, 0, %s25
    %s28 = ssub.s32 %s15, %s27
    %s29 = ssub.s32 %s16, %s23
    %s30 = sor.u32 %s28, %s29
    %p31 = scmp.eq.s32.totalorder %s30, 0
    %s33 = sadd.s32 %s32, 1
    %s34 = scalar_select %p31, %s32, %s33
    %p37 = pneg %p31
    %p38 = scmp.eq.s32.totalorder %s8, 1
    %p39 = por %p37, %p38
    %p40 = scmp.ne.s32.totalorder %s32, %s35
    %p41 = scmp.eq.s32.totalorder %s8, 0
    %p42 = por %p40, %p41
    %p43 = scmp.ne.s32.totalorder %s32, %s35
    %p44 = scmp.eq.s32.totalorder %s13, 1
    %p45 = por %p43, %p44
    %p46 = scmp.ne.s32.totalorder %s35, %s36
    %p47 = scmp.eq.s32.totalorder %s13, 0
    %p48 = por %p46, %p47
    %p49 = scmp.ne.s32.totalorder %s35, %s36
    %p50 = scmp.eq.s32.totalorder %s14, 1
    %p51 = por %p49, %p50
    %p53 = scmp.ne.s32.totalorder %s36, %s52
    %p54 = scmp.eq.s32.totalorder %s14, 0
    %p55 = por %p53, %p54
    %s56 = ssub.s32 %s15, %s27
    %p57 = scmp.eq.s32.totalorder %s56, 0
    %s59 = sadd.s32 %s58, 1
    %s60 = scalar_select %p57, %s58, %s59
    %p63 = pneg %p57
    %p64 = scmp.eq.s32.totalorder %s8, 1
    %p65 = por %p63, %p64
    %p66 = scmp.ne.s32.totalorder %s58, %s61
    %p67 = scmp.eq.s32.totalorder %s8, 0
    %p68 = por %p66, %p67
    %p69 = scmp.ne.s32.totalorder %s58, %s61
    %p70 = scmp.eq.s32.totalorder %s13, 1
    %p71 = por %p69, %p70
    %p72 = scmp.ne.s32.totalorder %s61, %s62
    %p73 = scmp.eq.s32.totalorder %s13, 0
    %p74 = por %p72, %p73
    %p75 = scmp.ne.s32.totalorder %s61, %s62
    %p76 = scmp.eq.s32.totalorder %s14, 1
    %p77 = por %p75, %p76
    %p79 = scmp.ne.s32.totalorder %s62, %s78
    %p80 = scmp.eq.s32.totalorder %s14, 0
    %p81 = por %p79, %p80
    %s82 = ssub.s32 %s15, %s27
    %s83 = ssub.s32 %s16, %s23
    %s84 = sor.u32 %s82, %s83
    %p85 = scmp.eq.s32.totalorder %s84, 0
    %s87 = sadd.s32 %s86, 1
    %s88 = scalar_select %p85, %s86, %s87
    %p91 = pneg %p85
    %p92 = scmp.eq.s32.totalorder %s8, 1
    %p93 = por %p91, %p92
    %p94 = scmp.ne.s32.totalorder %s86, %s89
    %p95 = scmp.eq.s32.totalorder %s8, 0
    %p96 = por %p94, %p95
    %p97 = scmp.ne.s32.totalorder %s86, %s89
    %p98 = scmp.eq.s32.totalorder %s13, 1
    %p99 = por %p97, %p98
    %p100 = scmp.ne.s32.totalorder %s89, %s90
    %p101 = scmp.eq.s32.totalorder %s13, 0
    %p102 = por %p100, %p101
    %p103 = scmp.ne.s32.totalorder %s89, %s90
    %p104 = scmp.eq.s32.totalorder %s14, 1
    %p105 = por %p103, %p104
    %p107 = scmp.ne.s32.totalorder %s90, %s106
    %p108 = scmp.eq.s32.totalorder %s14, 0
    %p109 = por %p107, %p108
    %p110 = scmp.le.s32.totalorder 1, %s8
    %p111 = scmp.lt.s32.totalorder %s8, 3
    %p112 = pnand %p110, %p111
    %p113 = pneg %p112
    // Predicated region
    $region9: #{rate_predictor_forward.2} parent=5 // pred_check
      _
    $region10: #{rate_predictor_forward.2} parent=5 // pred_check_branch
      %115 = sbr.rel (%p112) target = $region12
    $region11: #{rate_predictor_forward.2} parent=5 // pred_region
      %s116 = ssub.s32 %s8, 1
    $region12: #{rate_predictor_forward.2} parent=5 // pred_fallthru
      _
    %p117 = scmp.lt.s32.totalorder %s8, 2
    // Predicated region
    $region13: #{rate_predictor_forward.2} parent=5 // pred_check
      %p118 = pneg %p117
    $region14: #{rate_predictor_forward.2} parent=5 // pred_check_branch
      %120 = sbr.rel (%p118) target = $region16
    $region15: #{rate_predictor_forward.2} parent=5 // pred_region
      // Predicated region
      $region17: #{rate_predictor_forward.2} parent=15 // pred_check
        %p121 = pneg %p42
      $region18: #{rate_predictor_forward.2} parent=15 // pred_check_branch
        %123 = sbr.rel (%p121) target = $region20
      $region19: #{rate_predictor_forward.2} parent=15 // pred_region
        %s124 = smul.u32 8, %s16
        %p125 = scmp.lt.s32.totalorder %s15, 1
        %s126 = scalar_select %p125, %s15, 1
        %p127 = scmp.lt.s32.totalorder %s124, 7
        %s128 = scalar_select %p127, %s124, 7
        %s129 = smul.addr %s128, 8
        %s130 = smul.addr %s126, 64
        %s131 = sadd.s32 %s129, %s130
        %s132 = scalar_lea.vmem %s0, %s131
        %s133 = smul.u32 8, %s16
      $region20: #{rate_predictor_forward.2} parent=15 // pred_fallthru
        _
      // Predicated region
      $region21: #{rate_predictor_forward.2} parent=15 // pred_check
        %p134 = pneg %p68
      $region22: #{rate_predictor_forward.2} parent=15 // pred_check_branch
        %136 = sbr.rel (%p134) target = $region24
      $region23: #{rate_predictor_forward.2} parent=15 // pred_region
        %p137 = scmp.lt.s32.totalorder %s15, 1
        %s138 = scalar_select %p137, %s15, 1
        %s139 = smul.addr %s138, 256
        %s140 = smul.addr %s139, 4
        %s141 = scalar_lea.vmem %s1, %s140
      $region24: #{rate_predictor_forward.2} parent=15 // pred_fallthru
        _
    $region16: #{rate_predictor_forward.2} parent=5 // pred_fallthru
      _
    %p142 = scmp.le.s32.totalorder 1, %s8
    %p143 = scmp.lt.s32.totalorder %s8, 3
    %p144 = pnand %p142, %p143
    %p145 = pneg %p144
    // Predicated region
    $region25: #{rate_predictor_forward.2} parent=5 // pred_check
      _
    $region26: #{rate_predictor_forward.2} parent=5 // pred_check_branch
      %147 = sbr.rel (%p144) target = $region28
    $region27: #{rate_predictor_forward.2} parent=5 // pred_region
      %s148 = ssub.s32 %s8, 1
      %s149 = smul.u32 8, %s18
      %p150 = scmp.lt.s32.totalorder %s17, 1
      %s151 = scalar_select %p150, %s17, 1
      %p152 = scmp.lt.s32.totalorder %s149, 7
      %s153 = scalar_select %p152, %s149, 7
      %s154 = smul.addr %s153, 8
      %s155 = smul.addr %s151, 64
      %s156 = sadd.s32 %s154, %s155
      %s157 = scalar_lea.vmem %s0, %s156
      %p158 = pneg %p48
      %p159 = pneg %p45
      %p160 = scmp.lt.s32.totalorder %s17, 1
      %s161 = scalar_select %p160, %s17, 1
      %s162 = smul.addr %s161, 256
      %s163 = smul.addr %s162, 4
      %s164 = scalar_lea.vmem %s1, %s163
      %p165 = pneg %p74
      %p166 = pneg %p71
      %p167 = pneg %p102
      %p168 = pneg %p99
      %s169 = smul.u32 8, %s18
      %p170 = scmp.lt.s32.totalorder %s17, 1
      %s171 = scalar_select %p170, %s17, 1
      %p172 = scmp.lt.s32.totalorder %s169, 7
      %s173 = scalar_select %p172, %s169, 7
      %s174 = smul.addr %s173, 2
      %s175 = smul.addr %s171, 16
      %s176 = sadd.s32 %s174, %s175
      %s177 = scalar_lea.vmem %s2, %s176
      %s178 = smul.u32 8, %s18
      %p179 = scmp.lt.s32.totalorder %s17, 1
      %s180 = scalar_select %p179, %s17, 1
      %p181 = scmp.lt.s32.totalorder %s178, 7
      %s182 = scalar_select %p181, %s178, 7
      %s183 = smul.addr %s182, 8
      %s184 = smul.addr %s180, 64
      %s185 = sadd.s32 %s183, %s184
      %s186 = scalar_lea.vmem %s0, %s185
      %s187 = smul.u32 8, %s18
      %p188 = scmp.lt.s32.totalorder %s17, 1
      %s189 = scalar_select %p188, %s17, 1
      %s190 = smul.addr %s189, 256
      %s191 = smul.addr %s190, 4
      %s192 = scalar_lea.vmem %s1, %s191
      %s193 = smul.u32 8, %s18
      %p194 = scmp.lt.s32.totalorder %s17, 1
      %s195 = scalar_select %p194, %s17, 1
      %p196 = scmp.lt.s32.totalorder %s193, 7
      %s197 = scalar_select %p196, %s193, 7
      %s198 = smul.addr %s197, 2
      %s199 = smul.addr %s195, 16
      %s200 = sadd.s32 %s198, %s199
      %s201 = scalar_lea.vmem %s2, %s200
      %s202 = smul.u32 8, %s18
      %p203 = scmp.eq.s32.totalorder %s18, 0
      // Predicated region
      $region29: #{rate_predictor_forward.2} parent=27 // pred_check
        %p204 = pneg %p203
      $region30: #{rate_predictor_forward.2} parent=27 // pred_check_branch
        %206 = sbr.rel (%p204) target = $region32
      $region31: #{rate_predictor_forward.2} parent=27 // pred_region
        %207 = vst [vmem:[#allocation2] sm:$0xf] 0.0
        %208 = vst [vmem:[#allocation3] sm:$0xf] 0.0
      $region32: #{rate_predictor_forward.2} parent=27 // pred_fallthru
        _
      %v209 = vld [vmem:[%s192] sm:$0xff]
      %v210 = vld [vmem:[%s192 + $0x8] sm:$0xff]
      %v211 = vld [vmem:[%s192 + $0x10] sm:$0xff]
      %v212 = vld [vmem:[%s192 + $0x18] sm:$0xff]
      %v213 = vld [vmem:[%s192 + $0x20] sm:$0xff]
      %v214 = vld [vmem:[%s192 + $0x28] sm:$0xff]
      %v215 = vld [vmem:[%s192 + $0x30] sm:$0xff]
      %v216 = vld [vmem:[%s192 + $0x38] sm:$0xff]
      %v217 = vld [vmem:[%s192 + $0x40] sm:$0xff]
      %v218 = vld [vmem:[%s192 + $0x48] sm:$0xff]
      %v219 = vld [vmem:[%s192 + $0x50] sm:$0xff]
      %v220 = vld [vmem:[%s192 + $0x58] sm:$0xff]
      %v221 = vld [vmem:[%s192 + $0x60] sm:$0xff]
      %v222 = vld [vmem:[%s192 + $0x68] sm:$0xff]
      %v223 = vld [vmem:[%s192 + $0x70] sm:$0xff]
      %v224 = vld [vmem:[%s192 + $0x78] sm:$0xff]
      %v225 = vld [vmem:[%s192 + $0x80] sm:$0xff]
      %v226 = vld [vmem:[%s192 + $0x88] sm:$0xff]
      %v227 = vld [vmem:[%s192 + $0x90] sm:$0xff]
      %v228 = vld [vmem:[%s192 + $0x98] sm:$0xff]
      %v229 = vld [vmem:[%s192 + $0xa0] sm:$0xff]
      %v230 = vld [vmem:[%s192 + $0xa8] sm:$0xff]
      %v231 = vld [vmem:[%s192 + $0xb0] sm:$0xff]
      %v232 = vld [vmem:[%s192 + $0xb8] sm:$0xff]
      %v233 = vld [vmem:[%s192 + $0xc0] sm:$0xff]
      %v234 = vld [vmem:[%s192 + $0xc8] sm:$0xff]
      %v235 = vld [vmem:[%s192 + $0xd0] sm:$0xff]
      %v236 = vld [vmem:[%s192 + $0xd8] sm:$0xff]
      %v237 = vld [vmem:[%s192 + $0xe0] sm:$0xff]
      %v238 = vld [vmem:[%s192 + $0xe8] sm:$0xff]
      %v239 = vld [vmem:[%s192 + $0xf0] sm:$0xff]
      %v240 = vld [vmem:[%s192 + $0xf8] sm:$0xff]
      %v241 = vld [vmem:[%s192 + $0x100] sm:$0xff]
      %v242 = vld [vmem:[%s192 + $0x108] sm:$0xff]
      %v243 = vld [vmem:[%s192 + $0x110] sm:$0xff]
      %v244 = vld [vmem:[%s192 + $0x118] sm:$0xff]
      %v245 = vld [vmem:[%s192 + $0x120] sm:$0xff]
      %v246 = vld [vmem:[%s192 + $0x128] sm:$0xff]
      %v247 = vld [vmem:[%s192 + $0x130] sm:$0xff]
      %v248 = vld [vmem:[%s192 + $0x138] sm:$0xff]
      %v249 = vld [vmem:[%s192 + $0x140] sm:$0xff]
      %v250 = vld [vmem:[%s192 + $0x148] sm:$0xff]
      %v251 = vld [vmem:[%s192 + $0x150] sm:$0xff]
      %v252 = vld [vmem:[%s192 + $0x158] sm:$0xff]
      %v253 = vld [vmem:[%s192 + $0x160] sm:$0xff]
      %v254 = vld [vmem:[%s192 + $0x168] sm:$0xff]
      %v255 = vld [vmem:[%s192 + $0x170] sm:$0xff]
      %v256 = vld [vmem:[%s192 + $0x178] sm:$0xff]
      %v257 = vld [vmem:[%s192 + $0x180] sm:$0xff]
      %v258 = vld [vmem:[%s192 + $0x188] sm:$0xff]
      %v259 = vld [vmem:[%s192 + $0x190] sm:$0xff]
      %v260 = vld [vmem:[%s192 + $0x198] sm:$0xff]
      %v261 = vld [vmem:[%s192 + $0x1a0] sm:$0xff]
      %v262 = vld [vmem:[%s192 + $0x1a8] sm:$0xff]
      %v263 = vld [vmem:[%s192 + $0x1b0] sm:$0xff]
      %v264 = vld [vmem:[%s192 + $0x1b8] sm:$0xff]
      %v265 = vld [vmem:[%s192 + $0x1c0] sm:$0xff]
      %v266 = vld [vmem:[%s192 + $0x1c8] sm:$0xff]
      %v267 = vld [vmem:[%s192 + $0x1d0] sm:$0xff]
      %v268 = vld [vmem:[%s192 + $0x1d8] sm:$0xff]
      %v269 = vld [vmem:[%s192 + $0x1e0] sm:$0xff]
      %v270 = vld [vmem:[%s192 + $0x1e8] sm:$0xff]
      %v271 = vld [vmem:[%s192 + $0x1f0] sm:$0xff]
      %v272 = vld [vmem:[%s192 + $0x1f8] sm:$0xff]
      %v273 = vld [vmem:[%s192 + $0x200] sm:$0xff]
      %v274 = vld [vmem:[%s192 + $0x208] sm:$0xff]
      %v275 = vld [vmem:[%s192 + $0x210] sm:$0xff]
      %v276 = vld [vmem:[%s192 + $0x218] sm:$0xff]
      %v277 = vld [vmem:[%s192 + $0x220] sm:$0xff]
      %v278 = vld [vmem:[%s192 + $0x228] sm:$0xff]
      %v279 = vld [vmem:[%s192 + $0x230] sm:$0xff]
      %v280 = vld [vmem:[%s192 + $0x238] sm:$0xff]
      %v281 = vld [vmem:[%s192 + $0x240] sm:$0xff]
      %v282 = vld [vmem:[%s192 + $0x248] sm:$0xff]
      %v283 = vld [vmem:[%s192 + $0x250] sm:$0xff]
      %v284 = vld [vmem:[%s192 + $0x258] sm:$0xff]
      %v285 = vld [vmem:[%s192 + $0x260] sm:$0xff]
      %v286 = vld [vmem:[%s192 + $0x268] sm:$0xff]
      %v287 = vld [vmem:[%s192 + $0x270] sm:$0xff]
      %v288 = vld [vmem:[%s192 + $0x278] sm:$0xff]
      %v289 = vld [vmem:[%s192 + $0x280] sm:$0xff]
      %v290 = vld [vmem:[%s192 + $0x288] sm:$0xff]
      %v291 = vld [vmem:[%s192 + $0x290] sm:$0xff]
      %v292 = vld [vmem:[%s192 + $0x298] sm:$0xff]
      %v293 = vld [vmem:[%s192 + $0x2a0] sm:$0xff]
      %v294 = vld [vmem:[%s192 + $0x2a8] sm:$0xff]
      %v295 = vld [vmem:[%s192 + $0x2b0] sm:$0xff]
      %v296 = vld [vmem:[%s192 + $0x2b8] sm:$0xff]
      %v297 = vld [vmem:[%s192 + $0x2c0] sm:$0xff]
      %v298 = vld [vmem:[%s192 + $0x2c8] sm:$0xff]
      %v299 = vld [vmem:[%s192 + $0x2d0] sm:$0xff]
      %v300 = vld [vmem:[%s192 + $0x2d8] sm:$0xff]
      %v301 = vld [vmem:[%s192 + $0x2e0] sm:$0xff]
      %v302 = vld [vmem:[%s192 + $0x2e8] sm:$0xff]
      %v303 = vld [vmem:[%s192 + $0x2f0] sm:$0xff]
      %v304 = vld [vmem:[%s192 + $0x2f8] sm:$0xff]
      %v305 = vld [vmem:[%s192 + $0x300] sm:$0xff]
      %v306 = vld [vmem:[%s192 + $0x308] sm:$0xff]
      %v307 = vld [vmem:[%s192 + $0x310] sm:$0xff]
      %v308 = vld [vmem:[%s192 + $0x318] sm:$0xff]
      %v309 = vld [vmem:[%s192 + $0x320] sm:$0xff]
      %v310 = vld [vmem:[%s192 + $0x328] sm:$0xff]
      %v311 = vld [vmem:[%s192 + $0x330] sm:$0xff]
      %v312 = vld [vmem:[%s192 + $0x338] sm:$0xff]
      %v313 = vld [vmem:[%s192 + $0x340] sm:$0xff]
      %v314 = vld [vmem:[%s192 + $0x348] sm:$0xff]
      %v315 = vld [vmem:[%s192 + $0x350] sm:$0xff]
      %v316 = vld [vmem:[%s192 + $0x358] sm:$0xff]
      %v317 = vld [vmem:[%s192 + $0x360] sm:$0xff]
      %v318 = vld [vmem:[%s192 + $0x368] sm:$0xff]
      %v319 = vld [vmem:[%s192 + $0x370] sm:$0xff]
      %v320 = vld [vmem:[%s192 + $0x378] sm:$0xff]
      %v321 = vld [vmem:[%s192 + $0x380] sm:$0xff]
      %v322 = vld [vmem:[%s192 + $0x388] sm:$0xff]
      %v323 = vld [vmem:[%s192 + $0x390] sm:$0xff]
      %v324 = vld [vmem:[%s192 + $0x398] sm:$0xff]
      %v325 = vld [vmem:[%s192 + $0x3a0] sm:$0xff]
      %v326 = vld [vmem:[%s192 + $0x3a8] sm:$0xff]
      %v327 = vld [vmem:[%s192 + $0x3b0] sm:$0xff]
      %v328 = vld [vmem:[%s192 + $0x3b8] sm:$0xff]
      %v329 = vld [vmem:[%s192 + $0x3c0] sm:$0xff]
      %v330 = vld [vmem:[%s192 + $0x3c8] sm:$0xff]
      %v331 = vld [vmem:[%s192 + $0x3d0] sm:$0xff]
      %v332 = vld [vmem:[%s192 + $0x3d8] sm:$0xff]
      %v333 = vld [vmem:[%s192 + $0x3e0] sm:$0xff]
      %v334 = vld [vmem:[%s192 + $0x3e8] sm:$0xff]
      %v335 = vld [vmem:[%s192 + $0x3f0] sm:$0xff]
      %v336 = vld [vmem:[%s192 + $0x3f8] sm:$0xff]
      %v337 = vld [vmem:[#allocation2] sm:$0xf]
      %v338 = vld [vmem:[#allocation3] sm:$0xf]
      %v339 = vld [vmem:[%s186] sm:$0xff]
      %v340 = vunpack.c.l.bf16 %v339
      %v341 = vunpack.c.h.bf16 %v339
      %v344 = vunpack.c.l.s4 1983009808
      %v345 = vunpack.c.0.s8 %v344
      %v346 = vlaneseq
      %v347 = vshrl.u32 %v346, 7
      %v348 = vsub.s32 %v345, %v347
      %v349 = vrot.slane %v337, %v348
      %v350 = vcombine.high %v349, %v349
      %v353 = vpack.c.bf16 %v349, %v349
      %v354 = vpack.c.bf16 %v350, %v350
      %v483 = vunpack.c.l.b16 %v209
      %v484 = vunpack.c.h.b16 %v209
      %v485 = vunpack.c.l.b16 %v210
      %v486 = vunpack.c.h.b16 %v210
      %v487 = vunpack.c.l.b16 %v211
      %v488 = vunpack.c.h.b16 %v211
      %v489 = vunpack.c.l.b16 %v212
      %v490 = vunpack.c.h.b16 %v212
      %v491 = vunpack.c.l.b16 %v213
      %v492 = vunpack.c.h.b16 %v213
      %v493 = vunpack.c.l.b16 %v214
      %v494 = vunpack.c.h.b16 %v214
      %v495 = vunpack.c.l.b16 %v215
      %v496 = vunpack.c.h.b16 %v215
      %v497 = vunpack.c.l.b16 %v216
      %v498 = vunpack.c.h.b16 %v216
      %v499 = vunpack.c.l.b16 %v217
      %v500 = vunpack.c.h.b16 %v217
      %v501 = vunpack.c.l.b16 %v218
      %v502 = vunpack.c.h.b16 %v218
      %v503 = vunpack.c.l.b16 %v219
      %v504 = vunpack.c.h.b16 %v219
      %v505 = vunpack.c.l.b16 %v220
      %v506 = vunpack.c.h.b16 %v220
      %v507 = vunpack.c.l.b16 %v221
      %v508 = vunpack.c.h.b16 %v221
      %v509 = vunpack.c.l.b16 %v222
      %v510 = vunpack.c.h.b16 %v222
      %v511 = vunpack.c.l.b16 %v223
      %v512 = vunpack.c.h.b16 %v223
      %v513 = vunpack.c.l.b16 %v224
      %v514 = vunpack.c.h.b16 %v224
      %v515 = vunpack.c.l.b16 %v225
      %v516 = vunpack.c.h.b16 %v225
      %v517 = vunpack.c.l.b16 %v226
      %v518 = vunpack.c.h.b16 %v226
      %v519 = vunpack.c.l.b16 %v227
      %v520 = vunpack.c.h.b16 %v227
      %v521 = vunpack.c.l.b16 %v228
      %v522 = vunpack.c.h.b16 %v228
      %v523 = vunpack.c.l.b16 %v229
      %v524 = vunpack.c.h.b16 %v229
      %v525 = vunpack.c.l.b16 %v230
      %v526 = vunpack.c.h.b16 %v230
      %v527 = vunpack.c.l.b16 %v231
      %v528 = vunpack.c.h.b16 %v231
      %v529 = vunpack.c.l.b16 %v232
      %v530 = vunpack.c.h.b16 %v232
      %v531 = vunpack.c.l.b16 %v233
      %v532 = vunpack.c.h.b16 %v233
      %v533 = vunpack.c.l.b16 %v234
      %v534 = vunpack.c.h.b16 %v234
      %v535 = vunpack.c.l.b16 %v235
      %v536 = vunpack.c.h.b16 %v235
      %v537 = vunpack.c.l.b16 %v236
      %v538 = vunpack.c.h.b16 %v236
      %v539 = vunpack.c.l.b16 %v237
      %v540 = vunpack.c.h.b16 %v237
      %v541 = vunpack.c.l.b16 %v238
      %v542 = vunpack.c.h.b16 %v238
      %v543 = vunpack.c.l.b16 %v239
      %v544 = vunpack.c.h.b16 %v239
      %v545 = vunpack.c.l.b16 %v240
      %v546 = vunpack.c.h.b16 %v240
      %v547 = vunpack.c.l.b16 %v241
      %v548 = vunpack.c.h.b16 %v241
      %v549 = vunpack.c.l.b16 %v242
      %v550 = vunpack.c.h.b16 %v242
      %v551 = vunpack.c.l.b16 %v243
      %v552 = vunpack.c.h.b16 %v243
      %v553 = vunpack.c.l.b16 %v244
      %v554 = vunpack.c.h.b16 %v244
      %v555 = vunpack.c.l.b16 %v245
      %v556 = vunpack.c.h.b16 %v245
      %v557 = vunpack.c.l.b16 %v246
      %v558 = vunpack.c.h.b16 %v246
      %v559 = vunpack.c.l.b16 %v247
      %v560 = vunpack.c.h.b16 %v247
      %v561 = vunpack.c.l.b16 %v248
      %v562 = vunpack.c.h.b16 %v248
      %v563 = vunpack.c.l.b16 %v249
      %v564 = vunpack.c.h.b16 %v249
      %v565 = vunpack.c.l.b16 %v250
      %v566 = vunpack.c.h.b16 %v250
      %v567 = vunpack.c.l.b16 %v251
      %v568 = vunpack.c.h.b16 %v251
      %v569 = vunpack.c.l.b16 %v252
      %v570 = vunpack.c.h.b16 %v252
      %v571 = vunpack.c.l.b16 %v253
      %v572 = vunpack.c.h.b16 %v253
      %v573 = vunpack.c.l.b16 %v254
      %v574 = vunpack.c.h.b16 %v254
      %v575 = vunpack.c.l.b16 %v255
      %v576 = vunpack.c.h.b16 %v255
      %v577 = vunpack.c.l.b16 %v256
      %v578 = vunpack.c.h.b16 %v256
      %v579 = vunpack.c.l.b16 %v257
      %v580 = vunpack.c.h.b16 %v257
      %v581 = vunpack.c.l.b16 %v258
      %v582 = vunpack.c.h.b16 %v258
      %v583 = vunpack.c.l.b16 %v259
      %v584 = vunpack.c.h.b16 %v259
      %v585 = vunpack.c.l.b16 %v260
      %v586 = vunpack.c.h.b16 %v260
      %v587 = vunpack.c.l.b16 %v261
      %v588 = vunpack.c.h.b16 %v261
      %v589 = vunpack.c.l.b16 %v262
      %v590 = vunpack.c.h.b16 %v262
      %v591 = vunpack.c.l.b16 %v263
      %v592 = vunpack.c.h.b16 %v263
      %v593 = vunpack.c.l.b16 %v264
      %v594 = vunpack.c.h.b16 %v264
      %v595 = vunpack.c.l.b16 %v265
      %v596 = vunpack.c.h.b16 %v265
      %v597 = vunpack.c.l.b16 %v266
      %v598 = vunpack.c.h.b16 %v266
      %v599 = vunpack.c.l.b16 %v267
      %v600 = vunpack.c.h.b16 %v267
      %v601 = vunpack.c.l.b16 %v268
      %v602 = vunpack.c.h.b16 %v268
      %v603 = vunpack.c.l.b16 %v269
      %v604 = vunpack.c.h.b16 %v269
      %v605 = vunpack.c.l.b16 %v270
      %v606 = vunpack.c.h.b16 %v270
      %v607 = vunpack.c.l.b16 %v271
      %v608 = vunpack.c.h.b16 %v271
      %v609 = vunpack.c.l.b16 %v272
      %v610 = vunpack.c.h.b16 %v272
      %v611 = vunpack.c.l.b16 %v273
      %v612 = vunpack.c.h.b16 %v273
      %v613 = vunpack.c.l.b16 %v274
      %v614 = vunpack.c.h.b16 %v274
      %v615 = vunpack.c.l.b16 %v275
      %v616 = vunpack.c.h.b16 %v275
      %v617 = vunpack.c.l.b16 %v276
      %v618 = vunpack.c.h.b16 %v276
      %v619 = vunpack.c.l.b16 %v277
      %v620 = vunpack.c.h.b16 %v277
      %v621 = vunpack.c.l.b16 %v278
      %v622 = vunpack.c.h.b16 %v278
      %v623 = vunpack.c.l.b16 %v279
      %v624 = vunpack.c.h.b16 %v279
      %v625 = vunpack.c.l.b16 %v280
      %v626 = vunpack.c.h.b16 %v280
      %v627 = vunpack.c.l.b16 %v281
      %v628 = vunpack.c.h.b16 %v281
      %v629 = vunpack.c.l.b16 %v282
      %v630 = vunpack.c.h.b16 %v282
      %v631 = vunpack.c.l.b16 %v283
      %v632 = vunpack.c.h.b16 %v283
      %v633 = vunpack.c.l.b16 %v284
      %v634 = vunpack.c.h.b16 %v284
      %v635 = vunpack.c.l.b16 %v285
      %v636 = vunpack.c.h.b16 %v285
      %v637 = vunpack.c.l.b16 %v286
      %v638 = vunpack.c.h.b16 %v286
      %v639 = vunpack.c.l.b16 %v287
      %v640 = vunpack.c.h.b16 %v287
      %v641 = vunpack.c.l.b16 %v288
      %v642 = vunpack.c.h.b16 %v288
      %v643 = vunpack.c.l.b16 %v289
      %v644 = vunpack.c.h.b16 %v289
      %v645 = vunpack.c.l.b16 %v290
      %v646 = vunpack.c.h.b16 %v290
      %v647 = vunpack.c.l.b16 %v291
      %v648 = vunpack.c.h.b16 %v291
      %v649 = vunpack.c.l.b16 %v292
      %v650 = vunpack.c.h.b16 %v292
      %v651 = vunpack.c.l.b16 %v293
      %v652 = vunpack.c.h.b16 %v293
      %v653 = vunpack.c.l.b16 %v294
      %v654 = vunpack.c.h.b16 %v294
      %v655 = vunpack.c.l.b16 %v295
      %v656 = vunpack.c.h.b16 %v295
      %v657 = vunpack.c.l.b16 %v296
      %v658 = vunpack.c.h.b16 %v296
      %v659 = vunpack.c.l.b16 %v297
      %v660 = vunpack.c.h.b16 %v297
      %v661 = vunpack.c.l.b16 %v298
      %v662 = vunpack.c.h.b16 %v298
      %v663 = vunpack.c.l.b16 %v299
      %v664 = vunpack.c.h.b16 %v299
      %v665 = vunpack.c.l.b16 %v300
      %v666 = vunpack.c.h.b16 %v300
      %v667 = vunpack.c.l.b16 %v301
      %v668 = vunpack.c.h.b16 %v301
      %v669 = vunpack.c.l.b16 %v302
      %v670 = vunpack.c.h.b16 %v302
      %v671 = vunpack.c.l.b16 %v303
      %v672 = vunpack.c.h.b16 %v303
      %v673 = vunpack.c.l.b16 %v304
      %v674 = vunpack.c.h.b16 %v304
      %v675 = vunpack.c.l.b16 %v305
      %v676 = vunpack.c.h.b16 %v305
      %v677 = vunpack.c.l.b16 %v306
      %v678 = vunpack.c.h.b16 %v306
      %v679 = vunpack.c.l.b16 %v307
      %v680 = vunpack.c.h.b16 %v307
      %v681 = vunpack.c.l.b16 %v308
      %v682 = vunpack.c.h.b16 %v308
      %v683 = vunpack.c.l.b16 %v309
      %v684 = vunpack.c.h.b16 %v309
      %v685 = vunpack.c.l.b16 %v310
      %v686 = vunpack.c.h.b16 %v310
      %v687 = vunpack.c.l.b16 %v311
      %v688 = vunpack.c.h.b16 %v311
      %v689 = vunpack.c.l.b16 %v312
      %v690 = vunpack.c.h.b16 %v312
      %v691 = vunpack.c.l.b16 %v313
      %v692 = vunpack.c.h.b16 %v313
      %v693 = vunpack.c.l.b16 %v314
      %v694 = vunpack.c.h.b16 %v314
      %v695 = vunpack.c.l.b16 %v315
      %v696 = vunpack.c.h.b16 %v315
      %v697 = vunpack.c.l.b16 %v316
      %v698 = vunpack.c.h.b16 %v316
      %v699 = vunpack.c.l.b16 %v317
      %v700 = vunpack.c.h.b16 %v317
      %v701 = vunpack.c.l.b16 %v318
      %v702 = vunpack.c.h.b16 %v318
      %v703 = vunpack.c.l.b16 %v319
      %v704 = vunpack.c.h.b16 %v319
      %v705 = vunpack.c.l.b16 %v320
      %v706 = vunpack.c.h.b16 %v320
      %v707 = vunpack.c.l.b16 %v321
      %v708 = vunpack.c.h.b16 %v321
      %v709 = vunpack.c.l.b16 %v322
      %v710 = vunpack.c.h.b16 %v322
      %v711 = vunpack.c.l.b16 %v323
      %v712 = vunpack.c.h.b16 %v323
      %v713 = vunpack.c.l.b16 %v324
      %v714 = vunpack.c.h.b16 %v324
      %v715 = vunpack.c.l.b16 %v325
      %v716 = vunpack.c.h.b16 %v325
      %v717 = vunpack.c.l.b16 %v326
      %v718 = vunpack.c.h.b16 %v326
      %v719 = vunpack.c.l.b16 %v327
      %v720 = vunpack.c.h.b16 %v327
      %v721 = vunpack.c.l.b16 %v328
      %v722 = vunpack.c.h.b16 %v328
      %v723 = vunpack.c.l.b16 %v329
      %v724 = vunpack.c.h.b16 %v329
      %v725 = vunpack.c.l.b16 %v330
      %v726 = vunpack.c.h.b16 %v330
      %v727 = vunpack.c.l.b16 %v331
      %v728 = vunpack.c.h.b16 %v331
      %v729 = vunpack.c.l.b16 %v332
      %v730 = vunpack.c.h.b16 %v332
      %v731 = vunpack.c.l.b16 %v333
      %v732 = vunpack.c.h.b16 %v333
      %v733 = vunpack.c.l.b16 %v334
      %v734 = vunpack.c.h.b16 %v334
      %v735 = vunpack.c.l.b16 %v335
      %v736 = vunpack.c.h.b16 %v335
      %v737 = vunpack.c.l.b16 %v336
      %v738 = vunpack.c.h.b16 %v336
      %v739 = vpack.c.b16 %v491, %v483
      %v740 = vpack.c.b16 %v492, %v484
      %v741 = vpack.c.b16 %v493, %v485
      %v742 = vpack.c.b16 %v494, %v486
      %v743 = vpack.c.b16 %v495, %v487
      %v744 = vpack.c.b16 %v496, %v488
      %v745 = vpack.c.b16 %v497, %v489
      %v746 = vpack.c.b16 %v498, %v490
      %v747 = vpack.c.b16 %v507, %v499
      %v748 = vpack.c.b16 %v508, %v500
      %v749 = vpack.c.b16 %v509, %v501
      %v750 = vpack.c.b16 %v510, %v502
      %v751 = vpack.c.b16 %v511, %v503
      %v752 = vpack.c.b16 %v512, %v504
      %v753 = vpack.c.b16 %v513, %v505
      %v754 = vpack.c.b16 %v514, %v506
      %v755 = vpack.c.b16 %v523, %v515
      %v756 = vpack.c.b16 %v524, %v516
      %v757 = vpack.c.b16 %v525, %v517
      %v758 = vpack.c.b16 %v526, %v518
      %v759 = vpack.c.b16 %v527, %v519
      %v760 = vpack.c.b16 %v528, %v520
      %v761 = vpack.c.b16 %v529, %v521
      %v762 = vpack.c.b16 %v530, %v522
      %v763 = vpack.c.b16 %v539, %v531
      %v764 = vpack.c.b16 %v540, %v532
      %v765 = vpack.c.b16 %v541, %v533
      %v766 = vpack.c.b16 %v542, %v534
      %v767 = vpack.c.b16 %v543, %v535
      %v768 = vpack.c.b16 %v544, %v536
      %v769 = vpack.c.b16 %v545, %v537
      %v770 = vpack.c.b16 %v546, %v538
      %v771 = vpack.c.b16 %v555, %v547
      %v772 = vpack.c.b16 %v556, %v548
      %v773 = vpack.c.b16 %v557, %v549
      %v774 = vpack.c.b16 %v558, %v550
      %v775 = vpack.c.b16 %v559, %v551
      %v776 = vpack.c.b16 %v560, %v552
      %v777 = vpack.c.b16 %v561, %v553
      %v778 = vpack.c.b16 %v562, %v554
      %v779 = vpack.c.b16 %v571, %v563
      %v780 = vpack.c.b16 %v572, %v564
      %v781 = vpack.c.b16 %v573, %v565
      %v782 = vpack.c.b16 %v574, %v566
      %v783 = vpack.c.b16 %v575, %v567
      %v784 = vpack.c.b16 %v576, %v568
      %v785 = vpack.c.b16 %v577, %v569
      %v786 = vpack.c.b16 %v578, %v570
      %v787 = vpack.c.b16 %v587, %v579
      %v788 = vpack.c.b16 %v588, %v580
      %v789 = vpack.c.b16 %v589, %v581
      %v790 = vpack.c.b16 %v590, %v582
      %v791 = vpack.c.b16 %v591, %v583
      %v792 = vpack.c.b16 %v592, %v584
      %v793 = vpack.c.b16 %v593, %v585
      %v794 = vpack.c.b16 %v594, %v586
      %v795 = vpack.c.b16 %v603, %v595
      %v796 = vpack.c.b16 %v604, %v596
      %v797 = vpack.c.b16 %v605, %v597
      %v798 = vpack.c.b16 %v606, %v598
      %v799 = vpack.c.b16 %v607, %v599
      %v800 = vpack.c.b16 %v608, %v600
      %v801 = vpack.c.b16 %v609, %v601
      %v802 = vpack.c.b16 %v610, %v602
      %v803 = vpack.c.b16 %v619, %v611
      %v804 = vpack.c.b16 %v620, %v612
      %v805 = vpack.c.b16 %v621, %v613
      %v806 = vpack.c.b16 %v622, %v614
      %v807 = vpack.c.b16 %v623, %v615
      %v808 = vpack.c.b16 %v624, %v616
      %v809 = vpack.c.b16 %v625, %v617
      %v810 = vpack.c.b16 %v626, %v618
      %v811 = vpack.c.b16 %v635, %v627
      %v812 = vpack.c.b16 %v636, %v628
      %v813 = vpack.c.b16 %v637, %v629
      %v814 = vpack.c.b16 %v638, %v630
      %v815 = vpack.c.b16 %v639, %v631
      %v816 = vpack.c.b16 %v640, %v632
      %v817 = vpack.c.b16 %v641, %v633
      %v818 = vpack.c.b16 %v642, %v634
      %v819 = vpack.c.b16 %v651, %v643
      %v820 = vpack.c.b16 %v652, %v644
      %v821 = vpack.c.b16 %v653, %v645
      %v822 = vpack.c.b16 %v654, %v646
      %v823 = vpack.c.b16 %v655, %v647
      %v824 = vpack.c.b16 %v656, %v648
      %v825 = vpack.c.b16 %v657, %v649
      %v826 = vpack.c.b16 %v658, %v650
      %v827 = vpack.c.b16 %v667, %v659
      %v828 = vpack.c.b16 %v668, %v660
      %v829 = vpack.c.b16 %v669, %v661
      %v830 = vpack.c.b16 %v670, %v662
      %v831 = vpack.c.b16 %v671, %v663
      %v832 = vpack.c.b16 %v672, %v664
      %v833 = vpack.c.b16 %v673, %v665
      %v834 = vpack.c.b16 %v674, %v666
      %v835 = vpack.c.b16 %v683, %v675
      %v836 = vpack.c.b16 %v684, %v676
      %v837 = vpack.c.b16 %v685, %v677
      %v838 = vpack.c.b16 %v686, %v678
      %v839 = vpack.c.b16 %v687, %v679
      %v840 = vpack.c.b16 %v688, %v680
      %v841 = vpack.c.b16 %v689, %v681
      %v842 = vpack.c.b16 %v690, %v682
      %v843 = vpack.c.b16 %v699, %v691
      %v844 = vpack.c.b16 %v700, %v692
      %v845 = vpack.c.b16 %v701, %v693
      %v846 = vpack.c.b16 %v702, %v694
      %v847 = vpack.c.b16 %v703, %v695
      %v848 = vpack.c.b16 %v704, %v696
      %v849 = vpack.c.b16 %v705, %v697
      %v850 = vpack.c.b16 %v706, %v698
      %v851 = vpack.c.b16 %v715, %v707
      %v852 = vpack.c.b16 %v716, %v708
      %v853 = vpack.c.b16 %v717, %v709
      %v854 = vpack.c.b16 %v718, %v710
      %v855 = vpack.c.b16 %v719, %v711
      %v856 = vpack.c.b16 %v720, %v712
      %v857 = vpack.c.b16 %v721, %v713
      %v858 = vpack.c.b16 %v722, %v714
      %v859 = vpack.c.b16 %v731, %v723
      %v860 = vpack.c.b16 %v732, %v724
      %v861 = vpack.c.b16 %v733, %v725
      %v862 = vpack.c.b16 %v734, %v726
      %v863 = vpack.c.b16 %v735, %v727
      %v864 = vpack.c.b16 %v736, %v728
      %v865 = vpack.c.b16 %v737, %v729
      %v866 = vpack.c.b16 %v738, %v730
      %995 = vmatprep.subr.bf16.mxu0 %v740
      %996 = vmatpush1.bf16.msra.mxu0 %v739
      %997 = vmatprep.subr.bf16.mxu0 %v748
      %998 = vmatpush1.bf16.msra.mxu0 %v747
      %999 = vmatprep.subr.bf16.mxu0 %v756
      %1000 = vmatpush1.bf16.msra.mxu0 %v755
      %1001 = vmatprep.subr.bf16.mxu0 %v764
      %1002 = vmatpush1.bf16.msra.mxu0 %v763
      %1003 = vmatprep.subr.bf16.mxu0 %v772
      %1004 = vmatpush1.bf16.msra.mxu0 %v771
      %1005 = vmatprep.subr.bf16.mxu0 %v780
      %1006 = vmatpush1.bf16.msra.mxu0 %v779
      %1007 = vmatprep.subr.bf16.mxu0 %v788
      %1008 = vmatpush1.bf16.msra.mxu0 %v787
      %1009 = vmatprep.subr.bf16.mxu0 %v796
      %1010 = vmatpush1.bf16.msra.mxu0 %v795
      %1011 = vmatprep.subr.bf16.mxu0 %v804
      %1012 = vmatpush1.bf16.msra.mxu0 %v803
      %1013 = vmatprep.subr.bf16.mxu0 %v812
      %1014 = vmatpush1.bf16.msra.mxu0 %v811
      %1015 = vmatprep.subr.bf16.mxu0 %v820
      %1016 = vmatpush1.bf16.msra.mxu0 %v819
      %1017 = vmatprep.subr.bf16.mxu0 %v828
      %1018 = vmatpush1.bf16.msra.mxu0 %v827
      %1019 = vmatprep.subr.bf16.mxu0 %v836
      %1020 = vmatpush1.bf16.msra.mxu0 %v835
      %1021 = vmatprep.subr.bf16.mxu0 %v844
      %1022 = vmatpush1.bf16.msra.mxu0 %v843
      %1023 = vmatprep.subr.bf16.mxu0 %v852
      %1024 = vmatpush1.bf16.msra.mxu0 %v851
      %1025 = vmatprep.subr.bf16.mxu0 %v860
      %1026 = vmatpush1.bf16.msra.mxu0 %v859
      %1027 = vmatprep.mubr.bf16.mxu0 %v354
      %1028 = vmatmul.mubr.bf16.gmra.mrb[0].mxu0 %v353
      %v1029 = vpop.f32.mrb[0].mxu0
      %v1030 = vadd.f32 0.0, %v1029
      %v1031 = vpop.f32.mrb[0].mxu0
      %v1032 = vadd.f32 0.0, %v1031
      %v1033 = vpop.f32.mrb[0].mxu0
      %v1034 = vpop.f32.mrb[0].mxu0
      %1035 = vdwg.mxu0
      %1036 = vmatprep.subr.bf16.mxu0 %v742
      %1037 = vmatpush1.bf16.msra.mxu0 %v741
      %1038 = vmatprep.subr.bf16.mxu0 %v750
      %1039 = vmatpush1.bf16.msra.mxu0 %v749
      %1040 = vmatprep.subr.bf16.mxu0 %v758
      %1041 = vmatpush1.bf16.msra.mxu0 %v757
      %1042 = vmatprep.subr.bf16.mxu0 %v766
      %1043 = vmatpush1.bf16.msra.mxu0 %v765
      %1044 = vmatprep.subr.bf16.mxu0 %v774
      %1045 = vmatpush1.bf16.msra.mxu0 %v773
      %1046 = vmatprep.subr.bf16.mxu0 %v782
      %1047 = vmatpush1.bf16.msra.mxu0 %v781
      %1048 = vmatprep.subr.bf16.mxu0 %v790
      %1049 = vmatpush1.bf16.msra.mxu0 %v789
      %1050 = vmatprep.subr.bf16.mxu0 %v798
      %1051 = vmatpush1.bf16.msra.mxu0 %v797
      %1052 = vmatprep.subr.bf16.mxu0 %v806
      %1053 = vmatpush1.bf16.msra.mxu0 %v805
      %1054 = vmatprep.subr.bf16.mxu0 %v814
      %1055 = vmatpush1.bf16.msra.mxu0 %v813
      %1056 = vmatprep.subr.bf16.mxu0 %v822
      %1057 = vmatpush1.bf16.msra.mxu0 %v821
      %1058 = vmatprep.subr.bf16.mxu0 %v830
      %1059 = vmatpush1.bf16.msra.mxu0 %v829
      %1060 = vmatprep.subr.bf16.mxu0 %v838
      %1061 = vmatpush1.bf16.msra.mxu0 %v837
      %1062 = vmatprep.subr.bf16.mxu0 %v846
      %1063 = vmatpush1.bf16.msra.mxu0 %v845
      %1064 = vmatprep.subr.bf16.mxu0 %v854
      %1065 = vmatpush1.bf16.msra.mxu0 %v853
      %1066 = vmatprep.subr.bf16.mxu0 %v862
      %1067 = vmatpush1.bf16.msra.mxu0 %v861
      %1068 = vmatprep.mubr.bf16.mxu0 %v354
      %1069 = vmatmul.mubr.bf16.gmra.mrb[0].mxu0 %v353
      %v1070 = vpop.f32.mrb[0].mxu0
      %v1071 = vadd.f32 0.0, %v1070
      %v1072 = vpop.f32.mrb[0].mxu0
      %v1073 = vadd.f32 0.0, %v1072
      %v1074 = vpop.f32.mrb[0].mxu0
      %v1075 = vpop.f32.mrb[0].mxu0
      %1076 = vdwg.mxu0
      %1077 = vmatprep.subr.bf16.mxu0 %v744
      %1078 = vmatpush1.bf16.msra.mxu0 %v743
      %1079 = vmatprep.subr.bf16.mxu0 %v752
      %1080 = vmatpush1.bf16.msra.mxu0 %v751
      %1081 = vmatprep.subr.bf16.mxu0 %v760
      %1082 = vmatpush1.bf16.msra.mxu0 %v759
      %1083 = vmatprep.subr.bf16.mxu0 %v768
      %1084 = vmatpush1.bf16.msra.mxu0 %v767
      %1085 = vmatprep.subr.bf16.mxu0 %v776
      %1086 = vmatpush1.bf16.msra.mxu0 %v775
      %1087 = vmatprep.subr.bf16.mxu0 %v784
      %1088 = vmatpush1.bf16.msra.mxu0 %v783
      %1089 = vmatprep.subr.bf16.mxu0 %v792
      %1090 = vmatpush1.bf16.msra.mxu0 %v791
      %1091 = vmatprep.subr.bf16.mxu0 %v800
      %1092 = vmatpush1.bf16.msra.mxu0 %v799
      %1093 = vmatprep.subr.bf16.mxu0 %v808
      %1094 = vmatpush1.bf16.msra.mxu0 %v807
      %1095 = vmatprep.subr.bf16.mxu0 %v816
      %1096 = vmatpush1.bf16.msra.mxu0 %v815
      %1097 = vmatprep.subr.bf16.mxu0 %v824
      %1098 = vmatpush1.bf16.msra.mxu0 %v823
      %1099 = vmatprep.subr.bf16.mxu0 %v832
      %1100 = vmatpush1.bf16.msra.mxu0 %v831
      %1101 = vmatprep.subr.bf16.mxu0 %v840
      %1102 = vmatpush1.bf16.msra.mxu0 %v839
      %1103 = vmatprep.subr.bf16.mxu0 %v848
      %1104 = vmatpush1.bf16.msra.mxu0 %v847
      %1105 = vmatprep.subr.bf16.mxu0 %v856
      %1106 = vmatpush1.bf16.msra.mxu0 %v855
      %1107 = vmatprep.subr.bf16.mxu0 %v864
      %1108 = vmatpush1.bf16.msra.mxu0 %v863
      %1109 = vmatprep.mubr.bf16.mxu0 %v354
      %1110 = vmatmul.mubr.bf16.gmra.mrb[0].mxu0 %v353
      %v1111 = vpop.f32.mrb[0].mxu0
      %v1112 = vadd.f32 0.0, %v1111
      %v1113 = vpop.f32.mrb[0].mxu0
      %v1114 = vadd.f32 0.0, %v1113
      %v1115 = vpop.f32.mrb[0].mxu0
      %v1116 = vpop.f32.mrb[0].mxu0
      %1117 = vdwg.mxu0
      %1118 = vmatprep.subr.bf16.mxu0 %v746
      %1119 = vmatpush1.bf16.msra.mxu0 %v745
      %1120 = vmatprep.subr.bf16.mxu0 %v754
      %1121 = vmatpush1.bf16.msra.mxu0 %v753
      %1122 = vmatprep.subr.bf16.mxu0 %v762
      %1123 = vmatpush1.bf16.msra.mxu0 %v761
      %1124 = vmatprep.subr.bf16.mxu0 %v770
      %1125 = vmatpush1.bf16.msra.mxu0 %v769
      %1126 = vmatprep.subr.bf16.mxu0 %v778
      %1127 = vmatpush1.bf16.msra.mxu0 %v777
      %1128 = vmatprep.subr.bf16.mxu0 %v786
      %1129 = vmatpush1.bf16.msra.mxu0 %v785
      %1130 = vmatprep.subr.bf16.mxu0 %v794
      %1131 = vmatpush1.bf16.msra.mxu0 %v793
      %1132 = vmatprep.subr.bf16.mxu0 %v802
      %1133 = vmatpush1.bf16.msra.mxu0 %v801
      %1134 = vmatprep.subr.bf16.mxu0 %v810
      %1135 = vmatpush1.bf16.msra.mxu0 %v809
      %1136 = vmatprep.subr.bf16.mxu0 %v818
      %1137 = vmatpush1.bf16.msra.mxu0 %v817
      %1138 = vmatprep.subr.bf16.mxu0 %v826
      %1139 = vmatpush1.bf16.msra.mxu0 %v825
      %1140 = vmatprep.subr.bf16.mxu0 %v834
      %1141 = vmatpush1.bf16.msra.mxu0 %v833
      %1142 = vmatprep.subr.bf16.mxu0 %v842
      %1143 = vmatpush1.bf16.msra.mxu0 %v841
      %1144 = vmatprep.subr.bf16.mxu0 %v850
      %1145 = vmatpush1.bf16.msra.mxu0 %v849
      %1146 = vmatprep.subr.bf16.mxu0 %v858
      %1147 = vmatpush1.bf16.msra.mxu0 %v857
      %1148 = vmatprep.subr.bf16.mxu0 %v866
      %1149 = vmatpush1.bf16.msra.mxu0 %v865
      %1150 = vmatprep.mubr.bf16.mxu0 %v354
      %1151 = vmatmul.mubr.bf16.gmra.mrb[0].mxu0 %v353
      %v1152 = vpop.f32.mrb[0].mxu0
      %v1153 = vadd.f32 0.0, %v1152
      %v1154 = vpop.f32.mrb[0].mxu0
      %v1155 = vadd.f32 0.0, %v1154
      %v1156 = vpop.f32.mrb[0].mxu0
      %v1157 = vpop.f32.mrb[0].mxu0
      %1158 = vdwg.mxu0
      %v1167 = vcombine.low %v1030, %v1032
      %v1168 = vcombine.low %v1071, %v1073
      %v1170 = vunpack.c.l.s4 1983009808
      %v1171 = vunpack.c.0.s8 %v1170
      %v1172 = vlaneseq
      %v1173 = vshrl.u32 %v1172, 7
      %v1174 = vsub.s32 %v1171, %v1173
      %v1175 = vrot.slane %v1167, %v1174
      %v1177 = vunpack.c.l.s4 1983009808
      %v1178 = vunpack.c.0.s8 %v1177
      %v1179 = vlaneseq
      %v1180 = vshrl.u32 %v1179, 7
      %v1181 = vsub.s32 %v1178, %v1180
      %v1182 = vrot.slane %v1168, %v1181
      %v1183 = vcombine.low %v1175, %v1182
      %v1184 = vcombine.low %v1112, %v1114
      %v1185 = vcombine.low %v1153, %v1155
      %v1187 = vunpack.c.l.s4 1983009808
      %v1188 = vunpack.c.0.s8 %v1187
      %v1189 = vlaneseq
      %v1190 = vshrl.u32 %v1189, 7
      %v1191 = vsub.s32 %v1188, %v1190
      %v1192 = vrot.slane %v1184, %v1191
      %v1194 = vunpack.c.l.s4 1983009808
      %v1195 = vunpack.c.0.s8 %v1194
      %v1196 = vlaneseq
      %v1197 = vshrl.u32 %v1196, 7
      %v1198 = vsub.s32 %v1195, %v1197
      %v1199 = vrot.slane %v1185, %v1198
      %v1200 = vcombine.low %v1192, %v1199
      %v1203 = vadd.f32 %v340, %v1183
      %v1204 = vadd.f32 %v341, %v1200
      %v1205 = vxor.u32 %v1203, 2147483648
      %v1206 = vmul.f32 %v1205, 1.442695
      %v1207 = vpow.pop %v1206
      %v1208 = vadd.f32 %v1207, 1.0
      %v1209 = vrcp.pop %v1208
      %v1210 = vmul.f32 1.0, %v1209
      %v1212 = vrot.slane %v1203, 4
      %v1214 = vxor.u32 %v1212, 2147483648
      %v1215 = vmul.f32 %v1214, 1.442695
      %v1216 = vpow.pop %v1215
      %v1217 = vadd.f32 %v1216, 1.0
      %v1218 = vrcp.pop %v1217
      %v1219 = vmul.f32 1.0, %v1218
      %v1220 = vtanh.pop %v1204
      %v1222 = vrot.slane %v1204, 4
      %v1224 = vxor.u32 %v1222, 2147483648
      %v1225 = vmul.f32 %v1224, 1.442695
      %v1226 = vpow.pop %v1225
      %v1227 = vadd.f32 %v1226, 1.0
      %v1228 = vrcp.pop %v1227
      %v1229 = vmul.f32 1.0, %v1228
      %v1230 = vmul.f32 %v1219, %v338
      %v1231 = vmul.f32 %v1210, %v1220
      %v1232 = vadd.f32 %v1230, %v1231
      %v1233 = vtanh.pop %v1232
      %v1234 = vmul.f32 %v1229, %v1233
      %v1237 = vunpack.c.l.s4 1983009808
      %v1238 = vunpack.c.0.s8 %v1237
      %v1239 = vlaneseq
      %v1240 = vshrl.u32 %v1239, 7
      %v1241 = vsub.s32 %v1238, %v1240
      %v1242 = vrot.slane %v1234, %v1241
      %v1243 = vcombine.high %v1242, %v1242
      %v1246 = vpack.c.bf16 %v1242, %v1242
      %v1247 = vpack.c.bf16 %v1243, %v1243
      %v1250 = vcombine.low %v1246, %v1247
      %v1252 = vunpack.c.l.s4 1966171168
      %v1253 = vunpack.c.0.s8 %v1252
      %v1254 = vlaneseq
      %v1255 = vshrl.u32 %v1254, 7
      %v1256 = vsub.s32 %v1253, %v1255
      %v1257 = vrot.slane %v1250, %v1256
      %v1259 = vunpack.c.l.s4 1966171168
      %v1260 = vunpack.c.0.s8 %v1259
      %v1261 = vlaneseq
      %v1262 = vshrl.u32 %v1261, 7
      %v1263 = vsub.s32 %v1260, %v1262
      %v1264 = vrot.slane %v1257, %v1263
      %1266 = vst [vmem:[%s201] sm:$0x3] %v1264
      %s1267 = scalar_lea.vmem %s186, 8
      %v1268 = vld [vmem:[%s1267] sm:$0xff]
      %v1269 = vunpack.c.l.bf16 %v1268
      %v1270 = vunpack.c.h.bf16 %v1268
      %1271 = vmatprep.subr.bf16.mxu0 %v740
      %1272 = vmatpush1.bf16.msra.mxu0 %v739
      %1273 = vmatprep.subr.bf16.mxu0 %v748
      %1274 = vmatpush1.bf16.msra.mxu0 %v747
      %1275 = vmatprep.subr.bf16.mxu0 %v756
      %1276 = vmatpush1.bf16.msra.mxu0 %v755
      %1277 = vmatprep.subr.bf16.mxu0 %v764
      %1278 = vmatpush1.bf16.msra.mxu0 %v763
      %1279 = vmatprep.subr.bf16.mxu0 %v772
      %1280 = vmatpush1.bf16.msra.mxu0 %v771
      %1281 = vmatprep.subr.bf16.mxu0 %v780
      %1282 = vmatpush1.bf16.msra.mxu0 %v779
      %1283 = vmatprep.subr.bf16.mxu0 %v788
      %1284 = vmatpush1.bf16.msra.mxu0 %v787
      %1285 = vmatprep.subr.bf16.mxu0 %v796
      %1286 = vmatpush1.bf16.msra.mxu0 %v795
      %1287 = vmatprep.subr.bf16.mxu0 %v804
      %1288 = vmatpush1.bf16.msra.mxu0 %v803
      %1289 = vmatprep.subr.bf16.mxu0 %v812
      %1290 = vmatpush1.bf16.msra.mxu0 %v811
      %1291 = vmatprep.subr.bf16.mxu0 %v820
      %1292 = vmatpush1.bf16.msra.mxu0 %v819
      %1293 = vmatprep.subr.bf16.mxu0 %v828
      %1294 = vmatpush1.bf16.msra.mxu0 %v827
      %1295 = vmatprep.subr.bf16.mxu0 %v836
      %1296 = vmatpush1.bf16.msra.mxu0 %v835
      %1297 = vmatprep.subr.bf16.mxu0 %v844
      %1298 = vmatpush1.bf16.msra.mxu0 %v843
      %1299 = vmatprep.subr.bf16.mxu0 %v852
      %1300 = vmatpush1.bf16.msra.mxu0 %v851
      %1301 = vmatprep.subr.bf16.mxu0 %v860
      %1302 = vmatpush1.bf16.msra.mxu0 %v859
      %1303 = vmatprep.mubr.bf16.mxu0 %v1247
      %1304 = vmatmul.mubr.bf16.gmra.mrb[0].mxu0 %v1246
      %v1305 = vpop.f32.mrb[0].mxu0
      %v1306 = vadd.f32 0.0, %v1305
      %v1307 = vpop.f32.mrb[0].mxu0
      %v1308 = vadd.f32 0.0, %v1307
      %v1309 = vpop.f32.mrb[0].mxu0
      %v1310 = vpop.f32.mrb[0].mxu0
      %1311 = vdwg.mxu0
      %1312 = vmatprep.subr.bf16.mxu0 %v742
      %1313 = vmatpush1.bf16.msra.mxu0 %v741
      %1314 = vmatprep.subr.bf16.mxu0 %v750
      %1315 = vmatpush1.bf16.msra.mxu0 %v749
      %1316 = vmatprep.subr.bf16.mxu0 %v758
      %1317 = vmatpush1.bf16.msra.mxu0 %v757
      %1318 = vmatprep.subr.bf16.mxu0 %v766
      %1319 = vmatpush1.bf16.msra.mxu0 %v765
      %1320 = vmatprep.subr.bf16.mxu0 %v774
      %1321 = vmatpush1.bf16.msra.mxu0 %v773
      %1322 = vmatprep.subr.bf16.mxu0 %v782
      %1323 = vmatpush1.bf16.msra.mxu0 %v781
      %1324 = vmatprep.subr.bf16.mxu0 %v790
      %1325 = vmatpush1.bf16.msra.mxu0 %v789
      %1326 = vmatprep.subr.bf16.mxu0 %v798
      %1327 = vmatpush1.bf16.msra.mxu0 %v797
      %1328 = vmatprep.subr.bf16.mxu0 %v806
      %1329 = vmatpush1.bf16.msra.mxu0 %v805
      %1330 = vmatprep.subr.bf16.mxu0 %v814
      %1331 = vmatpush1.bf16.msra.mxu0 %v813
      %1332 = vmatprep.subr.bf16.mxu0 %v822
      %1333 = vmatpush1.bf16.msra.mxu0 %v821
      %1334 = vmatprep.subr.bf16.mxu0 %v830
      %1335 = vmatpush1.bf16.msra.mxu0 %v829
      %1336 = vmatprep.subr.bf16.mxu0 %v838
      %1337 = vmatpush1.bf16.msra.mxu0 %v837
      %1338 = vmatprep.subr.bf16.mxu0 %v846
      %1339 = vmatpush1.bf16.msra.mxu0 %v845
      %1340 = vmatprep.subr.bf16.mxu0 %v854
      %1341 = vmatpush1.bf16.msra.mxu0 %v853
      %1342 = vmatprep.subr.bf16.mxu0 %v862
      %1343 = vmatpush1.bf16.msra.mxu0 %v861
      %1344 = vmatprep.mubr.bf16.mxu0 %v1247
      %1345 = vmatmul.mubr.bf16.gmra.mrb[0].mxu0 %v1246
      %v1346 = vpop.f32.mrb[0].mxu0
      %v1347 = vadd.f32 0.0, %v1346
      %v1348 = vpop.f32.mrb[0].mxu0
      %v1349 = vadd.f32 0.0, %v1348
      %v1350 = vpop.f32.mrb[0].mxu0
      %v1351 = vpop.f32.mrb[0].mxu0
      %1352 = vdwg.mxu0
      %1353 = vmatprep.subr.bf16.mxu0 %v744
      %1354 = vmatpush1.bf16.msra.mxu0 %v743
      %1355 = vmatprep.subr.bf16.mxu0 %v752
      %1356 = vmatpush1.bf16.msra.mxu0 %v751
      %1357 = vmatprep.subr.bf16.mxu0 %v760
      %1358 = vmatpush1.bf16.msra.mxu0 %v759
      %1359 = vmatprep.subr.bf16.mxu0 %v768
      %1360 = vmatpush1.bf16.msra.mxu0 %v767
      %1361 = vmatprep.subr.bf16.mxu0 %v776
      %1362 = vmatpush1.bf16.msra.mxu0 %v775
      %1363 = vmatprep.subr.bf16.mxu0 %v784
      %1364 = vmatpush1.bf16.msra.mxu0 %v783
      %1365 = vmatprep.subr.bf16.mxu0 %v792
      %1366 = vmatpush1.bf16.msra.mxu0 %v791
      %1367 = vmatprep.subr.bf16.mxu0 %v800
      %1368 = vmatpush1.bf16.msra.mxu0 %v799
      %1369 = vmatprep.subr.bf16.mxu0 %v808
      %1370 = vmatpush1.bf16.msra.mxu0 %v807
      %1371 = vmatprep.subr.bf16.mxu0 %v816
      %1372 = vmatpush1.bf16.msra.mxu0 %v815
      %1373 = vmatprep.subr.bf16.mxu0 %v824
      %1374 = vmatpush1.bf16.msra.mxu0 %v823
      %1375 = vmatprep.subr.bf16.mxu0 %v832
      %1376 = vmatpush1.bf16.msra.mxu0 %v831
      %1377 = vmatprep.subr.bf16.mxu0 %v840
      %1378 = vmatpush1.bf16.msra.mxu0 %v839
      %1379 = vmatprep.subr.bf16.mxu0 %v848
      %1380 = vmatpush1.bf16.msra.mxu0 %v847
      %1381 = vmatprep.subr.bf16.mxu0 %v856
      %1382 = vmatpush1.bf16.msra.mxu0 %v855
      %1383 = vmatprep.subr.bf16.mxu0 %v864
      %1384 = vmatpush1.bf16.msra.mxu0 %v863
      %1385 = vmatprep.mubr.bf16.mxu0 %v1247
      %1386 = vmatmul.mubr.bf16.gmra.mrb[0].mxu0 %v1246
      %v1387 = vpop.f32.mrb[0].mxu0
      %v1388 = vadd.f32 0.0, %v1387
      %v1389 = vpop.f32.mrb[0].mxu0
      %v1390 = vadd.f32 0.0, %v1389
      %v1391 = vpop.f32.mrb[0].mxu0
      %v1392 = vpop.f32.mrb[0].mxu0
      %1393 = vdwg.mxu0
      %1394 = vmatprep.subr.bf16.mxu0 %v746
      %1395 = vmatpush1.bf16.msra.mxu0 %v745
      %1396 = vmatprep.subr.bf16.mxu0 %v754
      %1397 = vmatpush1.bf16.msra.mxu0 %v753
      %1398 = vmatprep.subr.bf16.mxu0 %v762
      %1399 = vmatpush1.bf16.msra.mxu0 %v761
      %1400 = vmatprep.subr.bf16.mxu0 %v770
      %1401 = vmatpush1.bf16.msra.mxu0 %v769
      %1402 = vmatprep.subr.bf16.mxu0 %v778
      %1403 = vmatpush1.bf16.msra.mxu0 %v777
      %1404 = vmatprep.subr.bf16.mxu0 %v786
      %1405 = vmatpush1.bf16.msra.mxu0 %v785
      %1406 = vmatprep.subr.bf16.mxu0 %v794
      %1407 = vmatpush1.bf16.msra.mxu0 %v793
      %1408 = vmatprep.subr.bf16.mxu0 %v802
      %1409 = vmatpush1.bf16.msra.mxu0 %v801
      %1410 = vmatprep.subr.bf16.mxu0 %v810
      %1411 = vmatpush1.bf16.msra.mxu0 %v809
      %1412 = vmatprep.subr.bf16.mxu0 %v818
      %1413 = vmatpush1.bf16.msra.mxu0 %v817
      %1414 = vmatprep.subr.bf16.mxu0 %v826
      %1415 = vmatpush1.bf16.msra.mxu0 %v825
      %1416 = vmatprep.subr.bf16.mxu0 %v834
      %1417 = vmatpush1.bf16.msra.mxu0 %v833
      %1418 = vmatprep.subr.bf16.mxu0 %v842
      %1419 = vmatpush1.bf16.msra.mxu0 %v841
      %1420 = vmatprep.subr.bf16.mxu0 %v850
      %1421 = vmatpush1.bf16.msra.mxu0 %v849
      %1422 = vmatprep.subr.bf16.mxu0 %v858
      %1423 = vmatpush1.bf16.msra.mxu0 %v857
      %1424 = vmatprep.subr.bf16.mxu0 %v866
      %1425 = vmatpush1.bf16.msra.mxu0 %v865
      %1426 = vmatprep.mubr.bf16.mxu0 %v1247
      %1427 = vmatmul.mubr.bf16.gmra.mrb[0].mxu0 %v1246
      %v1428 = vpop.f32.mrb[0].mxu0
      %v1429 = vadd.f32 0.0, %v1428
      %v1430 = vpop.f32.mrb[0].mxu0
      %v1431 = vadd.f32 0.0, %v1430
      %v1432 = vpop.f32.mrb[0].mxu0
      %v1433 = vpop.f32.mrb[0].mxu0
      %1434 = vdwg.mxu0
      %v1443 = vcombine.low %v1306, %v1308
      %v1444 = vcombine.low %v1347, %v1349
      %v1446 = vunpack.c.l.s4 1983009808
      %v1447 = vunpack.c.0.s8 %v1446
      %v1448 = vlaneseq
      %v1449 = vshrl.u32 %v1448, 7
      %v1450 = vsub.s32 %v1447, %v1449
      %v1451 = vrot.slane %v1443, %v1450
      %v1453 = vunpack.c.l.s4 1983009808
      %v1454 = vunpack.c.0.s8 %v1453
      %v1455 = vlaneseq
      %v1456 = vshrl.u32 %v1455, 7
      %v1457 = vsub.s32 %v1454, %v1456
      %v1458 = vrot.slane %v1444, %v1457
      %v1459 = vcombine.low %v1451, %v1458
      %v1460 = vcombine.low %v1388, %v1390
      %v1461 = vcombine.low %v1429, %v1431
      %v1463 = vunpack.c.l.s4 1983009808
      %v1464 = vunpack.c.0.s8 %v1463
      %v1465 = vlaneseq
      %v1466 = vshrl.u32 %v1465, 7
      %v1467 = vsub.s32 %v1464, %v1466
      %v1468 = vrot.slane %v1460, %v1467
      %v1470 = vunpack.c.l.s4 1983009808
      %v1471 = vunpack.c.0.s8 %v1470
      %v1472 = vlaneseq
      %v1473 = vshrl.u32 %v1472, 7
      %v1474 = vsub.s32 %v1471, %v1473
      %v1475 = vrot.slane %v1461, %v1474
      %v1476 = vcombine.low %v1468, %v1475
      %v1479 = vadd.f32 %v1269, %v1459
      %v1480 = vadd.f32 %v1270, %v1476
      %v1481 = vxor.u32 %v1479, 2147483648
      %v1482 = vmul.f32 %v1481, 1.442695
      %v1483 = vpow.pop %v1482
      %v1484 = vadd.f32 %v1483, 1.0
      %v1485 = vrcp.pop %v1484
      %v1486 = vmul.f32 1.0, %v1485
      %v1488 = vrot.slane %v1479, 4
      %v1490 = vxor.u32 %v1488, 2147483648
      %v1491 = vmul.f32 %v1490, 1.442695
      %v1492 = vpow.pop %v1491
      %v1493 = vadd.f32 %v1492, 1.0
      %v1494 = vrcp.pop %v1493
      %v1495 = vmul.f32 1.0, %v1494
      %v1496 = vtanh.pop %v1480
      %v1498 = vrot.slane %v1480, 4
      %v1500 = vxor.u32 %v1498, 2147483648
      %v1501 = vmul.f32 %v1500, 1.442695
      %v1502 = vpow.pop %v1501
      %v1503 = vadd.f32 %v1502, 1.0
      %v1504 = vrcp.pop %v1503
      %v1505 = vmul.f32 1.0, %v1504
      %v1506 = vmul.f32 %v1495, %v1232
      %v1507 = vmul.f32 %v1486, %v1496
      %v1508 = vadd.f32 %v1506, %v1507
      %v1509 = vtanh.pop %v1508
      %v1510 = vmul.f32 %v1505, %v1509
      %v1513 = vunpack.c.l.s4 1983009808
      %v1514 = vunpack.c.0.s8 %v1513
      %v1515 = vlaneseq
      %v1516 = vshrl.u32 %v1515, 7
      %v1517 = vsub.s32 %v1514, %v1516
      %v1518 = vrot.slane %v1510, %v1517
      %v1519 = vcombine.high %v1518, %v1518
      %v1522 = vpack.c.bf16 %v1518, %v1518
      %v1523 = vpack.c.bf16 %v1519, %v1519
      %v1526 = vcombine.low %v1522, %v1523
      %v1528 = vunpack.c.l.s4 1966171168
      %v1529 = vunpack.c.0.s8 %v1528
      %v1530 = vlaneseq
      %v1531 = vshrl.u32 %v1530, 7
      %v1532 = vsub.s32 %v1529, %v1531
      %v1533 = vrot.slane %v1526, %v1532
      %v1535 = vunpack.c.l.s4 1966171168
      %v1536 = vunpack.c.0.s8 %v1535
      %v1537 = vlaneseq
      %v1538 = vshrl.u32 %v1537, 7
      %v1539 = vsub.s32 %v1536, %v1538
      %v1540 = vrot.slane %v1533, %v1539
      %s1542 = scalar_lea.vmem %s201, 2
      %1543 = vst [vmem:[%s1542] sm:$0x3] %v1540
      %s1544 = scalar_lea.vmem %s186, 16
      %v1545 = vld [vmem:[%s1544] sm:$0xff]
      %v1546 = vunpack.c.l.bf16 %v1545
      %v1547 = vunpack.c.h.bf16 %v1545
      %1548 = vmatprep.subr.bf16.mxu0 %v740
      %1549 = vmatpush1.bf16.msra.mxu0 %v739
      %1550 = vmatprep.subr.bf16.mxu0 %v748
      %1551 = vmatpush1.bf16.msra.mxu0 %v747
      %1552 = vmatprep.subr.bf16.mxu0 %v756
      %1553 = vmatpush1.bf16.msra.mxu0 %v755
      %1554 = vmatprep.subr.bf16.mxu0 %v764
      %1555 = vmatpush1.bf16.msra.mxu0 %v763
      %1556 = vmatprep.subr.bf16.mxu0 %v772
      %1557 = vmatpush1.bf16.msra.mxu0 %v771
      %1558 = vmatprep.subr.bf16.mxu0 %v780
      %1559 = vmatpush1.bf16.msra.mxu0 %v779
      %1560 = vmatprep.subr.bf16.mxu0 %v788
      %1561 = vmatpush1.bf16.msra.mxu0 %v787
      %1562 = vmatprep.subr.bf16.mxu0 %v796
      %1563 = vmatpush1.bf16.msra.mxu0 %v795
      %1564 = vmatprep.subr.bf16.mxu0 %v804
      %1565 = vmatpush1.bf16.msra.mxu0 %v803
      %1566 = vmatprep.subr.bf16.mxu0 %v812
      %1567 = vmatpush1.bf16.msra.mxu0 %v811
      %1568 = vmatprep.subr.bf16.mxu0 %v820
      %1569 = vmatpush1.bf16.msra.mxu0 %v819
      %1570 = vmatprep.subr.bf16.mxu0 %v828
      %1571 = vmatpush1.bf16.msra.mxu0 %v827
      %1572 = vmatprep.subr.bf16.mxu0 %v836
      %1573 = vmatpush1.bf16.msra.mxu0 %v835
      %1574 = vmatprep.subr.bf16.mxu0 %v844
      %1575 = vmatpush1.bf16.msra.mxu0 %v843
      %1576 = vmatprep.subr.bf16.mxu0 %v852
      %1577 = vmatpush1.bf16.msra.mxu0 %v851
      %1578 = vmatprep.subr.bf16.mxu0 %v860
      %1579 = vmatpush1.bf16.msra.mxu0 %v859
      %1580 = vmatprep.mubr.bf16.mxu0 %v1523
      %1581 = vmatmul.mubr.bf16.gmra.mrb[0].mxu0 %v1522
      %v1582 = vpop.f32.mrb[0].mxu0
      %v1583 = vadd.f32 0.0, %v1582
      %v1584 = vpop.f32.mrb[0].mxu0
      %v1585 = vadd.f32 0.0, %v1584
      %v1586 = vpop.f32.mrb[0].mxu0
      %v1587 = vpop.f32.mrb[0].mxu0
      %1588 = vdwg.mxu0
      %1589 = vmatprep.subr.bf16.mxu0 %v742
      %1590 = vmatpush1.bf16.msra.mxu0 %v741
      %1591 = vmatprep.subr.bf16.mxu0 %v750
      %1592 = vmatpush1.bf16.msra.mxu0 %v749
      %1593 = vmatprep.subr.bf16.mxu0 %v758
      %1594 = vmatpush1.bf16.msra.mxu0 %v757
      %1595 = vmatprep.subr.bf16.mxu0 %v766
      %1596 = vmatpush1.bf16.msra.mxu0 %v765
      %1597 = vmatprep.subr.bf16.mxu0 %v774
      %1598 = vmatpush1.bf16.msra.mxu0 %v773
      %1599 = vmatprep.subr.bf16.mxu0 %v782
      %1600 = vmatpush1.bf16.msra.mxu0 %v781
      %1601 = vmatprep.subr.bf16.mxu0 %v790
      %1602 = vmatpush1.bf16.msra.mxu0 %v789
      %1603 = vmatprep.subr.bf16.mxu0 %v798
      %1604 = vmatpush1.bf16.msra.mxu0 %v797
      %1605 = vmatprep.subr.bf16.mxu0 %v806
      %1606 = vmatpush1.bf16.msra.mxu0 %v805
      %1607 = vmatprep.subr.bf16.mxu0 %v814
      %1608 = vmatpush1.bf16.msra.mxu0 %v813
      %1609 = vmatprep.subr.bf16.mxu0 %v822
      %1610 = vmatpush1.bf16.msra.mxu0 %v821
      %1611 = vmatprep.subr.bf16.mxu0 %v830
      %1612 = vmatpush1.bf16.msra.mxu0 %v829
      %1613 = vmatprep.subr.bf16.mxu0 %v838
      %1614 = vmatpush1.bf16.msra.mxu0 %v837
      %1615 = vmatprep.subr.bf16.mxu0 %v846
      %1616 = vmatpush1.bf16.msra.mxu0 %v845
      %1617 = vmatprep.subr.bf16.mxu0 %v854
      %1618 = vmatpush1.bf16.msra.mxu0 %v853
      %1619 = vmatprep.subr.bf16.mxu0 %v862
      %1620 = vmatpush1.bf16.msra.mxu0 %v861
      %1621 = vmatprep.mubr.bf16.mxu0 %v1523
      %1622 = vmatmul.mubr.bf16.gmra.mrb[0].mxu0 %v1522
      %v1623 = vpop.f32.mrb[0].mxu0
      %v1624 = vadd.f32 0.0, %v1623
      %v1625 = vpop.f32.mrb[0].mxu0
      %v1626 = vadd.f32 0.0, %v1625
      %v1627 = vpop.f32.mrb[0].mxu0
      %v1628 = vpop.f32.mrb[0].mxu0
      %1629 = vdwg.mxu0
      %1630 = vmatprep.subr.bf16.mxu0 %v744
      %1631 = vmatpush1.bf16.msra.mxu0 %v743
      %1632 = vmatprep.subr.bf16.mxu0 %v752
      %1633 = vmatpush1.bf16.msra.mxu0 %v751
      %1634 = vmatprep.subr.bf16.mxu0 %v760
      %1635 = vmatpush1.bf16.msra.mxu0 %v759
      %1636 = vmatprep.subr.bf16.mxu0 %v768
      %1637 = vmatpush1.bf16.msra.mxu0 %v767
      %1638 = vmatprep.subr.bf16.mxu0 %v776
      %1639 = vmatpush1.bf16.msra.mxu0 %v775
      %1640 = vmatprep.subr.bf16.mxu0 %v784
      %1641 = vmatpush1.bf16.msra.mxu0 %v783
      %1642 = vmatprep.subr.bf16.mxu0 %v792
      %1643 = vmatpush1.bf16.msra.mxu0 %v791
      %1644 = vmatprep.subr.bf16.mxu0 %v800
      %1645 = vmatpush1.bf16.msra.mxu0 %v799
      %1646 = vmatprep.subr.bf16.mxu0 %v808
      %1647 = vmatpush1.bf16.msra.mxu0 %v807
      %1648 = vmatprep.subr.bf16.mxu0 %v816
      %1649 = vmatpush1.bf16.msra.mxu0 %v815
      %1650 = vmatprep.subr.bf16.mxu0 %v824
      %1651 = vmatpush1.bf16.msra.mxu0 %v823
      %1652 = vmatprep.subr.bf16.mxu0 %v832
      %1653 = vmatpush1.bf16.msra.mxu0 %v831
      %1654 = vmatprep.subr.bf16.mxu0 %v840
      %1655 = vmatpush1.bf16.msra.mxu0 %v839
      %1656 = vmatprep.subr.bf16.mxu0 %v848
      %1657 = vmatpush1.bf16.msra.mxu0 %v847
      %1658 = vmatprep.subr.bf16.mxu0 %v856
      %1659 = vmatpush1.bf16.msra.mxu0 %v855
      %1660 = vmatprep.subr.bf16.mxu0 %v864
      %1661 = vmatpush1.bf16.msra.mxu0 %v863
      %1662 = vmatprep.mubr.bf16.mxu0 %v1523
      %1663 = vmatmul.mubr.bf16.gmra.mrb[0].mxu0 %v1522
      %v1664 = vpop.f32.mrb[0].mxu0
      %v1665 = vadd.f32 0.0, %v1664
      %v1666 = vpop.f32.mrb[0].mxu0
      %v1667 = vadd.f32 0.0, %v1666
      %v1668 = vpop.f32.mrb[0].mxu0
      %v1669 = vpop.f32.mrb[0].mxu0
      %1670 = vdwg.mxu0
      %1671 = vmatprep.subr.bf16.mxu0 %v746
      %1672 = vmatpush1.bf16.msra.mxu0 %v745
      %1673 = vmatprep.subr.bf16.mxu0 %v754
      %1674 = vmatpush1.bf16.msra.mxu0 %v753
      %1675 = vmatprep.subr.bf16.mxu0 %v762
      %1676 = vmatpush1.bf16.msra.mxu0 %v761
      %1677 = vmatprep.subr.bf16.mxu0 %v770
      %1678 = vmatpush1.bf16.msra.mxu0 %v769
      %1679 = vmatprep.subr.bf16.mxu0 %v778
      %1680 = vmatpush1.bf16.msra.mxu0 %v777
      %1681 = vmatprep.subr.bf16.mxu0 %v786
      %1682 = vmatpush1.bf16.msra.mxu0 %v785
      %1683 = vmatprep.subr.bf16.mxu0 %v794
      %1684 = vmatpush1.bf16.msra.mxu0 %v793
      %1685 = vmatprep.subr.bf16.mxu0 %v802
      %1686 = vmatpush1.bf16.msra.mxu0 %v801
      %1687 = vmatprep.subr.bf16.mxu0 %v810
      %1688 = vmatpush1.bf16.msra.mxu0 %v809
      %1689 = vmatprep.subr.bf16.mxu0 %v818
      %1690 = vmatpush1.bf16.msra.mxu0 %v817
      %1691 = vmatprep.subr.bf16.mxu0 %v826
      %1692 = vmatpush1.bf16.msra.mxu0 %v825
      %1693 = vmatprep.subr.bf16.mxu0 %v834
      %1694 = vmatpush1.bf16.msra.mxu0 %v833
      %1695 = vmatprep.subr.bf16.mxu0 %v842
      %1696 = vmatpush1.bf16.msra.mxu0 %v841
      %1697 = vmatprep.subr.bf16.mxu0 %v850
      %1698 = vmatpush1.bf16.msra.mxu0 %v849
      %1699 = vmatprep.subr.bf16.mxu0 %v858
      %1700 = vmatpush1.bf16.msra.mxu0 %v857
      %1701 = vmatprep.subr.bf16.mxu0 %v866
      %1702 = vmatpush1.bf16.msra.mxu0 %v865
      %1703 = vmatprep.mubr.bf16.mxu0 %v1523
      %1704 = vmatmul.mubr.bf16.gmra.mrb[0].mxu0 %v1522
      %v1705 = vpop.f32.mrb[0].mxu0
      %v1706 = vadd.f32 0.0, %v1705
      %v1707 = vpop.f32.mrb[0].mxu0
      %v1708 = vadd.f32 0.0, %v1707
      %v1709 = vpop.f32.mrb[0].mxu0
      %v1710 = vpop.f32.mrb[0].mxu0
      %1711 = vdwg.mxu0
      %v1720 = vcombine.low %v1583, %v1585
      %v1721 = vcombine.low %v1624, %v1626
      %v1723 = vunpack.c.l.s4 1983009808
      %v1724 = vunpack.c.0.s8 %v1723
      %v1725 = vlaneseq
      %v1726 = vshrl.u32 %v1725, 7
      %v1727 = vsub.s32 %v1724, %v1726
      %v1728 = vrot.slane %v1720, %v1727
      %v1730 = vunpack.c.l.s4 1983009808
      %v1731 = vunpack.c.0.s8 %v1730
      %v1732 = vlaneseq
      %v1733 = vshrl.u32 %v1732, 7
      %v1734 = vsub.s32 %v1731, %v1733
      %v1735 = vrot.slane %v1721, %v1734
      %v1736 = vcombine.low %v1728, %v1735
      %v1737 = vcombine.low %v1665, %v1667
      %v1738 = vcombine.low %v1706, %v1708
      %v1740 = vunpack.c.l.s4 1983009808
      %v1741 = vunpack.c.0.s8 %v1740
      %v1742 = vlaneseq
      %v1743 = vshrl.u32 %v1742, 7
      %v1744 = vsub.s32 %v1741, %v1743
      %v1745 = vrot.slane %v1737, %v1744
      %v1747 = vunpack.c.l.s4 1983009808
      %v1748 = vunpack.c.0.s8 %v1747
      %v1749 = vlaneseq
      %v1750 = vshrl.u32 %v1749, 7
      %v1751 = vsub.s32 %v1748, %v1750
      %v1752 = vrot.slane %v1738, %v1751
      %v1753 = vcombine.low %v1745, %v1752
      %v1756 = vadd.f32 %v1546, %v1736
      %v1757 = vadd.f32 %v1547, %v1753
      %v1758 = vxor.u32 %v1756, 2147483648
      %v1759 = vmul.f32 %v1758, 1.442695
      %v1760 = vpow.pop %v1759
      %v1761 = vadd.f32 %v1760, 1.0
      %v1762 = vrcp.pop %v1761
      %v1763 = vmul.f32 1.0, %v1762
      %v1765 = vrot.slane %v1756, 4
      %v1767 = vxor.u32 %v1765, 2147483648
      %v1768 = vmul.f32 %v1767, 1.442695
      %v1769 = vpow.pop %v1768
      %v1770 = vadd.f32 %v1769, 1.0
      %v1771 = vrcp.pop %v1770
      %v1772 = vmul.f32 1.0, %v1771
      %v1773 = vtanh.pop %v1757
      %v1775 = vrot.slane %v1757, 4
      %v1777 = vxor.u32 %v1775, 2147483648
      %v1778 = vmul.f32 %v1777, 1.442695
      %v1779 = vpow.pop %v1778
      %v1780 = vadd.f32 %v1779, 1.0
      %v1781 = vrcp.pop %v1780
      %v1782 = vmul.f32 1.0, %v1781
      %v1783 = vmul.f32 %v1772, %v1508
      %v1784 = vmul.f32 %v1763, %v1773
      %v1785 = vadd.f32 %v1783, %v1784
      %v1786 = vtanh.pop %v1785
      %v1787 = vmul.f32 %v1782, %v1786
      %v1790 = vunpack.c.l.s4 1983009808
      %v1791 = vunpack.c.0.s8 %v1790
      %v1792 = vlaneseq
      %v1793 = vshrl.u32 %v1792, 7
      %v1794 = vsub.s32 %v1791, %v1793
      %v1795 = vrot.slane %v1787, %v1794
      %v1796 = vcombine.high %v1795, %v1795
      %v1799 = vpack.c.bf16 %v1795, %v1795
      %v1800 = vpack.c.bf16 %v1796, %v1796
      %v1803 = vcombine.low %v1799, %v1800
      %v1805 = vunpack.c.l.s4 1966171168
      %v1806 = vunpack.c.0.s8 %v1805
      %v1807 = vlaneseq
      %v1808 = vshrl.u32 %v1807, 7
      %v1809 = vsub.s32 %v1806, %v1808
      %v1810 = vrot.slane %v1803, %v1809
      %v1812 = vunpack.c.l.s4 1966171168
      %v1813 = vunpack.c.0.s8 %v1812
      %v1814 = vlaneseq
      %v1815 = vshrl.u32 %v1814, 7
      %v1816 = vsub.s32 %v1813, %v1815
      %v1817 = vrot.slane %v1810, %v1816
      %s1819 = scalar_lea.vmem %s201, 4
      %1820 = vst [vmem:[%s1819] sm:$0x3] %v1817
      %s1821 = scalar_lea.vmem %s186, 24
      %v1822 = vld [vmem:[%s1821] sm:$0xff]
      %v1823 = vunpack.c.l.bf16 %v1822
      %v1824 = vunpack.c.h.bf16 %v1822
      %1825 = vmatprep.subr.bf16.mxu0 %v740
      %1826 = vmatpush1.bf16.msra.mxu0 %v739
      %1827 = vmatprep.subr.bf16.mxu0 %v748
      %1828 = vmatpush1.bf16.msra.mxu0 %v747
      %1829 = vmatprep.subr.bf16.mxu0 %v756
      %1830 = vmatpush1.bf16.msra.mxu0 %v755
      %1831 = vmatprep.subr.bf16.mxu0 %v764
      %1832 = vmatpush1.bf16.msra.mxu0 %v763
      %1833 = vmatprep.subr.bf16.mxu0 %v772
      %1834 = vmatpush1.bf16.msra.mxu0 %v771
      %1835 = vmatprep.subr.bf16.mxu0 %v780
      %1836 = vmatpush1.bf16.msra.mxu0 %v779
      %1837 = vmatprep.subr.bf16.mxu0 %v788
      %1838 = vmatpush1.bf16.msra.mxu0 %v787
      %1839 = vmatprep.subr.bf16.mxu0 %v796
      %1840 = vmatpush1.bf16.msra.mxu0 %v795
      %1841 = vmatprep.subr.bf16.mxu0 %v804
      %1842 = vmatpush1.bf16.msra.mxu0 %v803
      %1843 = vmatprep.subr.bf16.mxu0 %v812
      %1844 = vmatpush1.bf16.msra.mxu0 %v811
      %1845 = vmatprep.subr.bf16.mxu0 %v820
      %1846 = vmatpush1.bf16.msra.mxu0 %v819
      %1847 = vmatprep.subr.bf16.mxu0 %v828
      %1848 = vmatpush1.bf16.msra.mxu0 %v827
      %1849 = vmatprep.subr.bf16.mxu0 %v836
      %1850 = vmatpush1.bf16.msra.mxu0 %v835
      %1851 = vmatprep.subr.bf16.mxu0 %v844
      %1852 = vmatpush1.bf16.msra.mxu0 %v843
      %1853 = vmatprep.subr.bf16.mxu0 %v852
      %1854 = vmatpush1.bf16.msra.mxu0 %v851
      %1855 = vmatprep.subr.bf16.mxu0 %v860
      %1856 = vmatpush1.bf16.msra.mxu0 %v859
      %1857 = vmatprep.mubr.bf16.mxu0 %v1800
      %1858 = vmatmul.mubr.bf16.gmra.mrb[0].mxu0 %v1799
      %v1859 = vpop.f32.mrb[0].mxu0
      %v1860 = vadd.f32 0.0, %v1859
      %v1861 = vpop.f32.mrb[0].mxu0
      %v1862 = vadd.f32 0.0, %v1861
      %v1863 = vpop.f32.mrb[0].mxu0
      %v1864 = vpop.f32.mrb[0].mxu0
      %1865 = vdwg.mxu0
      %1866 = vmatprep.subr.bf16.mxu0 %v742
      %1867 = vmatpush1.bf16.msra.mxu0 %v741
      %1868 = vmatprep.subr.bf16.mxu0 %v750
      %1869 = vmatpush1.bf16.msra.mxu0 %v749
      %1870 = vmatprep.subr.bf16.mxu0 %v758
      %1871 = vmatpush1.bf16.msra.mxu0 %v757
      %1872 = vmatprep.subr.bf16.mxu0 %v766
      %1873 = vmatpush1.bf16.msra.mxu0 %v765
      %1874 = vmatprep.subr.bf16.mxu0 %v774
      %1875 = vmatpush1.bf16.msra.mxu0 %v773
      %1876 = vmatprep.subr.bf16.mxu0 %v782
      %1877 = vmatpush1.bf16.msra.mxu0 %v781
      %1878 = vmatprep.subr.bf16.mxu0 %v790
      %1879 = vmatpush1.bf16.msra.mxu0 %v789
      %1880 = vmatprep.subr.bf16.mxu0 %v798
      %1881 = vmatpush1.bf16.msra.mxu0 %v797
      %1882 = vmatprep.subr.bf16.mxu0 %v806
      %1883 = vmatpush1.bf16.msra.mxu0 %v805
      %1884 = vmatprep.subr.bf16.mxu0 %v814
      %1885 = vmatpush1.bf16.msra.mxu0 %v813
      %1886 = vmatprep.subr.bf16.mxu0 %v822
      %1887 = vmatpush1.bf16.msra.mxu0 %v821
      %1888 = vmatprep.subr.bf16.mxu0 %v830
      %1889 = vmatpush1.bf16.msra.mxu0 %v829
      %1890 = vmatprep.subr.bf16.mxu0 %v838
      %1891 = vmatpush1.bf16.msra.mxu0 %v837
      %1892 = vmatprep.subr.bf16.mxu0 %v846
      %1893 = vmatpush1.bf16.msra.mxu0 %v845
      %1894 = vmatprep.subr.bf16.mxu0 %v854
      %1895 = vmatpush1.bf16.msra.mxu0 %v853
      %1896 = vmatprep.subr.bf16.mxu0 %v862
      %1897 = vmatpush1.bf16.msra.mxu0 %v861
      %1898 = vmatprep.mubr.bf16.mxu0 %v1800
      %1899 = vmatmul.mubr.bf16.gmra.mrb[0].mxu0 %v1799
      %v1900 = vpop.f32.mrb[0].mxu0
      %v1901 = vadd.f32 0.0, %v1900
      %v1902 = vpop.f32.mrb[0].mxu0
      %v1903 = vadd.f32 0.0, %v1902
      %v1904 = vpop.f32.mrb[0].mxu0
      %v1905 = vpop.f32.mrb[0].mxu0
      %1906 = vdwg.mxu0
      %1907 = vmatprep.subr.bf16.mxu0 %v744
      %1908 = vmatpush1.bf16.msra.mxu0 %v743
      %1909 = vmatprep.subr.bf16.mxu0 %v752
      %1910 = vmatpush1.bf16.msra.mxu0 %v751
      %1911 = vmatprep.subr.bf16.mxu0 %v760
      %1912 = vmatpush1.bf16.msra.mxu0 %v759
      %1913 = vmatprep.subr.bf16.mxu0 %v768
      %1914 = vmatpush1.bf16.msra.mxu0 %v767
      %1915 = vmatprep.subr.bf16.mxu0 %v776
      %1916 = vmatpush1.bf16.msra.mxu0 %v775
      %1917 = vmatprep.subr.bf16.mxu0 %v784
      %1918 = vmatpush1.bf16.msra.mxu0 %v783
      %1919 = vmatprep.subr.bf16.mxu0 %v792
      %1920 = vmatpush1.bf16.msra.mxu0 %v791
      %1921 = vmatprep.subr.bf16.mxu0 %v800
      %1922 = vmatpush1.bf16.msra.mxu0 %v799
      %1923 = vmatprep.subr.bf16.mxu0 %v808
      %1924 = vmatpush1.bf16.msra.mxu0 %v807
      %1925 = vmatprep.subr.bf16.mxu0 %v816
      %1926 = vmatpush1.bf16.msra.mxu0 %v815
      %1927 = vmatprep.subr.bf16.mxu0 %v824
      %1928 = vmatpush1.bf16.msra.mxu0 %v823
      %1929 = vmatprep.subr.bf16.mxu0 %v832
      %1930 = vmatpush1.bf16.msra.mxu0 %v831
      %1931 = vmatprep.subr.bf16.mxu0 %v840
      %1932 = vmatpush1.bf16.msra.mxu0 %v839
      %1933 = vmatprep.subr.bf16.mxu0 %v848
      %1934 = vmatpush1.bf16.msra.mxu0 %v847
      %1935 = vmatprep.subr.bf16.mxu0 %v856
      %1936 = vmatpush1.bf16.msra.mxu0 %v855
      %1937 = vmatprep.subr.bf16.mxu0 %v864
      %1938 = vmatpush1.bf16.msra.mxu0 %v863
      %1939 = vmatprep.mubr.bf16.mxu0 %v1800
      %1940 = vmatmul.mubr.bf16.gmra.mrb[0].mxu0 %v1799
      %v1941 = vpop.f32.mrb[0].mxu0
      %v1942 = vadd.f32 0.0, %v1941
      %v1943 = vpop.f32.mrb[0].mxu0
      %v1944 = vadd.f32 0.0, %v1943
      %v1945 = vpop.f32.mrb[0].mxu0
      %v1946 = vpop.f32.mrb[0].mxu0
      %1947 = vdwg.mxu0
      %1948 = vmatprep.subr.bf16.mxu0 %v746
      %1949 = vmatpush1.bf16.msra.mxu0 %v745
      %1950 = vmatprep.subr.bf16.mxu0 %v754
      %1951 = vmatpush1.bf16.msra.mxu0 %v753
      %1952 = vmatprep.subr.bf16.mxu0 %v762
      %1953 = vmatpush1.bf16.msra.mxu0 %v761
      %1954 = vmatprep.subr.bf16.mxu0 %v770
      %1955 = vmatpush1.bf16.msra.mxu0 %v769
      %1956 = vmatprep.subr.bf16.mxu0 %v778
      %1957 = vmatpush1.bf16.msra.mxu0 %v777
      %1958 = vmatprep.subr.bf16.mxu0 %v786
      %1959 = vmatpush1.bf16.msra.mxu0 %v785
      %1960 = vmatprep.subr.bf16.mxu0 %v794
      %1961 = vmatpush1.bf16.msra.mxu0 %v793
      %1962 = vmatprep.subr.bf16.mxu0 %v802
      %1963 = vmatpush1.bf16.msra.mxu0 %v801
      %1964 = vmatprep.subr.bf16.mxu0 %v810
      %1965 = vmatpush1.bf16.msra.mxu0 %v809
      %1966 = vmatprep.subr.bf16.mxu0 %v818
      %1967 = vmatpush1.bf16.msra.mxu0 %v817
      %1968 = vmatprep.subr.bf16.mxu0 %v826
      %1969 = vmatpush1.bf16.msra.mxu0 %v825
      %1970 = vmatprep.subr.bf16.mxu0 %v834
      %1971 = vmatpush1.bf16.msra.mxu0 %v833
      %1972 = vmatprep.subr.bf16.mxu0 %v842
      %1973 = vmatpush1.bf16.msra.mxu0 %v841
      %1974 = vmatprep.subr.bf16.mxu0 %v850
      %1975 = vmatpush1.bf16.msra.mxu0 %v849
      %1976 = vmatprep.subr.bf16.mxu0 %v858
      %1977 = vmatpush1.bf16.msra.mxu0 %v857
      %1978 = vmatprep.subr.bf16.mxu0 %v866
      %1979 = vmatpush1.bf16.msra.mxu0 %v865
      %1980 = vmatprep.mubr.bf16.mxu0 %v1800
      %1981 = vmatmul.mubr.bf16.gmra.mrb[0].mxu0 %v1799
      %v1982 = vpop.f32.mrb[0].mxu0
      %v1983 = vadd.f32 0.0, %v1982
      %v1984 = vpop.f32.mrb[0].mxu0
      %v1985 = vadd.f32 0.0, %v1984
      %v1986 = vpop.f32.mrb[0].mxu0
      %v1987 = vpop.f32.mrb[0].mxu0
      %1988 = vdwg.mxu0
      %v1997 = vcombine.low %v1860, %v1862
      %v1998 = vcombine.low %v1901, %v1903
      %v2000 = vunpack.c.l.s4 1983009808
      %v2001 = vunpack.c.0.s8 %v2000
      %v2002 = vlaneseq
      %v2003 = vshrl.u32 %v2002, 7
      %v2004 = vsub.s32 %v2001, %v2003
      %v2005 = vrot.slane %v1997, %v2004
      %v2007 = vunpack.c.l.s4 1983009808
      %v2008 = vunpack.c.0.s8 %v2007
      %v2009 = vlaneseq
      %v2010 = vshrl.u32 %v2009, 7
      %v2011 = vsub.s32 %v2008, %v2010
      %v2012 = vrot.slane %v1998, %v2011
      %v2013 = vcombine.low %v2005, %v2012
      %v2014 = vcombine.low %v1942, %v1944
      %v2015 = vcombine.low %v1983, %v1985
      %v2017 = vunpack.c.l.s4 1983009808
      %v2018 = vunpack.c.0.s8 %v2017
      %v2019 = vlaneseq
      %v2020 = vshrl.u32 %v2019, 7
      %v2021 = vsub.s32 %v2018, %v2020
      %v2022 = vrot.slane %v2014, %v2021
      %v2024 = vunpack.c.l.s4 1983009808
      %v2025 = vunpack.c.0.s8 %v2024
      %v2026 = vlaneseq
      %v2027 = vshrl.u32 %v2026, 7
      %v2028 = vsub.s32 %v2025, %v2027
      %v2029 = vrot.slane %v2015, %v2028
      %v2030 = vcombine.low %v2022, %v2029
      %v2033 = vadd.f32 %v1823, %v2013
      %v2034 = vadd.f32 %v1824, %v2030
      %v2035 = vxor.u32 %v2033, 2147483648
      %v2036 = vmul.f32 %v2035, 1.442695
      %v2037 = vpow.pop %v2036
      %v2038 = vadd.f32 %v2037, 1.0
      %v2039 = vrcp.pop %v2038
      %v2040 = vmul.f32 1.0, %v2039
      %v2042 = vrot.slane %v2033, 4
      %v2044 = vxor.u32 %v2042, 2147483648
      %v2045 = vmul.f32 %v2044, 1.442695
      %v2046 = vpow.pop %v2045
      %v2047 = vadd.f32 %v2046, 1.0
      %v2048 = vrcp.pop %v2047
      %v2049 = vmul.f32 1.0, %v2048
      %v2050 = vtanh.pop %v2034
      %v2052 = vrot.slane %v2034, 4
      %v2054 = vxor.u32 %v2052, 2147483648
      %v2055 = vmul.f32 %v2054, 1.442695
      %v2056 = vpow.pop %v2055
      %v2057 = vadd.f32 %v2056, 1.0
      %v2058 = vrcp.pop %v2057
      %v2059 = vmul.f32 1.0, %v2058
      %v2060 = vmul.f32 %v2049, %v1785
      %v2061 = vmul.f32 %v2040, %v2050
      %v2062 = vadd.f32 %v2060, %v2061
      %v2063 = vtanh.pop %v2062
      %v2064 = vmul.f32 %v2059, %v2063
      %v2067 = vunpack.c.l.s4 1983009808
      %v2068 = vunpack.c.0.s8 %v2067
      %v2069 = vlaneseq
      %v2070 = vshrl.u32 %v2069, 7
      %v2071 = vsub.s32 %v2068, %v2070
      %v2072 = vrot.slane %v2064, %v2071
      %v2073 = vcombine.high %v2072, %v2072
      %v2076 = vpack.c.bf16 %v2072, %v2072
      %v2077 = vpack.c.bf16 %v2073, %v2073
      %v2080 = vcombine.low %v2076, %v2077
      %v2082 = vunpack.c.l.s4 1966171168
      %v2083 = vunpack.c.0.s8 %v2082
      %v2084 = vlaneseq
      %v2085 = vshrl.u32 %v2084, 7
      %v2086 = vsub.s32 %v2083, %v2085
      %v2087 = vrot.slane %v2080, %v2086
      %v2089 = vunpack.c.l.s4 1966171168
      %v2090 = vunpack.c.0.s8 %v2089
      %v2091 = vlaneseq
      %v2092 = vshrl.u32 %v2091, 7
      %v2093 = vsub.s32 %v2090, %v2092
      %v2094 = vrot.slane %v2087, %v2093
      %s2096 = scalar_lea.vmem %s201, 6
      %2097 = vst [vmem:[%s2096] sm:$0x3] %v2094
      %s2098 = scalar_lea.vmem %s186, 32
      %v2099 = vld [vmem:[%s2098] sm:$0xff]
      %v2100 = vunpack.c.l.bf16 %v2099
      %v2101 = vunpack.c.h.bf16 %v2099
      %2102 = vmatprep.subr.bf16.mxu0 %v740
      %2103 = vmatpush1.bf16.msra.mxu0 %v739
      %2104 = vmatprep.subr.bf16.mxu0 %v748
      %2105 = vmatpush1.bf16.msra.mxu0 %v747
      %2106 = vmatprep.subr.bf16.mxu0 %v756
      %2107 = vmatpush1.bf16.msra.mxu0 %v755
      %2108 = vmatprep.subr.bf16.mxu0 %v764
      %2109 = vmatpush1.bf16.msra.mxu0 %v763
      %2110 = vmatprep.subr.bf16.mxu0 %v772
      %2111 = vmatpush1.bf16.msra.mxu0 %v771
      %2112 = vmatprep.subr.bf16.mxu0 %v780
      %2113 = vmatpush1.bf16.msra.mxu0 %v779
      %2114 = vmatprep.subr.bf16.mxu0 %v788
      %2115 = vmatpush1.bf16.msra.mxu0 %v787
      %2116 = vmatprep.subr.bf16.mxu0 %v796
      %2117 = vmatpush1.bf16.msra.mxu0 %v795
      %2118 = vmatprep.subr.bf16.mxu0 %v804
      %2119 = vmatpush1.bf16.msra.mxu0 %v803
      %2120 = vmatprep.subr.bf16.mxu0 %v812
      %2121 = vmatpush1.bf16.msra.mxu0 %v811
      %2122 = vmatprep.subr.bf16.mxu0 %v820
      %2123 = vmatpush1.bf16.msra.mxu0 %v819
      %2124 = vmatprep.subr.bf16.mxu0 %v828
      %2125 = vmatpush1.bf16.msra.mxu0 %v827
      %2126 = vmatprep.subr.bf16.mxu0 %v836
      %2127 = vmatpush1.bf16.msra.mxu0 %v835
      %2128 = vmatprep.subr.bf16.mxu0 %v844
      %2129 = vmatpush1.bf16.msra.mxu0 %v843
      %2130 = vmatprep.subr.bf16.mxu0 %v852
      %2131 = vmatpush1.bf16.msra.mxu0 %v851
      %2132 = vmatprep.subr.bf16.mxu0 %v860
      %2133 = vmatpush1.bf16.msra.mxu0 %v859
      %2134 = vmatprep.mubr.bf16.mxu0 %v2077
      %2135 = vmatmul.mubr.bf16.gmra.mrb[0].mxu0 %v2076
      %v2136 = vpop.f32.mrb[0].mxu0
      %v2137 = vadd.f32 0.0, %v2136
      %v2138 = vpop.f32.mrb[0].mxu0
      %v2139 = vadd.f32 0.0, %v2138
      %v2140 = vpop.f32.mrb[0].mxu0
      %v2141 = vpop.f32.mrb[0].mxu0
      %2142 = vdwg.mxu0
      %2143 = vmatprep.subr.bf16.mxu0 %v742
      %2144 = vmatpush1.bf16.msra.mxu0 %v741
      %2145 = vmatprep.subr.bf16.mxu0 %v750
      %2146 = vmatpush1.bf16.msra.mxu0 %v749
      %2147 = vmatprep.subr.bf16.mxu0 %v758
      %2148 = vmatpush1.bf16.msra.mxu0 %v757
      %2149 = vmatprep.subr.bf16.mxu0 %v766
      %2150 = vmatpush1.bf16.msra.mxu0 %v765
      %2151 = vmatprep.subr.bf16.mxu0 %v774
      %2152 = vmatpush1.bf16.msra.mxu0 %v773
      %2153 = vmatprep.subr.bf16.mxu0 %v782
      %2154 = vmatpush1.bf16.msra.mxu0 %v781
      %2155 = vmatprep.subr.bf16.mxu0 %v790
      %2156 = vmatpush1.bf16.msra.mxu0 %v789
      %2157 = vmatprep.subr.bf16.mxu0 %v798
      %2158 = vmatpush1.bf16.msra.mxu0 %v797
      %2159 = vmatprep.subr.bf16.mxu0 %v806
      %2160 = vmatpush1.bf16.msra.mxu0 %v805
      %2161 = vmatprep.subr.bf16.mxu0 %v814
      %2162 = vmatpush1.bf16.msra.mxu0 %v813
      %2163 = vmatprep.subr.bf16.mxu0 %v822
      %2164 = vmatpush1.bf16.msra.mxu0 %v821
      %2165 = vmatprep.subr.bf16.mxu0 %v830
      %2166 = vmatpush1.bf16.msra.mxu0 %v829
      %2167 = vmatprep.subr.bf16.mxu0 %v838
      %2168 = vmatpush1.bf16.msra.mxu0 %v837
      %2169 = vmatprep.subr.bf16.mxu0 %v846
      %2170 = vmatpush1.bf16.msra.mxu0 %v845
      %2171 = vmatprep.subr.bf16.mxu0 %v854
      %2172 = vmatpush1.bf16.msra.mxu0 %v853
      %2173 = vmatprep.subr.bf16.mxu0 %v862
      %2174 = vmatpush1.bf16.msra.mxu0 %v861
      %2175 = vmatprep.mubr.bf16.mxu0 %v2077
      %2176 = vmatmul.mubr.bf16.gmra.mrb[0].mxu0 %v2076
      %v2177 = vpop.f32.mrb[0].mxu0
      %v2178 = vadd.f32 0.0, %v2177
      %v2179 = vpop.f32.mrb[0].mxu0
      %v2180 = vadd.f32 0.0, %v2179
      %v2181 = vpop.f32.mrb[0].mxu0
      %v2182 = vpop.f32.mrb[0].mxu0
      %2183 = vdwg.mxu0
      %2184 = vmatprep.subr.bf16.mxu0 %v744
      %2185 = vmatpush1.bf16.msra.mxu0 %v743
      %2186 = vmatprep.subr.bf16.mxu0 %v752
      %2187 = vmatpush1.bf16.msra.mxu0 %v751
      %2188 = vmatprep.subr.bf16.mxu0 %v760
      %2189 = vmatpush1.bf16.msra.mxu0 %v759
      %2190 = vmatprep.subr.bf16.mxu0 %v768
      %2191 = vmatpush1.bf16.msra.mxu0 %v767
      %2192 = vmatprep.subr.bf16.mxu0 %v776
      %2193 = vmatpush1.bf16.msra.mxu0 %v775
      %2194 = vmatprep.subr.bf16.mxu0 %v784
      %2195 = vmatpush1.bf16.msra.mxu0 %v783
      %2196 = vmatprep.subr.bf16.mxu0 %v792
      %2197 = vmatpush1.bf16.msra.mxu0 %v791
      %2198 = vmatprep.subr.bf16.mxu0 %v800
      %2199 = vmatpush1.bf16.msra.mxu0 %v799
      %2200 = vmatprep.subr.bf16.mxu0 %v808
      %2201 = vmatpush1.bf16.msra.mxu0 %v807
      %2202 = vmatprep.subr.bf16.mxu0 %v816
      %2203 = vmatpush1.bf16.msra.mxu0 %v815
      %2204 = vmatprep.subr.bf16.mxu0 %v824
      %2205 = vmatpush1.bf16.msra.mxu0 %v823
      %2206 = vmatprep.subr.bf16.mxu0 %v832
      %2207 = vmatpush1.bf16.msra.mxu0 %v831
      %2208 = vmatprep.subr.bf16.mxu0 %v840
      %2209 = vmatpush1.bf16.msra.mxu0 %v839
      %2210 = vmatprep.subr.bf16.mxu0 %v848
      %2211 = vmatpush1.bf16.msra.mxu0 %v847
      %2212 = vmatprep.subr.bf16.mxu0 %v856
      %2213 = vmatpush1.bf16.msra.mxu0 %v855
      %2214 = vmatprep.subr.bf16.mxu0 %v864
      %2215 = vmatpush1.bf16.msra.mxu0 %v863
      %2216 = vmatprep.mubr.bf16.mxu0 %v2077
      %2217 = vmatmul.mubr.bf16.gmra.mrb[0].mxu0 %v2076
      %v2218 = vpop.f32.mrb[0].mxu0
      %v2219 = vadd.f32 0.0, %v2218
      %v2220 = vpop.f32.mrb[0].mxu0
      %v2221 = vadd.f32 0.0, %v2220
      %v2222 = vpop.f32.mrb[0].mxu0
      %v2223 = vpop.f32.mrb[0].mxu0
      %2224 = vdwg.mxu0
      %2225 = vmatprep.subr.bf16.mxu0 %v746
      %2226 = vmatpush1.bf16.msra.mxu0 %v745
      %2227 = vmatprep.subr.bf16.mxu0 %v754
      %2228 = vmatpush1.bf16.msra.mxu0 %v753
      %2229 = vmatprep.subr.bf16.mxu0 %v762
      %2230 = vmatpush1.bf16.msra.mxu0 %v761
      %2231 = vmatprep.subr.bf16.mxu0 %v770
      %2232 = vmatpush1.bf16.msra.mxu0 %v769
      %2233 = vmatprep.subr.bf16.mxu0 %v778
      %2234 = vmatpush1.bf16.msra.mxu0 %v777
      %2235 = vmatprep.subr.bf16.mxu0 %v786
      %2236 = vmatpush1.bf16.msra.mxu0 %v785
      %2237 = vmatprep.subr.bf16.mxu0 %v794
      %2238 = vmatpush1.bf16.msra.mxu0 %v793
      %2239 = vmatprep.subr.bf16.mxu0 %v802
      %2240 = vmatpush1.bf16.msra.mxu0 %v801
      %2241 = vmatprep.subr.bf16.mxu0 %v810
      %2242 = vmatpush1.bf16.msra.mxu0 %v809
      %2243 = vmatprep.subr.bf16.mxu0 %v818
      %2244 = vmatpush1.bf16.msra.mxu0 %v817
      %2245 = vmatprep.subr.bf16.mxu0 %v826
      %2246 = vmatpush1.bf16.msra.mxu0 %v825
      %2247 = vmatprep.subr.bf16.mxu0 %v834
      %2248 = vmatpush1.bf16.msra.mxu0 %v833
      %2249 = vmatprep.subr.bf16.mxu0 %v842
      %2250 = vmatpush1.bf16.msra.mxu0 %v841
      %2251 = vmatprep.subr.bf16.mxu0 %v850
      %2252 = vmatpush1.bf16.msra.mxu0 %v849
      %2253 = vmatprep.subr.bf16.mxu0 %v858
      %2254 = vmatpush1.bf16.msra.mxu0 %v857
      %2255 = vmatprep.subr.bf16.mxu0 %v866
      %2256 = vmatpush1.bf16.msra.mxu0 %v865
      %2257 = vmatprep.mubr.bf16.mxu0 %v2077
      %2258 = vmatmul.mubr.bf16.gmra.mrb[0].mxu0 %v2076
      %v2259 = vpop.f32.mrb[0].mxu0
      %v2260 = vadd.f32 0.0, %v2259
      %v2261 = vpop.f32.mrb[0].mxu0
      %v2262 = vadd.f32 0.0, %v2261
      %v2263 = vpop.f32.mrb[0].mxu0
      %v2264 = vpop.f32.mrb[0].mxu0
      %2265 = vdwg.mxu0
      %v2274 = vcombine.low %v2137, %v2139
      %v2275 = vcombine.low %v2178, %v2180
      %v2277 = vunpack.c.l.s4 1983009808
      %v2278 = vunpack.c.0.s8 %v2277
      %v2279 = vlaneseq
      %v2280 = vshrl.u32 %v2279, 7
      %v2281 = vsub.s32 %v2278, %v2280
      %v2282 = vrot.slane %v2274, %v2281
      %v2284 = vunpack.c.l.s4 1983009808
      %v2285 = vunpack.c.0.s8 %v2284
      %v2286 = vlaneseq
      %v2287 = vshrl.u32 %v2286, 7
      %v2288 = vsub.s32 %v2285, %v2287
      %v2289 = vrot.slane %v2275, %v2288
      %v2290 = vcombine.low %v2282, %v2289
      %v2291 = vcombine.low %v2219, %v2221
      %v2292 = vcombine.low %v2260, %v2262
      %v2294 = vunpack.c.l.s4 1983009808
      %v2295 = vunpack.c.0.s8 %v2294
      %v2296 = vlaneseq
      %v2297 = vshrl.u32 %v2296, 7
      %v2298 = vsub.s32 %v2295, %v2297
      %v2299 = vrot.slane %v2291, %v2298
      %v2301 = vunpack.c.l.s4 1983009808
      %v2302 = vunpack.c.0.s8 %v2301
      %v2303 = vlaneseq
      %v2304 = vshrl.u32 %v2303, 7
      %v2305 = vsub.s32 %v2302, %v2304
      %v2306 = vrot.slane %v2292, %v2305
      %v2307 = vcombine.low %v2299, %v2306
      %v2310 = vadd.f32 %v2100, %v2290
      %v2311 = vadd.f32 %v2101, %v2307
      %v2312 = vxor.u32 %v2310, 2147483648
      %v2313 = vmul.f32 %v2312, 1.442695
      %v2314 = vpow.pop %v2313
      %v2315 = vadd.f32 %v2314, 1.0
      %v2316 = vrcp.pop %v2315
      %v2317 = vmul.f32 1.0, %v2316
      %v2319 = vrot.slane %v2310, 4
      %v2321 = vxor.u32 %v2319, 2147483648
      %v2322 = vmul.f32 %v2321, 1.442695
      %v2323 = vpow.pop %v2322
      %v2324 = vadd.f32 %v2323, 1.0
      %v2325 = vrcp.pop %v2324
      %v2326 = vmul.f32 1.0, %v2325
      %v2327 = vtanh.pop %v2311
      %v2329 = vrot.slane %v2311, 4
      %v2331 = vxor.u32 %v2329, 2147483648
      %v2332 = vmul.f32 %v2331, 1.442695
      %v2333 = vpow.pop %v2332
      %v2334 = vadd.f32 %v2333, 1.0
      %v2335 = vrcp.pop %v2334
      %v2336 = vmul.f32 1.0, %v2335
      %v2337 = vmul.f32 %v2326, %v2062
      %v2338 = vmul.f32 %v2317, %v2327
      %v2339 = vadd.f32 %v2337, %v2338
      %v2340 = vtanh.pop %v2339
      %v2341 = vmul.f32 %v2336, %v2340
      %v2344 = vunpack.c.l.s4 1983009808
      %v2345 = vunpack.c.0.s8 %v2344
      %v2346 = vlaneseq
      %v2347 = vshrl.u32 %v2346, 7
      %v2348 = vsub.s32 %v2345, %v2347
      %v2349 = vrot.slane %v2341, %v2348
      %v2350 = vcombine.high %v2349, %v2349
      %v2353 = vpack.c.bf16 %v2349, %v2349
      %v2354 = vpack.c.bf16 %v2350, %v2350
      %v2357 = vcombine.low %v2353, %v2354
      %v2359 = vunpack.c.l.s4 1966171168
      %v2360 = vunpack.c.0.s8 %v2359
      %v2361 = vlaneseq
      %v2362 = vshrl.u32 %v2361, 7
      %v2363 = vsub.s32 %v2360, %v2362
      %v2364 = vrot.slane %v2357, %v2363
      %v2366 = vunpack.c.l.s4 1966171168
      %v2367 = vunpack.c.0.s8 %v2366
      %v2368 = vlaneseq
      %v2369 = vshrl.u32 %v2368, 7
      %v2370 = vsub.s32 %v2367, %v2369
      %v2371 = vrot.slane %v2364, %v2370
      %s2373 = scalar_lea.vmem %s201, 8
      %2374 = vst [vmem:[%s2373] sm:$0x3] %v2371
      %s2375 = scalar_lea.vmem %s186, 40
      %v2376 = vld [vmem:[%s2375] sm:$0xff]
      %v2377 = vunpack.c.l.bf16 %v2376
      %v2378 = vunpack.c.h.bf16 %v2376
      %2379 = vmatprep.subr.bf16.mxu0 %v740
      %2380 = vmatpush1.bf16.msra.mxu0 %v739
      %2381 = vmatprep.subr.bf16.mxu0 %v748
      %2382 = vmatpush1.bf16.msra.mxu0 %v747
      %2383 = vmatprep.subr.bf16.mxu0 %v756
      %2384 = vmatpush1.bf16.msra.mxu0 %v755
      %2385 = vmatprep.subr.bf16.mxu0 %v764
      %2386 = vmatpush1.bf16.msra.mxu0 %v763
      %2387 = vmatprep.subr.bf16.mxu0 %v772
      %2388 = vmatpush1.bf16.msra.mxu0 %v771
      %2389 = vmatprep.subr.bf16.mxu0 %v780
      %2390 = vmatpush1.bf16.msra.mxu0 %v779
      %2391 = vmatprep.subr.bf16.mxu0 %v788
      %2392 = vmatpush1.bf16.msra.mxu0 %v787
      %2393 = vmatprep.subr.bf16.mxu0 %v796
      %2394 = vmatpush1.bf16.msra.mxu0 %v795
      %2395 = vmatprep.subr.bf16.mxu0 %v804
      %2396 = vmatpush1.bf16.msra.mxu0 %v803
      %2397 = vmatprep.subr.bf16.mxu0 %v812
      %2398 = vmatpush1.bf16.msra.mxu0 %v811
      %2399 = vmatprep.subr.bf16.mxu0 %v820
      %2400 = vmatpush1.bf16.msra.mxu0 %v819
      %2401 = vmatprep.subr.bf16.mxu0 %v828
      %2402 = vmatpush1.bf16.msra.mxu0 %v827
      %2403 = vmatprep.subr.bf16.mxu0 %v836
      %2404 = vmatpush1.bf16.msra.mxu0 %v835
      %2405 = vmatprep.subr.bf16.mxu0 %v844
      %2406 = vmatpush1.bf16.msra.mxu0 %v843
      %2407 = vmatprep.subr.bf16.mxu0 %v852
      %2408 = vmatpush1.bf16.msra.mxu0 %v851
      %2409 = vmatprep.subr.bf16.mxu0 %v860
      %2410 = vmatpush1.bf16.msra.mxu0 %v859
      %2411 = vmatprep.mubr.bf16.mxu0 %v2354
      %2412 = vmatmul.mubr.bf16.gmra.mrb[0].mxu0 %v2353
      %v2413 = vpop.f32.mrb[0].mxu0
      %v2414 = vadd.f32 0.0, %v2413
      %v2415 = vpop.f32.mrb[0].mxu0
      %v2416 = vadd.f32 0.0, %v2415
      %v2417 = vpop.f32.mrb[0].mxu0
      %v2418 = vpop.f32.mrb[0].mxu0
      %2419 = vdwg.mxu0
      %2420 = vmatprep.subr.bf16.mxu0 %v742
      %2421 = vmatpush1.bf16.msra.mxu0 %v741
      %2422 = vmatprep.subr.bf16.mxu0 %v750
      %2423 = vmatpush1.bf16.msra.mxu0 %v749
      %2424 = vmatprep.subr.bf16.mxu0 %v758
      %2425 = vmatpush1.bf16.msra.mxu0 %v757
      %2426 = vmatprep.subr.bf16.mxu0 %v766
      %2427 = vmatpush1.bf16.msra.mxu0 %v765
      %2428 = vmatprep.subr.bf16.mxu0 %v774
      %2429 = vmatpush1.bf16.msra.mxu0 %v773
      %2430 = vmatprep.subr.bf16.mxu0 %v782
      %2431 = vmatpush1.bf16.msra.mxu0 %v781
      %2432 = vmatprep.subr.bf16.mxu0 %v790
      %2433 = vmatpush1.bf16.msra.mxu0 %v789
      %2434 = vmatprep.subr.bf16.mxu0 %v798
      %2435 = vmatpush1.bf16.msra.mxu0 %v797
      %2436 = vmatprep.subr.bf16.mxu0 %v806
      %2437 = vmatpush1.bf16.msra.mxu0 %v805
      %2438 = vmatprep.subr.bf16.mxu0 %v814
      %2439 = vmatpush1.bf16.msra.mxu0 %v813
      %2440 = vmatprep.subr.bf16.mxu0 %v822
      %2441 = vmatpush1.bf16.msra.mxu0 %v821
      %2442 = vmatprep.subr.bf16.mxu0 %v830
      %2443 = vmatpush1.bf16.msra.mxu0 %v829
      %2444 = vmatprep.subr.bf16.mxu0 %v838
      %2445 = vmatpush1.bf16.msra.mxu0 %v837
      %2446 = vmatprep.subr.bf16.mxu0 %v846
      %2447 = vmatpush1.bf16.msra.mxu0 %v845
      %2448 = vmatprep.subr.bf16.mxu0 %v854
      %2449 = vmatpush1.bf16.msra.mxu0 %v853
      %2450 = vmatprep.subr.bf16.mxu0 %v862
      %2451 = vmatpush1.bf16.msra.mxu0 %v861
      %2452 = vmatprep.mubr.bf16.mxu0 %v2354
      %2453 = vmatmul.mubr.bf16.gmra.mrb[0].mxu0 %v2353
      %v2454 = vpop.f32.mrb[0].mxu0
      %v2455 = vadd.f32 0.0, %v2454
      %v2456 = vpop.f32.mrb[0].mxu0
      %v2457 = vadd.f32 0.0, %v2456
      %v2458 = vpop.f32.mrb[0].mxu0
      %v2459 = vpop.f32.mrb[0].mxu0
      %2460 = vdwg.mxu0
      %2461 = vmatprep.subr.bf16.mxu0 %v744
      %2462 = vmatpush1.bf16.msra.mxu0 %v743
      %2463 = vmatprep.subr.bf16.mxu0 %v752
      %2464 = vmatpush1.bf16.msra.mxu0 %v751
      %2465 = vmatprep.subr.bf16.mxu0 %v760
      %2466 = vmatpush1.bf16.msra.mxu0 %v759
      %2467 = vmatprep.subr.bf16.mxu0 %v768
      %2468 = vmatpush1.bf16.msra.mxu0 %v767
      %2469 = vmatprep.subr.bf16.mxu0 %v776
      %2470 = vmatpush1.bf16.msra.mxu0 %v775
      %2471 = vmatprep.subr.bf16.mxu0 %v784
      %2472 = vmatpush1.bf16.msra.mxu0 %v783
      %2473 = vmatprep.subr.bf16.mxu0 %v792
      %2474 = vmatpush1.bf16.msra.mxu0 %v791
      %2475 = vmatprep.subr.bf16.mxu0 %v800
      %2476 = vmatpush1.bf16.msra.mxu0 %v799
      %2477 = vmatprep.subr.bf16.mxu0 %v808
      %2478 = vmatpush1.bf16.msra.mxu0 %v807
      %2479 = vmatprep.subr.bf16.mxu0 %v816
      %2480 = vmatpush1.bf16.msra.mxu0 %v815
      %2481 = vmatprep.subr.bf16.mxu0 %v824
      %2482 = vmatpush1.bf16.msra.mxu0 %v823
      %2483 = vmatprep.subr.bf16.mxu0 %v832
      %2484 = vmatpush1.bf16.msra.mxu0 %v831
      %2485 = vmatprep.subr.bf16.mxu0 %v840
      %2486 = vmatpush1.bf16.msra.mxu0 %v839
      %2487 = vmatprep.subr.bf16.mxu0 %v848
      %2488 = vmatpush1.bf16.msra.mxu0 %v847
      %2489 = vmatprep.subr.bf16.mxu0 %v856
      %2490 = vmatpush1.bf16.msra.mxu0 %v855
      %2491 = vmatprep.subr.bf16.mxu0 %v864
      %2492 = vmatpush1.bf16.msra.mxu0 %v863
      %2493 = vmatprep.mubr.bf16.mxu0 %v2354
      %2494 = vmatmul.mubr.bf16.gmra.mrb[0].mxu0 %v2353
      %v2495 = vpop.f32.mrb[0].mxu0
      %v2496 = vadd.f32 0.0, %v2495
      %v2497 = vpop.f32.mrb[0].mxu0
      %v2498 = vadd.f32 0.0, %v2497
      %v2499 = vpop.f32.mrb[0].mxu0
      %v2500 = vpop.f32.mrb[0].mxu0
      %2501 = vdwg.mxu0
      %2502 = vmatprep.subr.bf16.mxu0 %v746
      %2503 = vmatpush1.bf16.msra.mxu0 %v745
      %2504 = vmatprep.subr.bf16.mxu0 %v754
      %2505 = vmatpush1.bf16.msra.mxu0 %v753
      %2506 = vmatprep.subr.bf16.mxu0 %v762
      %2507 = vmatpush1.bf16.msra.mxu0 %v761
      %2508 = vmatprep.subr.bf16.mxu0 %v770
      %2509 = vmatpush1.bf16.msra.mxu0 %v769
      %2510 = vmatprep.subr.bf16.mxu0 %v778
      %2511 = vmatpush1.bf16.msra.mxu0 %v777
      %2512 = vmatprep.subr.bf16.mxu0 %v786
      %2513 = vmatpush1.bf16.msra.mxu0 %v785
      %2514 = vmatprep.subr.bf16.mxu0 %v794
      %2515 = vmatpush1.bf16.msra.mxu0 %v793
      %2516 = vmatprep.subr.bf16.mxu0 %v802
      %2517 = vmatpush1.bf16.msra.mxu0 %v801
      %2518 = vmatprep.subr.bf16.mxu0 %v810
      %2519 = vmatpush1.bf16.msra.mxu0 %v809
      %2520 = vmatprep.subr.bf16.mxu0 %v818
      %2521 = vmatpush1.bf16.msra.mxu0 %v817
      %2522 = vmatprep.subr.bf16.mxu0 %v826
      %2523 = vmatpush1.bf16.msra.mxu0 %v825
      %2524 = vmatprep.subr.bf16.mxu0 %v834
      %2525 = vmatpush1.bf16.msra.mxu0 %v833
      %2526 = vmatprep.subr.bf16.mxu0 %v842
      %2527 = vmatpush1.bf16.msra.mxu0 %v841
      %2528 = vmatprep.subr.bf16.mxu0 %v850
      %2529 = vmatpush1.bf16.msra.mxu0 %v849
      %2530 = vmatprep.subr.bf16.mxu0 %v858
      %2531 = vmatpush1.bf16.msra.mxu0 %v857
      %2532 = vmatprep.subr.bf16.mxu0 %v866
      %2533 = vmatpush1.bf16.msra.mxu0 %v865
      %2534 = vmatprep.mubr.bf16.mxu0 %v2354
      %2535 = vmatmul.mubr.bf16.gmra.mrb[0].mxu0 %v2353
      %v2536 = vpop.f32.mrb[0].mxu0
      %v2537 = vadd.f32 0.0, %v2536
      %v2538 = vpop.f32.mrb[0].mxu0
      %v2539 = vadd.f32 0.0, %v2538
      %v2540 = vpop.f32.mrb[0].mxu0
      %v2541 = vpop.f32.mrb[0].mxu0
      %2542 = vdwg.mxu0
      %v2551 = vcombine.low %v2414, %v2416
      %v2552 = vcombine.low %v2455, %v2457
      %v2554 = vunpack.c.l.s4 1983009808
      %v2555 = vunpack.c.0.s8 %v2554
      %v2556 = vlaneseq
      %v2557 = vshrl.u32 %v2556, 7
      %v2558 = vsub.s32 %v2555, %v2557
      %v2559 = vrot.slane %v2551, %v2558
      %v2561 = vunpack.c.l.s4 1983009808
      %v2562 = vunpack.c.0.s8 %v2561
      %v2563 = vlaneseq
      %v2564 = vshrl.u32 %v2563, 7
      %v2565 = vsub.s32 %v2562, %v2564
      %v2566 = vrot.slane %v2552, %v2565
      %v2567 = vcombine.low %v2559, %v2566
      %v2568 = vcombine.low %v2496, %v2498
      %v2569 = vcombine.low %v2537, %v2539
      %v2571 = vunpack.c.l.s4 1983009808
      %v2572 = vunpack.c.0.s8 %v2571
      %v2573 = vlaneseq
      %v2574 = vshrl.u32 %v2573, 7
      %v2575 = vsub.s32 %v2572, %v2574
      %v2576 = vrot.slane %v2568, %v2575
      %v2578 = vunpack.c.l.s4 1983009808
      %v2579 = vunpack.c.0.s8 %v2578
      %v2580 = vlaneseq
      %v2581 = vshrl.u32 %v2580, 7
      %v2582 = vsub.s32 %v2579, %v2581
      %v2583 = vrot.slane %v2569, %v2582
      %v2584 = vcombine.low %v2576, %v2583
      %v2587 = vadd.f32 %v2377, %v2567
      %v2588 = vadd.f32 %v2378, %v2584
      %v2589 = vxor.u32 %v2587, 2147483648
      %v2590 = vmul.f32 %v2589, 1.442695
      %v2591 = vpow.pop %v2590
      %v2592 = vadd.f32 %v2591, 1.0
      %v2593 = vrcp.pop %v2592
      %v2594 = vmul.f32 1.0, %v2593
      %v2596 = vrot.slane %v2587, 4
      %v2598 = vxor.u32 %v2596, 2147483648
      %v2599 = vmul.f32 %v2598, 1.442695
      %v2600 = vpow.pop %v2599
      %v2601 = vadd.f32 %v2600, 1.0
      %v2602 = vrcp.pop %v2601
      %v2603 = vmul.f32 1.0, %v2602
      %v2604 = vtanh.pop %v2588
      %v2606 = vrot.slane %v2588, 4
      %v2608 = vxor.u32 %v2606, 2147483648
      %v2609 = vmul.f32 %v2608, 1.442695
      %v2610 = vpow.pop %v2609
      %v2611 = vadd.f32 %v2610, 1.0
      %v2612 = vrcp.pop %v2611
      %v2613 = vmul.f32 1.0, %v2612
      %v2614 = vmul.f32 %v2603, %v2339
      %v2615 = vmul.f32 %v2594, %v2604
      %v2616 = vadd.f32 %v2614, %v2615
      %v2617 = vtanh.pop %v2616
      %v2618 = vmul.f32 %v2613, %v2617
      %v2621 = vunpack.c.l.s4 1983009808
      %v2622 = vunpack.c.0.s8 %v2621
      %v2623 = vlaneseq
      %v2624 = vshrl.u32 %v2623, 7
      %v2625 = vsub.s32 %v2622, %v2624
      %v2626 = vrot.slane %v2618, %v2625
      %v2627 = vcombine.high %v2626, %v2626
      %v2630 = vpack.c.bf16 %v2626, %v2626
      %v2631 = vpack.c.bf16 %v2627, %v2627
      %v2634 = vcombine.low %v2630, %v2631
      %v2636 = vunpack.c.l.s4 1966171168
      %v2637 = vunpack.c.0.s8 %v2636
      %v2638 = vlaneseq
      %v2639 = vshrl.u32 %v2638, 7
      %v2640 = vsub.s32 %v2637, %v2639
      %v2641 = vrot.slane %v2634, %v2640
      %v2643 = vunpack.c.l.s4 1966171168
      %v2644 = vunpack.c.0.s8 %v2643
      %v2645 = vlaneseq
      %v2646 = vshrl.u32 %v2645, 7
      %v2647 = vsub.s32 %v2644, %v2646
      %v2648 = vrot.slane %v2641, %v2647
      %s2650 = scalar_lea.vmem %s201, 10
      %2651 = vst [vmem:[%s2650] sm:$0x3] %v2648
      %s2652 = scalar_lea.vmem %s186, 48
      %v2653 = vld [vmem:[%s2652] sm:$0xff]
      %v2654 = vunpack.c.l.bf16 %v2653
      %v2655 = vunpack.c.h.bf16 %v2653
      %2656 = vmatprep.subr.bf16.mxu0 %v740
      %2657 = vmatpush1.bf16.msra.mxu0 %v739
      %2658 = vmatprep.subr.bf16.mxu0 %v748
      %2659 = vmatpush1.bf16.msra.mxu0 %v747
      %2660 = vmatprep.subr.bf16.mxu0 %v756
      %2661 = vmatpush1.bf16.msra.mxu0 %v755
      %2662 = vmatprep.subr.bf16.mxu0 %v764
      %2663 = vmatpush1.bf16.msra.mxu0 %v763
      %2664 = vmatprep.subr.bf16.mxu0 %v772
      %2665 = vmatpush1.bf16.msra.mxu0 %v771
      %2666 = vmatprep.subr.bf16.mxu0 %v780
      %2667 = vmatpush1.bf16.msra.mxu0 %v779
      %2668 = vmatprep.subr.bf16.mxu0 %v788
      %2669 = vmatpush1.bf16.msra.mxu0 %v787
      %2670 = vmatprep.subr.bf16.mxu0 %v796
      %2671 = vmatpush1.bf16.msra.mxu0 %v795
      %2672 = vmatprep.subr.bf16.mxu0 %v804
      %2673 = vmatpush1.bf16.msra.mxu0 %v803
      %2674 = vmatprep.subr.bf16.mxu0 %v812
      %2675 = vmatpush1.bf16.msra.mxu0 %v811
      %2676 = vmatprep.subr.bf16.mxu0 %v820
      %2677 = vmatpush1.bf16.msra.mxu0 %v819
      %2678 = vmatprep.subr.bf16.mxu0 %v828
      %2679 = vmatpush1.bf16.msra.mxu0 %v827
      %2680 = vmatprep.subr.bf16.mxu0 %v836
      %2681 = vmatpush1.bf16.msra.mxu0 %v835
      %2682 = vmatprep.subr.bf16.mxu0 %v844
      %2683 = vmatpush1.bf16.msra.mxu0 %v843
      %2684 = vmatprep.subr.bf16.mxu0 %v852
      %2685 = vmatpush1.bf16.msra.mxu0 %v851
      %2686 = vmatprep.subr.bf16.mxu0 %v860
      %2687 = vmatpush1.bf16.msra.mxu0 %v859
      %2688 = vmatprep.mubr.bf16.mxu0 %v2631
      %2689 = vmatmul.mubr.bf16.gmra.mrb[0].mxu0 %v2630
      %v2690 = vpop.f32.mrb[0].mxu0
      %v2691 = vadd.f32 0.0, %v2690
      %v2692 = vpop.f32.mrb[0].mxu0
      %v2693 = vadd.f32 0.0, %v2692
      %v2694 = vpop.f32.mrb[0].mxu0
      %v2695 = vpop.f32.mrb[0].mxu0
      %2696 = vdwg.mxu0
      %2697 = vmatprep.subr.bf16.mxu0 %v742
      %2698 = vmatpush1.bf16.msra.mxu0 %v741
      %2699 = vmatprep.subr.bf16.mxu0 %v750
      %2700 = vmatpush1.bf16.msra.mxu0 %v749
      %2701 = vmatprep.subr.bf16.mxu0 %v758
      %2702 = vmatpush1.bf16.msra.mxu0 %v757
      %2703 = vmatprep.subr.bf16.mxu0 %v766
      %2704 = vmatpush1.bf16.msra.mxu0 %v765
      %2705 = vmatprep.subr.bf16.mxu0 %v774
      %2706 = vmatpush1.bf16.msra.mxu0 %v773
      %2707 = vmatprep.subr.bf16.mxu0 %v782
      %2708 = vmatpush1.bf16.msra.mxu0 %v781
      %2709 = vmatprep.subr.bf16.mxu0 %v790
      %2710 = vmatpush1.bf16.msra.mxu0 %v789
      %2711 = vmatprep.subr.bf16.mxu0 %v798
      %2712 = vmatpush1.bf16.msra.mxu0 %v797
      %2713 = vmatprep.subr.bf16.mxu0 %v806
      %2714 = vmatpush1.bf16.msra.mxu0 %v805
      %2715 = vmatprep.subr.bf16.mxu0 %v814
      %2716 = vmatpush1.bf16.msra.mxu0 %v813
      %2717 = vmatprep.subr.bf16.mxu0 %v822
      %2718 = vmatpush1.bf16.msra.mxu0 %v821
      %2719 = vmatprep.subr.bf16.mxu0 %v830
      %2720 = vmatpush1.bf16.msra.mxu0 %v829
      %2721 = vmatprep.subr.bf16.mxu0 %v838
      %2722 = vmatpush1.bf16.msra.mxu0 %v837
      %2723 = vmatprep.subr.bf16.mxu0 %v846
      %2724 = vmatpush1.bf16.msra.mxu0 %v845
      %2725 = vmatprep.subr.bf16.mxu0 %v854
      %2726 = vmatpush1.bf16.msra.mxu0 %v853
      %2727 = vmatprep.subr.bf16.mxu0 %v862
      %2728 = vmatpush1.bf16.msra.mxu0 %v861
      %2729 = vmatprep.mubr.bf16.mxu0 %v2631
      %2730 = vmatmul.mubr.bf16.gmra.mrb[0].mxu0 %v2630
      %v2731 = vpop.f32.mrb[0].mxu0
      %v2732 = vadd.f32 0.0, %v2731
      %v2733 = vpop.f32.mrb[0].mxu0
      %v2734 = vadd.f32 0.0, %v2733
      %v2735 = vpop.f32.mrb[0].mxu0
      %v2736 = vpop.f32.mrb[0].mxu0
      %2737 = vdwg.mxu0
      %2738 = vmatprep.subr.bf16.mxu0 %v744
      %2739 = vmatpush1.bf16.msra.mxu0 %v743
      %2740 = vmatprep.subr.bf16.mxu0 %v752
      %2741 = vmatpush1.bf16.msra.mxu0 %v751
      %2742 = vmatprep.subr.bf16.mxu0 %v760
      %2743 = vmatpush1.bf16.msra.mxu0 %v759
      %2744 = vmatprep.subr.bf16.mxu0 %v768
      %2745 = vmatpush1.bf16.msra.mxu0 %v767
      %2746 = vmatprep.subr.bf16.mxu0 %v776
      %2747 = vmatpush1.bf16.msra.mxu0 %v775
      %2748 = vmatprep.subr.bf16.mxu0 %v784
      %2749 = vmatpush1.bf16.msra.mxu0 %v783
      %2750 = vmatprep.subr.bf16.mxu0 %v792
      %2751 = vmatpush1.bf16.msra.mxu0 %v791
      %2752 = vmatprep.subr.bf16.mxu0 %v800
      %2753 = vmatpush1.bf16.msra.mxu0 %v799
      %2754 = vmatprep.subr.bf16.mxu0 %v808
      %2755 = vmatpush1.bf16.msra.mxu0 %v807
      %2756 = vmatprep.subr.bf16.mxu0 %v816
      %2757 = vmatpush1.bf16.msra.mxu0 %v815
      %2758 = vmatprep.subr.bf16.mxu0 %v824
      %2759 = vmatpush1.bf16.msra.mxu0 %v823
      %2760 = vmatprep.subr.bf16.mxu0 %v832
      %2761 = vmatpush1.bf16.msra.mxu0 %v831
      %2762 = vmatprep.subr.bf16.mxu0 %v840
      %2763 = vmatpush1.bf16.msra.mxu0 %v839
      %2764 = vmatprep.subr.bf16.mxu0 %v848
      %2765 = vmatpush1.bf16.msra.mxu0 %v847
      %2766 = vmatprep.subr.bf16.mxu0 %v856
      %2767 = vmatpush1.bf16.msra.mxu0 %v855
      %2768 = vmatprep.subr.bf16.mxu0 %v864
      %2769 = vmatpush1.bf16.msra.mxu0 %v863
      %2770 = vmatprep.mubr.bf16.mxu0 %v2631
      %2771 = vmatmul.mubr.bf16.gmra.mrb[0].mxu0 %v2630
      %v2772 = vpop.f32.mrb[0].mxu0
      %v2773 = vadd.f32 0.0, %v2772
      %v2774 = vpop.f32.mrb[0].mxu0
      %v2775 = vadd.f32 0.0, %v2774
      %v2776 = vpop.f32.mrb[0].mxu0
      %v2777 = vpop.f32.mrb[0].mxu0
      %2778 = vdwg.mxu0
      %2779 = vmatprep.subr.bf16.mxu0 %v746
      %2780 = vmatpush1.bf16.msra.mxu0 %v745
      %2781 = vmatprep.subr.bf16.mxu0 %v754
      %2782 = vmatpush1.bf16.msra.mxu0 %v753
      %2783 = vmatprep.subr.bf16.mxu0 %v762
      %2784 = vmatpush1.bf16.msra.mxu0 %v761
      %2785 = vmatprep.subr.bf16.mxu0 %v770
      %2786 = vmatpush1.bf16.msra.mxu0 %v769
      %2787 = vmatprep.subr.bf16.mxu0 %v778
      %2788 = vmatpush1.bf16.msra.mxu0 %v777
      %2789 = vmatprep.subr.bf16.mxu0 %v786
      %2790 = vmatpush1.bf16.msra.mxu0 %v785
      %2791 = vmatprep.subr.bf16.mxu0 %v794
      %2792 = vmatpush1.bf16.msra.mxu0 %v793
      %2793 = vmatprep.subr.bf16.mxu0 %v802
      %2794 = vmatpush1.bf16.msra.mxu0 %v801
      %2795 = vmatprep.subr.bf16.mxu0 %v810
      %2796 = vmatpush1.bf16.msra.mxu0 %v809
      %2797 = vmatprep.subr.bf16.mxu0 %v818
      %2798 = vmatpush1.bf16.msra.mxu0 %v817
      %2799 = vmatprep.subr.bf16.mxu0 %v826
      %2800 = vmatpush1.bf16.msra.mxu0 %v825
      %2801 = vmatprep.subr.bf16.mxu0 %v834
      %2802 = vmatpush1.bf16.msra.mxu0 %v833
      %2803 = vmatprep.subr.bf16.mxu0 %v842
      %2804 = vmatpush1.bf16.msra.mxu0 %v841
      %2805 = vmatprep.subr.bf16.mxu0 %v850
      %2806 = vmatpush1.bf16.msra.mxu0 %v849
      %2807 = vmatprep.subr.bf16.mxu0 %v858
      %2808 = vmatpush1.bf16.msra.mxu0 %v857
      %2809 = vmatprep.subr.bf16.mxu0 %v866
      %2810 = vmatpush1.bf16.msra.mxu0 %v865
      %2811 = vmatprep.mubr.bf16.mxu0 %v2631
      %2812 = vmatmul.mubr.bf16.gmra.mrb[0].mxu0 %v2630
      %v2813 = vpop.f32.mrb[0].mxu0
      %v2814 = vadd.f32 0.0, %v2813
      %v2815 = vpop.f32.mrb[0].mxu0
      %v2816 = vadd.f32 0.0, %v2815
      %v2817 = vpop.f32.mrb[0].mxu0
      %v2818 = vpop.f32.mrb[0].mxu0
      %2819 = vdwg.mxu0
      %v2828 = vcombine.low %v2691, %v2693
      %v2829 = vcombine.low %v2732, %v2734
      %v2831 = vunpack.c.l.s4 1983009808
      %v2832 = vunpack.c.0.s8 %v2831
      %v2833 = vlaneseq
      %v2834 = vshrl.u32 %v2833, 7
      %v2835 = vsub.s32 %v2832, %v2834
      %v2836 = vrot.slane %v2828, %v2835
      %v2838 = vunpack.c.l.s4 1983009808
      %v2839 = vunpack.c.0.s8 %v2838
      %v2840 = vlaneseq
      %v2841 = vshrl.u32 %v2840, 7
      %v2842 = vsub.s32 %v2839, %v2841
      %v2843 = vrot.slane %v2829, %v2842
      %v2844 = vcombine.low %v2836, %v2843
      %v2845 = vcombine.low %v2773, %v2775
      %v2846 = vcombine.low %v2814, %v2816
      %v2848 = vunpack.c.l.s4 1983009808
      %v2849 = vunpack.c.0.s8 %v2848
      %v2850 = vlaneseq
      %v2851 = vshrl.u32 %v2850, 7
      %v2852 = vsub.s32 %v2849, %v2851
      %v2853 = vrot.slane %v2845, %v2852
      %v2855 = vunpack.c.l.s4 1983009808
      %v2856 = vunpack.c.0.s8 %v2855
      %v2857 = vlaneseq
      %v2858 = vshrl.u32 %v2857, 7
      %v2859 = vsub.s32 %v2856, %v2858
      %v2860 = vrot.slane %v2846, %v2859
      %v2861 = vcombine.low %v2853, %v2860
      %v2864 = vadd.f32 %v2654, %v2844
      %v2865 = vadd.f32 %v2655, %v2861
      %v2866 = vxor.u32 %v2864, 2147483648
      %v2867 = vmul.f32 %v2866, 1.442695
      %v2868 = vpow.pop %v2867
      %v2869 = vadd.f32 %v2868, 1.0
      %v2870 = vrcp.pop %v2869
      %v2871 = vmul.f32 1.0, %v2870
      %v2873 = vrot.slane %v2864, 4
      %v2875 = vxor.u32 %v2873, 2147483648
      %v2876 = vmul.f32 %v2875, 1.442695
      %v2877 = vpow.pop %v2876
      %v2878 = vadd.f32 %v2877, 1.0
      %v2879 = vrcp.pop %v2878
      %v2880 = vmul.f32 1.0, %v2879
      %v2881 = vtanh.pop %v2865
      %v2883 = vrot.slane %v2865, 4
      %v2885 = vxor.u32 %v2883, 2147483648
      %v2886 = vmul.f32 %v2885, 1.442695
      %v2887 = vpow.pop %v2886
      %v2888 = vadd.f32 %v2887, 1.0
      %v2889 = vrcp.pop %v2888
      %v2890 = vmul.f32 1.0, %v2889
      %v2891 = vmul.f32 %v2880, %v2616
      %v2892 = vmul.f32 %v2871, %v2881
      %v2893 = vadd.f32 %v2891, %v2892
      %v2894 = vtanh.pop %v2893
      %v2895 = vmul.f32 %v2890, %v2894
      %v2898 = vunpack.c.l.s4 1983009808
      %v2899 = vunpack.c.0.s8 %v2898
      %v2900 = vlaneseq
      %v2901 = vshrl.u32 %v2900, 7
      %v2902 = vsub.s32 %v2899, %v2901
      %v2903 = vrot.slane %v2895, %v2902
      %v2904 = vcombine.high %v2903, %v2903
      %v2907 = vpack.c.bf16 %v2903, %v2903
      %v2908 = vpack.c.bf16 %v2904, %v2904
      %v2911 = vcombine.low %v2907, %v2908
      %v2913 = vunpack.c.l.s4 1966171168
      %v2914 = vunpack.c.0.s8 %v2913
      %v2915 = vlaneseq
      %v2916 = vshrl.u32 %v2915, 7
      %v2917 = vsub.s32 %v2914, %v2916
      %v2918 = vrot.slane %v2911, %v2917
      %v2920 = vunpack.c.l.s4 1966171168
      %v2921 = vunpack.c.0.s8 %v2920
      %v2922 = vlaneseq
      %v2923 = vshrl.u32 %v2922, 7
      %v2924 = vsub.s32 %v2921, %v2923
      %v2925 = vrot.slane %v2918, %v2924
      %s2927 = scalar_lea.vmem %s201, 12
      %2928 = vst [vmem:[%s2927] sm:$0x3] %v2925
      %s2929 = scalar_lea.vmem %s186, 56
      %v2930 = vld [vmem:[%s2929] sm:$0xff]
      %v2931 = vunpack.c.l.bf16 %v2930
      %v2932 = vunpack.c.h.bf16 %v2930
      %2933 = vmatprep.subr.bf16.mxu0 %v740
      %2934 = vmatpush1.bf16.msra.mxu0 %v739
      %2935 = vmatprep.subr.bf16.mxu0 %v748
      %2936 = vmatpush1.bf16.msra.mxu0 %v747
      %2937 = vmatprep.subr.bf16.mxu0 %v756
      %2938 = vmatpush1.bf16.msra.mxu0 %v755
      %2939 = vmatprep.subr.bf16.mxu0 %v764
      %2940 = vmatpush1.bf16.msra.mxu0 %v763
      %2941 = vmatprep.subr.bf16.mxu0 %v772
      %2942 = vmatpush1.bf16.msra.mxu0 %v771
      %2943 = vmatprep.subr.bf16.mxu0 %v780
      %2944 = vmatpush1.bf16.msra.mxu0 %v779
      %2945 = vmatprep.subr.bf16.mxu0 %v788
      %2946 = vmatpush1.bf16.msra.mxu0 %v787
      %2947 = vmatprep.subr.bf16.mxu0 %v796
      %2948 = vmatpush1.bf16.msra.mxu0 %v795
      %2949 = vmatprep.subr.bf16.mxu0 %v804
      %2950 = vmatpush1.bf16.msra.mxu0 %v803
      %2951 = vmatprep.subr.bf16.mxu0 %v812
      %2952 = vmatpush1.bf16.msra.mxu0 %v811
      %2953 = vmatprep.subr.bf16.mxu0 %v820
      %2954 = vmatpush1.bf16.msra.mxu0 %v819
      %2955 = vmatprep.subr.bf16.mxu0 %v828
      %2956 = vmatpush1.bf16.msra.mxu0 %v827
      %2957 = vmatprep.subr.bf16.mxu0 %v836
      %2958 = vmatpush1.bf16.msra.mxu0 %v835
      %2959 = vmatprep.subr.bf16.mxu0 %v844
      %2960 = vmatpush1.bf16.msra.mxu0 %v843
      %2961 = vmatprep.subr.bf16.mxu0 %v852
      %2962 = vmatpush1.bf16.msra.mxu0 %v851
      %2963 = vmatprep.subr.bf16.mxu0 %v860
      %2964 = vmatpush1.bf16.msra.mxu0 %v859
      %2965 = vmatprep.mubr.bf16.mxu0 %v2908
      %2966 = vmatmul.mubr.bf16.gmra.mrb[0].mxu0 %v2907
      %v2967 = vpop.f32.mrb[0].mxu0
      %v2968 = vadd.f32 0.0, %v2967
      %v2969 = vpop.f32.mrb[0].mxu0
      %v2970 = vadd.f32 0.0, %v2969
      %v2971 = vpop.f32.mrb[0].mxu0
      %v2972 = vpop.f32.mrb[0].mxu0
      %2973 = vdwg.mxu0
      %2974 = vmatprep.subr.bf16.mxu0 %v742
      %2975 = vmatpush1.bf16.msra.mxu0 %v741
      %2976 = vmatprep.subr.bf16.mxu0 %v750
      %2977 = vmatpush1.bf16.msra.mxu0 %v749
      %2978 = vmatprep.subr.bf16.mxu0 %v758
      %2979 = vmatpush1.bf16.msra.mxu0 %v757
      %2980 = vmatprep.subr.bf16.mxu0 %v766
      %2981 = vmatpush1.bf16.msra.mxu0 %v765
      %2982 = vmatprep.subr.bf16.mxu0 %v774
      %2983 = vmatpush1.bf16.msra.mxu0 %v773
      %2984 = vmatprep.subr.bf16.mxu0 %v782
      %2985 = vmatpush1.bf16.msra.mxu0 %v781
      %2986 = vmatprep.subr.bf16.mxu0 %v790
      %2987 = vmatpush1.bf16.msra.mxu0 %v789
      %2988 = vmatprep.subr.bf16.mxu0 %v798
      %2989 = vmatpush1.bf16.msra.mxu0 %v797
      %2990 = vmatprep.subr.bf16.mxu0 %v806
      %2991 = vmatpush1.bf16.msra.mxu0 %v805
      %2992 = vmatprep.subr.bf16.mxu0 %v814
      %2993 = vmatpush1.bf16.msra.mxu0 %v813
      %2994 = vmatprep.subr.bf16.mxu0 %v822
      %2995 = vmatpush1.bf16.msra.mxu0 %v821
      %2996 = vmatprep.subr.bf16.mxu0 %v830
      %2997 = vmatpush1.bf16.msra.mxu0 %v829
      %2998 = vmatprep.subr.bf16.mxu0 %v838
      %2999 = vmatpush1.bf16.msra.mxu0 %v837
      %3000 = vmatprep.subr.bf16.mxu0 %v846
      %3001 = vmatpush1.bf16.msra.mxu0 %v845
      %3002 = vmatprep.subr.bf16.mxu0 %v854
      %3003 = vmatpush1.bf16.msra.mxu0 %v853
      %3004 = vmatprep.subr.bf16.mxu0 %v862
      %3005 = vmatpush1.bf16.msra.mxu0 %v861
      %3006 = vmatprep.mubr.bf16.mxu0 %v2908
      %3007 = vmatmul.mubr.bf16.gmra.mrb[0].mxu0 %v2907
      %v3008 = vpop.f32.mrb[0].mxu0
      %v3009 = vadd.f32 0.0, %v3008
      %v3010 = vpop.f32.mrb[0].mxu0
      %v3011 = vadd.f32 0.0, %v3010
      %v3012 = vpop.f32.mrb[0].mxu0
      %v3013 = vpop.f32.mrb[0].mxu0
      %3014 = vdwg.mxu0
      %3015 = vmatprep.subr.bf16.mxu0 %v744
      %3016 = vmatpush1.bf16.msra.mxu0 %v743
      %3017 = vmatprep.subr.bf16.mxu0 %v752
      %3018 = vmatpush1.bf16.msra.mxu0 %v751
      %3019 = vmatprep.subr.bf16.mxu0 %v760
      %3020 = vmatpush1.bf16.msra.mxu0 %v759
      %3021 = vmatprep.subr.bf16.mxu0 %v768
      %3022 = vmatpush1.bf16.msra.mxu0 %v767
      %3023 = vmatprep.subr.bf16.mxu0 %v776
      %3024 = vmatpush1.bf16.msra.mxu0 %v775
      %3025 = vmatprep.subr.bf16.mxu0 %v784
      %3026 = vmatpush1.bf16.msra.mxu0 %v783
      %3027 = vmatprep.subr.bf16.mxu0 %v792
      %3028 = vmatpush1.bf16.msra.mxu0 %v791
      %3029 = vmatprep.subr.bf16.mxu0 %v800
      %3030 = vmatpush1.bf16.msra.mxu0 %v799
      %3031 = vmatprep.subr.bf16.mxu0 %v808
      %3032 = vmatpush1.bf16.msra.mxu0 %v807
      %3033 = vmatprep.subr.bf16.mxu0 %v816
      %3034 = vmatpush1.bf16.msra.mxu0 %v815
      %3035 = vmatprep.subr.bf16.mxu0 %v824
      %3036 = vmatpush1.bf16.msra.mxu0 %v823
      %3037 = vmatprep.subr.bf16.mxu0 %v832
      %3038 = vmatpush1.bf16.msra.mxu0 %v831
      %3039 = vmatprep.subr.bf16.mxu0 %v840
      %3040 = vmatpush1.bf16.msra.mxu0 %v839
      %3041 = vmatprep.subr.bf16.mxu0 %v848
      %3042 = vmatpush1.bf16.msra.mxu0 %v847
      %3043 = vmatprep.subr.bf16.mxu0 %v856
      %3044 = vmatpush1.bf16.msra.mxu0 %v855
      %3045 = vmatprep.subr.bf16.mxu0 %v864
      %3046 = vmatpush1.bf16.msra.mxu0 %v863
      %3047 = vmatprep.mubr.bf16.mxu0 %v2908
      %3048 = vmatmul.mubr.bf16.gmra.mrb[0].mxu0 %v2907
      %v3049 = vpop.f32.mrb[0].mxu0
      %v3050 = vadd.f32 0.0, %v3049
      %v3051 = vpop.f32.mrb[0].mxu0
      %v3052 = vadd.f32 0.0, %v3051
      %v3053 = vpop.f32.mrb[0].mxu0
      %v3054 = vpop.f32.mrb[0].mxu0
      %3055 = vdwg.mxu0
      %3056 = vmatprep.subr.bf16.mxu0 %v746
      %3057 = vmatpush1.bf16.msra.mxu0 %v745
      %3058 = vmatprep.subr.bf16.mxu0 %v754
      %3059 = vmatpush1.bf16.msra.mxu0 %v753
      %3060 = vmatprep.subr.bf16.mxu0 %v762
      %3061 = vmatpush1.bf16.msra.mxu0 %v761
      %3062 = vmatprep.subr.bf16.mxu0 %v770
      %3063 = vmatpush1.bf16.msra.mxu0 %v769
      %3064 = vmatprep.subr.bf16.mxu0 %v778
      %3065 = vmatpush1.bf16.msra.mxu0 %v777
      %3066 = vmatprep.subr.bf16.mxu0 %v786
      %3067 = vmatpush1.bf16.msra.mxu0 %v785
      %3068 = vmatprep.subr.bf16.mxu0 %v794
      %3069 = vmatpush1.bf16.msra.mxu0 %v793
      %3070 = vmatprep.subr.bf16.mxu0 %v802
      %3071 = vmatpush1.bf16.msra.mxu0 %v801
      %3072 = vmatprep.subr.bf16.mxu0 %v810
      %3073 = vmatpush1.bf16.msra.mxu0 %v809
      %3074 = vmatprep.subr.bf16.mxu0 %v818
      %3075 = vmatpush1.bf16.msra.mxu0 %v817
      %3076 = vmatprep.subr.bf16.mxu0 %v826
      %3077 = vmatpush1.bf16.msra.mxu0 %v825
      %3078 = vmatprep.subr.bf16.mxu0 %v834
      %3079 = vmatpush1.bf16.msra.mxu0 %v833
      %3080 = vmatprep.subr.bf16.mxu0 %v842
      %3081 = vmatpush1.bf16.msra.mxu0 %v841
      %3082 = vmatprep.subr.bf16.mxu0 %v850
      %3083 = vmatpush1.bf16.msra.mxu0 %v849
      %3084 = vmatprep.subr.bf16.mxu0 %v858
      %3085 = vmatpush1.bf16.msra.mxu0 %v857
      %3086 = vmatprep.subr.bf16.mxu0 %v866
      %3087 = vmatpush1.bf16.msra.mxu0 %v865
      %3088 = vmatprep.mubr.bf16.mxu0 %v2908
      %3089 = vmatmul.mubr.bf16.gmra.mrb[0].mxu0 %v2907
      %v3090 = vpop.f32.mrb[0].mxu0
      %v3091 = vadd.f32 0.0, %v3090
      %v3092 = vpop.f32.mrb[0].mxu0
      %v3093 = vadd.f32 0.0, %v3092
      %v3094 = vpop.f32.mrb[0].mxu0
      %v3095 = vpop.f32.mrb[0].mxu0
      %3096 = vdwg.mxu0
      %v3105 = vcombine.low %v2968, %v2970
      %v3106 = vcombine.low %v3009, %v3011
      %v3108 = vunpack.c.l.s4 1983009808
      %v3109 = vunpack.c.0.s8 %v3108
      %v3110 = vlaneseq
      %v3111 = vshrl.u32 %v3110, 7
      %v3112 = vsub.s32 %v3109, %v3111
      %v3113 = vrot.slane %v3105, %v3112
      %v3115 = vunpack.c.l.s4 1983009808
      %v3116 = vunpack.c.0.s8 %v3115
      %v3117 = vlaneseq
      %v3118 = vshrl.u32 %v3117, 7
      %v3119 = vsub.s32 %v3116, %v3118
      %v3120 = vrot.slane %v3106, %v3119
      %v3121 = vcombine.low %v3113, %v3120
      %v3122 = vcombine.low %v3050, %v3052
      %v3123 = vcombine.low %v3091, %v3093
      %v3125 = vunpack.c.l.s4 1983009808
      %v3126 = vunpack.c.0.s8 %v3125
      %v3127 = vlaneseq
      %v3128 = vshrl.u32 %v3127, 7
      %v3129 = vsub.s32 %v3126, %v3128
      %v3130 = vrot.slane %v3122, %v3129
      %v3132 = vunpack.c.l.s4 1983009808
      %v3133 = vunpack.c.0.s8 %v3132
      %v3134 = vlaneseq
      %v3135 = vshrl.u32 %v3134, 7
      %v3136 = vsub.s32 %v3133, %v3135
      %v3137 = vrot.slane %v3123, %v3136
      %v3138 = vcombine.low %v3130, %v3137
      %v3141 = vadd.f32 %v2931, %v3121
      %v3142 = vadd.f32 %v2932, %v3138
      %v3143 = vxor.u32 %v3141, 2147483648
      %v3144 = vmul.f32 %v3143, 1.442695
      %v3145 = vpow.pop %v3144
      %v3146 = vadd.f32 %v3145, 1.0
      %v3147 = vrcp.pop %v3146
      %v3148 = vmul.f32 1.0, %v3147
      %v3150 = vrot.slane %v3141, 4
      %v3152 = vxor.u32 %v3150, 2147483648
      %v3153 = vmul.f32 %v3152, 1.442695
      %v3154 = vpow.pop %v3153
      %v3155 = vadd.f32 %v3154, 1.0
      %v3156 = vrcp.pop %v3155
      %v3157 = vmul.f32 1.0, %v3156
      %v3158 = vtanh.pop %v3142
      %v3160 = vrot.slane %v3142, 4
      %v3162 = vxor.u32 %v3160, 2147483648
      %v3163 = vmul.f32 %v3162, 1.442695
      %v3164 = vpow.pop %v3163
      %v3165 = vadd.f32 %v3164, 1.0
      %v3166 = vrcp.pop %v3165
      %v3167 = vmul.f32 1.0, %v3166
      %v3168 = vmul.f32 %v3157, %v2893
      %v3169 = vmul.f32 %v3148, %v3158
      %v3170 = vadd.f32 %v3168, %v3169
      %v3171 = vtanh.pop %v3170
      %v3172 = vmul.f32 %v3167, %v3171
      %v3175 = vunpack.c.l.s4 1983009808
      %v3176 = vunpack.c.0.s8 %v3175
      %v3177 = vlaneseq
      %v3178 = vshrl.u32 %v3177, 7
      %v3179 = vsub.s32 %v3176, %v3178
      %v3180 = vrot.slane %v3172, %v3179
      %v3181 = vcombine.high %v3180, %v3180
      %v3184 = vpack.c.bf16 %v3180, %v3180
      %v3185 = vpack.c.bf16 %v3181, %v3181
      %v3188 = vcombine.low %v3184, %v3185
      %v3190 = vunpack.c.l.s4 1966171168
      %v3191 = vunpack.c.0.s8 %v3190
      %v3192 = vlaneseq
      %v3193 = vshrl.u32 %v3192, 7
      %v3194 = vsub.s32 %v3191, %v3193
      %v3195 = vrot.slane %v3188, %v3194
      %v3197 = vunpack.c.l.s4 1966171168
      %v3198 = vunpack.c.0.s8 %v3197
      %v3199 = vlaneseq
      %v3200 = vshrl.u32 %v3199, 7
      %v3201 = vsub.s32 %v3198, %v3200
      %v3202 = vrot.slane %v3195, %v3201
      %s3204 = scalar_lea.vmem %s201, 14
      %3205 = vst [vmem:[%s3204] sm:$0x3] %v3202
      %3206 = vst [vmem:[#allocation2] sm:$0xf] %v3172
      %3207 = vst [vmem:[#allocation3] sm:$0xf] %v3170
      %s3208 = smul.u32 8, %s18
      %p3209 = scmp.lt.s32.totalorder %s17, 1
      %s3210 = scalar_select %p3209, %s17, 1
      %p3211 = scmp.lt.s32.totalorder %s3208, 7
      %s3212 = scalar_select %p3211, %s3208, 7
      %s3213 = smul.addr %s3212, 2
      %s3214 = smul.addr %s3210, 16
      %s3215 = sadd.s32 %s3213, %s3214
      %s3216 = scalar_lea.vmem %s2, %s3215
      // Predicated region
      $region33: #{rate_predictor_forward.2} parent=27 // pred_check
        %p3217 = pneg %p99
      $region34: #{rate_predictor_forward.2} parent=27 // pred_check_branch
        %3219 = sbr.rel (%p3217) target = $region36
      $region35: #{rate_predictor_forward.2} parent=27 // pred_region
        %s3220 = smul.u32 8, %s18
      $region36: #{rate_predictor_forward.2} parent=27 // pred_fallthru
        _
    $region28: #{rate_predictor_forward.2} parent=5 // pred_fallthru
      _
    %p3221 = scmp.le.s32.totalorder 2, %s8
    // Predicated region
    $region37: #{rate_predictor_forward.2} parent=5 // pred_check
      %p3222 = pneg %p3221
    $region38: #{rate_predictor_forward.2} parent=5 // pred_check_branch
      %3224 = sbr.rel (%p3222) target = $region40
    $region39: #{rate_predictor_forward.2} parent=5 // pred_region
      %s3225 = ssub.s32 %s8, 2
      // Predicated region
      $region41: #{rate_predictor_forward.2} parent=39 // pred_check
        %p3226 = pneg %p105
      $region42: #{rate_predictor_forward.2} parent=39 // pred_check_branch
        %3228 = sbr.rel (%p3226) target = $region44
      $region43: #{rate_predictor_forward.2} parent=39 // pred_region
        %s3229 = smul.u32 8, %s20
        %p3230 = scmp.lt.s32.totalorder %s19, 1
        %s3231 = scalar_select %p3230, %s19, 1
        %p3232 = scmp.lt.s32.totalorder %s3229, 7
        %s3233 = scalar_select %p3232, %s3229, 7
        %s3234 = smul.addr %s3233, 2
        %s3235 = smul.addr %s3231, 16
        %s3236 = sadd.s32 %s3234, %s3235
        %s3237 = scalar_lea.vmem %s2, %s3236
      $region44: #{rate_predictor_forward.2} parent=39 // pred_fallthru
        _
    $region40: #{rate_predictor_forward.2} parent=5 // pred_fallthru
      _
  $region6: #{rate_predictor_forward.2} parent=0 // loop_footer
    %s12 = sadd.s32 1, %s8
  $region7: #{rate_predictor_forward.2} parent=0 // loop_footer_branch
    %7 = sbr.rel target = $region3
  $region8: #{rate_predictor_forward.2} parent=0 // loop_exit
    _

// kernel: rate_predictor_forward.3
$region0: #{rate_predictor_forward.3}
  #allocation0 [shape = 'u32[]', space=smem, size = 0x4, offset = 0x4, fixed_abs, tag = 'smem constant byte address 0x4 - core index']
  #allocation1 [shape = 'u32[144,128]{1,0:T(1,128)}', space=vmem, size = 0x12000, scoped, tag = 'internal scratch']
  #allocation2 [shape = 'f32[2,256]{1,0:T(2,128)}', space=vmem, size = 0x800, scoped, tag = 'scratch operand']
  #allocation3 [shape = 'f32[2,256]{1,0:T(2,128)}', space=vmem, size = 0x800, scoped, tag = 'scratch operand']
  %s0 = inlined_call_operand.vmem [shape: bf16[8,2,1024], index: 0, kind: input, shape index: {}]
  %s1 = inlined_call_operand.vmem [shape: bf16[256,1024], index: 1, kind: input, shape index: {}]
  %s2 = inlined_call_operand.vmem [shape: f32[2,1024], index: 2, kind: input, shape index: {}]
  %s3 = inlined_call_operand.vmem [shape: f32[256,7], index: 3, kind: input, shape index: {}]
  %s4 = inlined_call_operand.vmem [shape: f32[256,7], index: 4, kind: input, shape index: {}]
  %s5 = inlined_call_operand.vmem [shape: f32[1,7], index: 5, kind: input, shape index: {}]
  %s6 = inlined_call_operand.hbm [shape: f32[2,7], index: 6, kind: output, shape index: {}]
  %s7 = sld [smem:[#allocation0]]
  $region42: #{rate_predictor_forward.3} parent=0
    _
  %s9 = ssub.s32 1, %s7
  %s10 = scalar_select 0, %s9, %s7
  $region1: #{rate_predictor_forward.3} parent=0
    #allocation4 [shape = 'u8[1024]{0}', space=vmem, size = 0x400, scoped, tag = 'output window, operand 0, single buffered']
    #allocation5 [shape = 's32[1]{0}', space=sflag, size = 0x4, scoped, tag = 'scoped memory for rate_predictor_forward.3']
    %11 = vsyncpa [#allocation5], 0
    // Predicated region
    $region2: #{rate_predictor_forward.3} parent=1 // pred_check
      _
    $region3: #{rate_predictor_forward.3} parent=1 // pred_check_branch
      %13 = sbr.rel (0) target = $region5
    $region4: #{rate_predictor_forward.3} parent=1 // pred_region
      _
    $region5: #{rate_predictor_forward.3} parent=1 // pred_fallthru
      _
    // Predicated region
    $region6: #{rate_predictor_forward.3} parent=1 // pred_check
      _
    $region7: #{rate_predictor_forward.3} parent=1 // pred_check_branch
      %15 = sbr.rel (0) target = $region9
    $region8: #{rate_predictor_forward.3} parent=1 // pred_region
      _
    $region9: #{rate_predictor_forward.3} parent=1 // pred_fallthru
      _
    // Predicated region
    $region10: #{rate_predictor_forward.3} parent=1 // pred_check
      _
    $region11: #{rate_predictor_forward.3} parent=1 // pred_check_branch
      %17 = sbr.rel (0) target = $region13
    $region12: #{rate_predictor_forward.3} parent=1 // pred_region
      _
    $region13: #{rate_predictor_forward.3} parent=1 // pred_fallthru
      _
    // Predicated region
    $region14: #{rate_predictor_forward.3} parent=1 // pred_check
      _
    $region15: #{rate_predictor_forward.3} parent=1 // pred_check_branch
      %19 = sbr.rel (0) target = $region17
    $region16: #{rate_predictor_forward.3} parent=1 // pred_region
      _
    $region17: #{rate_predictor_forward.3} parent=1 // pred_fallthru
      _
    // Predicated region
    $region18: #{rate_predictor_forward.3} parent=1 // pred_check
      _
    $region19: #{rate_predictor_forward.3} parent=1 // pred_check_branch
      %21 = sbr.rel (0) target = $region21
    $region20: #{rate_predictor_forward.3} parent=1 // pred_region
      _
    $region21: #{rate_predictor_forward.3} parent=1 // pred_fallthru
      _
    // Predicated region
    $region22: #{rate_predictor_forward.3} parent=1 // pred_check
      _
    $region23: #{rate_predictor_forward.3} parent=1 // pred_check_branch
      %23 = sbr.rel (0) target = $region25
    $region24: #{rate_predictor_forward.3} parent=1 // pred_region
      _
    $region25: #{rate_predictor_forward.3} parent=1 // pred_fallthru
      _
    %p24 = scmp.eq.s32.totalorder 0, 0
    // Predicated region
    $region26: #{rate_predictor_forward.3} parent=1 // pred_check
      %p25 = pneg %p24
    $region27: #{rate_predictor_forward.3} parent=1 // pred_check_branch
      %27 = sbr.rel (%p25) target = $region29
    $region28: #{rate_predictor_forward.3} parent=1 // pred_region
      %28 = vst [vmem:[#allocation2] sm:$0xf] 0.0
      %29 = vst [vmem:[#allocation3] sm:$0xf] 0.0
    $region29: #{rate_predictor_forward.3} parent=1 // pred_fallthru
      _
    %v30 = vld [vmem:[%s1] sm:$0xff]
    %v31 = vld [vmem:[%s1 + $0x8] sm:$0xff]
    %v32 = vld [vmem:[%s1 + $0x10] sm:$0xff]
    %v33 = vld [vmem:[%s1 + $0x18] sm:$0xff]
    %v34 = vld [vmem:[%s1 + $0x20] sm:$0xff]
    %v35 = vld [vmem:[%s1 + $0x28] sm:$0xff]
    %v36 = vld [vmem:[%s1 + $0x30] sm:$0xff]
    %v37 = vld [vmem:[%s1 + $0x38] sm:$0xff]
    %v38 = vld [vmem:[%s1 + $0x40] sm:$0xff]
    %v39 = vld [vmem:[%s1 + $0x48] sm:$0xff]
    %v40 = vld [vmem:[%s1 + $0x50] sm:$0xff]
    %v41 = vld [vmem:[%s1 + $0x58] sm:$0xff]
    %v42 = vld [vmem:[%s1 + $0x60] sm:$0xff]
    %v43 = vld [vmem:[%s1 + $0x68] sm:$0xff]
    %v44 = vld [vmem:[%s1 + $0x70] sm:$0xff]
    %v45 = vld [vmem:[%s1 + $0x78] sm:$0xff]
    %v46 = vld [vmem:[%s1 + $0x80] sm:$0xff]
    %v47 = vld [vmem:[%s1 + $0x88] sm:$0xff]
    %v48 = vld [vmem:[%s1 + $0x90] sm:$0xff]
    %v49 = vld [vmem:[%s1 + $0x98] sm:$0xff]
    %v50 = vld [vmem:[%s1 + $0xa0] sm:$0xff]
    %v51 = vld [vmem:[%s1 + $0xa8] sm:$0xff]
    %v52 = vld [vmem:[%s1 + $0xb0] sm:$0xff]
    %v53 = vld [vmem:[%s1 + $0xb8] sm:$0xff]
    %v54 = vld [vmem:[%s1 + $0xc0] sm:$0xff]
    %v55 = vld [vmem:[%s1 + $0xc8] sm:$0xff]
    %v56 = vld [vmem:[%s1 + $0xd0] sm:$0xff]
    %v57 = vld [vmem:[%s1 + $0xd8] sm:$0xff]
    %v58 = vld [vmem:[%s1 + $0xe0] sm:$0xff]
    %v59 = vld [vmem:[%s1 + $0xe8] sm:$0xff]
    %v60 = vld [vmem:[%s1 + $0xf0] sm:$0xff]
    %v61 = vld [vmem:[%s1 + $0xf8] sm:$0xff]
    %v62 = vld [vmem:[%s1 + $0x100] sm:$0xff]
    %v63 = vld [vmem:[%s1 + $0x108] sm:$0xff]
    %v64 = vld [vmem:[%s1 + $0x110] sm:$0xff]
    %v65 = vld [vmem:[%s1 + $0x118] sm:$0xff]
    %v66 = vld [vmem:[%s1 + $0x120] sm:$0xff]
    %v67 = vld [vmem:[%s1 + $0x128] sm:$0xff]
    %v68 = vld [vmem:[%s1 + $0x130] sm:$0xff]
    %v69 = vld [vmem:[%s1 + $0x138] sm:$0xff]
    %v70 = vld [vmem:[%s1 + $0x140] sm:$0xff]
    %v71 = vld [vmem:[%s1 + $0x148] sm:$0xff]
    %v72 = vld [vmem:[%s1 + $0x150] sm:$0xff]
    %v73 = vld [vmem:[%s1 + $0x158] sm:$0xff]
    %v74 = vld [vmem:[%s1 + $0x160] sm:$0xff]
    %v75 = vld [vmem:[%s1 + $0x168] sm:$0xff]
    %v76 = vld [vmem:[%s1 + $0x170] sm:$0xff]
    %v77 = vld [vmem:[%s1 + $0x178] sm:$0xff]
    %v78 = vld [vmem:[%s1 + $0x180] sm:$0xff]
    %v79 = vld [vmem:[%s1 + $0x188] sm:$0xff]
    %v80 = vld [vmem:[%s1 + $0x190] sm:$0xff]
    %v81 = vld [vmem:[%s1 + $0x198] sm:$0xff]
    %v82 = vld [vmem:[%s1 + $0x1a0] sm:$0xff]
    %v83 = vld [vmem:[%s1 + $0x1a8] sm:$0xff]
    %v84 = vld [vmem:[%s1 + $0x1b0] sm:$0xff]
    %v85 = vld [vmem:[%s1 + $0x1b8] sm:$0xff]
    %v86 = vld [vmem:[%s1 + $0x1c0] sm:$0xff]
    %v87 = vld [vmem:[%s1 + $0x1c8] sm:$0xff]
    %v88 = vld [vmem:[%s1 + $0x1d0] sm:$0xff]
    %v89 = vld [vmem:[%s1 + $0x1d8] sm:$0xff]
    %v90 = vld [vmem:[%s1 + $0x1e0] sm:$0xff]
    %v91 = vld [vmem:[%s1 + $0x1e8] sm:$0xff]
    %v92 = vld [vmem:[%s1 + $0x1f0] sm:$0xff]
    %v93 = vld [vmem:[%s1 + $0x1f8] sm:$0xff]
    %v94 = vld [vmem:[%s1 + $0x200] sm:$0xff]
    %v95 = vld [vmem:[%s1 + $0x208] sm:$0xff]
    %v96 = vld [vmem:[%s1 + $0x210] sm:$0xff]
    %v97 = vld [vmem:[%s1 + $0x218] sm:$0xff]
    %v98 = vld [vmem:[%s1 + $0x220] sm:$0xff]
    %v99 = vld [vmem:[%s1 + $0x228] sm:$0xff]
    %v100 = vld [vmem:[%s1 + $0x230] sm:$0xff]
    %v101 = vld [vmem:[%s1 + $0x238] sm:$0xff]
    %v102 = vld [vmem:[%s1 + $0x240] sm:$0xff]
    %v103 = vld [vmem:[%s1 + $0x248] sm:$0xff]
    %v104 = vld [vmem:[%s1 + $0x250] sm:$0xff]
    %v105 = vld [vmem:[%s1 + $0x258] sm:$0xff]
    %v106 = vld [vmem:[%s1 + $0x260] sm:$0xff]
    %v107 = vld [vmem:[%s1 + $0x268] sm:$0xff]
    %v108 = vld [vmem:[%s1 + $0x270] sm:$0xff]
    %v109 = vld [vmem:[%s1 + $0x278] sm:$0xff]
    %v110 = vld [vmem:[%s1 + $0x280] sm:$0xff]
    %v111 = vld [vmem:[%s1 + $0x288] sm:$0xff]
    %v112 = vld [vmem:[%s1 + $0x290] sm:$0xff]
    %v113 = vld [vmem:[%s1 + $0x298] sm:$0xff]
    %v114 = vld [vmem:[%s1 + $0x2a0] sm:$0xff]
    %v115 = vld [vmem:[%s1 + $0x2a8] sm:$0xff]
    %v116 = vld [vmem:[%s1 + $0x2b0] sm:$0xff]
    %v117 = vld [vmem:[%s1 + $0x2b8] sm:$0xff]
    %v118 = vld [vmem:[%s1 + $0x2c0] sm:$0xff]
    %v119 = vld [vmem:[%s1 + $0x2c8] sm:$0xff]
    %v120 = vld [vmem:[%s1 + $0x2d0] sm:$0xff]
    %v121 = vld [vmem:[%s1 + $0x2d8] sm:$0xff]
    %v122 = vld [vmem:[%s1 + $0x2e0] sm:$0xff]
    %v123 = vld [vmem:[%s1 + $0x2e8] sm:$0xff]
    %v124 = vld [vmem:[%s1 + $0x2f0] sm:$0xff]
    %v125 = vld [vmem:[%s1 + $0x2f8] sm:$0xff]
    %v126 = vld [vmem:[%s1 + $0x300] sm:$0xff]
    %v127 = vld [vmem:[%s1 + $0x308] sm:$0xff]
    %v128 = vld [vmem:[%s1 + $0x310] sm:$0xff]
    %v129 = vld [vmem:[%s1 + $0x318] sm:$0xff]
    %v130 = vld [vmem:[%s1 + $0x320] sm:$0xff]
    %v131 = vld [vmem:[%s1 + $0x328] sm:$0xff]
    %v132 = vld [vmem:[%s1 + $0x330] sm:$0xff]
    %v133 = vld [vmem:[%s1 + $0x338] sm:$0xff]
    %v134 = vld [vmem:[%s1 + $0x340] sm:$0xff]
    %v135 = vld [vmem:[%s1 + $0x348] sm:$0xff]
    %v136 = vld [vmem:[%s1 + $0x350] sm:$0xff]
    %v137 = vld [vmem:[%s1 + $0x358] sm:$0xff]
    %v138 = vld [vmem:[%s1 + $0x360] sm:$0xff]
    %v139 = vld [vmem:[%s1 + $0x368] sm:$0xff]
    %v140 = vld [vmem:[%s1 + $0x370] sm:$0xff]
    %v141 = vld [vmem:[%s1 + $0x378] sm:$0xff]
    %v142 = vld [vmem:[%s1 + $0x380] sm:$0xff]
    %v143 = vld [vmem:[%s1 + $0x388] sm:$0xff]
    %v144 = vld [vmem:[%s1 + $0x390] sm:$0xff]
    %v145 = vld [vmem:[%s1 + $0x398] sm:$0xff]
    %v146 = vld [vmem:[%s1 + $0x3a0] sm:$0xff]
    %v147 = vld [vmem:[%s1 + $0x3a8] sm:$0xff]
    %v148 = vld [vmem:[%s1 + $0x3b0] sm:$0xff]
    %v149 = vld [vmem:[%s1 + $0x3b8] sm:$0xff]
    %v150 = vld [vmem:[%s1 + $0x3c0] sm:$0xff]
    %v151 = vld [vmem:[%s1 + $0x3c8] sm:$0xff]
    %v152 = vld [vmem:[%s1 + $0x3d0] sm:$0xff]
    %v153 = vld [vmem:[%s1 + $0x3d8] sm:$0xff]
    %v154 = vld [vmem:[%s1 + $0x3e0] sm:$0xff]
    %v155 = vld [vmem:[%s1 + $0x3e8] sm:$0xff]
    %v156 = vld [vmem:[%s1 + $0x3f0] sm:$0xff]
    %v157 = vld [vmem:[%s1 + $0x3f8] sm:$0xff]
    %v158 = vld [vmem:[#allocation2] sm:$0xf]
    %v159 = vld [vmem:[#allocation3] sm:$0xf]
    %v160 = vld [vmem:[%s0] sm:$0xff]
    %v161 = vunpack.c.l.bf16 %v160
    %v162 = vunpack.c.h.bf16 %v160
    %v165 = vunpack.c.l.s4 1983009808
    %v166 = vunpack.c.0.s8 %v165
    %v167 = vlaneseq
    %v168 = vshrl.u32 %v167, 7
    %v169 = vsub.s32 %v166, %v168
    %v170 = vrot.slane %v158, %v169
    %v171 = vcombine.high %v170, %v170
    %v174 = vpack.c.bf16 %v170, %v170
    %v175 = vpack.c.bf16 %v171, %v171
    %v304 = vunpack.c.l.b16 %v30
    %v305 = vunpack.c.h.b16 %v30
    %v306 = vunpack.c.l.b16 %v31
    %v307 = vunpack.c.h.b16 %v31
    %v308 = vunpack.c.l.b16 %v32
    %v309 = vunpack.c.h.b16 %v32
    %v310 = vunpack.c.l.b16 %v33
    %v311 = vunpack.c.h.b16 %v33
    %v312 = vunpack.c.l.b16 %v34
    %v313 = vunpack.c.h.b16 %v34
    %v314 = vunpack.c.l.b16 %v35
    %v315 = vunpack.c.h.b16 %v35
    %v316 = vunpack.c.l.b16 %v36
    %v317 = vunpack.c.h.b16 %v36
    %v318 = vunpack.c.l.b16 %v37
    %v319 = vunpack.c.h.b16 %v37
    %v320 = vunpack.c.l.b16 %v38
    %v321 = vunpack.c.h.b16 %v38
    %v322 = vunpack.c.l.b16 %v39
    %v323 = vunpack.c.h.b16 %v39
    %v324 = vunpack.c.l.b16 %v40
    %v325 = vunpack.c.h.b16 %v40
    %v326 = vunpack.c.l.b16 %v41
    %v327 = vunpack.c.h.b16 %v41
    %v328 = vunpack.c.l.b16 %v42
    %v329 = vunpack.c.h.b16 %v42
    %v330 = vunpack.c.l.b16 %v43
    %v331 = vunpack.c.h.b16 %v43
    %v332 = vunpack.c.l.b16 %v44
    %v333 = vunpack.c.h.b16 %v44
    %v334 = vunpack.c.l.b16 %v45
    %v335 = vunpack.c.h.b16 %v45
    %v336 = vunpack.c.l.b16 %v46
    %v337 = vunpack.c.h.b16 %v46
    %v338 = vunpack.c.l.b16 %v47
    %v339 = vunpack.c.h.b16 %v47
    %v340 = vunpack.c.l.b16 %v48
    %v341 = vunpack.c.h.b16 %v48
    %v342 = vunpack.c.l.b16 %v49
    %v343 = vunpack.c.h.b16 %v49
    %v344 = vunpack.c.l.b16 %v50
    %v345 = vunpack.c.h.b16 %v50
    %v346 = vunpack.c.l.b16 %v51
    %v347 = vunpack.c.h.b16 %v51
    %v348 = vunpack.c.l.b16 %v52
    %v349 = vunpack.c.h.b16 %v52
    %v350 = vunpack.c.l.b16 %v53
    %v351 = vunpack.c.h.b16 %v53
    %v352 = vunpack.c.l.b16 %v54
    %v353 = vunpack.c.h.b16 %v54
    %v354 = vunpack.c.l.b16 %v55
    %v355 = vunpack.c.h.b16 %v55
    %v356 = vunpack.c.l.b16 %v56
    %v357 = vunpack.c.h.b16 %v56
    %v358 = vunpack.c.l.b16 %v57
    %v359 = vunpack.c.h.b16 %v57
    %v360 = vunpack.c.l.b16 %v58
    %v361 = vunpack.c.h.b16 %v58
    %v362 = vunpack.c.l.b16 %v59
    %v363 = vunpack.c.h.b16 %v59
    %v364 = vunpack.c.l.b16 %v60
    %v365 = vunpack.c.h.b16 %v60
    %v366 = vunpack.c.l.b16 %v61
    %v367 = vunpack.c.h.b16 %v61
    %v368 = vunpack.c.l.b16 %v62
    %v369 = vunpack.c.h.b16 %v62
    %v370 = vunpack.c.l.b16 %v63
    %v371 = vunpack.c.h.b16 %v63
    %v372 = vunpack.c.l.b16 %v64
    %v373 = vunpack.c.h.b16 %v64
    %v374 = vunpack.c.l.b16 %v65
    %v375 = vunpack.c.h.b16 %v65
    %v376 = vunpack.c.l.b16 %v66
    %v377 = vunpack.c.h.b16 %v66
    %v378 = vunpack.c.l.b16 %v67
    %v379 = vunpack.c.h.b16 %v67
    %v380 = vunpack.c.l.b16 %v68
    %v381 = vunpack.c.h.b16 %v68
    %v382 = vunpack.c.l.b16 %v69
    %v383 = vunpack.c.h.b16 %v69
    %v384 = vunpack.c.l.b16 %v70
    %v385 = vunpack.c.h.b16 %v70
    %v386 = vunpack.c.l.b16 %v71
    %v387 = vunpack.c.h.b16 %v71
    %v388 = vunpack.c.l.b16 %v72
    %v389 = vunpack.c.h.b16 %v72
    %v390 = vunpack.c.l.b16 %v73
    %v391 = vunpack.c.h.b16 %v73
    %v392 = vunpack.c.l.b16 %v74
    %v393 = vunpack.c.h.b16 %v74
    %v394 = vunpack.c.l.b16 %v75
    %v395 = vunpack.c.h.b16 %v75
    %v396 = vunpack.c.l.b16 %v76
    %v397 = vunpack.c.h.b16 %v76
    %v398 = vunpack.c.l.b16 %v77
    %v399 = vunpack.c.h.b16 %v77
    %v400 = vunpack.c.l.b16 %v78
    %v401 = vunpack.c.h.b16 %v78
    %v402 = vunpack.c.l.b16 %v79
    %v403 = vunpack.c.h.b16 %v79
    %v404 = vunpack.c.l.b16 %v80
    %v405 = vunpack.c.h.b16 %v80
    %v406 = vunpack.c.l.b16 %v81
    %v407 = vunpack.c.h.b16 %v81
    %v408 = vunpack.c.l.b16 %v82
    %v409 = vunpack.c.h.b16 %v82
    %v410 = vunpack.c.l.b16 %v83
    %v411 = vunpack.c.h.b16 %v83
    %v412 = vunpack.c.l.b16 %v84
    %v413 = vunpack.c.h.b16 %v84
    %v414 = vunpack.c.l.b16 %v85
    %v415 = vunpack.c.h.b16 %v85
    %v416 = vunpack.c.l.b16 %v86
    %v417 = vunpack.c.h.b16 %v86
    %v418 = vunpack.c.l.b16 %v87
    %v419 = vunpack.c.h.b16 %v87
    %v420 = vunpack.c.l.b16 %v88
    %v421 = vunpack.c.h.b16 %v88
    %v422 = vunpack.c.l.b16 %v89
    %v423 = vunpack.c.h.b16 %v89
    %v424 = vunpack.c.l.b16 %v90
    %v425 = vunpack.c.h.b16 %v90
    %v426 = vunpack.c.l.b16 %v91
    %v427 = vunpack.c.h.b16 %v91
    %v428 = vunpack.c.l.b16 %v92
    %v429 = vunpack.c.h.b16 %v92
    %v430 = vunpack.c.l.b16 %v93
    %v431 = vunpack.c.h.b16 %v93
    %v432 = vunpack.c.l.b16 %v94
    %v433 = vunpack.c.h.b16 %v94
    %v434 = vunpack.c.l.b16 %v95
    %v435 = vunpack.c.h.b16 %v95
    %v436 = vunpack.c.l.b16 %v96
    %v437 = vunpack.c.h.b16 %v96
    %v438 = vunpack.c.l.b16 %v97
    %v439 = vunpack.c.h.b16 %v97
    %v440 = vunpack.c.l.b16 %v98
    %v441 = vunpack.c.h.b16 %v98
    %v442 = vunpack.c.l.b16 %v99
    %v443 = vunpack.c.h.b16 %v99
    %v444 = vunpack.c.l.b16 %v100
    %v445 = vunpack.c.h.b16 %v100
    %v446 = vunpack.c.l.b16 %v101
    %v447 = vunpack.c.h.b16 %v101
    %v448 = vunpack.c.l.b16 %v102
    %v449 = vunpack.c.h.b16 %v102
    %v450 = vunpack.c.l.b16 %v103
    %v451 = vunpack.c.h.b16 %v103
    %v452 = vunpack.c.l.b16 %v104
    %v453 = vunpack.c.h.b16 %v104
    %v454 = vunpack.c.l.b16 %v105
    %v455 = vunpack.c.h.b16 %v105
    %v456 = vunpack.c.l.b16 %v106
    %v457 = vunpack.c.h.b16 %v106
    %v458 = vunpack.c.l.b16 %v107
    %v459 = vunpack.c.h.b16 %v107
    %v460 = vunpack.c.l.b16 %v108
    %v461 = vunpack.c.h.b16 %v108
    %v462 = vunpack.c.l.b16 %v109
    %v463 = vunpack.c.h.b16 %v109
    %v464 = vunpack.c.l.b16 %v110
    %v465 = vunpack.c.h.b16 %v110
    %v466 = vunpack.c.l.b16 %v111
    %v467 = vunpack.c.h.b16 %v111
    %v468 = vunpack.c.l.b16 %v112
    %v469 = vunpack.c.h.b16 %v112
    %v470 = vunpack.c.l.b16 %v113
    %v471 = vunpack.c.h.b16 %v113
    %v472 = vunpack.c.l.b16 %v114
    %v473 = vunpack.c.h.b16 %v114
    %v474 = vunpack.c.l.b16 %v115
    %v475 = vunpack.c.h.b16 %v115
    %v476 = vunpack.c.l.b16 %v116
    %v477 = vunpack.c.h.b16 %v116
    %v478 = vunpack.c.l.b16 %v117
    %v479 = vunpack.c.h.b16 %v117
    %v480 = vunpack.c.l.b16 %v118
    %v481 = vunpack.c.h.b16 %v118
    %v482 = vunpack.c.l.b16 %v119
    %v483 = vunpack.c.h.b16 %v119
    %v484 = vunpack.c.l.b16 %v120
    %v485 = vunpack.c.h.b16 %v120
    %v486 = vunpack.c.l.b16 %v121
    %v487 = vunpack.c.h.b16 %v121
    %v488 = vunpack.c.l.b16 %v122
    %v489 = vunpack.c.h.b16 %v122
    %v490 = vunpack.c.l.b16 %v123
    %v491 = vunpack.c.h.b16 %v123
    %v492 = vunpack.c.l.b16 %v124
    %v493 = vunpack.c.h.b16 %v124
    %v494 = vunpack.c.l.b16 %v125
    %v495 = vunpack.c.h.b16 %v125
    %v496 = vunpack.c.l.b16 %v126
    %v497 = vunpack.c.h.b16 %v126
    %v498 = vunpack.c.l.b16 %v127
    %v499 = vunpack.c.h.b16 %v127
    %v500 = vunpack.c.l.b16 %v128
    %v501 = vunpack.c.h.b16 %v128
    %v502 = vunpack.c.l.b16 %v129
    %v503 = vunpack.c.h.b16 %v129
    %v504 = vunpack.c.l.b16 %v130
    %v505 = vunpack.c.h.b16 %v130
    %v506 = vunpack.c.l.b16 %v131
    %v507 = vunpack.c.h.b16 %v131
    %v508 = vunpack.c.l.b16 %v132
    %v509 = vunpack.c.h.b16 %v132
    %v510 = vunpack.c.l.b16 %v133
    %v511 = vunpack.c.h.b16 %v133
    %v512 = vunpack.c.l.b16 %v134
    %v513 = vunpack.c.h.b16 %v134
    %v514 = vunpack.c.l.b16 %v135
    %v515 = vunpack.c.h.b16 %v135
    %v516 = vunpack.c.l.b16 %v136
    %v517 = vunpack.c.h.b16 %v136
    %v518 = vunpack.c.l.b16 %v137
    %v519 = vunpack.c.h.b16 %v137
    %v520 = vunpack.c.l.b16 %v138
    %v521 = vunpack.c.h.b16 %v138
    %v522 = vunpack.c.l.b16 %v139
    %v523 = vunpack.c.h.b16 %v139
    %v524 = vunpack.c.l.b16 %v140
    %v525 = vunpack.c.h.b16 %v140
    %v526 = vunpack.c.l.b16 %v141
    %v527 = vunpack.c.h.b16 %v141
    %v528 = vunpack.c.l.b16 %v142
    %v529 = vunpack.c.h.b16 %v142
    %v530 = vunpack.c.l.b16 %v143
    %v531 = vunpack.c.h.b16 %v143
    %v532 = vunpack.c.l.b16 %v144
    %v533 = vunpack.c.h.b16 %v144
    %v534 = vunpack.c.l.b16 %v145
    %v535 = vunpack.c.h.b16 %v145
    %v536 = vunpack.c.l.b16 %v146
    %v537 = vunpack.c.h.b16 %v146
    %v538 = vunpack.c.l.b16 %v147
    %v539 = vunpack.c.h.b16 %v147
    %v540 = vunpack.c.l.b16 %v148
    %v541 = vunpack.c.h.b16 %v148
    %v542 = vunpack.c.l.b16 %v149
    %v543 = vunpack.c.h.b16 %v149
    %v544 = vunpack.c.l.b16 %v150
    %v545 = vunpack.c.h.b16 %v150
    %v546 = vunpack.c.l.b16 %v151
    %v547 = vunpack.c.h.b16 %v151
    %v548 = vunpack.c.l.b16 %v152
    %v549 = vunpack.c.h.b16 %v152
    %v550 = vunpack.c.l.b16 %v153
    %v551 = vunpack.c.h.b16 %v153
    %v552 = vunpack.c.l.b16 %v154
    %v553 = vunpack.c.h.b16 %v154
    %v554 = vunpack.c.l.b16 %v155
    %v555 = vunpack.c.h.b16 %v155
    %v556 = vunpack.c.l.b16 %v156
    %v557 = vunpack.c.h.b16 %v156
    %v558 = vunpack.c.l.b16 %v157
    %v559 = vunpack.c.h.b16 %v157
    %v560 = vpack.c.b16 %v312, %v304
    %v561 = vpack.c.b16 %v313, %v305
    %v562 = vpack.c.b16 %v314, %v306
    %v563 = vpack.c.b16 %v315, %v307
    %v564 = vpack.c.b16 %v316, %v308
    %v565 = vpack.c.b16 %v317, %v309
    %v566 = vpack.c.b16 %v318, %v310
    %v567 = vpack.c.b16 %v319, %v311
    %v568 = vpack.c.b16 %v328, %v320
    %v569 = vpack.c.b16 %v329, %v321
    %v570 = vpack.c.b16 %v330, %v322
    %v571 = vpack.c.b16 %v331, %v323
    %v572 = vpack.c.b16 %v332, %v324
    %v573 = vpack.c.b16 %v333, %v325
    %v574 = vpack.c.b16 %v334, %v326
    %v575 = vpack.c.b16 %v335, %v327
    %v576 = vpack.c.b16 %v344, %v336
    %v577 = vpack.c.b16 %v345, %v337
    %v578 = vpack.c.b16 %v346, %v338
    %v579 = vpack.c.b16 %v347, %v339
    %v580 = vpack.c.b16 %v348, %v340
    %v581 = vpack.c.b16 %v349, %v341
    %v582 = vpack.c.b16 %v350, %v342
    %v583 = vpack.c.b16 %v351, %v343
    %v584 = vpack.c.b16 %v360, %v352
    %v585 = vpack.c.b16 %v361, %v353
    %v586 = vpack.c.b16 %v362, %v354
    %v587 = vpack.c.b16 %v363, %v355
    %v588 = vpack.c.b16 %v364, %v356
    %v589 = vpack.c.b16 %v365, %v357
    %v590 = vpack.c.b16 %v366, %v358
    %v591 = vpack.c.b16 %v367, %v359
    %v592 = vpack.c.b16 %v376, %v368
    %v593 = vpack.c.b16 %v377, %v369
    %v594 = vpack.c.b16 %v378, %v370
    %v595 = vpack.c.b16 %v379, %v371
    %v596 = vpack.c.b16 %v380, %v372
    %v597 = vpack.c.b16 %v381, %v373
    %v598 = vpack.c.b16 %v382, %v374
    %v599 = vpack.c.b16 %v383, %v375
    %v600 = vpack.c.b16 %v392, %v384
    %v601 = vpack.c.b16 %v393, %v385
    %v602 = vpack.c.b16 %v394, %v386
    %v603 = vpack.c.b16 %v395, %v387
    %v604 = vpack.c.b16 %v396, %v388
    %v605 = vpack.c.b16 %v397, %v389
    %v606 = vpack.c.b16 %v398, %v390
    %v607 = vpack.c.b16 %v399, %v391
    %v608 = vpack.c.b16 %v408, %v400
    %v609 = vpack.c.b16 %v409, %v401
    %v610 = vpack.c.b16 %v410, %v402
    %v611 = vpack.c.b16 %v411, %v403
    %v612 = vpack.c.b16 %v412, %v404
    %v613 = vpack.c.b16 %v413, %v405
    %v614 = vpack.c.b16 %v414, %v406
    %v615 = vpack.c.b16 %v415, %v407
    %v616 = vpack.c.b16 %v424, %v416
    %v617 = vpack.c.b16 %v425, %v417
    %v618 = vpack.c.b16 %v426, %v418
    %v619 = vpack.c.b16 %v427, %v419
    %v620 = vpack.c.b16 %v428, %v420
    %v621 = vpack.c.b16 %v429, %v421
    %v622 = vpack.c.b16 %v430, %v422
    %v623 = vpack.c.b16 %v431, %v423
    %v624 = vpack.c.b16 %v440, %v432
    %v625 = vpack.c.b16 %v441, %v433
    %v626 = vpack.c.b16 %v442, %v434
    %v627 = vpack.c.b16 %v443, %v435
    %v628 = vpack.c.b16 %v444, %v436
    %v629 = vpack.c.b16 %v445, %v437
    %v630 = vpack.c.b16 %v446, %v438
    %v631 = vpack.c.b16 %v447, %v439
    %v632 = vpack.c.b16 %v456, %v448
    %v633 = vpack.c.b16 %v457, %v449
    %v634 = vpack.c.b16 %v458, %v450
    %v635 = vpack.c.b16 %v459, %v451
    %v636 = vpack.c.b16 %v460, %v452
    %v637 = vpack.c.b16 %v461, %v453
    %v638 = vpack.c.b16 %v462, %v454
    %v639 = vpack.c.b16 %v463, %v455
    %v640 = vpack.c.b16 %v472, %v464
    %v641 = vpack.c.b16 %v473, %v465
    %v642 = vpack.c.b16 %v474, %v466
    %v643 = vpack.c.b16 %v475, %v467
    %v644 = vpack.c.b16 %v476, %v468
    %v645 = vpack.c.b16 %v477, %v469
    %v646 = vpack.c.b16 %v478, %v470
    %v647 = vpack.c.b16 %v479, %v471
    %v648 = vpack.c.b16 %v488, %v480
    %v649 = vpack.c.b16 %v489, %v481
    %v650 = vpack.c.b16 %v490, %v482
    %v651 = vpack.c.b16 %v491, %v483
    %v652 = vpack.c.b16 %v492, %v484
    %v653 = vpack.c.b16 %v493, %v485
    %v654 = vpack.c.b16 %v494, %v486
    %v655 = vpack.c.b16 %v495, %v487
    %v656 = vpack.c.b16 %v504, %v496
    %v657 = vpack.c.b16 %v505, %v497
    %v658 = vpack.c.b16 %v506, %v498
    %v659 = vpack.c.b16 %v507, %v499
    %v660 = vpack.c.b16 %v508, %v500
    %v661 = vpack.c.b16 %v509, %v501
    %v662 = vpack.c.b16 %v510, %v502
    %v663 = vpack.c.b16 %v511, %v503
    %v664 = vpack.c.b16 %v520, %v512
    %v665 = vpack.c.b16 %v521, %v513
    %v666 = vpack.c.b16 %v522, %v514
    %v667 = vpack.c.b16 %v523, %v515
    %v668 = vpack.c.b16 %v524, %v516
    %v669 = vpack.c.b16 %v525, %v517
    %v670 = vpack.c.b16 %v526, %v518
    %v671 = vpack.c.b16 %v527, %v519
    %v672 = vpack.c.b16 %v536, %v528
    %v673 = vpack.c.b16 %v537, %v529
    %v674 = vpack.c.b16 %v538, %v530
    %v675 = vpack.c.b16 %v539, %v531
    %v676 = vpack.c.b16 %v540, %v532
    %v677 = vpack.c.b16 %v541, %v533
    %v678 = vpack.c.b16 %v542, %v534
    %v679 = vpack.c.b16 %v543, %v535
    %v680 = vpack.c.b16 %v552, %v544
    %v681 = vpack.c.b16 %v553, %v545
    %v682 = vpack.c.b16 %v554, %v546
    %v683 = vpack.c.b16 %v555, %v547
    %v684 = vpack.c.b16 %v556, %v548
    %v685 = vpack.c.b16 %v557, %v549
    %v686 = vpack.c.b16 %v558, %v550
    %v687 = vpack.c.b16 %v559, %v551
    %816 = vmatprep.subr.bf16.mxu0 %v561
    %817 = vmatpush1.bf16.msra.mxu0 %v560
    %818 = vmatprep.subr.bf16.mxu0 %v569
    %819 = vmatpush1.bf16.msra.mxu0 %v568
    %820 = vmatprep.subr.bf16.mxu0 %v577
    %821 = vmatpush1.bf16.msra.mxu0 %v576
    %822 = vmatprep.subr.bf16.mxu0 %v585
    %823 = vmatpush1.bf16.msra.mxu0 %v584
    %824 = vmatprep.subr.bf16.mxu0 %v593
    %825 = vmatpush1.bf16.msra.mxu0 %v592
    %826 = vmatprep.subr.bf16.mxu0 %v601
    %827 = vmatpush1.bf16.msra.mxu0 %v600
    %828 = vmatprep.subr.bf16.mxu0 %v609
    %829 = vmatpush1.bf16.msra.mxu0 %v608
    %830 = vmatprep.subr.bf16.mxu0 %v617
    %831 = vmatpush1.bf16.msra.mxu0 %v616
    %832 = vmatprep.subr.bf16.mxu0 %v625
    %833 = vmatpush1.bf16.msra.mxu0 %v624
    %834 = vmatprep.subr.bf16.mxu0 %v633
    %835 = vmatpush1.bf16.msra.mxu0 %v632
    %836 = vmatprep.subr.bf16.mxu0 %v641
    %837 = vmatpush1.bf16.msra.mxu0 %v640
    %838 = vmatprep.subr.bf16.mxu0 %v649
    %839 = vmatpush1.bf16.msra.mxu0 %v648
    %840 = vmatprep.subr.bf16.mxu0 %v657
    %841 = vmatpush1.bf16.msra.mxu0 %v656
    %842 = vmatprep.subr.bf16.mxu0 %v665
    %843 = vmatpush1.bf16.msra.mxu0 %v664
    %844 = vmatprep.subr.bf16.mxu0 %v673
    %845 = vmatpush1.bf16.msra.mxu0 %v672
    %846 = vmatprep.subr.bf16.mxu0 %v681
    %847 = vmatpush1.bf16.msra.mxu0 %v680
    %848 = vmatprep.mubr.bf16.mxu0 %v175
    %849 = vmatmul.mubr.bf16.gmra.mrb[0].mxu0 %v174
    %v850 = vpop.f32.mrb[0].mxu0
    %v851 = vadd.f32 0.0, %v850
    %v852 = vpop.f32.mrb[0].mxu0
    %v853 = vadd.f32 0.0, %v852
    %v854 = vpop.f32.mrb[0].mxu0
    %v855 = vpop.f32.mrb[0].mxu0
    %856 = vdwg.mxu0
    %857 = vmatprep.subr.bf16.mxu0 %v563
    %858 = vmatpush1.bf16.msra.mxu0 %v562
    %859 = vmatprep.subr.bf16.mxu0 %v571
    %860 = vmatpush1.bf16.msra.mxu0 %v570
    %861 = vmatprep.subr.bf16.mxu0 %v579
    %862 = vmatpush1.bf16.msra.mxu0 %v578
    %863 = vmatprep.subr.bf16.mxu0 %v587
    %864 = vmatpush1.bf16.msra.mxu0 %v586
    %865 = vmatprep.subr.bf16.mxu0 %v595
    %866 = vmatpush1.bf16.msra.mxu0 %v594
    %867 = vmatprep.subr.bf16.mxu0 %v603
    %868 = vmatpush1.bf16.msra.mxu0 %v602
    %869 = vmatprep.subr.bf16.mxu0 %v611
    %870 = vmatpush1.bf16.msra.mxu0 %v610
    %871 = vmatprep.subr.bf16.mxu0 %v619
    %872 = vmatpush1.bf16.msra.mxu0 %v618
    %873 = vmatprep.subr.bf16.mxu0 %v627
    %874 = vmatpush1.bf16.msra.mxu0 %v626
    %875 = vmatprep.subr.bf16.mxu0 %v635
    %876 = vmatpush1.bf16.msra.mxu0 %v634
    %877 = vmatprep.subr.bf16.mxu0 %v643
    %878 = vmatpush1.bf16.msra.mxu0 %v642
    %879 = vmatprep.subr.bf16.mxu0 %v651
    %880 = vmatpush1.bf16.msra.mxu0 %v650
    %881 = vmatprep.subr.bf16.mxu0 %v659
    %882 = vmatpush1.bf16.msra.mxu0 %v658
    %883 = vmatprep.subr.bf16.mxu0 %v667
    %884 = vmatpush1.bf16.msra.mxu0 %v666
    %885 = vmatprep.subr.bf16.mxu0 %v675
    %886 = vmatpush1.bf16.msra.mxu0 %v674
    %887 = vmatprep.subr.bf16.mxu0 %v683
    %888 = vmatpush1.bf16.msra.mxu0 %v682
    %889 = vmatprep.mubr.bf16.mxu0 %v175
    %890 = vmatmul.mubr.bf16.gmra.mrb[0].mxu0 %v174
    %v891 = vpop.f32.mrb[0].mxu0
    %v892 = vadd.f32 0.0, %v891
    %v893 = vpop.f32.mrb[0].mxu0
    %v894 = vadd.f32 0.0, %v893
    %v895 = vpop.f32.mrb[0].mxu0
    %v896 = vpop.f32.mrb[0].mxu0
    %897 = vdwg.mxu0
    %898 = vmatprep.subr.bf16.mxu0 %v565
    %899 = vmatpush1.bf16.msra.mxu0 %v564
    %900 = vmatprep.subr.bf16.mxu0 %v573
    %901 = vmatpush1.bf16.msra.mxu0 %v572
    %902 = vmatprep.subr.bf16.mxu0 %v581
    %903 = vmatpush1.bf16.msra.mxu0 %v580
    %904 = vmatprep.subr.bf16.mxu0 %v589
    %905 = vmatpush1.bf16.msra.mxu0 %v588
    %906 = vmatprep.subr.bf16.mxu0 %v597
    %907 = vmatpush1.bf16.msra.mxu0 %v596
    %908 = vmatprep.subr.bf16.mxu0 %v605
    %909 = vmatpush1.bf16.msra.mxu0 %v604
    %910 = vmatprep.subr.bf16.mxu0 %v613
    %911 = vmatpush1.bf16.msra.mxu0 %v612
    %912 = vmatprep.subr.bf16.mxu0 %v621
    %913 = vmatpush1.bf16.msra.mxu0 %v620
    %914 = vmatprep.subr.bf16.mxu0 %v629
    %915 = vmatpush1.bf16.msra.mxu0 %v628
    %916 = vmatprep.subr.bf16.mxu0 %v637
    %917 = vmatpush1.bf16.msra.mxu0 %v636
    %918 = vmatprep.subr.bf16.mxu0 %v645
    %919 = vmatpush1.bf16.msra.mxu0 %v644
    %920 = vmatprep.subr.bf16.mxu0 %v653
    %921 = vmatpush1.bf16.msra.mxu0 %v652
    %922 = vmatprep.subr.bf16.mxu0 %v661
    %923 = vmatpush1.bf16.msra.mxu0 %v660
    %924 = vmatprep.subr.bf16.mxu0 %v669
    %925 = vmatpush1.bf16.msra.mxu0 %v668
    %926 = vmatprep.subr.bf16.mxu0 %v677
    %927 = vmatpush1.bf16.msra.mxu0 %v676
    %928 = vmatprep.subr.bf16.mxu0 %v685
    %929 = vmatpush1.bf16.msra.mxu0 %v684
    %930 = vmatprep.mubr.bf16.mxu0 %v175
    %931 = vmatmul.mubr.bf16.gmra.mrb[0].mxu0 %v174
    %v932 = vpop.f32.mrb[0].mxu0
    %v933 = vadd.f32 0.0, %v932
    %v934 = vpop.f32.mrb[0].mxu0
    %v935 = vadd.f32 0.0, %v934
    %v936 = vpop.f32.mrb[0].mxu0
    %v937 = vpop.f32.mrb[0].mxu0
    %938 = vdwg.mxu0
    %939 = vmatprep.subr.bf16.mxu0 %v567
    %940 = vmatpush1.bf16.msra.mxu0 %v566
    %941 = vmatprep.subr.bf16.mxu0 %v575
    %942 = vmatpush1.bf16.msra.mxu0 %v574
    %943 = vmatprep.subr.bf16.mxu0 %v583
    %944 = vmatpush1.bf16.msra.mxu0 %v582
    %945 = vmatprep.subr.bf16.mxu0 %v591
    %946 = vmatpush1.bf16.msra.mxu0 %v590
    %947 = vmatprep.subr.bf16.mxu0 %v599
    %948 = vmatpush1.bf16.msra.mxu0 %v598
    %949 = vmatprep.subr.bf16.mxu0 %v607
    %950 = vmatpush1.bf16.msra.mxu0 %v606
    %951 = vmatprep.subr.bf16.mxu0 %v615
    %952 = vmatpush1.bf16.msra.mxu0 %v614
    %953 = vmatprep.subr.bf16.mxu0 %v623
    %954 = vmatpush1.bf16.msra.mxu0 %v622
    %955 = vmatprep.subr.bf16.mxu0 %v631
    %956 = vmatpush1.bf16.msra.mxu0 %v630
    %957 = vmatprep.subr.bf16.mxu0 %v639
    %958 = vmatpush1.bf16.msra.mxu0 %v638
    %959 = vmatprep.subr.bf16.mxu0 %v647
    %960 = vmatpush1.bf16.msra.mxu0 %v646
    %961 = vmatprep.subr.bf16.mxu0 %v655
    %962 = vmatpush1.bf16.msra.mxu0 %v654
    %963 = vmatprep.subr.bf16.mxu0 %v663
    %964 = vmatpush1.bf16.msra.mxu0 %v662
    %965 = vmatprep.subr.bf16.mxu0 %v671
    %966 = vmatpush1.bf16.msra.mxu0 %v670
    %967 = vmatprep.subr.bf16.mxu0 %v679
    %968 = vmatpush1.bf16.msra.mxu0 %v678
    %969 = vmatprep.subr.bf16.mxu0 %v687
    %970 = vmatpush1.bf16.msra.mxu0 %v686
    %971 = vmatprep.mubr.bf16.mxu0 %v175
    %972 = vmatmul.mubr.bf16.gmra.mrb[0].mxu0 %v174
    %v973 = vpop.f32.mrb[0].mxu0
    %v974 = vadd.f32 0.0, %v973
    %v975 = vpop.f32.mrb[0].mxu0
    %v976 = vadd.f32 0.0, %v975
    %v977 = vpop.f32.mrb[0].mxu0
    %v978 = vpop.f32.mrb[0].mxu0
    %979 = vdwg.mxu0
    %v988 = vcombine.low %v851, %v853
    %v989 = vcombine.low %v892, %v894
    %v991 = vunpack.c.l.s4 1983009808
    %v992 = vunpack.c.0.s8 %v991
    %v993 = vlaneseq
    %v994 = vshrl.u32 %v993, 7
    %v995 = vsub.s32 %v992, %v994
    %v996 = vrot.slane %v988, %v995
    %v998 = vunpack.c.l.s4 1983009808
    %v999 = vunpack.c.0.s8 %v998
    %v1000 = vlaneseq
    %v1001 = vshrl.u32 %v1000, 7
    %v1002 = vsub.s32 %v999, %v1001
    %v1003 = vrot.slane %v989, %v1002
    %v1004 = vcombine.low %v996, %v1003
    %v1005 = vcombine.low %v933, %v935
    %v1006 = vcombine.low %v974, %v976
    %v1008 = vunpack.c.l.s4 1983009808
    %v1009 = vunpack.c.0.s8 %v1008
    %v1010 = vlaneseq
    %v1011 = vshrl.u32 %v1010, 7
    %v1012 = vsub.s32 %v1009, %v1011
    %v1013 = vrot.slane %v1005, %v1012
    %v1015 = vunpack.c.l.s4 1983009808
    %v1016 = vunpack.c.0.s8 %v1015
    %v1017 = vlaneseq
    %v1018 = vshrl.u32 %v1017, 7
    %v1019 = vsub.s32 %v1016, %v1018
    %v1020 = vrot.slane %v1006, %v1019
    %v1021 = vcombine.low %v1013, %v1020
    %v1024 = vadd.f32 %v161, %v1004
    %v1025 = vadd.f32 %v162, %v1021
    %v1026 = vxor.u32 %v1024, 2147483648
    %v1027 = vmul.f32 %v1026, 1.442695
    %v1028 = vpow.pop %v1027
    %v1029 = vadd.f32 %v1028, 1.0
    %v1030 = vrcp.pop %v1029
    %v1031 = vmul.f32 1.0, %v1030
    %v1033 = vrot.slane %v1024, 4
    %v1035 = vxor.u32 %v1033, 2147483648
    %v1036 = vmul.f32 %v1035, 1.442695
    %v1037 = vpow.pop %v1036
    %v1038 = vadd.f32 %v1037, 1.0
    %v1039 = vrcp.pop %v1038
    %v1040 = vmul.f32 1.0, %v1039
    %v1041 = vtanh.pop %v1025
    %v1043 = vrot.slane %v1025, 4
    %v1045 = vxor.u32 %v1043, 2147483648
    %v1046 = vmul.f32 %v1045, 1.442695
    %v1047 = vpow.pop %v1046
    %v1048 = vadd.f32 %v1047, 1.0
    %v1049 = vrcp.pop %v1048
    %v1050 = vmul.f32 1.0, %v1049
    %v1051 = vmul.f32 %v1040, %v159
    %v1052 = vmul.f32 %v1031, %v1041
    %v1053 = vadd.f32 %v1051, %v1052
    %v1054 = vtanh.pop %v1053
    %v1055 = vmul.f32 %v1050, %v1054
    %s1056 = scalar_lea.vmem %s0, 8
    %v1057 = vld [vmem:[%s1056] sm:$0xff]
    %v1058 = vunpack.c.l.bf16 %v1057
    %v1059 = vunpack.c.h.bf16 %v1057
    %v1062 = vunpack.c.l.s4 1983009808
    %v1063 = vunpack.c.0.s8 %v1062
    %v1064 = vlaneseq
    %v1065 = vshrl.u32 %v1064, 7
    %v1066 = vsub.s32 %v1063, %v1065
    %v1067 = vrot.slane %v1055, %v1066
    %v1068 = vcombine.high %v1067, %v1067
    %v1071 = vpack.c.bf16 %v1067, %v1067
    %v1072 = vpack.c.bf16 %v1068, %v1068
    %1073 = vmatprep.subr.bf16.mxu0 %v561
    %1074 = vmatpush1.bf16.msra.mxu0 %v560
    %1075 = vmatprep.subr.bf16.mxu0 %v569
    %1076 = vmatpush1.bf16.msra.mxu0 %v568
    %1077 = vmatprep.subr.bf16.mxu0 %v577
    %1078 = vmatpush1.bf16.msra.mxu0 %v576
    %1079 = vmatprep.subr.bf16.mxu0 %v585
    %1080 = vmatpush1.bf16.msra.mxu0 %v584
    %1081 = vmatprep.subr.bf16.mxu0 %v593
    %1082 = vmatpush1.bf16.msra.mxu0 %v592
    %1083 = vmatprep.subr.bf16.mxu0 %v601
    %1084 = vmatpush1.bf16.msra.mxu0 %v600
    %1085 = vmatprep.subr.bf16.mxu0 %v609
    %1086 = vmatpush1.bf16.msra.mxu0 %v608
    %1087 = vmatprep.subr.bf16.mxu0 %v617
    %1088 = vmatpush1.bf16.msra.mxu0 %v616
    %1089 = vmatprep.subr.bf16.mxu0 %v625
    %1090 = vmatpush1.bf16.msra.mxu0 %v624
    %1091 = vmatprep.subr.bf16.mxu0 %v633
    %1092 = vmatpush1.bf16.msra.mxu0 %v632
    %1093 = vmatprep.subr.bf16.mxu0 %v641
    %1094 = vmatpush1.bf16.msra.mxu0 %v640
    %1095 = vmatprep.subr.bf16.mxu0 %v649
    %1096 = vmatpush1.bf16.msra.mxu0 %v648
    %1097 = vmatprep.subr.bf16.mxu0 %v657
    %1098 = vmatpush1.bf16.msra.mxu0 %v656
    %1099 = vmatprep.subr.bf16.mxu0 %v665
    %1100 = vmatpush1.bf16.msra.mxu0 %v664
    %1101 = vmatprep.subr.bf16.mxu0 %v673
    %1102 = vmatpush1.bf16.msra.mxu0 %v672
    %1103 = vmatprep.subr.bf16.mxu0 %v681
    %1104 = vmatpush1.bf16.msra.mxu0 %v680
    %1105 = vmatprep.mubr.bf16.mxu0 %v1072
    %1106 = vmatmul.mubr.bf16.gmra.mrb[0].mxu0 %v1071
    %v1107 = vpop.f32.mrb[0].mxu0
    %v1108 = vadd.f32 0.0, %v1107
    %v1109 = vpop.f32.mrb[0].mxu0
    %v1110 = vadd.f32 0.0, %v1109
    %v1111 = vpop.f32.mrb[0].mxu0
    %v1112 = vpop.f32.mrb[0].mxu0
    %1113 = vdwg.mxu0
    %1114 = vmatprep.subr.bf16.mxu0 %v563
    %1115 = vmatpush1.bf16.msra.mxu0 %v562
    %1116 = vmatprep.subr.bf16.mxu0 %v571
    %1117 = vmatpush1.bf16.msra.mxu0 %v570
    %1118 = vmatprep.subr.bf16.mxu0 %v579
    %1119 = vmatpush1.bf16.msra.mxu0 %v578
    %1120 = vmatprep.subr.bf16.mxu0 %v587
    %1121 = vmatpush1.bf16.msra.mxu0 %v586
    %1122 = vmatprep.subr.bf16.mxu0 %v595
    %1123 = vmatpush1.bf16.msra.mxu0 %v594
    %1124 = vmatprep.subr.bf16.mxu0 %v603
    %1125 = vmatpush1.bf16.msra.mxu0 %v602
    %1126 = vmatprep.subr.bf16.mxu0 %v611
    %1127 = vmatpush1.bf16.msra.mxu0 %v610
    %1128 = vmatprep.subr.bf16.mxu0 %v619
    %1129 = vmatpush1.bf16.msra.mxu0 %v618
    %1130 = vmatprep.subr.bf16.mxu0 %v627
    %1131 = vmatpush1.bf16.msra.mxu0 %v626
    %1132 = vmatprep.subr.bf16.mxu0 %v635
    %1133 = vmatpush1.bf16.msra.mxu0 %v634
    %1134 = vmatprep.subr.bf16.mxu0 %v643
    %1135 = vmatpush1.bf16.msra.mxu0 %v642
    %1136 = vmatprep.subr.bf16.mxu0 %v651
    %1137 = vmatpush1.bf16.msra.mxu0 %v650
    %1138 = vmatprep.subr.bf16.mxu0 %v659
    %1139 = vmatpush1.bf16.msra.mxu0 %v658
    %1140 = vmatprep.subr.bf16.mxu0 %v667
    %1141 = vmatpush1.bf16.msra.mxu0 %v666
    %1142 = vmatprep.subr.bf16.mxu0 %v675
    %1143 = vmatpush1.bf16.msra.mxu0 %v674
    %1144 = vmatprep.subr.bf16.mxu0 %v683
    %1145 = vmatpush1.bf16.msra.mxu0 %v682
    %1146 = vmatprep.mubr.bf16.mxu0 %v1072
    %1147 = vmatmul.mubr.bf16.gmra.mrb[0].mxu0 %v1071
    %v1148 = vpop.f32.mrb[0].mxu0
    %v1149 = vadd.f32 0.0, %v1148
    %v1150 = vpop.f32.mrb[0].mxu0
    %v1151 = vadd.f32 0.0, %v1150
    %v1152 = vpop.f32.mrb[0].mxu0
    %v1153 = vpop.f32.mrb[0].mxu0
    %1154 = vdwg.mxu0
    %1155 = vmatprep.subr.bf16.mxu0 %v565
    %1156 = vmatpush1.bf16.msra.mxu0 %v564
    %1157 = vmatprep.subr.bf16.mxu0 %v573
    %1158 = vmatpush1.bf16.msra.mxu0 %v572
    %1159 = vmatprep.subr.bf16.mxu0 %v581
    %1160 = vmatpush1.bf16.msra.mxu0 %v580
    %1161 = vmatprep.subr.bf16.mxu0 %v589
    %1162 = vmatpush1.bf16.msra.mxu0 %v588
    %1163 = vmatprep.subr.bf16.mxu0 %v597
    %1164 = vmatpush1.bf16.msra.mxu0 %v596
    %1165 = vmatprep.subr.bf16.mxu0 %v605
    %1166 = vmatpush1.bf16.msra.mxu0 %v604
    %1167 = vmatprep.subr.bf16.mxu0 %v613
    %1168 = vmatpush1.bf16.msra.mxu0 %v612
    %1169 = vmatprep.subr.bf16.mxu0 %v621
    %1170 = vmatpush1.bf16.msra.mxu0 %v620
    %1171 = vmatprep.subr.bf16.mxu0 %v629
    %1172 = vmatpush1.bf16.msra.mxu0 %v628
    %1173 = vmatprep.subr.bf16.mxu0 %v637
    %1174 = vmatpush1.bf16.msra.mxu0 %v636
    %1175 = vmatprep.subr.bf16.mxu0 %v645
    %1176 = vmatpush1.bf16.msra.mxu0 %v644
    %1177 = vmatprep.subr.bf16.mxu0 %v653
    %1178 = vmatpush1.bf16.msra.mxu0 %v652
    %1179 = vmatprep.subr.bf16.mxu0 %v661
    %1180 = vmatpush1.bf16.msra.mxu0 %v660
    %1181 = vmatprep.subr.bf16.mxu0 %v669
    %1182 = vmatpush1.bf16.msra.mxu0 %v668
    %1183 = vmatprep.subr.bf16.mxu0 %v677
    %1184 = vmatpush1.bf16.msra.mxu0 %v676
    %1185 = vmatprep.subr.bf16.mxu0 %v685
    %1186 = vmatpush1.bf16.msra.mxu0 %v684
    %1187 = vmatprep.mubr.bf16.mxu0 %v1072
    %1188 = vmatmul.mubr.bf16.gmra.mrb[0].mxu0 %v1071
    %v1189 = vpop.f32.mrb[0].mxu0
    %v1190 = vadd.f32 0.0, %v1189
    %v1191 = vpop.f32.mrb[0].mxu0
    %v1192 = vadd.f32 0.0, %v1191
    %v1193 = vpop.f32.mrb[0].mxu0
    %v1194 = vpop.f32.mrb[0].mxu0
    %1195 = vdwg.mxu0
    %1196 = vmatprep.subr.bf16.mxu0 %v567
    %1197 = vmatpush1.bf16.msra.mxu0 %v566
    %1198 = vmatprep.subr.bf16.mxu0 %v575
    %1199 = vmatpush1.bf16.msra.mxu0 %v574
    %1200 = vmatprep.subr.bf16.mxu0 %v583
    %1201 = vmatpush1.bf16.msra.mxu0 %v582
    %1202 = vmatprep.subr.bf16.mxu0 %v591
    %1203 = vmatpush1.bf16.msra.mxu0 %v590
    %1204 = vmatprep.subr.bf16.mxu0 %v599
    %1205 = vmatpush1.bf16.msra.mxu0 %v598
    %1206 = vmatprep.subr.bf16.mxu0 %v607
    %1207 = vmatpush1.bf16.msra.mxu0 %v606
    %1208 = vmatprep.subr.bf16.mxu0 %v615
    %1209 = vmatpush1.bf16.msra.mxu0 %v614
    %1210 = vmatprep.subr.bf16.mxu0 %v623
    %1211 = vmatpush1.bf16.msra.mxu0 %v622
    %1212 = vmatprep.subr.bf16.mxu0 %v631
    %1213 = vmatpush1.bf16.msra.mxu0 %v630
    %1214 = vmatprep.subr.bf16.mxu0 %v639
    %1215 = vmatpush1.bf16.msra.mxu0 %v638
    %1216 = vmatprep.subr.bf16.mxu0 %v647
    %1217 = vmatpush1.bf16.msra.mxu0 %v646
    %1218 = vmatprep.subr.bf16.mxu0 %v655
    %1219 = vmatpush1.bf16.msra.mxu0 %v654
    %1220 = vmatprep.subr.bf16.mxu0 %v663
    %1221 = vmatpush1.bf16.msra.mxu0 %v662
    %1222 = vmatprep.subr.bf16.mxu0 %v671
    %1223 = vmatpush1.bf16.msra.mxu0 %v670
    %1224 = vmatprep.subr.bf16.mxu0 %v679
    %1225 = vmatpush1.bf16.msra.mxu0 %v678
    %1226 = vmatprep.subr.bf16.mxu0 %v687
    %1227 = vmatpush1.bf16.msra.mxu0 %v686
    %1228 = vmatprep.mubr.bf16.mxu0 %v1072
    %1229 = vmatmul.mubr.bf16.gmra.mrb[0].mxu0 %v1071
    %v1230 = vpop.f32.mrb[0].mxu0
    %v1231 = vadd.f32 0.0, %v1230
    %v1232 = vpop.f32.mrb[0].mxu0
    %v1233 = vadd.f32 0.0, %v1232
    %v1234 = vpop.f32.mrb[0].mxu0
    %v1235 = vpop.f32.mrb[0].mxu0
    %1236 = vdwg.mxu0
    %v1245 = vcombine.low %v1108, %v1110
    %v1246 = vcombine.low %v1149, %v1151
    %v1248 = vunpack.c.l.s4 1983009808
    %v1249 = vunpack.c.0.s8 %v1248
    %v1250 = vlaneseq
    %v1251 = vshrl.u32 %v1250, 7
    %v1252 = vsub.s32 %v1249, %v1251
    %v1253 = vrot.slane %v1245, %v1252
    %v1255 = vunpack.c.l.s4 1983009808
    %v1256 = vunpack.c.0.s8 %v1255
    %v1257 = vlaneseq
    %v1258 = vshrl.u32 %v1257, 7
    %v1259 = vsub.s32 %v1256, %v1258
    %v1260 = vrot.slane %v1246, %v1259
    %v1261 = vcombine.low %v1253, %v1260
    %v1262 = vcombine.low %v1190, %v1192
    %v1263 = vcombine.low %v1231, %v1233
    %v1265 = vunpack.c.l.s4 1983009808
    %v1266 = vunpack.c.0.s8 %v1265
    %v1267 = vlaneseq
    %v1268 = vshrl.u32 %v1267, 7
    %v1269 = vsub.s32 %v1266, %v1268
    %v1270 = vrot.slane %v1262, %v1269
    %v1272 = vunpack.c.l.s4 1983009808
    %v1273 = vunpack.c.0.s8 %v1272
    %v1274 = vlaneseq
    %v1275 = vshrl.u32 %v1274, 7
    %v1276 = vsub.s32 %v1273, %v1275
    %v1277 = vrot.slane %v1263, %v1276
    %v1278 = vcombine.low %v1270, %v1277
    %v1281 = vadd.f32 %v1058, %v1261
    %v1282 = vadd.f32 %v1059, %v1278
    %v1283 = vxor.u32 %v1281, 2147483648
    %v1284 = vmul.f32 %v1283, 1.442695
    %v1285 = vpow.pop %v1284
    %v1286 = vadd.f32 %v1285, 1.0
    %v1287 = vrcp.pop %v1286
    %v1288 = vmul.f32 1.0, %v1287
    %v1290 = vrot.slane %v1281, 4
    %v1292 = vxor.u32 %v1290, 2147483648
    %v1293 = vmul.f32 %v1292, 1.442695
    %v1294 = vpow.pop %v1293
    %v1295 = vadd.f32 %v1294, 1.0
    %v1296 = vrcp.pop %v1295
    %v1297 = vmul.f32 1.0, %v1296
    %v1298 = vtanh.pop %v1282
    %v1300 = vrot.slane %v1282, 4
    %v1302 = vxor.u32 %v1300, 2147483648
    %v1303 = vmul.f32 %v1302, 1.442695
    %v1304 = vpow.pop %v1303
    %v1305 = vadd.f32 %v1304, 1.0
    %v1306 = vrcp.pop %v1305
    %v1307 = vmul.f32 1.0, %v1306
    %v1308 = vmul.f32 %v1297, %v1053
    %v1309 = vmul.f32 %v1288, %v1298
    %v1310 = vadd.f32 %v1308, %v1309
    %v1311 = vtanh.pop %v1310
    %v1312 = vmul.f32 %v1307, %v1311
    %s1313 = scalar_lea.vmem %s0, 16
    %v1314 = vld [vmem:[%s1313] sm:$0xff]
    %v1315 = vunpack.c.l.bf16 %v1314
    %v1316 = vunpack.c.h.bf16 %v1314
    %v1319 = vunpack.c.l.s4 1983009808
    %v1320 = vunpack.c.0.s8 %v1319
    %v1321 = vlaneseq
    %v1322 = vshrl.u32 %v1321, 7
    %v1323 = vsub.s32 %v1320, %v1322
    %v1324 = vrot.slane %v1312, %v1323
    %v1325 = vcombine.high %v1324, %v1324
    %v1328 = vpack.c.bf16 %v1324, %v1324
    %v1329 = vpack.c.bf16 %v1325, %v1325
    %1330 = vmatprep.subr.bf16.mxu0 %v561
    %1331 = vmatpush1.bf16.msra.mxu0 %v560
    %1332 = vmatprep.subr.bf16.mxu0 %v569
    %1333 = vmatpush1.bf16.msra.mxu0 %v568
    %1334 = vmatprep.subr.bf16.mxu0 %v577
    %1335 = vmatpush1.bf16.msra.mxu0 %v576
    %1336 = vmatprep.subr.bf16.mxu0 %v585
    %1337 = vmatpush1.bf16.msra.mxu0 %v584
    %1338 = vmatprep.subr.bf16.mxu0 %v593
    %1339 = vmatpush1.bf16.msra.mxu0 %v592
    %1340 = vmatprep.subr.bf16.mxu0 %v601
    %1341 = vmatpush1.bf16.msra.mxu0 %v600
    %1342 = vmatprep.subr.bf16.mxu0 %v609
    %1343 = vmatpush1.bf16.msra.mxu0 %v608
    %1344 = vmatprep.subr.bf16.mxu0 %v617
    %1345 = vmatpush1.bf16.msra.mxu0 %v616
    %1346 = vmatprep.subr.bf16.mxu0 %v625
    %1347 = vmatpush1.bf16.msra.mxu0 %v624
    %1348 = vmatprep.subr.bf16.mxu0 %v633
    %1349 = vmatpush1.bf16.msra.mxu0 %v632
    %1350 = vmatprep.subr.bf16.mxu0 %v641
    %1351 = vmatpush1.bf16.msra.mxu0 %v640
    %1352 = vmatprep.subr.bf16.mxu0 %v649
    %1353 = vmatpush1.bf16.msra.mxu0 %v648
    %1354 = vmatprep.subr.bf16.mxu0 %v657
    %1355 = vmatpush1.bf16.msra.mxu0 %v656
    %1356 = vmatprep.subr.bf16.mxu0 %v665
    %1357 = vmatpush1.bf16.msra.mxu0 %v664
    %1358 = vmatprep.subr.bf16.mxu0 %v673
    %1359 = vmatpush1.bf16.msra.mxu0 %v672
    %1360 = vmatprep.subr.bf16.mxu0 %v681
    %1361 = vmatpush1.bf16.msra.mxu0 %v680
    %1362 = vmatprep.mubr.bf16.mxu0 %v1329
    %1363 = vmatmul.mubr.bf16.gmra.mrb[0].mxu0 %v1328
    %v1364 = vpop.f32.mrb[0].mxu0
    %v1365 = vadd.f32 0.0, %v1364
    %v1366 = vpop.f32.mrb[0].mxu0
    %v1367 = vadd.f32 0.0, %v1366
    %v1368 = vpop.f32.mrb[0].mxu0
    %v1369 = vpop.f32.mrb[0].mxu0
    %1370 = vdwg.mxu0
    %1371 = vmatprep.subr.bf16.mxu0 %v563
    %1372 = vmatpush1.bf16.msra.mxu0 %v562
    %1373 = vmatprep.subr.bf16.mxu0 %v571
    %1374 = vmatpush1.bf16.msra.mxu0 %v570
    %1375 = vmatprep.subr.bf16.mxu0 %v579
    %1376 = vmatpush1.bf16.msra.mxu0 %v578
    %1377 = vmatprep.subr.bf16.mxu0 %v587
    %1378 = vmatpush1.bf16.msra.mxu0 %v586
    %1379 = vmatprep.subr.bf16.mxu0 %v595
    %1380 = vmatpush1.bf16.msra.mxu0 %v594
    %1381 = vmatprep.subr.bf16.mxu0 %v603
    %1382 = vmatpush1.bf16.msra.mxu0 %v602
    %1383 = vmatprep.subr.bf16.mxu0 %v611
    %1384 = vmatpush1.bf16.msra.mxu0 %v610
    %1385 = vmatprep.subr.bf16.mxu0 %v619
    %1386 = vmatpush1.bf16.msra.mxu0 %v618
    %1387 = vmatprep.subr.bf16.mxu0 %v627
    %1388 = vmatpush1.bf16.msra.mxu0 %v626
    %1389 = vmatprep.subr.bf16.mxu0 %v635
    %1390 = vmatpush1.bf16.msra.mxu0 %v634
    %1391 = vmatprep.subr.bf16.mxu0 %v643
    %1392 = vmatpush1.bf16.msra.mxu0 %v642
    %1393 = vmatprep.subr.bf16.mxu0 %v651
    %1394 = vmatpush1.bf16.msra.mxu0 %v650
    %1395 = vmatprep.subr.bf16.mxu0 %v659
    %1396 = vmatpush1.bf16.msra.mxu0 %v658
    %1397 = vmatprep.subr.bf16.mxu0 %v667
    %1398 = vmatpush1.bf16.msra.mxu0 %v666
    %1399 = vmatprep.subr.bf16.mxu0 %v675
    %1400 = vmatpush1.bf16.msra.mxu0 %v674
    %1401 = vmatprep.subr.bf16.mxu0 %v683
    %1402 = vmatpush1.bf16.msra.mxu0 %v682
    %1403 = vmatprep.mubr.bf16.mxu0 %v1329
    %1404 = vmatmul.mubr.bf16.gmra.mrb[0].mxu0 %v1328
    %v1405 = vpop.f32.mrb[0].mxu0
    %v1406 = vadd.f32 0.0, %v1405
    %v1407 = vpop.f32.mrb[0].mxu0
    %v1408 = vadd.f32 0.0, %v1407
    %v1409 = vpop.f32.mrb[0].mxu0
    %v1410 = vpop.f32.mrb[0].mxu0
    %1411 = vdwg.mxu0
    %1412 = vmatprep.subr.bf16.mxu0 %v565
    %1413 = vmatpush1.bf16.msra.mxu0 %v564
    %1414 = vmatprep.subr.bf16.mxu0 %v573
    %1415 = vmatpush1.bf16.msra.mxu0 %v572
    %1416 = vmatprep.subr.bf16.mxu0 %v581
    %1417 = vmatpush1.bf16.msra.mxu0 %v580
    %1418 = vmatprep.subr.bf16.mxu0 %v589
    %1419 = vmatpush1.bf16.msra.mxu0 %v588
    %1420 = vmatprep.subr.bf16.mxu0 %v597
    %1421 = vmatpush1.bf16.msra.mxu0 %v596
    %1422 = vmatprep.subr.bf16.mxu0 %v605
    %1423 = vmatpush1.bf16.msra.mxu0 %v604
    %1424 = vmatprep.subr.bf16.mxu0 %v613
    %1425 = vmatpush1.bf16.msra.mxu0 %v612
    %1426 = vmatprep.subr.bf16.mxu0 %v621
    %1427 = vmatpush1.bf16.msra.mxu0 %v620
    %1428 = vmatprep.subr.bf16.mxu0 %v629
    %1429 = vmatpush1.bf16.msra.mxu0 %v628
    %1430 = vmatprep.subr.bf16.mxu0 %v637
    %1431 = vmatpush1.bf16.msra.mxu0 %v636
    %1432 = vmatprep.subr.bf16.mxu0 %v645
    %1433 = vmatpush1.bf16.msra.mxu0 %v644
    %1434 = vmatprep.subr.bf16.mxu0 %v653
    %1435 = vmatpush1.bf16.msra.mxu0 %v652
    %1436 = vmatprep.subr.bf16.mxu0 %v661
    %1437 = vmatpush1.bf16.msra.mxu0 %v660
    %1438 = vmatprep.subr.bf16.mxu0 %v669
    %1439 = vmatpush1.bf16.msra.mxu0 %v668
    %1440 = vmatprep.subr.bf16.mxu0 %v677
    %1441 = vmatpush1.bf16.msra.mxu0 %v676
    %1442 = vmatprep.subr.bf16.mxu0 %v685
    %1443 = vmatpush1.bf16.msra.mxu0 %v684
    %1444 = vmatprep.mubr.bf16.mxu0 %v1329
    %1445 = vmatmul.mubr.bf16.gmra.mrb[0].mxu0 %v1328
    %v1446 = vpop.f32.mrb[0].mxu0
    %v1447 = vadd.f32 0.0, %v1446
    %v1448 = vpop.f32.mrb[0].mxu0
    %v1449 = vadd.f32 0.0, %v1448
    %v1450 = vpop.f32.mrb[0].mxu0
    %v1451 = vpop.f32.mrb[0].mxu0
    %1452 = vdwg.mxu0
    %1453 = vmatprep.subr.bf16.mxu0 %v567
    %1454 = vmatpush1.bf16.msra.mxu0 %v566
    %1455 = vmatprep.subr.bf16.mxu0 %v575
    %1456 = vmatpush1.bf16.msra.mxu0 %v574
    %1457 = vmatprep.subr.bf16.mxu0 %v583
    %1458 = vmatpush1.bf16.msra.mxu0 %v582
    %1459 = vmatprep.subr.bf16.mxu0 %v591
    %1460 = vmatpush1.bf16.msra.mxu0 %v590
    %1461 = vmatprep.subr.bf16.mxu0 %v599
    %1462 = vmatpush1.bf16.msra.mxu0 %v598
    %1463 = vmatprep.subr.bf16.mxu0 %v607
    %1464 = vmatpush1.bf16.msra.mxu0 %v606
    %1465 = vmatprep.subr.bf16.mxu0 %v615
    %1466 = vmatpush1.bf16.msra.mxu0 %v614
    %1467 = vmatprep.subr.bf16.mxu0 %v623
    %1468 = vmatpush1.bf16.msra.mxu0 %v622
    %1469 = vmatprep.subr.bf16.mxu0 %v631
    %1470 = vmatpush1.bf16.msra.mxu0 %v630
    %1471 = vmatprep.subr.bf16.mxu0 %v639
    %1472 = vmatpush1.bf16.msra.mxu0 %v638
    %1473 = vmatprep.subr.bf16.mxu0 %v647
    %1474 = vmatpush1.bf16.msra.mxu0 %v646
    %1475 = vmatprep.subr.bf16.mxu0 %v655
    %1476 = vmatpush1.bf16.msra.mxu0 %v654
    %1477 = vmatprep.subr.bf16.mxu0 %v663
    %1478 = vmatpush1.bf16.msra.mxu0 %v662
    %1479 = vmatprep.subr.bf16.mxu0 %v671
    %1480 = vmatpush1.bf16.msra.mxu0 %v670
    %1481 = vmatprep.subr.bf16.mxu0 %v679
    %1482 = vmatpush1.bf16.msra.mxu0 %v678
    %1483 = vmatprep.subr.bf16.mxu0 %v687
    %1484 = vmatpush1.bf16.msra.mxu0 %v686
    %1485 = vmatprep.mubr.bf16.mxu0 %v1329
    %1486 = vmatmul.mubr.bf16.gmra.mrb[0].mxu0 %v1328
    %v1487 = vpop.f32.mrb[0].mxu0
    %v1488 = vadd.f32 0.0, %v1487
    %v1489 = vpop.f32.mrb[0].mxu0
    %v1490 = vadd.f32 0.0, %v1489
    %v1491 = vpop.f32.mrb[0].mxu0
    %v1492 = vpop.f32.mrb[0].mxu0
    %1493 = vdwg.mxu0
    %v1502 = vcombine.low %v1365, %v1367
    %v1503 = vcombine.low %v1406, %v1408
    %v1505 = vunpack.c.l.s4 1983009808
    %v1506 = vunpack.c.0.s8 %v1505
    %v1507 = vlaneseq
    %v1508 = vshrl.u32 %v1507, 7
    %v1509 = vsub.s32 %v1506, %v1508
    %v1510 = vrot.slane %v1502, %v1509
    %v1512 = vunpack.c.l.s4 1983009808
    %v1513 = vunpack.c.0.s8 %v1512
    %v1514 = vlaneseq
    %v1515 = vshrl.u32 %v1514, 7
    %v1516 = vsub.s32 %v1513, %v1515
    %v1517 = vrot.slane %v1503, %v1516
    %v1518 = vcombine.low %v1510, %v1517
    %v1519 = vcombine.low %v1447, %v1449
    %v1520 = vcombine.low %v1488, %v1490
    %v1522 = vunpack.c.l.s4 1983009808
    %v1523 = vunpack.c.0.s8 %v1522
    %v1524 = vlaneseq
    %v1525 = vshrl.u32 %v1524, 7
    %v1526 = vsub.s32 %v1523, %v1525
    %v1527 = vrot.slane %v1519, %v1526
    %v1529 = vunpack.c.l.s4 1983009808
    %v1530 = vunpack.c.0.s8 %v1529
    %v1531 = vlaneseq
    %v1532 = vshrl.u32 %v1531, 7
    %v1533 = vsub.s32 %v1530, %v1532
    %v1534 = vrot.slane %v1520, %v1533
    %v1535 = vcombine.low %v1527, %v1534
    %v1538 = vadd.f32 %v1315, %v1518
    %v1539 = vadd.f32 %v1316, %v1535
    %v1540 = vxor.u32 %v1538, 2147483648
    %v1541 = vmul.f32 %v1540, 1.442695
    %v1542 = vpow.pop %v1541
    %v1543 = vadd.f32 %v1542, 1.0
    %v1544 = vrcp.pop %v1543
    %v1545 = vmul.f32 1.0, %v1544
    %v1547 = vrot.slane %v1538, 4
    %v1549 = vxor.u32 %v1547, 2147483648
    %v1550 = vmul.f32 %v1549, 1.442695
    %v1551 = vpow.pop %v1550
    %v1552 = vadd.f32 %v1551, 1.0
    %v1553 = vrcp.pop %v1552
    %v1554 = vmul.f32 1.0, %v1553
    %v1555 = vtanh.pop %v1539
    %v1557 = vrot.slane %v1539, 4
    %v1559 = vxor.u32 %v1557, 2147483648
    %v1560 = vmul.f32 %v1559, 1.442695
    %v1561 = vpow.pop %v1560
    %v1562 = vadd.f32 %v1561, 1.0
    %v1563 = vrcp.pop %v1562
    %v1564 = vmul.f32 1.0, %v1563
    %v1565 = vmul.f32 %v1554, %v1310
    %v1566 = vmul.f32 %v1545, %v1555
    %v1567 = vadd.f32 %v1565, %v1566
    %v1568 = vtanh.pop %v1567
    %v1569 = vmul.f32 %v1564, %v1568
    %s1570 = scalar_lea.vmem %s0, 24
    %v1571 = vld [vmem:[%s1570] sm:$0xff]
    %v1572 = vunpack.c.l.bf16 %v1571
    %v1573 = vunpack.c.h.bf16 %v1571
    %v1576 = vunpack.c.l.s4 1983009808
    %v1577 = vunpack.c.0.s8 %v1576
    %v1578 = vlaneseq
    %v1579 = vshrl.u32 %v1578, 7
    %v1580 = vsub.s32 %v1577, %v1579
    %v1581 = vrot.slane %v1569, %v1580
    %v1582 = vcombine.high %v1581, %v1581
    %v1585 = vpack.c.bf16 %v1581, %v1581
    %v1586 = vpack.c.bf16 %v1582, %v1582
    %1587 = vmatprep.subr.bf16.mxu0 %v561
    %1588 = vmatpush1.bf16.msra.mxu0 %v560
    %1589 = vmatprep.subr.bf16.mxu0 %v569
    %1590 = vmatpush1.bf16.msra.mxu0 %v568
    %1591 = vmatprep.subr.bf16.mxu0 %v577
    %1592 = vmatpush1.bf16.msra.mxu0 %v576
    %1593 = vmatprep.subr.bf16.mxu0 %v585
    %1594 = vmatpush1.bf16.msra.mxu0 %v584
    %1595 = vmatprep.subr.bf16.mxu0 %v593
    %1596 = vmatpush1.bf16.msra.mxu0 %v592
    %1597 = vmatprep.subr.bf16.mxu0 %v601
    %1598 = vmatpush1.bf16.msra.mxu0 %v600
    %1599 = vmatprep.subr.bf16.mxu0 %v609
    %1600 = vmatpush1.bf16.msra.mxu0 %v608
    %1601 = vmatprep.subr.bf16.mxu0 %v617
    %1602 = vmatpush1.bf16.msra.mxu0 %v616
    %1603 = vmatprep.subr.bf16.mxu0 %v625
    %1604 = vmatpush1.bf16.msra.mxu0 %v624
    %1605 = vmatprep.subr.bf16.mxu0 %v633
    %1606 = vmatpush1.bf16.msra.mxu0 %v632
    %1607 = vmatprep.subr.bf16.mxu0 %v641
    %1608 = vmatpush1.bf16.msra.mxu0 %v640
    %1609 = vmatprep.subr.bf16.mxu0 %v649
    %1610 = vmatpush1.bf16.msra.mxu0 %v648
    %1611 = vmatprep.subr.bf16.mxu0 %v657
    %1612 = vmatpush1.bf16.msra.mxu0 %v656
    %1613 = vmatprep.subr.bf16.mxu0 %v665
    %1614 = vmatpush1.bf16.msra.mxu0 %v664
    %1615 = vmatprep.subr.bf16.mxu0 %v673
    %1616 = vmatpush1.bf16.msra.mxu0 %v672
    %1617 = vmatprep.subr.bf16.mxu0 %v681
    %1618 = vmatpush1.bf16.msra.mxu0 %v680
    %1619 = vmatprep.mubr.bf16.mxu0 %v1586
    %1620 = vmatmul.mubr.bf16.gmra.mrb[0].mxu0 %v1585
    %v1621 = vpop.f32.mrb[0].mxu0
    %v1622 = vadd.f32 0.0, %v1621
    %v1623 = vpop.f32.mrb[0].mxu0
    %v1624 = vadd.f32 0.0, %v1623
    %v1625 = vpop.f32.mrb[0].mxu0
    %v1626 = vpop.f32.mrb[0].mxu0
    %1627 = vdwg.mxu0
    %1628 = vmatprep.subr.bf16.mxu0 %v563
    %1629 = vmatpush1.bf16.msra.mxu0 %v562
    %1630 = vmatprep.subr.bf16.mxu0 %v571
    %1631 = vmatpush1.bf16.msra.mxu0 %v570
    %1632 = vmatprep.subr.bf16.mxu0 %v579
    %1633 = vmatpush1.bf16.msra.mxu0 %v578
    %1634 = vmatprep.subr.bf16.mxu0 %v587
    %1635 = vmatpush1.bf16.msra.mxu0 %v586
    %1636 = vmatprep.subr.bf16.mxu0 %v595
    %1637 = vmatpush1.bf16.msra.mxu0 %v594
    %1638 = vmatprep.subr.bf16.mxu0 %v603
    %1639 = vmatpush1.bf16.msra.mxu0 %v602
    %1640 = vmatprep.subr.bf16.mxu0 %v611
    %1641 = vmatpush1.bf16.msra.mxu0 %v610
    %1642 = vmatprep.subr.bf16.mxu0 %v619
    %1643 = vmatpush1.bf16.msra.mxu0 %v618
    %1644 = vmatprep.subr.bf16.mxu0 %v627
    %1645 = vmatpush1.bf16.msra.mxu0 %v626
    %1646 = vmatprep.subr.bf16.mxu0 %v635
    %1647 = vmatpush1.bf16.msra.mxu0 %v634
    %1648 = vmatprep.subr.bf16.mxu0 %v643
    %1649 = vmatpush1.bf16.msra.mxu0 %v642
    %1650 = vmatprep.subr.bf16.mxu0 %v651
    %1651 = vmatpush1.bf16.msra.mxu0 %v650
    %1652 = vmatprep.subr.bf16.mxu0 %v659
    %1653 = vmatpush1.bf16.msra.mxu0 %v658
    %1654 = vmatprep.subr.bf16.mxu0 %v667
    %1655 = vmatpush1.bf16.msra.mxu0 %v666
    %1656 = vmatprep.subr.bf16.mxu0 %v675
    %1657 = vmatpush1.bf16.msra.mxu0 %v674
    %1658 = vmatprep.subr.bf16.mxu0 %v683
    %1659 = vmatpush1.bf16.msra.mxu0 %v682
    %1660 = vmatprep.mubr.bf16.mxu0 %v1586
    %1661 = vmatmul.mubr.bf16.gmra.mrb[0].mxu0 %v1585
    %v1662 = vpop.f32.mrb[0].mxu0
    %v1663 = vadd.f32 0.0, %v1662
    %v1664 = vpop.f32.mrb[0].mxu0
    %v1665 = vadd.f32 0.0, %v1664
    %v1666 = vpop.f32.mrb[0].mxu0
    %v1667 = vpop.f32.mrb[0].mxu0
    %1668 = vdwg.mxu0
    %1669 = vmatprep.subr.bf16.mxu0 %v565
    %1670 = vmatpush1.bf16.msra.mxu0 %v564
    %1671 = vmatprep.subr.bf16.mxu0 %v573
    %1672 = vmatpush1.bf16.msra.mxu0 %v572
    %1673 = vmatprep.subr.bf16.mxu0 %v581
    %1674 = vmatpush1.bf16.msra.mxu0 %v580
    %1675 = vmatprep.subr.bf16.mxu0 %v589
    %1676 = vmatpush1.bf16.msra.mxu0 %v588
    %1677 = vmatprep.subr.bf16.mxu0 %v597
    %1678 = vmatpush1.bf16.msra.mxu0 %v596
    %1679 = vmatprep.subr.bf16.mxu0 %v605
    %1680 = vmatpush1.bf16.msra.mxu0 %v604
    %1681 = vmatprep.subr.bf16.mxu0 %v613
    %1682 = vmatpush1.bf16.msra.mxu0 %v612
    %1683 = vmatprep.subr.bf16.mxu0 %v621
    %1684 = vmatpush1.bf16.msra.mxu0 %v620
    %1685 = vmatprep.subr.bf16.mxu0 %v629
    %1686 = vmatpush1.bf16.msra.mxu0 %v628
    %1687 = vmatprep.subr.bf16.mxu0 %v637
    %1688 = vmatpush1.bf16.msra.mxu0 %v636
    %1689 = vmatprep.subr.bf16.mxu0 %v645
    %1690 = vmatpush1.bf16.msra.mxu0 %v644
    %1691 = vmatprep.subr.bf16.mxu0 %v653
    %1692 = vmatpush1.bf16.msra.mxu0 %v652
    %1693 = vmatprep.subr.bf16.mxu0 %v661
    %1694 = vmatpush1.bf16.msra.mxu0 %v660
    %1695 = vmatprep.subr.bf16.mxu0 %v669
    %1696 = vmatpush1.bf16.msra.mxu0 %v668
    %1697 = vmatprep.subr.bf16.mxu0 %v677
    %1698 = vmatpush1.bf16.msra.mxu0 %v676
    %1699 = vmatprep.subr.bf16.mxu0 %v685
    %1700 = vmatpush1.bf16.msra.mxu0 %v684
    %1701 = vmatprep.mubr.bf16.mxu0 %v1586
    %1702 = vmatmul.mubr.bf16.gmra.mrb[0].mxu0 %v1585
    %v1703 = vpop.f32.mrb[0].mxu0
    %v1704 = vadd.f32 0.0, %v1703
    %v1705 = vpop.f32.mrb[0].mxu0
    %v1706 = vadd.f32 0.0, %v1705
    %v1707 = vpop.f32.mrb[0].mxu0
    %v1708 = vpop.f32.mrb[0].mxu0
    %1709 = vdwg.mxu0
    %1710 = vmatprep.subr.bf16.mxu0 %v567
    %1711 = vmatpush1.bf16.msra.mxu0 %v566
    %1712 = vmatprep.subr.bf16.mxu0 %v575
    %1713 = vmatpush1.bf16.msra.mxu0 %v574
    %1714 = vmatprep.subr.bf16.mxu0 %v583
    %1715 = vmatpush1.bf16.msra.mxu0 %v582
    %1716 = vmatprep.subr.bf16.mxu0 %v591
    %1717 = vmatpush1.bf16.msra.mxu0 %v590
    %1718 = vmatprep.subr.bf16.mxu0 %v599
    %1719 = vmatpush1.bf16.msra.mxu0 %v598
    %1720 = vmatprep.subr.bf16.mxu0 %v607
    %1721 = vmatpush1.bf16.msra.mxu0 %v606
    %1722 = vmatprep.subr.bf16.mxu0 %v615
    %1723 = vmatpush1.bf16.msra.mxu0 %v614
    %1724 = vmatprep.subr.bf16.mxu0 %v623
    %1725 = vmatpush1.bf16.msra.mxu0 %v622
    %1726 = vmatprep.subr.bf16.mxu0 %v631
    %1727 = vmatpush1.bf16.msra.mxu0 %v630
    %1728 = vmatprep.subr.bf16.mxu0 %v639
    %1729 = vmatpush1.bf16.msra.mxu0 %v638
    %1730 = vmatprep.subr.bf16.mxu0 %v647
    %1731 = vmatpush1.bf16.msra.mxu0 %v646
    %1732 = vmatprep.subr.bf16.mxu0 %v655
    %1733 = vmatpush1.bf16.msra.mxu0 %v654
    %1734 = vmatprep.subr.bf16.mxu0 %v663
    %1735 = vmatpush1.bf16.msra.mxu0 %v662
    %1736 = vmatprep.subr.bf16.mxu0 %v671
    %1737 = vmatpush1.bf16.msra.mxu0 %v670
    %1738 = vmatprep.subr.bf16.mxu0 %v679
    %1739 = vmatpush1.bf16.msra.mxu0 %v678
    %1740 = vmatprep.subr.bf16.mxu0 %v687
    %1741 = vmatpush1.bf16.msra.mxu0 %v686
    %1742 = vmatprep.mubr.bf16.mxu0 %v1586
    %1743 = vmatmul.mubr.bf16.gmra.mrb[0].mxu0 %v1585
    %v1744 = vpop.f32.mrb[0].mxu0
    %v1745 = vadd.f32 0.0, %v1744
    %v1746 = vpop.f32.mrb[0].mxu0
    %v1747 = vadd.f32 0.0, %v1746
    %v1748 = vpop.f32.mrb[0].mxu0
    %v1749 = vpop.f32.mrb[0].mxu0
    %1750 = vdwg.mxu0
    %v1759 = vcombine.low %v1622, %v1624
    %v1760 = vcombine.low %v1663, %v1665
    %v1762 = vunpack.c.l.s4 1983009808
    %v1763 = vunpack.c.0.s8 %v1762
    %v1764 = vlaneseq
    %v1765 = vshrl.u32 %v1764, 7
    %v1766 = vsub.s32 %v1763, %v1765
    %v1767 = vrot.slane %v1759, %v1766
    %v1769 = vunpack.c.l.s4 1983009808
    %v1770 = vunpack.c.0.s8 %v1769
    %v1771 = vlaneseq
    %v1772 = vshrl.u32 %v1771, 7
    %v1773 = vsub.s32 %v1770, %v1772
    %v1774 = vrot.slane %v1760, %v1773
    %v1775 = vcombine.low %v1767, %v1774
    %v1776 = vcombine.low %v1704, %v1706
    %v1777 = vcombine.low %v1745, %v1747
    %v1779 = vunpack.c.l.s4 1983009808
    %v1780 = vunpack.c.0.s8 %v1779
    %v1781 = vlaneseq
    %v1782 = vshrl.u32 %v1781, 7
    %v1783 = vsub.s32 %v1780, %v1782
    %v1784 = vrot.slane %v1776, %v1783
    %v1786 = vunpack.c.l.s4 1983009808
    %v1787 = vunpack.c.0.s8 %v1786
    %v1788 = vlaneseq
    %v1789 = vshrl.u32 %v1788, 7
    %v1790 = vsub.s32 %v1787, %v1789
    %v1791 = vrot.slane %v1777, %v1790
    %v1792 = vcombine.low %v1784, %v1791
    %v1795 = vadd.f32 %v1572, %v1775
    %v1796 = vadd.f32 %v1573, %v1792
    %v1797 = vxor.u32 %v1795, 2147483648
    %v1798 = vmul.f32 %v1797, 1.442695
    %v1799 = vpow.pop %v1798
    %v1800 = vadd.f32 %v1799, 1.0
    %v1801 = vrcp.pop %v1800
    %v1802 = vmul.f32 1.0, %v1801
    %v1804 = vrot.slane %v1795, 4
    %v1806 = vxor.u32 %v1804, 2147483648
    %v1807 = vmul.f32 %v1806, 1.442695
    %v1808 = vpow.pop %v1807
    %v1809 = vadd.f32 %v1808, 1.0
    %v1810 = vrcp.pop %v1809
    %v1811 = vmul.f32 1.0, %v1810
    %v1812 = vtanh.pop %v1796
    %v1814 = vrot.slane %v1796, 4
    %v1816 = vxor.u32 %v1814, 2147483648
    %v1817 = vmul.f32 %v1816, 1.442695
    %v1818 = vpow.pop %v1817
    %v1819 = vadd.f32 %v1818, 1.0
    %v1820 = vrcp.pop %v1819
    %v1821 = vmul.f32 1.0, %v1820
    %v1822 = vmul.f32 %v1811, %v1567
    %v1823 = vmul.f32 %v1802, %v1812
    %v1824 = vadd.f32 %v1822, %v1823
    %v1825 = vtanh.pop %v1824
    %v1826 = vmul.f32 %v1821, %v1825
    %s1827 = scalar_lea.vmem %s0, 32
    %v1828 = vld [vmem:[%s1827] sm:$0xff]
    %v1829 = vunpack.c.l.bf16 %v1828
    %v1830 = vunpack.c.h.bf16 %v1828
    %v1833 = vunpack.c.l.s4 1983009808
    %v1834 = vunpack.c.0.s8 %v1833
    %v1835 = vlaneseq
    %v1836 = vshrl.u32 %v1835, 7
    %v1837 = vsub.s32 %v1834, %v1836
    %v1838 = vrot.slane %v1826, %v1837
    %v1839 = vcombine.high %v1838, %v1838
    %v1842 = vpack.c.bf16 %v1838, %v1838
    %v1843 = vpack.c.bf16 %v1839, %v1839
    %1844 = vmatprep.subr.bf16.mxu0 %v561
    %1845 = vmatpush1.bf16.msra.mxu0 %v560
    %1846 = vmatprep.subr.bf16.mxu0 %v569
    %1847 = vmatpush1.bf16.msra.mxu0 %v568
    %1848 = vmatprep.subr.bf16.mxu0 %v577
    %1849 = vmatpush1.bf16.msra.mxu0 %v576
    %1850 = vmatprep.subr.bf16.mxu0 %v585
    %1851 = vmatpush1.bf16.msra.mxu0 %v584
    %1852 = vmatprep.subr.bf16.mxu0 %v593
    %1853 = vmatpush1.bf16.msra.mxu0 %v592
    %1854 = vmatprep.subr.bf16.mxu0 %v601
    %1855 = vmatpush1.bf16.msra.mxu0 %v600
    %1856 = vmatprep.subr.bf16.mxu0 %v609
    %1857 = vmatpush1.bf16.msra.mxu0 %v608
    %1858 = vmatprep.subr.bf16.mxu0 %v617
    %1859 = vmatpush1.bf16.msra.mxu0 %v616
    %1860 = vmatprep.subr.bf16.mxu0 %v625
    %1861 = vmatpush1.bf16.msra.mxu0 %v624
    %1862 = vmatprep.subr.bf16.mxu0 %v633
    %1863 = vmatpush1.bf16.msra.mxu0 %v632
    %1864 = vmatprep.subr.bf16.mxu0 %v641
    %1865 = vmatpush1.bf16.msra.mxu0 %v640
    %1866 = vmatprep.subr.bf16.mxu0 %v649
    %1867 = vmatpush1.bf16.msra.mxu0 %v648
    %1868 = vmatprep.subr.bf16.mxu0 %v657
    %1869 = vmatpush1.bf16.msra.mxu0 %v656
    %1870 = vmatprep.subr.bf16.mxu0 %v665
    %1871 = vmatpush1.bf16.msra.mxu0 %v664
    %1872 = vmatprep.subr.bf16.mxu0 %v673
    %1873 = vmatpush1.bf16.msra.mxu0 %v672
    %1874 = vmatprep.subr.bf16.mxu0 %v681
    %1875 = vmatpush1.bf16.msra.mxu0 %v680
    %1876 = vmatprep.mubr.bf16.mxu0 %v1843
    %1877 = vmatmul.mubr.bf16.gmra.mrb[0].mxu0 %v1842
    %v1878 = vpop.f32.mrb[0].mxu0
    %v1879 = vadd.f32 0.0, %v1878
    %v1880 = vpop.f32.mrb[0].mxu0
    %v1881 = vadd.f32 0.0, %v1880
    %v1882 = vpop.f32.mrb[0].mxu0
    %v1883 = vpop.f32.mrb[0].mxu0
    %1884 = vdwg.mxu0
    %1885 = vmatprep.subr.bf16.mxu0 %v563
    %1886 = vmatpush1.bf16.msra.mxu0 %v562
    %1887 = vmatprep.subr.bf16.mxu0 %v571
    %1888 = vmatpush1.bf16.msra.mxu0 %v570
    %1889 = vmatprep.subr.bf16.mxu0 %v579
    %1890 = vmatpush1.bf16.msra.mxu0 %v578
    %1891 = vmatprep.subr.bf16.mxu0 %v587
    %1892 = vmatpush1.bf16.msra.mxu0 %v586
    %1893 = vmatprep.subr.bf16.mxu0 %v595
    %1894 = vmatpush1.bf16.msra.mxu0 %v594
    %1895 = vmatprep.subr.bf16.mxu0 %v603
    %1896 = vmatpush1.bf16.msra.mxu0 %v602
    %1897 = vmatprep.subr.bf16.mxu0 %v611
    %1898 = vmatpush1.bf16.msra.mxu0 %v610
    %1899 = vmatprep.subr.bf16.mxu0 %v619
    %1900 = vmatpush1.bf16.msra.mxu0 %v618
    %1901 = vmatprep.subr.bf16.mxu0 %v627
    %1902 = vmatpush1.bf16.msra.mxu0 %v626
    %1903 = vmatprep.subr.bf16.mxu0 %v635
    %1904 = vmatpush1.bf16.msra.mxu0 %v634
    %1905 = vmatprep.subr.bf16.mxu0 %v643
    %1906 = vmatpush1.bf16.msra.mxu0 %v642
    %1907 = vmatprep.subr.bf16.mxu0 %v651
    %1908 = vmatpush1.bf16.msra.mxu0 %v650
    %1909 = vmatprep.subr.bf16.mxu0 %v659
    %1910 = vmatpush1.bf16.msra.mxu0 %v658
    %1911 = vmatprep.subr.bf16.mxu0 %v667
    %1912 = vmatpush1.bf16.msra.mxu0 %v666
    %1913 = vmatprep.subr.bf16.mxu0 %v675
    %1914 = vmatpush1.bf16.msra.mxu0 %v674
    %1915 = vmatprep.subr.bf16.mxu0 %v683
    %1916 = vmatpush1.bf16.msra.mxu0 %v682
    %1917 = vmatprep.mubr.bf16.mxu0 %v1843
    %1918 = vmatmul.mubr.bf16.gmra.mrb[0].mxu0 %v1842
    %v1919 = vpop.f32.mrb[0].mxu0
    %v1920 = vadd.f32 0.0, %v1919
    %v1921 = vpop.f32.mrb[0].mxu0
    %v1922 = vadd.f32 0.0, %v1921
    %v1923 = vpop.f32.mrb[0].mxu0
    %v1924 = vpop.f32.mrb[0].mxu0
    %1925 = vdwg.mxu0
    %1926 = vmatprep.subr.bf16.mxu0 %v565
    %1927 = vmatpush1.bf16.msra.mxu0 %v564
    %1928 = vmatprep.subr.bf16.mxu0 %v573
    %1929 = vmatpush1.bf16.msra.mxu0 %v572
    %1930 = vmatprep.subr.bf16.mxu0 %v581
    %1931 = vmatpush1.bf16.msra.mxu0 %v580
    %1932 = vmatprep.subr.bf16.mxu0 %v589
    %1933 = vmatpush1.bf16.msra.mxu0 %v588
    %1934 = vmatprep.subr.bf16.mxu0 %v597
    %1935 = vmatpush1.bf16.msra.mxu0 %v596
    %1936 = vmatprep.subr.bf16.mxu0 %v605
    %1937 = vmatpush1.bf16.msra.mxu0 %v604
    %1938 = vmatprep.subr.bf16.mxu0 %v613
    %1939 = vmatpush1.bf16.msra.mxu0 %v612
    %1940 = vmatprep.subr.bf16.mxu0 %v621
    %1941 = vmatpush1.bf16.msra.mxu0 %v620
    %1942 = vmatprep.subr.bf16.mxu0 %v629
    %1943 = vmatpush1.bf16.msra.mxu0 %v628
    %1944 = vmatprep.subr.bf16.mxu0 %v637
    %1945 = vmatpush1.bf16.msra.mxu0 %v636
    %1946 = vmatprep.subr.bf16.mxu0 %v645
    %1947 = vmatpush1.bf16.msra.mxu0 %v644
    %1948 = vmatprep.subr.bf16.mxu0 %v653
    %1949 = vmatpush1.bf16.msra.mxu0 %v652
    %1950 = vmatprep.subr.bf16.mxu0 %v661
    %1951 = vmatpush1.bf16.msra.mxu0 %v660
    %1952 = vmatprep.subr.bf16.mxu0 %v669
    %1953 = vmatpush1.bf16.msra.mxu0 %v668
    %1954 = vmatprep.subr.bf16.mxu0 %v677
    %1955 = vmatpush1.bf16.msra.mxu0 %v676
    %1956 = vmatprep.subr.bf16.mxu0 %v685
    %1957 = vmatpush1.bf16.msra.mxu0 %v684
    %1958 = vmatprep.mubr.bf16.mxu0 %v1843
    %1959 = vmatmul.mubr.bf16.gmra.mrb[0].mxu0 %v1842
    %v1960 = vpop.f32.mrb[0].mxu0
    %v1961 = vadd.f32 0.0, %v1960
    %v1962 = vpop.f32.mrb[0].mxu0
    %v1963 = vadd.f32 0.0, %v1962
    %v1964 = vpop.f32.mrb[0].mxu0
    %v1965 = vpop.f32.mrb[0].mxu0
    %1966 = vdwg.mxu0
    %1967 = vmatprep.subr.bf16.mxu0 %v567
    %1968 = vmatpush1.bf16.msra.mxu0 %v566
    %1969 = vmatprep.subr.bf16.mxu0 %v575
    %1970 = vmatpush1.bf16.msra.mxu0 %v574
    %1971 = vmatprep.subr.bf16.mxu0 %v583
    %1972 = vmatpush1.bf16.msra.mxu0 %v582
    %1973 = vmatprep.subr.bf16.mxu0 %v591
    %1974 = vmatpush1.bf16.msra.mxu0 %v590
    %1975 = vmatprep.subr.bf16.mxu0 %v599
    %1976 = vmatpush1.bf16.msra.mxu0 %v598
    %1977 = vmatprep.subr.bf16.mxu0 %v607
    %1978 = vmatpush1.bf16.msra.mxu0 %v606
    %1979 = vmatprep.subr.bf16.mxu0 %v615
    %1980 = vmatpush1.bf16.msra.mxu0 %v614
    %1981 = vmatprep.subr.bf16.mxu0 %v623
    %1982 = vmatpush1.bf16.msra.mxu0 %v622
    %1983 = vmatprep.subr.bf16.mxu0 %v631
    %1984 = vmatpush1.bf16.msra.mxu0 %v630
    %1985 = vmatprep.subr.bf16.mxu0 %v639
    %1986 = vmatpush1.bf16.msra.mxu0 %v638
    %1987 = vmatprep.subr.bf16.mxu0 %v647
    %1988 = vmatpush1.bf16.msra.mxu0 %v646
    %1989 = vmatprep.subr.bf16.mxu0 %v655
    %1990 = vmatpush1.bf16.msra.mxu0 %v654
    %1991 = vmatprep.subr.bf16.mxu0 %v663
    %1992 = vmatpush1.bf16.msra.mxu0 %v662
    %1993 = vmatprep.subr.bf16.mxu0 %v671
    %1994 = vmatpush1.bf16.msra.mxu0 %v670
    %1995 = vmatprep.subr.bf16.mxu0 %v679
    %1996 = vmatpush1.bf16.msra.mxu0 %v678
    %1997 = vmatprep.subr.bf16.mxu0 %v687
    %1998 = vmatpush1.bf16.msra.mxu0 %v686
    %1999 = vmatprep.mubr.bf16.mxu0 %v1843
    %2000 = vmatmul.mubr.bf16.gmra.mrb[0].mxu0 %v1842
    %v2001 = vpop.f32.mrb[0].mxu0
    %v2002 = vadd.f32 0.0, %v2001
    %v2003 = vpop.f32.mrb[0].mxu0
    %v2004 = vadd.f32 0.0, %v2003
    %v2005 = vpop.f32.mrb[0].mxu0
    %v2006 = vpop.f32.mrb[0].mxu0
    %2007 = vdwg.mxu0
    %v2016 = vcombine.low %v1879, %v1881
    %v2017 = vcombine.low %v1920, %v1922
    %v2019 = vunpack.c.l.s4 1983009808
    %v2020 = vunpack.c.0.s8 %v2019
    %v2021 = vlaneseq
    %v2022 = vshrl.u32 %v2021, 7
    %v2023 = vsub.s32 %v2020, %v2022
    %v2024 = vrot.slane %v2016, %v2023
    %v2026 = vunpack.c.l.s4 1983009808
    %v2027 = vunpack.c.0.s8 %v2026
    %v2028 = vlaneseq
    %v2029 = vshrl.u32 %v2028, 7
    %v2030 = vsub.s32 %v2027, %v2029
    %v2031 = vrot.slane %v2017, %v2030
    %v2032 = vcombine.low %v2024, %v2031
    %v2033 = vcombine.low %v1961, %v1963
    %v2034 = vcombine.low %v2002, %v2004
    %v2036 = vunpack.c.l.s4 1983009808
    %v2037 = vunpack.c.0.s8 %v2036
    %v2038 = vlaneseq
    %v2039 = vshrl.u32 %v2038, 7
    %v2040 = vsub.s32 %v2037, %v2039
    %v2041 = vrot.slane %v2033, %v2040
    %v2043 = vunpack.c.l.s4 1983009808
    %v2044 = vunpack.c.0.s8 %v2043
    %v2045 = vlaneseq
    %v2046 = vshrl.u32 %v2045, 7
    %v2047 = vsub.s32 %v2044, %v2046
    %v2048 = vrot.slane %v2034, %v2047
    %v2049 = vcombine.low %v2041, %v2048
    %v2052 = vadd.f32 %v1829, %v2032
    %v2053 = vadd.f32 %v1830, %v2049
    %v2054 = vxor.u32 %v2052, 2147483648
    %v2055 = vmul.f32 %v2054, 1.442695
    %v2056 = vpow.pop %v2055
    %v2057 = vadd.f32 %v2056, 1.0
    %v2058 = vrcp.pop %v2057
    %v2059 = vmul.f32 1.0, %v2058
    %v2061 = vrot.slane %v2052, 4
    %v2063 = vxor.u32 %v2061, 2147483648
    %v2064 = vmul.f32 %v2063, 1.442695
    %v2065 = vpow.pop %v2064
    %v2066 = vadd.f32 %v2065, 1.0
    %v2067 = vrcp.pop %v2066
    %v2068 = vmul.f32 1.0, %v2067
    %v2069 = vtanh.pop %v2053
    %v2071 = vrot.slane %v2053, 4
    %v2073 = vxor.u32 %v2071, 2147483648
    %v2074 = vmul.f32 %v2073, 1.442695
    %v2075 = vpow.pop %v2074
    %v2076 = vadd.f32 %v2075, 1.0
    %v2077 = vrcp.pop %v2076
    %v2078 = vmul.f32 1.0, %v2077
    %v2079 = vmul.f32 %v2068, %v1824
    %v2080 = vmul.f32 %v2059, %v2069
    %v2081 = vadd.f32 %v2079, %v2080
    %v2082 = vtanh.pop %v2081
    %v2083 = vmul.f32 %v2078, %v2082
    %s2084 = scalar_lea.vmem %s0, 40
    %v2085 = vld [vmem:[%s2084] sm:$0xff]
    %v2086 = vunpack.c.l.bf16 %v2085
    %v2087 = vunpack.c.h.bf16 %v2085
    %v2090 = vunpack.c.l.s4 1983009808
    %v2091 = vunpack.c.0.s8 %v2090
    %v2092 = vlaneseq
    %v2093 = vshrl.u32 %v2092, 7
    %v2094 = vsub.s32 %v2091, %v2093
    %v2095 = vrot.slane %v2083, %v2094
    %v2096 = vcombine.high %v2095, %v2095
    %v2099 = vpack.c.bf16 %v2095, %v2095
    %v2100 = vpack.c.bf16 %v2096, %v2096
    %2101 = vmatprep.subr.bf16.mxu0 %v561
    %2102 = vmatpush1.bf16.msra.mxu0 %v560
    %2103 = vmatprep.subr.bf16.mxu0 %v569
    %2104 = vmatpush1.bf16.msra.mxu0 %v568
    %2105 = vmatprep.subr.bf16.mxu0 %v577
    %2106 = vmatpush1.bf16.msra.mxu0 %v576
    %2107 = vmatprep.subr.bf16.mxu0 %v585
    %2108 = vmatpush1.bf16.msra.mxu0 %v584
    %2109 = vmatprep.subr.bf16.mxu0 %v593
    %2110 = vmatpush1.bf16.msra.mxu0 %v592
    %2111 = vmatprep.subr.bf16.mxu0 %v601
    %2112 = vmatpush1.bf16.msra.mxu0 %v600
    %2113 = vmatprep.subr.bf16.mxu0 %v609
    %2114 = vmatpush1.bf16.msra.mxu0 %v608
    %2115 = vmatprep.subr.bf16.mxu0 %v617
    %2116 = vmatpush1.bf16.msra.mxu0 %v616
    %2117 = vmatprep.subr.bf16.mxu0 %v625
    %2118 = vmatpush1.bf16.msra.mxu0 %v624
    %2119 = vmatprep.subr.bf16.mxu0 %v633
    %2120 = vmatpush1.bf16.msra.mxu0 %v632
    %2121 = vmatprep.subr.bf16.mxu0 %v641
    %2122 = vmatpush1.bf16.msra.mxu0 %v640
    %2123 = vmatprep.subr.bf16.mxu0 %v649
    %2124 = vmatpush1.bf16.msra.mxu0 %v648
    %2125 = vmatprep.subr.bf16.mxu0 %v657
    %2126 = vmatpush1.bf16.msra.mxu0 %v656
    %2127 = vmatprep.subr.bf16.mxu0 %v665
    %2128 = vmatpush1.bf16.msra.mxu0 %v664
    %2129 = vmatprep.subr.bf16.mxu0 %v673
    %2130 = vmatpush1.bf16.msra.mxu0 %v672
    %2131 = vmatprep.subr.bf16.mxu0 %v681
    %2132 = vmatpush1.bf16.msra.mxu0 %v680
    %2133 = vmatprep.mubr.bf16.mxu0 %v2100
    %2134 = vmatmul.mubr.bf16.gmra.mrb[0].mxu0 %v2099
    %v2135 = vpop.f32.mrb[0].mxu0
    %v2136 = vadd.f32 0.0, %v2135
    %v2137 = vpop.f32.mrb[0].mxu0
    %v2138 = vadd.f32 0.0, %v2137
    %v2139 = vpop.f32.mrb[0].mxu0
    %v2140 = vpop.f32.mrb[0].mxu0
    %2141 = vdwg.mxu0
    %2142 = vmatprep.subr.bf16.mxu0 %v563
    %2143 = vmatpush1.bf16.msra.mxu0 %v562
    %2144 = vmatprep.subr.bf16.mxu0 %v571
    %2145 = vmatpush1.bf16.msra.mxu0 %v570
    %2146 = vmatprep.subr.bf16.mxu0 %v579
    %2147 = vmatpush1.bf16.msra.mxu0 %v578
    %2148 = vmatprep.subr.bf16.mxu0 %v587
    %2149 = vmatpush1.bf16.msra.mxu0 %v586
    %2150 = vmatprep.subr.bf16.mxu0 %v595
    %2151 = vmatpush1.bf16.msra.mxu0 %v594
    %2152 = vmatprep.subr.bf16.mxu0 %v603
    %2153 = vmatpush1.bf16.msra.mxu0 %v602
    %2154 = vmatprep.subr.bf16.mxu0 %v611
    %2155 = vmatpush1.bf16.msra.mxu0 %v610
    %2156 = vmatprep.subr.bf16.mxu0 %v619
    %2157 = vmatpush1.bf16.msra.mxu0 %v618
    %2158 = vmatprep.subr.bf16.mxu0 %v627
    %2159 = vmatpush1.bf16.msra.mxu0 %v626
    %2160 = vmatprep.subr.bf16.mxu0 %v635
    %2161 = vmatpush1.bf16.msra.mxu0 %v634
    %2162 = vmatprep.subr.bf16.mxu0 %v643
    %2163 = vmatpush1.bf16.msra.mxu0 %v642
    %2164 = vmatprep.subr.bf16.mxu0 %v651
    %2165 = vmatpush1.bf16.msra.mxu0 %v650
    %2166 = vmatprep.subr.bf16.mxu0 %v659
    %2167 = vmatpush1.bf16.msra.mxu0 %v658
    %2168 = vmatprep.subr.bf16.mxu0 %v667
    %2169 = vmatpush1.bf16.msra.mxu0 %v666
    %2170 = vmatprep.subr.bf16.mxu0 %v675
    %2171 = vmatpush1.bf16.msra.mxu0 %v674
    %2172 = vmatprep.subr.bf16.mxu0 %v683
    %2173 = vmatpush1.bf16.msra.mxu0 %v682
    %2174 = vmatprep.mubr.bf16.mxu0 %v2100
    %2175 = vmatmul.mubr.bf16.gmra.mrb[0].mxu0 %v2099
    %v2176 = vpop.f32.mrb[0].mxu0
    %v2177 = vadd.f32 0.0, %v2176
    %v2178 = vpop.f32.mrb[0].mxu0
    %v2179 = vadd.f32 0.0, %v2178
    %v2180 = vpop.f32.mrb[0].mxu0
    %v2181 = vpop.f32.mrb[0].mxu0
    %2182 = vdwg.mxu0
    %2183 = vmatprep.subr.bf16.mxu0 %v565
    %2184 = vmatpush1.bf16.msra.mxu0 %v564
    %2185 = vmatprep.subr.bf16.mxu0 %v573
    %2186 = vmatpush1.bf16.msra.mxu0 %v572
    %2187 = vmatprep.subr.bf16.mxu0 %v581
    %2188 = vmatpush1.bf16.msra.mxu0 %v580
    %2189 = vmatprep.subr.bf16.mxu0 %v589
    %2190 = vmatpush1.bf16.msra.mxu0 %v588
    %2191 = vmatprep.subr.bf16.mxu0 %v597
    %2192 = vmatpush1.bf16.msra.mxu0 %v596
    %2193 = vmatprep.subr.bf16.mxu0 %v605
    %2194 = vmatpush1.bf16.msra.mxu0 %v604
    %2195 = vmatprep.subr.bf16.mxu0 %v613
    %2196 = vmatpush1.bf16.msra.mxu0 %v612
    %2197 = vmatprep.subr.bf16.mxu0 %v621
    %2198 = vmatpush1.bf16.msra.mxu0 %v620
    %2199 = vmatprep.subr.bf16.mxu0 %v629
    %2200 = vmatpush1.bf16.msra.mxu0 %v628
    %2201 = vmatprep.subr.bf16.mxu0 %v637
    %2202 = vmatpush1.bf16.msra.mxu0 %v636
    %2203 = vmatprep.subr.bf16.mxu0 %v645
    %2204 = vmatpush1.bf16.msra.mxu0 %v644
    %2205 = vmatprep.subr.bf16.mxu0 %v653
    %2206 = vmatpush1.bf16.msra.mxu0 %v652
    %2207 = vmatprep.subr.bf16.mxu0 %v661
    %2208 = vmatpush1.bf16.msra.mxu0 %v660
    %2209 = vmatprep.subr.bf16.mxu0 %v669
    %2210 = vmatpush1.bf16.msra.mxu0 %v668
    %2211 = vmatprep.subr.bf16.mxu0 %v677
    %2212 = vmatpush1.bf16.msra.mxu0 %v676
    %2213 = vmatprep.subr.bf16.mxu0 %v685
    %2214 = vmatpush1.bf16.msra.mxu0 %v684
    %2215 = vmatprep.mubr.bf16.mxu0 %v2100
    %2216 = vmatmul.mubr.bf16.gmra.mrb[0].mxu0 %v2099
    %v2217 = vpop.f32.mrb[0].mxu0
    %v2218 = vadd.f32 0.0, %v2217
    %v2219 = vpop.f32.mrb[0].mxu0
    %v2220 = vadd.f32 0.0, %v2219
    %v2221 = vpop.f32.mrb[0].mxu0
    %v2222 = vpop.f32.mrb[0].mxu0
    %2223 = vdwg.mxu0
    %2224 = vmatprep.subr.bf16.mxu0 %v567
    %2225 = vmatpush1.bf16.msra.mxu0 %v566
    %2226 = vmatprep.subr.bf16.mxu0 %v575
    %2227 = vmatpush1.bf16.msra.mxu0 %v574
    %2228 = vmatprep.subr.bf16.mxu0 %v583
    %2229 = vmatpush1.bf16.msra.mxu0 %v582
    %2230 = vmatprep.subr.bf16.mxu0 %v591
    %2231 = vmatpush1.bf16.msra.mxu0 %v590
    %2232 = vmatprep.subr.bf16.mxu0 %v599
    %2233 = vmatpush1.bf16.msra.mxu0 %v598
    %2234 = vmatprep.subr.bf16.mxu0 %v607
    %2235 = vmatpush1.bf16.msra.mxu0 %v606
    %2236 = vmatprep.subr.bf16.mxu0 %v615
    %2237 = vmatpush1.bf16.msra.mxu0 %v614
    %2238 = vmatprep.subr.bf16.mxu0 %v623
    %2239 = vmatpush1.bf16.msra.mxu0 %v622
    %2240 = vmatprep.subr.bf16.mxu0 %v631
    %2241 = vmatpush1.bf16.msra.mxu0 %v630
    %2242 = vmatprep.subr.bf16.mxu0 %v639
    %2243 = vmatpush1.bf16.msra.mxu0 %v638
    %2244 = vmatprep.subr.bf16.mxu0 %v647
    %2245 = vmatpush1.bf16.msra.mxu0 %v646
    %2246 = vmatprep.subr.bf16.mxu0 %v655
    %2247 = vmatpush1.bf16.msra.mxu0 %v654
    %2248 = vmatprep.subr.bf16.mxu0 %v663
    %2249 = vmatpush1.bf16.msra.mxu0 %v662
    %2250 = vmatprep.subr.bf16.mxu0 %v671
    %2251 = vmatpush1.bf16.msra.mxu0 %v670
    %2252 = vmatprep.subr.bf16.mxu0 %v679
    %2253 = vmatpush1.bf16.msra.mxu0 %v678
    %2254 = vmatprep.subr.bf16.mxu0 %v687
    %2255 = vmatpush1.bf16.msra.mxu0 %v686
    %2256 = vmatprep.mubr.bf16.mxu0 %v2100
    %2257 = vmatmul.mubr.bf16.gmra.mrb[0].mxu0 %v2099
    %v2258 = vpop.f32.mrb[0].mxu0
    %v2259 = vadd.f32 0.0, %v2258
    %v2260 = vpop.f32.mrb[0].mxu0
    %v2261 = vadd.f32 0.0, %v2260
    %v2262 = vpop.f32.mrb[0].mxu0
    %v2263 = vpop.f32.mrb[0].mxu0
    %2264 = vdwg.mxu0
    %v2273 = vcombine.low %v2136, %v2138
    %v2274 = vcombine.low %v2177, %v2179
    %v2276 = vunpack.c.l.s4 1983009808
    %v2277 = vunpack.c.0.s8 %v2276
    %v2278 = vlaneseq
    %v2279 = vshrl.u32 %v2278, 7
    %v2280 = vsub.s32 %v2277, %v2279
    %v2281 = vrot.slane %v2273, %v2280
    %v2283 = vunpack.c.l.s4 1983009808
    %v2284 = vunpack.c.0.s8 %v2283
    %v2285 = vlaneseq
    %v2286 = vshrl.u32 %v2285, 7
    %v2287 = vsub.s32 %v2284, %v2286
    %v2288 = vrot.slane %v2274, %v2287
    %v2289 = vcombine.low %v2281, %v2288
    %v2290 = vcombine.low %v2218, %v2220
    %v2291 = vcombine.low %v2259, %v2261
    %v2293 = vunpack.c.l.s4 1983009808
    %v2294 = vunpack.c.0.s8 %v2293
    %v2295 = vlaneseq
    %v2296 = vshrl.u32 %v2295, 7
    %v2297 = vsub.s32 %v2294, %v2296
    %v2298 = vrot.slane %v2290, %v2297
    %v2300 = vunpack.c.l.s4 1983009808
    %v2301 = vunpack.c.0.s8 %v2300
    %v2302 = vlaneseq
    %v2303 = vshrl.u32 %v2302, 7
    %v2304 = vsub.s32 %v2301, %v2303
    %v2305 = vrot.slane %v2291, %v2304
    %v2306 = vcombine.low %v2298, %v2305
    %v2309 = vadd.f32 %v2086, %v2289
    %v2310 = vadd.f32 %v2087, %v2306
    %v2311 = vxor.u32 %v2309, 2147483648
    %v2312 = vmul.f32 %v2311, 1.442695
    %v2313 = vpow.pop %v2312
    %v2314 = vadd.f32 %v2313, 1.0
    %v2315 = vrcp.pop %v2314
    %v2316 = vmul.f32 1.0, %v2315
    %v2318 = vrot.slane %v2309, 4
    %v2320 = vxor.u32 %v2318, 2147483648
    %v2321 = vmul.f32 %v2320, 1.442695
    %v2322 = vpow.pop %v2321
    %v2323 = vadd.f32 %v2322, 1.0
    %v2324 = vrcp.pop %v2323
    %v2325 = vmul.f32 1.0, %v2324
    %v2326 = vtanh.pop %v2310
    %v2328 = vrot.slane %v2310, 4
    %v2330 = vxor.u32 %v2328, 2147483648
    %v2331 = vmul.f32 %v2330, 1.442695
    %v2332 = vpow.pop %v2331
    %v2333 = vadd.f32 %v2332, 1.0
    %v2334 = vrcp.pop %v2333
    %v2335 = vmul.f32 1.0, %v2334
    %v2336 = vmul.f32 %v2325, %v2081
    %v2337 = vmul.f32 %v2316, %v2326
    %v2338 = vadd.f32 %v2336, %v2337
    %v2339 = vtanh.pop %v2338
    %v2340 = vmul.f32 %v2335, %v2339
    %s2341 = scalar_lea.vmem %s0, 48
    %v2342 = vld [vmem:[%s2341] sm:$0xff]
    %v2343 = vunpack.c.l.bf16 %v2342
    %v2344 = vunpack.c.h.bf16 %v2342
    %v2347 = vunpack.c.l.s4 1983009808
    %v2348 = vunpack.c.0.s8 %v2347
    %v2349 = vlaneseq
    %v2350 = vshrl.u32 %v2349, 7
    %v2351 = vsub.s32 %v2348, %v2350
    %v2352 = vrot.slane %v2340, %v2351
    %v2353 = vcombine.high %v2352, %v2352
    %v2356 = vpack.c.bf16 %v2352, %v2352
    %v2357 = vpack.c.bf16 %v2353, %v2353
    %2358 = vmatprep.subr.bf16.mxu0 %v561
    %2359 = vmatpush1.bf16.msra.mxu0 %v560
    %2360 = vmatprep.subr.bf16.mxu0 %v569
    %2361 = vmatpush1.bf16.msra.mxu0 %v568
    %2362 = vmatprep.subr.bf16.mxu0 %v577
    %2363 = vmatpush1.bf16.msra.mxu0 %v576
    %2364 = vmatprep.subr.bf16.mxu0 %v585
    %2365 = vmatpush1.bf16.msra.mxu0 %v584
    %2366 = vmatprep.subr.bf16.mxu0 %v593
    %2367 = vmatpush1.bf16.msra.mxu0 %v592
    %2368 = vmatprep.subr.bf16.mxu0 %v601
    %2369 = vmatpush1.bf16.msra.mxu0 %v600
    %2370 = vmatprep.subr.bf16.mxu0 %v609
    %2371 = vmatpush1.bf16.msra.mxu0 %v608
    %2372 = vmatprep.subr.bf16.mxu0 %v617
    %2373 = vmatpush1.bf16.msra.mxu0 %v616
    %2374 = vmatprep.subr.bf16.mxu0 %v625
    %2375 = vmatpush1.bf16.msra.mxu0 %v624
    %2376 = vmatprep.subr.bf16.mxu0 %v633
    %2377 = vmatpush1.bf16.msra.mxu0 %v632
    %2378 = vmatprep.subr.bf16.mxu0 %v641
    %2379 = vmatpush1.bf16.msra.mxu0 %v640
    %2380 = vmatprep.subr.bf16.mxu0 %v649
    %2381 = vmatpush1.bf16.msra.mxu0 %v648
    %2382 = vmatprep.subr.bf16.mxu0 %v657
    %2383 = vmatpush1.bf16.msra.mxu0 %v656
    %2384 = vmatprep.subr.bf16.mxu0 %v665
    %2385 = vmatpush1.bf16.msra.mxu0 %v664
    %2386 = vmatprep.subr.bf16.mxu0 %v673
    %2387 = vmatpush1.bf16.msra.mxu0 %v672
    %2388 = vmatprep.subr.bf16.mxu0 %v681
    %2389 = vmatpush1.bf16.msra.mxu0 %v680
    %2390 = vmatprep.mubr.bf16.mxu0 %v2357
    %2391 = vmatmul.mubr.bf16.gmra.mrb[0].mxu0 %v2356
    %v2392 = vpop.f32.mrb[0].mxu0
    %v2393 = vadd.f32 0.0, %v2392
    %v2394 = vpop.f32.mrb[0].mxu0
    %v2395 = vadd.f32 0.0, %v2394
    %v2396 = vpop.f32.mrb[0].mxu0
    %v2397 = vpop.f32.mrb[0].mxu0
    %2398 = vdwg.mxu0
    %2399 = vmatprep.subr.bf16.mxu0 %v563
    %2400 = vmatpush1.bf16.msra.mxu0 %v562
    %2401 = vmatprep.subr.bf16.mxu0 %v571
    %2402 = vmatpush1.bf16.msra.mxu0 %v570
    %2403 = vmatprep.subr.bf16.mxu0 %v579
    %2404 = vmatpush1.bf16.msra.mxu0 %v578
    %2405 = vmatprep.subr.bf16.mxu0 %v587
    %2406 = vmatpush1.bf16.msra.mxu0 %v586
    %2407 = vmatprep.subr.bf16.mxu0 %v595
    %2408 = vmatpush1.bf16.msra.mxu0 %v594
    %2409 = vmatprep.subr.bf16.mxu0 %v603
    %2410 = vmatpush1.bf16.msra.mxu0 %v602
    %2411 = vmatprep.subr.bf16.mxu0 %v611
    %2412 = vmatpush1.bf16.msra.mxu0 %v610
    %2413 = vmatprep.subr.bf16.mxu0 %v619
    %2414 = vmatpush1.bf16.msra.mxu0 %v618
    %2415 = vmatprep.subr.bf16.mxu0 %v627
    %2416 = vmatpush1.bf16.msra.mxu0 %v626
    %2417 = vmatprep.subr.bf16.mxu0 %v635
    %2418 = vmatpush1.bf16.msra.mxu0 %v634
    %2419 = vmatprep.subr.bf16.mxu0 %v643
    %2420 = vmatpush1.bf16.msra.mxu0 %v642
    %2421 = vmatprep.subr.bf16.mxu0 %v651
    %2422 = vmatpush1.bf16.msra.mxu0 %v650
    %2423 = vmatprep.subr.bf16.mxu0 %v659
    %2424 = vmatpush1.bf16.msra.mxu0 %v658
    %2425 = vmatprep.subr.bf16.mxu0 %v667
    %2426 = vmatpush1.bf16.msra.mxu0 %v666
    %2427 = vmatprep.subr.bf16.mxu0 %v675
    %2428 = vmatpush1.bf16.msra.mxu0 %v674
    %2429 = vmatprep.subr.bf16.mxu0 %v683
    %2430 = vmatpush1.bf16.msra.mxu0 %v682
    %2431 = vmatprep.mubr.bf16.mxu0 %v2357
    %2432 = vmatmul.mubr.bf16.gmra.mrb[0].mxu0 %v2356
    %v2433 = vpop.f32.mrb[0].mxu0
    %v2434 = vadd.f32 0.0, %v2433
    %v2435 = vpop.f32.mrb[0].mxu0
    %v2436 = vadd.f32 0.0, %v2435
    %v2437 = vpop.f32.mrb[0].mxu0
    %v2438 = vpop.f32.mrb[0].mxu0
    %2439 = vdwg.mxu0
    %2440 = vmatprep.subr.bf16.mxu0 %v565
    %2441 = vmatpush1.bf16.msra.mxu0 %v564
    %2442 = vmatprep.subr.bf16.mxu0 %v573
    %2443 = vmatpush1.bf16.msra.mxu0 %v572
    %2444 = vmatprep.subr.bf16.mxu0 %v581
    %2445 = vmatpush1.bf16.msra.mxu0 %v580
    %2446 = vmatprep.subr.bf16.mxu0 %v589
    %2447 = vmatpush1.bf16.msra.mxu0 %v588
    %2448 = vmatprep.subr.bf16.mxu0 %v597
    %2449 = vmatpush1.bf16.msra.mxu0 %v596
    %2450 = vmatprep.subr.bf16.mxu0 %v605
    %2451 = vmatpush1.bf16.msra.mxu0 %v604
    %2452 = vmatprep.subr.bf16.mxu0 %v613
    %2453 = vmatpush1.bf16.msra.mxu0 %v612
    %2454 = vmatprep.subr.bf16.mxu0 %v621
    %2455 = vmatpush1.bf16.msra.mxu0 %v620
    %2456 = vmatprep.subr.bf16.mxu0 %v629
    %2457 = vmatpush1.bf16.msra.mxu0 %v628
    %2458 = vmatprep.subr.bf16.mxu0 %v637
    %2459 = vmatpush1.bf16.msra.mxu0 %v636
    %2460 = vmatprep.subr.bf16.mxu0 %v645
    %2461 = vmatpush1.bf16.msra.mxu0 %v644
    %2462 = vmatprep.subr.bf16.mxu0 %v653
    %2463 = vmatpush1.bf16.msra.mxu0 %v652
    %2464 = vmatprep.subr.bf16.mxu0 %v661
    %2465 = vmatpush1.bf16.msra.mxu0 %v660
    %2466 = vmatprep.subr.bf16.mxu0 %v669
    %2467 = vmatpush1.bf16.msra.mxu0 %v668
    %2468 = vmatprep.subr.bf16.mxu0 %v677
    %2469 = vmatpush1.bf16.msra.mxu0 %v676
    %2470 = vmatprep.subr.bf16.mxu0 %v685
    %2471 = vmatpush1.bf16.msra.mxu0 %v684
    %2472 = vmatprep.mubr.bf16.mxu0 %v2357
    %2473 = vmatmul.mubr.bf16.gmra.mrb[0].mxu0 %v2356
    %v2474 = vpop.f32.mrb[0].mxu0
    %v2475 = vadd.f32 0.0, %v2474
    %v2476 = vpop.f32.mrb[0].mxu0
    %v2477 = vadd.f32 0.0, %v2476
    %v2478 = vpop.f32.mrb[0].mxu0
    %v2479 = vpop.f32.mrb[0].mxu0
    %2480 = vdwg.mxu0
    %2481 = vmatprep.subr.bf16.mxu0 %v567
    %2482 = vmatpush1.bf16.msra.mxu0 %v566
    %2483 = vmatprep.subr.bf16.mxu0 %v575
    %2484 = vmatpush1.bf16.msra.mxu0 %v574
    %2485 = vmatprep.subr.bf16.mxu0 %v583
    %2486 = vmatpush1.bf16.msra.mxu0 %v582
    %2487 = vmatprep.subr.bf16.mxu0 %v591
    %2488 = vmatpush1.bf16.msra.mxu0 %v590
    %2489 = vmatprep.subr.bf16.mxu0 %v599
    %2490 = vmatpush1.bf16.msra.mxu0 %v598
    %2491 = vmatprep.subr.bf16.mxu0 %v607
    %2492 = vmatpush1.bf16.msra.mxu0 %v606
    %2493 = vmatprep.subr.bf16.mxu0 %v615
    %2494 = vmatpush1.bf16.msra.mxu0 %v614
    %2495 = vmatprep.subr.bf16.mxu0 %v623
    %2496 = vmatpush1.bf16.msra.mxu0 %v622
    %2497 = vmatprep.subr.bf16.mxu0 %v631
    %2498 = vmatpush1.bf16.msra.mxu0 %v630
    %2499 = vmatprep.subr.bf16.mxu0 %v639
    %2500 = vmatpush1.bf16.msra.mxu0 %v638
    %2501 = vmatprep.subr.bf16.mxu0 %v647
    %2502 = vmatpush1.bf16.msra.mxu0 %v646
    %2503 = vmatprep.subr.bf16.mxu0 %v655
    %2504 = vmatpush1.bf16.msra.mxu0 %v654
    %2505 = vmatprep.subr.bf16.mxu0 %v663
    %2506 = vmatpush1.bf16.msra.mxu0 %v662
    %2507 = vmatprep.subr.bf16.mxu0 %v671
    %2508 = vmatpush1.bf16.msra.mxu0 %v670
    %2509 = vmatprep.subr.bf16.mxu0 %v679
    %2510 = vmatpush1.bf16.msra.mxu0 %v678
    %2511 = vmatprep.subr.bf16.mxu0 %v687
    %2512 = vmatpush1.bf16.msra.mxu0 %v686
    %2513 = vmatprep.mubr.bf16.mxu0 %v2357
    %2514 = vmatmul.mubr.bf16.gmra.mrb[0].mxu0 %v2356
    %v2515 = vpop.f32.mrb[0].mxu0
    %v2516 = vadd.f32 0.0, %v2515
    %v2517 = vpop.f32.mrb[0].mxu0
    %v2518 = vadd.f32 0.0, %v2517
    %v2519 = vpop.f32.mrb[0].mxu0
    %v2520 = vpop.f32.mrb[0].mxu0
    %2521 = vdwg.mxu0
    %v2530 = vcombine.low %v2393, %v2395
    %v2531 = vcombine.low %v2434, %v2436
    %v2533 = vunpack.c.l.s4 1983009808
    %v2534 = vunpack.c.0.s8 %v2533
    %v2535 = vlaneseq
    %v2536 = vshrl.u32 %v2535, 7
    %v2537 = vsub.s32 %v2534, %v2536
    %v2538 = vrot.slane %v2530, %v2537
    %v2540 = vunpack.c.l.s4 1983009808
    %v2541 = vunpack.c.0.s8 %v2540
    %v2542 = vlaneseq
    %v2543 = vshrl.u32 %v2542, 7
    %v2544 = vsub.s32 %v2541, %v2543
    %v2545 = vrot.slane %v2531, %v2544
    %v2546 = vcombine.low %v2538, %v2545
    %v2547 = vcombine.low %v2475, %v2477
    %v2548 = vcombine.low %v2516, %v2518
    %v2550 = vunpack.c.l.s4 1983009808
    %v2551 = vunpack.c.0.s8 %v2550
    %v2552 = vlaneseq
    %v2553 = vshrl.u32 %v2552, 7
    %v2554 = vsub.s32 %v2551, %v2553
    %v2555 = vrot.slane %v2547, %v2554
    %v2557 = vunpack.c.l.s4 1983009808
    %v2558 = vunpack.c.0.s8 %v2557
    %v2559 = vlaneseq
    %v2560 = vshrl.u32 %v2559, 7
    %v2561 = vsub.s32 %v2558, %v2560
    %v2562 = vrot.slane %v2548, %v2561
    %v2563 = vcombine.low %v2555, %v2562
    %v2566 = vadd.f32 %v2343, %v2546
    %v2567 = vadd.f32 %v2344, %v2563
    %v2568 = vxor.u32 %v2566, 2147483648
    %v2569 = vmul.f32 %v2568, 1.442695
    %v2570 = vpow.pop %v2569
    %v2571 = vadd.f32 %v2570, 1.0
    %v2572 = vrcp.pop %v2571
    %v2573 = vmul.f32 1.0, %v2572
    %v2575 = vrot.slane %v2566, 4
    %v2577 = vxor.u32 %v2575, 2147483648
    %v2578 = vmul.f32 %v2577, 1.442695
    %v2579 = vpow.pop %v2578
    %v2580 = vadd.f32 %v2579, 1.0
    %v2581 = vrcp.pop %v2580
    %v2582 = vmul.f32 1.0, %v2581
    %v2583 = vtanh.pop %v2567
    %v2585 = vrot.slane %v2567, 4
    %v2587 = vxor.u32 %v2585, 2147483648
    %v2588 = vmul.f32 %v2587, 1.442695
    %v2589 = vpow.pop %v2588
    %v2590 = vadd.f32 %v2589, 1.0
    %v2591 = vrcp.pop %v2590
    %v2592 = vmul.f32 1.0, %v2591
    %v2593 = vmul.f32 %v2582, %v2338
    %v2594 = vmul.f32 %v2573, %v2583
    %v2595 = vadd.f32 %v2593, %v2594
    %v2596 = vtanh.pop %v2595
    %v2597 = vmul.f32 %v2592, %v2596
    %s2598 = scalar_lea.vmem %s0, 56
    %v2599 = vld [vmem:[%s2598] sm:$0xff]
    %v2600 = vunpack.c.l.bf16 %v2599
    %v2601 = vunpack.c.h.bf16 %v2599
    %v2604 = vunpack.c.l.s4 1983009808
    %v2605 = vunpack.c.0.s8 %v2604
    %v2606 = vlaneseq
    %v2607 = vshrl.u32 %v2606, 7
    %v2608 = vsub.s32 %v2605, %v2607
    %v2609 = vrot.slane %v2597, %v2608
    %v2610 = vcombine.high %v2609, %v2609
    %v2613 = vpack.c.bf16 %v2609, %v2609
    %v2614 = vpack.c.bf16 %v2610, %v2610
    %2615 = vmatprep.subr.bf16.mxu0 %v561
    %2616 = vmatpush1.bf16.msra.mxu0 %v560
    %2617 = vmatprep.subr.bf16.mxu0 %v569
    %2618 = vmatpush1.bf16.msra.mxu0 %v568
    %2619 = vmatprep.subr.bf16.mxu0 %v577
    %2620 = vmatpush1.bf16.msra.mxu0 %v576
    %2621 = vmatprep.subr.bf16.mxu0 %v585
    %2622 = vmatpush1.bf16.msra.mxu0 %v584
    %2623 = vmatprep.subr.bf16.mxu0 %v593
    %2624 = vmatpush1.bf16.msra.mxu0 %v592
    %2625 = vmatprep.subr.bf16.mxu0 %v601
    %2626 = vmatpush1.bf16.msra.mxu0 %v600
    %2627 = vmatprep.subr.bf16.mxu0 %v609
    %2628 = vmatpush1.bf16.msra.mxu0 %v608
    %2629 = vmatprep.subr.bf16.mxu0 %v617
    %2630 = vmatpush1.bf16.msra.mxu0 %v616
    %2631 = vmatprep.subr.bf16.mxu0 %v625
    %2632 = vmatpush1.bf16.msra.mxu0 %v624
    %2633 = vmatprep.subr.bf16.mxu0 %v633
    %2634 = vmatpush1.bf16.msra.mxu0 %v632
    %2635 = vmatprep.subr.bf16.mxu0 %v641
    %2636 = vmatpush1.bf16.msra.mxu0 %v640
    %2637 = vmatprep.subr.bf16.mxu0 %v649
    %2638 = vmatpush1.bf16.msra.mxu0 %v648
    %2639 = vmatprep.subr.bf16.mxu0 %v657
    %2640 = vmatpush1.bf16.msra.mxu0 %v656
    %2641 = vmatprep.subr.bf16.mxu0 %v665
    %2642 = vmatpush1.bf16.msra.mxu0 %v664
    %2643 = vmatprep.subr.bf16.mxu0 %v673
    %2644 = vmatpush1.bf16.msra.mxu0 %v672
    %2645 = vmatprep.subr.bf16.mxu0 %v681
    %2646 = vmatpush1.bf16.msra.mxu0 %v680
    %2647 = vmatprep.mubr.bf16.mxu0 %v2614
    %2648 = vmatmul.mubr.bf16.gmra.mrb[0].mxu0 %v2613
    %v2649 = vpop.f32.mrb[0].mxu0
    %v2650 = vadd.f32 0.0, %v2649
    %v2651 = vpop.f32.mrb[0].mxu0
    %v2652 = vadd.f32 0.0, %v2651
    %v2653 = vpop.f32.mrb[0].mxu0
    %v2654 = vpop.f32.mrb[0].mxu0
    %2655 = vdwg.mxu0
    %2656 = vmatprep.subr.bf16.mxu0 %v563
    %2657 = vmatpush1.bf16.msra.mxu0 %v562
    %2658 = vmatprep.subr.bf16.mxu0 %v571
    %2659 = vmatpush1.bf16.msra.mxu0 %v570
    %2660 = vmatprep.subr.bf16.mxu0 %v579
    %2661 = vmatpush1.bf16.msra.mxu0 %v578
    %2662 = vmatprep.subr.bf16.mxu0 %v587
    %2663 = vmatpush1.bf16.msra.mxu0 %v586
    %2664 = vmatprep.subr.bf16.mxu0 %v595
    %2665 = vmatpush1.bf16.msra.mxu0 %v594
    %2666 = vmatprep.subr.bf16.mxu0 %v603
    %2667 = vmatpush1.bf16.msra.mxu0 %v602
    %2668 = vmatprep.subr.bf16.mxu0 %v611
    %2669 = vmatpush1.bf16.msra.mxu0 %v610
    %2670 = vmatprep.subr.bf16.mxu0 %v619
    %2671 = vmatpush1.bf16.msra.mxu0 %v618
    %2672 = vmatprep.subr.bf16.mxu0 %v627
    %2673 = vmatpush1.bf16.msra.mxu0 %v626
    %2674 = vmatprep.subr.bf16.mxu0 %v635
    %2675 = vmatpush1.bf16.msra.mxu0 %v634
    %2676 = vmatprep.subr.bf16.mxu0 %v643
    %2677 = vmatpush1.bf16.msra.mxu0 %v642
    %2678 = vmatprep.subr.bf16.mxu0 %v651
    %2679 = vmatpush1.bf16.msra.mxu0 %v650
    %2680 = vmatprep.subr.bf16.mxu0 %v659
    %2681 = vmatpush1.bf16.msra.mxu0 %v658
    %2682 = vmatprep.subr.bf16.mxu0 %v667
    %2683 = vmatpush1.bf16.msra.mxu0 %v666
    %2684 = vmatprep.subr.bf16.mxu0 %v675
    %2685 = vmatpush1.bf16.msra.mxu0 %v674
    %2686 = vmatprep.subr.bf16.mxu0 %v683
    %2687 = vmatpush1.bf16.msra.mxu0 %v682
    %2688 = vmatprep.mubr.bf16.mxu0 %v2614
    %2689 = vmatmul.mubr.bf16.gmra.mrb[0].mxu0 %v2613
    %v2690 = vpop.f32.mrb[0].mxu0
    %v2691 = vadd.f32 0.0, %v2690
    %v2692 = vpop.f32.mrb[0].mxu0
    %v2693 = vadd.f32 0.0, %v2692
    %v2694 = vpop.f32.mrb[0].mxu0
    %v2695 = vpop.f32.mrb[0].mxu0
    %2696 = vdwg.mxu0
    %2697 = vmatprep.subr.bf16.mxu0 %v565
    %2698 = vmatpush1.bf16.msra.mxu0 %v564
    %2699 = vmatprep.subr.bf16.mxu0 %v573
    %2700 = vmatpush1.bf16.msra.mxu0 %v572
    %2701 = vmatprep.subr.bf16.mxu0 %v581
    %2702 = vmatpush1.bf16.msra.mxu0 %v580
    %2703 = vmatprep.subr.bf16.mxu0 %v589
    %2704 = vmatpush1.bf16.msra.mxu0 %v588
    %2705 = vmatprep.subr.bf16.mxu0 %v597
    %2706 = vmatpush1.bf16.msra.mxu0 %v596
    %2707 = vmatprep.subr.bf16.mxu0 %v605
    %2708 = vmatpush1.bf16.msra.mxu0 %v604
    %2709 = vmatprep.subr.bf16.mxu0 %v613
    %2710 = vmatpush1.bf16.msra.mxu0 %v612
    %2711 = vmatprep.subr.bf16.mxu0 %v621
    %2712 = vmatpush1.bf16.msra.mxu0 %v620
    %2713 = vmatprep.subr.bf16.mxu0 %v629
    %2714 = vmatpush1.bf16.msra.mxu0 %v628
    %2715 = vmatprep.subr.bf16.mxu0 %v637
    %2716 = vmatpush1.bf16.msra.mxu0 %v636
    %2717 = vmatprep.subr.bf16.mxu0 %v645
    %2718 = vmatpush1.bf16.msra.mxu0 %v644
    %2719 = vmatprep.subr.bf16.mxu0 %v653
    %2720 = vmatpush1.bf16.msra.mxu0 %v652
    %2721 = vmatprep.subr.bf16.mxu0 %v661
    %2722 = vmatpush1.bf16.msra.mxu0 %v660
    %2723 = vmatprep.subr.bf16.mxu0 %v669
    %2724 = vmatpush1.bf16.msra.mxu0 %v668
    %2725 = vmatprep.subr.bf16.mxu0 %v677
    %2726 = vmatpush1.bf16.msra.mxu0 %v676
    %2727 = vmatprep.subr.bf16.mxu0 %v685
    %2728 = vmatpush1.bf16.msra.mxu0 %v684
    %2729 = vmatprep.mubr.bf16.mxu0 %v2614
    %2730 = vmatmul.mubr.bf16.gmra.mrb[0].mxu0 %v2613
    %v2731 = vpop.f32.mrb[0].mxu0
    %v2732 = vadd.f32 0.0, %v2731
    %v2733 = vpop.f32.mrb[0].mxu0
    %v2734 = vadd.f32 0.0, %v2733
    %v2735 = vpop.f32.mrb[0].mxu0
    %v2736 = vpop.f32.mrb[0].mxu0
    %2737 = vdwg.mxu0
    %2738 = vmatprep.subr.bf16.mxu0 %v567
    %2739 = vmatpush1.bf16.msra.mxu0 %v566
    %2740 = vmatprep.subr.bf16.mxu0 %v575
    %2741 = vmatpush1.bf16.msra.mxu0 %v574
    %2742 = vmatprep.subr.bf16.mxu0 %v583
    %2743 = vmatpush1.bf16.msra.mxu0 %v582
    %2744 = vmatprep.subr.bf16.mxu0 %v591
    %2745 = vmatpush1.bf16.msra.mxu0 %v590
    %2746 = vmatprep.subr.bf16.mxu0 %v599
    %2747 = vmatpush1.bf16.msra.mxu0 %v598
    %2748 = vmatprep.subr.bf16.mxu0 %v607
    %2749 = vmatpush1.bf16.msra.mxu0 %v606
    %2750 = vmatprep.subr.bf16.mxu0 %v615
    %2751 = vmatpush1.bf16.msra.mxu0 %v614
    %2752 = vmatprep.subr.bf16.mxu0 %v623
    %2753 = vmatpush1.bf16.msra.mxu0 %v622
    %2754 = vmatprep.subr.bf16.mxu0 %v631
    %2755 = vmatpush1.bf16.msra.mxu0 %v630
    %2756 = vmatprep.subr.bf16.mxu0 %v639
    %2757 = vmatpush1.bf16.msra.mxu0 %v638
    %2758 = vmatprep.subr.bf16.mxu0 %v647
    %2759 = vmatpush1.bf16.msra.mxu0 %v646
    %2760 = vmatprep.subr.bf16.mxu0 %v655
    %2761 = vmatpush1.bf16.msra.mxu0 %v654
    %2762 = vmatprep.subr.bf16.mxu0 %v663
    %2763 = vmatpush1.bf16.msra.mxu0 %v662
    %2764 = vmatprep.subr.bf16.mxu0 %v671
    %2765 = vmatpush1.bf16.msra.mxu0 %v670
    %2766 = vmatprep.subr.bf16.mxu0 %v679
    %2767 = vmatpush1.bf16.msra.mxu0 %v678
    %2768 = vmatprep.subr.bf16.mxu0 %v687
    %2769 = vmatpush1.bf16.msra.mxu0 %v686
    %2770 = vmatprep.mubr.bf16.mxu0 %v2614
    %2771 = vmatmul.mubr.bf16.gmra.mrb[0].mxu0 %v2613
    %v2772 = vpop.f32.mrb[0].mxu0
    %v2773 = vadd.f32 0.0, %v2772
    %v2774 = vpop.f32.mrb[0].mxu0
    %v2775 = vadd.f32 0.0, %v2774
    %v2776 = vpop.f32.mrb[0].mxu0
    %v2777 = vpop.f32.mrb[0].mxu0
    %2778 = vdwg.mxu0
    %v2787 = vcombine.low %v2650, %v2652
    %v2788 = vcombine.low %v2691, %v2693
    %v2790 = vunpack.c.l.s4 1983009808
    %v2791 = vunpack.c.0.s8 %v2790
    %v2792 = vlaneseq
    %v2793 = vshrl.u32 %v2792, 7
    %v2794 = vsub.s32 %v2791, %v2793
    %v2795 = vrot.slane %v2787, %v2794
    %v2797 = vunpack.c.l.s4 1983009808
    %v2798 = vunpack.c.0.s8 %v2797
    %v2799 = vlaneseq
    %v2800 = vshrl.u32 %v2799, 7
    %v2801 = vsub.s32 %v2798, %v2800
    %v2802 = vrot.slane %v2788, %v2801
    %v2803 = vcombine.low %v2795, %v2802
    %v2804 = vcombine.low %v2732, %v2734
    %v2805 = vcombine.low %v2773, %v2775
    %v2807 = vunpack.c.l.s4 1983009808
    %v2808 = vunpack.c.0.s8 %v2807
    %v2809 = vlaneseq
    %v2810 = vshrl.u32 %v2809, 7
    %v2811 = vsub.s32 %v2808, %v2810
    %v2812 = vrot.slane %v2804, %v2811
    %v2814 = vunpack.c.l.s4 1983009808
    %v2815 = vunpack.c.0.s8 %v2814
    %v2816 = vlaneseq
    %v2817 = vshrl.u32 %v2816, 7
    %v2818 = vsub.s32 %v2815, %v2817
    %v2819 = vrot.slane %v2805, %v2818
    %v2820 = vcombine.low %v2812, %v2819
    %v2823 = vadd.f32 %v2600, %v2803
    %v2824 = vadd.f32 %v2601, %v2820
    %v2825 = vxor.u32 %v2823, 2147483648
    %v2826 = vmul.f32 %v2825, 1.442695
    %v2827 = vpow.pop %v2826
    %v2828 = vadd.f32 %v2827, 1.0
    %v2829 = vrcp.pop %v2828
    %v2830 = vmul.f32 1.0, %v2829
    %v2832 = vrot.slane %v2823, 4
    %v2834 = vxor.u32 %v2832, 2147483648
    %v2835 = vmul.f32 %v2834, 1.442695
    %v2836 = vpow.pop %v2835
    %v2837 = vadd.f32 %v2836, 1.0
    %v2838 = vrcp.pop %v2837
    %v2839 = vmul.f32 1.0, %v2838
    %v2840 = vtanh.pop %v2824
    %v2842 = vrot.slane %v2824, 4
    %v2844 = vxor.u32 %v2842, 2147483648
    %v2845 = vmul.f32 %v2844, 1.442695
    %v2846 = vpow.pop %v2845
    %v2847 = vadd.f32 %v2846, 1.0
    %v2848 = vrcp.pop %v2847
    %v2849 = vmul.f32 1.0, %v2848
    %v2850 = vmul.f32 %v2839, %v2595
    %v2851 = vmul.f32 %v2830, %v2840
    %v2852 = vadd.f32 %v2850, %v2851
    %v2853 = vtanh.pop %v2852
    %v2854 = vmul.f32 %v2849, %v2853
    %2855 = vst [vmem:[#allocation2] sm:$0xf] %v2854
    %2856 = vst [vmem:[#allocation3] sm:$0xf] %v2852
    // Predicated region
    $region30: #{rate_predictor_forward.3} parent=1 // pred_check
      %p2857 = pneg %p24
    $region31: #{rate_predictor_forward.3} parent=1 // pred_check_branch
      %2859 = sbr.rel (%p2857) target = $region33
    $region32: #{rate_predictor_forward.3} parent=1 // pred_region
      %v2860 = vld [vmem:[%s2] sm:$0xff]
      %v2861 = vld [vmem:[%s2 + $0x8] sm:$0xff]
      %v2862 = vxor.u32 %v2860, 2147483648
      %v2863 = vmul.f32 %v2862, 1.442695
      %v2864 = vpow.pop %v2863
      %v2865 = vadd.f32 %v2864, 1.0
      %v2866 = vrcp.pop %v2865
      %v2867 = vmul.f32 1.0, %v2866
      %v2868 = vtanh.pop %v2861
      %v2870 = vrot.slane %v2861, 4
      %v2872 = vxor.u32 %v2870, 2147483648
      %v2873 = vmul.f32 %v2872, 1.442695
      %v2874 = vpow.pop %v2873
      %v2875 = vadd.f32 %v2874, 1.0
      %v2876 = vrcp.pop %v2875
      %v2877 = vmul.f32 1.0, %v2876
      %v2878 = vmul.f32 %v2867, %v2868
      %v2879 = vtanh.pop %v2878
      %v2880 = vmul.f32 %v2877, %v2879
      %v2881 = vld [vmem:[%s3] sm:$0xff]
      %v2882 = vld [vmem:[%s3 + $0x8] sm:$0xff]
      %v2883 = vld [vmem:[%s3 + $0x10] sm:$0xff]
      %v2884 = vld [vmem:[%s3 + $0x18] sm:$0xff]
      %v2885 = vld [vmem:[%s3 + $0x20] sm:$0xff]
      %v2886 = vld [vmem:[%s3 + $0x28] sm:$0xff]
      %v2887 = vld [vmem:[%s3 + $0x30] sm:$0xff]
      %v2888 = vld [vmem:[%s3 + $0x38] sm:$0xff]
      %v2889 = vld [vmem:[%s3 + $0x40] sm:$0xff]
      %v2890 = vld [vmem:[%s3 + $0x48] sm:$0xff]
      %v2891 = vld [vmem:[%s3 + $0x50] sm:$0xff]
      %v2892 = vld [vmem:[%s3 + $0x58] sm:$0xff]
      %v2893 = vld [vmem:[%s3 + $0x60] sm:$0xff]
      %v2894 = vld [vmem:[%s3 + $0x68] sm:$0xff]
      %v2895 = vld [vmem:[%s3 + $0x70] sm:$0xff]
      %v2896 = vld [vmem:[%s3 + $0x78] sm:$0xff]
      %v2897 = vld [vmem:[%s3 + $0x80] sm:$0xff]
      %v2898 = vld [vmem:[%s3 + $0x88] sm:$0xff]
      %v2899 = vld [vmem:[%s3 + $0x90] sm:$0xff]
      %v2900 = vld [vmem:[%s3 + $0x98] sm:$0xff]
      %v2901 = vld [vmem:[%s3 + $0xa0] sm:$0xff]
      %v2902 = vld [vmem:[%s3 + $0xa8] sm:$0xff]
      %v2903 = vld [vmem:[%s3 + $0xb0] sm:$0xff]
      %v2904 = vld [vmem:[%s3 + $0xb8] sm:$0xff]
      %v2905 = vld [vmem:[%s3 + $0xc0] sm:$0xff]
      %v2906 = vld [vmem:[%s3 + $0xc8] sm:$0xff]
      %v2907 = vld [vmem:[%s3 + $0xd0] sm:$0xff]
      %v2908 = vld [vmem:[%s3 + $0xd8] sm:$0xff]
      %v2909 = vld [vmem:[%s3 + $0xe0] sm:$0xff]
      %v2910 = vld [vmem:[%s3 + $0xe8] sm:$0xff]
      %v2911 = vld [vmem:[%s3 + $0xf0] sm:$0xff]
      %v2912 = vld [vmem:[%s3 + $0xf8] sm:$0xff]
      %v2913 = vld [vmem:[%s4] sm:$0xff]
      %v2914 = vld [vmem:[%s4 + $0x8] sm:$0xff]
      %v2915 = vld [vmem:[%s4 + $0x10] sm:$0xff]
      %v2916 = vld [vmem:[%s4 + $0x18] sm:$0xff]
      %v2917 = vld [vmem:[%s4 + $0x20] sm:$0xff]
      %v2918 = vld [vmem:[%s4 + $0x28] sm:$0xff]
      %v2919 = vld [vmem:[%s4 + $0x30] sm:$0xff]
      %v2920 = vld [vmem:[%s4 + $0x38] sm:$0xff]
      %v2921 = vld [vmem:[%s4 + $0x40] sm:$0xff]
      %v2922 = vld [vmem:[%s4 + $0x48] sm:$0xff]
      %v2923 = vld [vmem:[%s4 + $0x50] sm:$0xff]
      %v2924 = vld [vmem:[%s4 + $0x58] sm:$0xff]
      %v2925 = vld [vmem:[%s4 + $0x60] sm:$0xff]
      %v2926 = vld [vmem:[%s4 + $0x68] sm:$0xff]
      %v2927 = vld [vmem:[%s4 + $0x70] sm:$0xff]
      %v2928 = vld [vmem:[%s4 + $0x78] sm:$0xff]
      %v2929 = vld [vmem:[%s4 + $0x80] sm:$0xff]
      %v2930 = vld [vmem:[%s4 + $0x88] sm:$0xff]
      %v2931 = vld [vmem:[%s4 + $0x90] sm:$0xff]
      %v2932 = vld [vmem:[%s4 + $0x98] sm:$0xff]
      %v2933 = vld [vmem:[%s4 + $0xa0] sm:$0xff]
      %v2934 = vld [vmem:[%s4 + $0xa8] sm:$0xff]
      %v2935 = vld [vmem:[%s4 + $0xb0] sm:$0xff]
      %v2936 = vld [vmem:[%s4 + $0xb8] sm:$0xff]
      %v2937 = vld [vmem:[%s4 + $0xc0] sm:$0xff]
      %v2938 = vld [vmem:[%s4 + $0xc8] sm:$0xff]
      %v2939 = vld [vmem:[%s4 + $0xd0] sm:$0xff]
      %v2940 = vld [vmem:[%s4 + $0xd8] sm:$0xff]
      %v2941 = vld [vmem:[%s4 + $0xe0] sm:$0xff]
      %v2942 = vld [vmem:[%s4 + $0xe8] sm:$0xff]
      %v2943 = vld [vmem:[%s4 + $0xf0] sm:$0xff]
      %v2944 = vld [vmem:[%s4 + $0xf8] sm:$0xff]
      %v2947 = vunpack.c.l.s4 1983009808
      %v2948 = vunpack.c.0.s8 %v2947
      %v2949 = vlaneseq
      %v2950 = vshrl.u32 %v2949, 7
      %v2951 = vsub.s32 %v2948, %v2950
      %v2952 = vrot.slane %v2880, %v2951
      %v2953 = vcombine.high %v2952, %v2952
      %2956 = vmatprep.subr.mxu0 0.0
      %2957 = vmatpush1.msra.mxu0 %v2913
      %2958 = vmatprep.subr.mxu0 0.0
      %2959 = vmatpush1.msra.mxu0 %v2914
      %2960 = vmatprep.subr.mxu0 0.0
      %2961 = vmatpush1.msra.mxu0 %v2915
      %2962 = vmatprep.subr.mxu0 0.0
      %2963 = vmatpush1.msra.mxu0 %v2916
      %2964 = vmatprep.subr.mxu0 0.0
      %2965 = vmatpush1.msra.mxu0 %v2917
      %2966 = vmatprep.subr.mxu0 0.0
      %2967 = vmatpush1.msra.mxu0 %v2918
      %2968 = vmatprep.subr.mxu0 0.0
      %2969 = vmatpush1.msra.mxu0 %v2919
      %2970 = vmatprep.subr.mxu0 0.0
      %2971 = vmatpush1.msra.mxu0 %v2920
      %2972 = vmatprep.subr.mxu0 0.0
      %2973 = vmatpush1.msra.mxu0 %v2921
      %2974 = vmatprep.subr.mxu0 0.0
      %2975 = vmatpush1.msra.mxu0 %v2922
      %2976 = vmatprep.subr.mxu0 0.0
      %2977 = vmatpush1.msra.mxu0 %v2923
      %2978 = vmatprep.subr.mxu0 0.0
      %2979 = vmatpush1.msra.mxu0 %v2924
      %2980 = vmatprep.subr.mxu0 0.0
      %2981 = vmatpush1.msra.mxu0 %v2925
      %2982 = vmatprep.subr.mxu0 0.0
      %2983 = vmatpush1.msra.mxu0 %v2926
      %2984 = vmatprep.subr.mxu0 0.0
      %2985 = vmatpush1.msra.mxu0 %v2927
      %2986 = vmatprep.subr.mxu0 0.0
      %2987 = vmatpush1.msra.mxu0 %v2928
      %2988 = vmatprep.subr.mxu0 0.0
      %2989 = vmatpush1.msra.mxu0 %v2929
      %2990 = vmatprep.subr.mxu0 0.0
      %2991 = vmatpush1.msra.mxu0 %v2930
      %2992 = vmatprep.subr.mxu0 0.0
      %2993 = vmatpush1.msra.mxu0 %v2931
      %2994 = vmatprep.subr.mxu0 0.0
      %2995 = vmatpush1.msra.mxu0 %v2932
      %2996 = vmatprep.subr.mxu0 0.0
      %2997 = vmatpush1.msra.mxu0 %v2933
      %2998 = vmatprep.subr.mxu0 0.0
      %2999 = vmatpush1.msra.mxu0 %v2934
      %3000 = vmatprep.subr.mxu0 0.0
      %3001 = vmatpush1.msra.mxu0 %v2935
      %3002 = vmatprep.subr.mxu0 0.0
      %3003 = vmatpush1.msra.mxu0 %v2936
      %3004 = vmatprep.subr.mxu0 0.0
      %3005 = vmatpush1.msra.mxu0 %v2937
      %3006 = vmatprep.subr.mxu0 0.0
      %3007 = vmatpush1.msra.mxu0 %v2938
      %3008 = vmatprep.subr.mxu0 0.0
      %3009 = vmatpush1.msra.mxu0 %v2939
      %3010 = vmatprep.subr.mxu0 0.0
      %3011 = vmatpush1.msra.mxu0 %v2940
      %3012 = vmatprep.subr.mxu0 0.0
      %3013 = vmatpush1.msra.mxu0 %v2941
      %3014 = vmatprep.subr.mxu0 0.0
      %3015 = vmatpush1.msra.mxu0 %v2942
      %3016 = vmatprep.subr.mxu0 0.0
      %3017 = vmatpush1.msra.mxu0 %v2943
      %3018 = vmatprep.subr.mxu0 0.0
      %3019 = vmatpush1.msra.mxu0 %v2944
      %3020 = vmatprep.mubr.f32.mxu0 %v2953
      %3021 = vmatmul.mubr.f32.gmra.mrb[0].mxu0 %v2952
      %v3022 = vpop.f32.mrb[0].mxu0
      %v3023 = vadd.f32 0.0, %v3022
      %v3024 = vpop.f32.mrb[0].mxu0
      %3025 = vdwg.mxu0
      %v3028 = vunpack.c.l.s4 1983009808
      %v3029 = vunpack.c.0.s8 %v3028
      %v3030 = vlaneseq
      %v3031 = vshrl.u32 %v3030, 7
      %v3032 = vsub.s32 %v3029, %v3031
      %v3033 = vrot.slane %v2854, %v3032
      %v3034 = vcombine.high %v3033, %v3033
      %3037 = vmatprep.subr.mxu0 0.0
      %3038 = vmatpush1.msra.mxu0 %v2881
      %3039 = vmatprep.subr.mxu0 0.0
      %3040 = vmatpush1.msra.mxu0 %v2882
      %3041 = vmatprep.subr.mxu0 0.0
      %3042 = vmatpush1.msra.mxu0 %v2883
      %3043 = vmatprep.subr.mxu0 0.0
      %3044 = vmatpush1.msra.mxu0 %v2884
      %3045 = vmatprep.subr.mxu0 0.0
      %3046 = vmatpush1.msra.mxu0 %v2885
      %3047 = vmatprep.subr.mxu0 0.0
      %3048 = vmatpush1.msra.mxu0 %v2886
      %3049 = vmatprep.subr.mxu0 0.0
      %3050 = vmatpush1.msra.mxu0 %v2887
      %3051 = vmatprep.subr.mxu0 0.0
      %3052 = vmatpush1.msra.mxu0 %v2888
      %3053 = vmatprep.subr.mxu0 0.0
      %3054 = vmatpush1.msra.mxu0 %v2889
      %3055 = vmatprep.subr.mxu0 0.0
      %3056 = vmatpush1.msra.mxu0 %v2890
      %3057 = vmatprep.subr.mxu0 0.0
      %3058 = vmatpush1.msra.mxu0 %v2891
      %3059 = vmatprep.subr.mxu0 0.0
      %3060 = vmatpush1.msra.mxu0 %v2892
      %3061 = vmatprep.subr.mxu0 0.0
      %3062 = vmatpush1.msra.mxu0 %v2893
      %3063 = vmatprep.subr.mxu0 0.0
      %3064 = vmatpush1.msra.mxu0 %v2894
      %3065 = vmatprep.subr.mxu0 0.0
      %3066 = vmatpush1.msra.mxu0 %v2895
      %3067 = vmatprep.subr.mxu0 0.0
      %3068 = vmatpush1.msra.mxu0 %v2896
      %3069 = vmatprep.subr.mxu0 0.0
      %3070 = vmatpush1.msra.mxu0 %v2897
      %3071 = vmatprep.subr.mxu0 0.0
      %3072 = vmatpush1.msra.mxu0 %v2898
      %3073 = vmatprep.subr.mxu0 0.0
      %3074 = vmatpush1.msra.mxu0 %v2899
      %3075 = vmatprep.subr.mxu0 0.0
      %3076 = vmatpush1.msra.mxu0 %v2900
      %3077 = vmatprep.subr.mxu0 0.0
      %3078 = vmatpush1.msra.mxu0 %v2901
      %3079 = vmatprep.subr.mxu0 0.0
      %3080 = vmatpush1.msra.mxu0 %v2902
      %3081 = vmatprep.subr.mxu0 0.0
      %3082 = vmatpush1.msra.mxu0 %v2903
      %3083 = vmatprep.subr.mxu0 0.0
      %3084 = vmatpush1.msra.mxu0 %v2904
      %3085 = vmatprep.subr.mxu0 0.0
      %3086 = vmatpush1.msra.mxu0 %v2905
      %3087 = vmatprep.subr.mxu0 0.0
      %3088 = vmatpush1.msra.mxu0 %v2906
      %3089 = vmatprep.subr.mxu0 0.0
      %3090 = vmatpush1.msra.mxu0 %v2907
      %3091 = vmatprep.subr.mxu0 0.0
      %3092 = vmatpush1.msra.mxu0 %v2908
      %3093 = vmatprep.subr.mxu0 0.0
      %3094 = vmatpush1.msra.mxu0 %v2909
      %3095 = vmatprep.subr.mxu0 0.0
      %3096 = vmatpush1.msra.mxu0 %v2910
      %3097 = vmatprep.subr.mxu0 0.0
      %3098 = vmatpush1.msra.mxu0 %v2911
      %3099 = vmatprep.subr.mxu0 0.0
      %3100 = vmatpush1.msra.mxu0 %v2912
      %3101 = vmatprep.mubr.f32.mxu0 %v3034
      %3102 = vmatmul.mubr.f32.gmra.mrb[0].mxu0 %v3033
      %v3103 = vpop.f32.mrb[0].mxu0
      %v3104 = vadd.f32 %v3023, %v3103
      %v3105 = vpop.f32.mrb[0].mxu0
      %3106 = vdwg.mxu0
      %v3107 = vld [vmem:[%s5] sm:$0x1]
      %v3109 = vlaneseq
      %v3110 = vshrl.u32 %v3109, 7
      %v3111 = vsub.s32 0, %v3110
      %v3112 = vrot.slane %v3107, %v3111
      %v3114 = vadd.f32 %v3104, %v3112
      %v3115 = vmul.f32 %v3114, 0.1
      %vm3116 = vcmask 50176
      %v3117 = vsel %vm3116, %v3115, -inf
      %3118 = vmax.xlane.f32.xlu0 %v3117
      %v3119 = vpop.xlane.xlu0 %3118
      %v3120 = vsub.f32 %v3115, %v3119
      %v3121 = vmul.f32 %v3120, 1.442695
      %v3122 = vpow.pop %v3121
      %v3123 = vsel %vm3116, %v3122, 0.0
      %3124 = vadd.xlane.f32.xlu0 %v3123
      %v3125 = vpop.xlane.xlu0 %3124
      %v3126 = vrcp.pop %v3125
      %v3127 = vmul.f32 %v3122, %v3126
      %3128 = vst.msk [vmem:[#allocation4] sm:$0x3] %vm3116, %v3127
    $region33: #{rate_predictor_forward.3} parent=1 // pred_fallthru
      _
    // Predicated region
    $region34: #{rate_predictor_forward.3} parent=1 // pred_check
      _
    $region35: #{rate_predictor_forward.3} parent=1 // pred_check_branch
      %3130 = sbr.rel (0) target = $region37
    $region36: #{rate_predictor_forward.3} parent=1 // pred_region
      %s3132 = ssub.s32 32, 32
      %3133 = vsyncadd [#allocation5], %s3132
      %s3135 = sshll.u32 [#allocation4], 4
      %s3136 = int_to_ptr.vmem [resolvable:$true] %s3135
      %3138 = dma.vmem_to_hbm [thread:$0]  %s3136, 32, %s6, [#allocation5]
    $region37: #{rate_predictor_forward.3} parent=1 // pred_fallthru
      _
    // Predicated region
    $region38: #{rate_predictor_forward.3} parent=1 // pred_check
      _
    $region39: #{rate_predictor_forward.3} parent=1 // pred_check_branch
      %3140 = sbr.rel (0) target = $region41
    $region40: #{rate_predictor_forward.3} parent=1 // pred_region
      %3141 = dma.done [#allocation5], 32
    $region41: #{rate_predictor_forward.3} parent=1 // pred_fallthru
      _
    %3142 = vsyncpa [#allocation5], 1

</llo_original>
